<compile_context>
chip_gen: v7x
topology: tpu7x:2x2x1
jax: 0.10.0
libtpu: 0.0.40
codegen_flags: <defaults>
</compile_context>

<pallas_src>
import functools

import jax
import jax.numpy as jnp
from jax.experimental import pallas as pl
from jax.experimental.pallas import tpu as pltpu

# ---------------- config (small, CohereConfig-like) ----------------
VOCAB = 256
HIDDEN = 128
N_HEADS = 4
N_KV_HEADS = 4
HEAD_DIM = HIDDEN // N_HEADS          # 32
INTER = 256
N_LAYERS = 4
LAYERS_PER_STEP = 2                   # layer-axis blocking (amortize step cost)
EPS = 1e-5
ROPE_THETA = 10000.0
SEQ = 128                             # token tile; multiple of 16, fills MXU rows

Q_SIZE = N_HEADS * HEAD_DIM           # 128
KV_SIZE = N_KV_HEADS * HEAD_DIM       # 128
QKV_OUT = Q_SIZE + 2 * KV_SIZE        # 384
ROT_OUT = Q_SIZE + KV_SIZE            # 256
FUSED_OUT = QKV_OUT + ROT_OUT + 2 * INTER   # 1152

assert N_HEADS % N_KV_HEADS == 0
assert N_LAYERS % LAYERS_PER_STEP == 0
assert SEQ % 16 == 0


# ---------------- fused whole-model Pallas kernel ----------------
def _cohere_layers_kernel(
    # inputs (constant across layers)
    h0_ref, cos_ref, sin_ref, fln_ref,
    # per-layer stacked weights (leading dim = LAYERS_PER_STEP per block)
    ln_ref, fused_ref, ow_ref, dw_ref,
    # output
    out_ref,
    # scratch
    h_scr,
    *, layers_per_step, n_heads, n_kv_heads, head_dim, inter, eps):
  step = pl.program_id(0)

  @pl.when(step == 0)
  def _():
    h_scr[...] = h0_ref[...]

  T = h0_ref.shape[0]
  q_size = n_heads * head_dim
  kv_size = n_kv_heads * head_dim
  qkv_out = q_size + 2 * kv_size
  rot_out = q_size + kv_size

  cos = cos_ref[...]                               # (T, q_size) f32
  sin = sin_ref[...]

  # Additive causal bias, built once per grid step (shared by all layers).
  row = jax.lax.broadcasted_iota(jnp.int32, (T, T), 0)
  col = jax.lax.broadcasted_iota(jnp.int32, (T, T), 1)
  mask_bias = jnp.where(col <= row, 0.0, -1e30).astype(jnp.float32)

  contract_last = (((1,), (1,)), ((), ()))         # q @ k^T without transpose
  group = n_heads // n_kv_heads

  h = h_scr[...]                                   # (T, H) f32 residual stream

  for l in range(layers_per_step):                 # small static unroll (2)
    # ---- input LayerNorm (no bias) ----
    mean = jnp.mean(h, axis=-1, keepdims=True)
    c = h - mean
    var = jnp.mean(c * c, axis=-1, keepdims=True)
    xn = c * jax.lax.rsqrt(var + eps) * ln_ref[l]  # ln_ref[l]: (1, H)
    xb = xn.astype(jnp.bfloat16)

    # ---- ONE fused projection: [q|k|v | q_rot|k_rot | gate|up] ----
    fused = jnp.dot(xb, fused_ref[l],
                    preferred_element_type=jnp.float32)        # (T, 1152)

    q = fused[:, :q_size]                          # scale already folded in
    k = fused[:, q_size:q_size + kv_size]
    v = fused[:, q_size + kv_size:qkv_out]
    q_rot = fused[:, qkv_out:qkv_out + q_size]
    k_rot = fused[:, qkv_out + q_size:qkv_out + rot_out]
    gate = fused[:, qkv_out + rot_out:qkv_out + rot_out + inter]
    up = fused[:, qkv_out + rot_out + inter:]

    # ---- GPT-J interleaved RoPE, pure elementwise (pair-swap + sign is
    #      folded into the rotated weight columns) ----
    q = q * cos + q_rot * sin
    k = k * cos[:, :kv_size] + k_rot * sin[:, :kv_size]

    # ---- causal attention: per-head softmax, outputs concatenated
    #      lane-locally, then ONE K=128 o_proj matmul ----
    head_outs = []
    for hd in range(n_heads):
      kv_h = hd // group
      qh = q[:, hd * head_dim:(hd + 1) * head_dim].astype(jnp.bfloat16)
      kh = k[:, kv_h * head_dim:(kv_h + 1) * head_dim].astype(jnp.bfloat16)
      vh = v[:, kv_h * head_dim:(kv_h + 1) * head_dim].astype(jnp.bfloat16)

      s = jax.lax.dot_general(qh, kh, contract_last,
                              preferred_element_type=jnp.float32)
      s = s + mask_bias                            # additive mask, f32
      m = jnp.max(s, axis=-1, keepdims=True)
      p = jnp.exp(s - m)
      denom = jnp.sum(p, axis=-1, keepdims=True)
      oh = jnp.dot(p.astype(jnp.bfloat16), vh,
                   preferred_element_type=jnp.float32)
      head_outs.append(oh * pl.reciprocal(denom, approx=True))

    attn_cat = jnp.concatenate(head_outs, axis=-1).astype(jnp.bfloat16)  # (T, q_size)
    attn_out = jnp.dot(attn_cat, ow_ref[l],
                       preferred_element_type=jnp.float32)               # (T, H)

    # ---- MLP (SiLU(gate) * up -> down), reusing the fused projection ----
    act = gate * jax.nn.sigmoid(gate) * up
    mlp_out = jnp.dot(act.astype(jnp.bfloat16), dw_ref[l],
                      preferred_element_type=jnp.float32)

    # ---- Cohere parallel residual: h = residual + attn + mlp ----
    h = h + attn_out + mlp_out

  h_scr[...] = h

  # ---- final LayerNorm, written once (lane-dense (T, 128) block) ----
  @pl.when(step == pl.num_programs(0) - 1)
  def _():
    mean2 = jnp.mean(h, axis=-1, keepdims=True)
    c2 = h - mean2
    var2 = jnp.mean(c2 * c2, axis=-1, keepdims=True)
    out_ref[...] = (c2 * jax.lax.rsqrt(var2 + eps)
                    * fln_ref[...]).astype(out_ref.dtype)


def cohere_model(params, input_ids, positions):
  # embed_tokens (gather is glue, not a hot path)
  h0 = jnp.take(params["embed"], input_ids, axis=0)                  # (T, H) f32
  T = h0.shape[0]

  cos, sin = _rope_tables(positions, N_HEADS, HEAD_DIM, ROPE_THETA)  # (T, q_size)

  lps = LAYERS_PER_STEP
  grid_spec = pltpu.PrefetchScalarGridSpec(
      num_scalar_prefetch=0,
      grid=(N_LAYERS // lps,),
      in_specs=[
          pl.BlockSpec((T, HIDDEN), lambda s: (0, 0)),               # h0
          pl.BlockSpec((T, Q_SIZE), lambda s: (0, 0)),               # cos
          pl.BlockSpec((T, Q_SIZE), lambda s: (0, 0)),               # sin
          pl.BlockSpec((1, HIDDEN), lambda s: (0, 0)),               # final ln w
          pl.BlockSpec((lps, 1, HIDDEN), lambda s: (s, 0, 0)),       # ln_w
          pl.BlockSpec((lps, HIDDEN, FUSED_OUT), lambda s: (s, 0, 0)),  # fused w
          pl.BlockSpec((lps, Q_SIZE, HIDDEN), lambda s: (s, 0, 0)),  # o_w
          pl.BlockSpec((lps, INTER, HIDDEN), lambda s: (s, 0, 0)),   # down_w
      ],
      out_specs=pl.BlockSpec((T, HIDDEN), lambda s: (0, 0)),
      scratch_shapes=[pltpu.VMEM((T, HIDDEN), jnp.float32)],
  )

  kernel = functools.partial(
      _cohere_layers_kernel,
      layers_per_step=lps, n_heads=N_HEADS, n_kv_heads=N_KV_HEADS,
      head_dim=HEAD_DIM, inter=INTER, eps=EPS)

  return pl.pallas_call(
      kernel,
      out_shape=jax.ShapeDtypeStruct((T, HIDDEN), jnp.float32),
      grid_spec=grid_spec,
      # Layer axis carries state in VMEM scratch -> must be sequential.
      compiler_params=pltpu.CompilerParams(
          dimension_semantics=("arbitrary",)),
  )(h0, cos, sin, params["final_ln_w"],
    params["ln_w"], params["fused_w"], params["o_w"], params["down_w"])


# ---------------- JAX-side preprocessing (weights / tables) ----------------
def _rope_tables(positions, n_heads, head_dim, theta):
  """cos/sin per (token, lane) for GPT-J interleaved RoPE, rotary_dim==head_dim."""
  half = head_dim // 2
  inv_freq = 1.0 / (theta ** (jnp.arange(half, dtype=jnp.float32) * 2.0 / head_dim))
  freqs = positions.astype(jnp.float32)[:, None] * inv_freq[None, :]   # (T, half)
  freqs_il = jnp.repeat(freqs, 2, axis=-1)                             # lane 2i,2i+1 -> freq i
  cos = jnp.tile(jnp.cos(freqs_il), (1, n_heads))                      # (T, n_heads*head_dim)
  sin = jnp.tile(jnp.sin(freqs_il), (1, n_heads))
  return cos, sin


def _make_rot_weight(w):
  """Columns pair-swapped with sign: col 2i -> -w[:,2i+1], col 2i+1 -> w[:,2i].

  Then (x @ w_rot) gives the "rotate_half" companion of (x @ w) for interleaved
  RoPE, so no lane shuffles are needed inside the kernel.
  """
  H, N = w.shape
  wr = w.reshape(H, N // 2, 2)
  w_even = wr[..., 0]
  w_odd = wr[..., 1]
  return jnp.stack([-w_odd, w_even], axis=-1).reshape(H, N)


def init_params(key):
  keys = jax.random.split(key, 1 + N_LAYERS)
  wscale = 0.02
  scale = HEAD_DIM ** -0.5

  embed = jax.random.normal(keys[0], (VOCAB, HIDDEN), jnp.float32) * wscale

  ln_w, fused_w, o_w, dn_w = [], [], [], []
  for i in range(N_LAYERS):
    k = jax.random.split(keys[1 + i], 4)
    w_qkv = jax.random.normal(k[0], (HIDDEN, QKV_OUT), jnp.float32) * wscale
    w_o = jax.random.normal(k[1], (Q_SIZE, HIDDEN), jnp.float32) * wscale
    w_gu = jax.random.normal(k[2], (HIDDEN, 2 * INTER), jnp.float32) * wscale
    w_dn = jax.random.normal(k[3], (INTER, HIDDEN), jnp.float32) * wscale

    # Fold softmax scale into the q columns (and their rotated companions).
    w_q = w_qkv[:, :Q_SIZE] * scale
    w_k = w_qkv[:, Q_SIZE:Q_SIZE + KV_SIZE]
    w_v = w_qkv[:, Q_SIZE + KV_SIZE:]
    w_rot = jnp.concatenate(
        [_make_rot_weight(w_q), _make_rot_weight(w_k)], axis=1)         # (H, q+kv)
    # Fused xb-side projection: [q | k | v | q_rot | k_rot | gate_up]
    w_fused = jnp.concatenate([w_q, w_k, w_v, w_rot, w_gu], axis=1)     # (H, 1152)

    ln_w.append(jnp.ones((1, HIDDEN), jnp.float32))
    fused_w.append(w_fused.astype(jnp.bfloat16))
    o_w.append(w_o.astype(jnp.bfloat16))
    dn_w.append(w_dn.astype(jnp.bfloat16))

  return {
      "embed": embed,
      "final_ln_w": jnp.ones((1, HIDDEN), jnp.float32),
      "ln_w": jnp.stack(ln_w),          # (L, 1, H)          f32
      "fused_w": jnp.stack(fused_w),    # (L, H, 1152)       bf16
      "o_w": jnp.stack(o_w),            # (L, q, H)          bf16
      "down_w": jnp.stack(dn_w),        # (L, I, H)          bf16
  }


if __name__ == "__main__":
  key = jax.random.PRNGKey(0)
  pkey, ikey = jax.random.split(key)
  params = init_params(pkey)
  input_ids = jax.random.randint(ikey, (SEQ,), 0, VOCAB, dtype=jnp.int32)
  positions = jnp.arange(SEQ, dtype=jnp.int32)

  out = jax.jit(cohere_model)(params, input_ids, positions)
  jax.block_until_ready(out)
  assert out.shape == (SEQ, HIDDEN) and bool(jnp.all(jnp.isfinite(out)))
  print("KERNEL_OK")
</pallas_src>

<mosaic_0001>
module attributes {stable_mosaic.version = 11 : i64} {
  func.func @_cohere_layers_kernel(%arg0: i32, %arg1: memref<128x128xf32, #tpu.memory_space<vmem>>, %arg2: memref<128x128xf32, #tpu.memory_space<vmem>>, %arg3: memref<128x128xf32, #tpu.memory_space<vmem>>, %arg4: memref<1x128xf32, #tpu.memory_space<vmem>>, %arg5: memref<2x1x128xf32, #tpu.memory_space<vmem>>, %arg6: memref<2x128x1152xbf16, #tpu.memory_space<vmem>>, %arg7: memref<2x128x128xbf16, #tpu.memory_space<vmem>>, %arg8: memref<2x256x128xbf16, #tpu.memory_space<vmem>>, %arg9: memref<128x128xf32, #tpu.memory_space<vmem>>, %arg10: memref<128x128xf32, #tpu.memory_space<vmem>>) attributes {dimension_semantics = [#tpu.dimension_semantics<arbitrary>], iteration_bounds = array<i64: 2>, scalar_prefetch = 0 : i64, scratch_operands = 1 : i64, tpu.core_type = #tpu.core_type<tc>, window_params = [{pipeline_mode = #tpu.pipeline_mode<synchronous>, transform_indices = @transform_0, window_bounds = array<i64: 128, 128>}, {pipeline_mode = #tpu.pipeline_mode<synchronous>, transform_indices = @transform_1, window_bounds = array<i64: 128, 128>}, {pipeline_mode = #tpu.pipeline_mode<synchronous>, transform_indices = @transform_2, window_bounds = array<i64: 128, 128>}, {pipeline_mode = #tpu.pipeline_mode<synchronous>, transform_indices = @transform_3, window_bounds = array<i64: 1, 128>}, {transform_indices = @transform_4, window_bounds = array<i64: 2, 1, 128>}, {transform_indices = @transform_5, window_bounds = array<i64: 2, 128, 1152>}, {transform_indices = @transform_6, window_bounds = array<i64: 2, 128, 128>}, {transform_indices = @transform_7, window_bounds = array<i64: 2, 256, 128>}, {pipeline_mode = #tpu.pipeline_mode<synchronous>, transform_indices = @transform_8, window_bounds = array<i64: 128, 128>}]} {
    %c0_i32 = arith.constant 0 : i32
    %0 = arith.cmpi eq, %arg0, %c0_i32 : i32
    %1 = arith.extui %0 : i1 to i32
    %c0_i32_0 = arith.constant 0 : i32
    %2 = arith.cmpi ne, %1, %c0_i32_0 : i32
    scf.if %2 {
      %c0_83 = arith.constant 0 : index
      %c0_84 = arith.constant 0 : index
      %286 = vector.load %arg1[%c0_83, %c0_84] : memref<128x128xf32, #tpu.memory_space<vmem>>, vector<128x128xf32>
      %c0_85 = arith.constant 0 : index
      %c0_86 = arith.constant 0 : index
      %287 = vector.load %arg10[%c0_85, %c0_86] : memref<128x128xf32, #tpu.memory_space<vmem>>, vector<128x128xf32>
      tpu.vector_store %arg10[%c0_85, %c0_86], %286 {strides = array<i32>} : memref<128x128xf32, #tpu.memory_space<vmem>>, vector<128x128xf32>,
    } else {
    }
    %c0 = arith.constant 0 : index
    %c0_1 = arith.constant 0 : index
    %3 = vector.load %arg2[%c0, %c0_1] : memref<128x128xf32, #tpu.memory_space<vmem>>, vector<128x128xf32>
    %c0_2 = arith.constant 0 : index
    %c0_3 = arith.constant 0 : index
    %4 = vector.load %arg3[%c0_2, %c0_3] : memref<128x128xf32, #tpu.memory_space<vmem>>, vector<128x128xf32>
    %5 = tpu.iota {dimensions = array<i32: 0>} : vector<128x128xi32>
    %6 = tpu.iota {dimensions = array<i32: 1>} : vector<128x128xi32>
    %7 = arith.cmpi sle, %6, %5 : vector<128x128xi32>
    %cst = arith.constant 0.000000e+00 : f32
    %cst_4 = arith.constant -1.000000e+30 : f32
    %8 = vector.broadcast %cst : f32 to vector<128x128xf32>
    %9 = vector.broadcast %cst_4 : f32 to vector<128x128xf32>
    %10 = arith.select %7, %8, %9 : vector<128x128xi1>, vector<128x128xf32>
    %c0_5 = arith.constant 0 : index
    %c0_6 = arith.constant 0 : index
    %11 = vector.load %arg10[%c0_5, %c0_6] : memref<128x128xf32, #tpu.memory_space<vmem>>, vector<128x128xf32>
    %cst_7 = arith.constant dense<0.000000e+00> : vector<128xf32>
    %12 = vector.multi_reduction <add>, %11, %cst_7 [1] : vector<128x128xf32> to vector<128xf32>
    %13 = vector.shape_cast %12 : vector<128xf32> to vector<128x1xf32>
    %cst_8 = arith.constant 1.280000e+02 : f32
    %14 = vector.broadcast %cst_8 : f32 to vector<128x1xf32>
    %15 = arith.divf %13, %14 : vector<128x1xf32>
    %16 = vector.broadcast %15 : vector<128x1xf32> to vector<128x128xf32>
    %17 = arith.subf %11, %16 : vector<128x128xf32>
    %18 = arith.mulf %17, %17 : vector<128x128xf32>
    %cst_9 = arith.constant dense<0.000000e+00> : vector<128xf32>
    %19 = vector.multi_reduction <add>, %18, %cst_9 [1] : vector<128x128xf32> to vector<128xf32>
    %20 = vector.shape_cast %19 : vector<128xf32> to vector<128x1xf32>
    %cst_10 = arith.constant 1.280000e+02 : f32
    %21 = vector.broadcast %cst_10 : f32 to vector<128x1xf32>
    %22 = arith.divf %20, %21 : vector<128x1xf32>
    %cst_11 = arith.constant 9.99999974E-6 : f32
    %23 = vector.broadcast %cst_11 : f32 to vector<128x1xf32>
    %24 = arith.addf %22, %23 : vector<128x1xf32>
    %25 = math.rsqrt %24 : vector<128x1xf32>
    %26 = vector.broadcast %25 : vector<128x1xf32> to vector<128x128xf32>
    %27 = arith.mulf %17, %26 : vector<128x128xf32>
    %c0_12 = arith.constant 0 : index
    %c0_13 = arith.constant 0 : index
    %c0_14 = arith.constant 0 : index
    %28 = vector.load %arg5[%c0_12, %c0_13, %c0_14] : memref<2x1x128xf32, #tpu.memory_space<vmem>>, vector<1x1x128xf32>
    %29 = vector.shape_cast %28 : vector<1x1x128xf32> to vector<1x128xf32>
    %30 = vector.broadcast %29 : vector<1x128xf32> to vector<128x128xf32>
    %31 = arith.mulf %27, %30 : vector<128x128xf32>
    %32 = arith.truncf %31 : vector<128x128xf32> to vector<128x128xbf16>
    %c0_15 = arith.constant 0 : index
    %c0_16 = arith.constant 0 : index
    %c0_17 = arith.constant 0 : index
    %33 = vector.load %arg6[%c0_15, %c0_16, %c0_17] : memref<2x128x1152xbf16, #tpu.memory_space<vmem>>, vector<1x128x1152xbf16>
    %34 = vector.shape_cast %33 : vector<1x128x1152xbf16> to vector<128x1152xbf16>
    %cst_18 = arith.constant dense<0.000000e+00> : vector<128x1152xf32>
    %35 = tpu.matmul %32, %34, %cst_18 {dimension_numbers = #tpu.dot_dimension_numbers<[1], [0], [0], [1], [0, 0, 1, 1], [], []>} : vector<128x128xbf16>, vector<128x1152xbf16>, vector<128x1152xf32> -> vector<128x1152xf32>
    %36 = vector.extract_strided_slice %35 {offsets = [0, 0], sizes = [128, 128], strides = [1, 1]} : vector<128x1152xf32> to vector<128x128xf32>
    %37 = vector.extract_strided_slice %35 {offsets = [0, 128], sizes = [128, 128], strides = [1, 1]} : vector<128x1152xf32> to vector<128x128xf32>
    %38 = vector.extract_strided_slice %35 {offsets = [0, 256], sizes = [128, 128], strides = [1, 1]} : vector<128x1152xf32> to vector<128x128xf32>
    %39 = vector.extract_strided_slice %35 {offsets = [0, 384], sizes = [128, 128], strides = [1, 1]} : vector<128x1152xf32> to vector<128x128xf32>
    %40 = vector.extract_strided_slice %35 {offsets = [0, 512], sizes = [128, 128], strides = [1, 1]} : vector<128x1152xf32> to vector<128x128xf32>
    %41 = vector.extract_strided_slice %35 {offsets = [0, 640], sizes = [128, 256], strides = [1, 1]} : vector<128x1152xf32> to vector<128x256xf32>
    %42 = vector.extract_strided_slice %35 {offsets = [0, 896], sizes = [128, 256], strides = [1, 1]} : vector<128x1152xf32> to vector<128x256xf32>
    %43 = arith.mulf %36, %3 : vector<128x128xf32>
    %44 = arith.mulf %39, %4 : vector<128x128xf32>
    %45 = arith.addf %43, %44 : vector<128x128xf32>
    %46 = arith.mulf %37, %3 : vector<128x128xf32>
    %47 = arith.mulf %40, %4 : vector<128x128xf32>
    %48 = arith.addf %46, %47 : vector<128x128xf32>
    %49 = vector.extract_strided_slice %45 {offsets = [0, 0], sizes = [128, 32], strides = [1, 1]} : vector<128x128xf32> to vector<128x32xf32>
    %50 = arith.truncf %49 : vector<128x32xf32> to vector<128x32xbf16>
    %51 = vector.extract_strided_slice %48 {offsets = [0, 0], sizes = [128, 32], strides = [1, 1]} : vector<128x128xf32> to vector<128x32xf32>
    %52 = arith.truncf %51 : vector<128x32xf32> to vector<128x32xbf16>
    %53 = vector.extract_strided_slice %38 {offsets = [0, 0], sizes = [128, 32], strides = [1, 1]} : vector<128x128xf32> to vector<128x32xf32>
    %54 = arith.truncf %53 : vector<128x32xf32> to vector<128x32xbf16>
    %cst_19 = arith.constant dense<0.000000e+00> : vector<128x128xf32>
    %55 = tpu.matmul %50, %52, %cst_19 {dimension_numbers = #tpu.dot_dimension_numbers<[1], [1], [0], [0], [0, 0, 1, 0], [], []>} : vector<128x32xbf16>, vector<128x32xbf16>, vector<128x128xf32> -> vector<128x128xf32>
    %56 = arith.addf %55, %10 : vector<128x128xf32>
    %cst_20 = arith.constant dense<0xFF800000> : vector<128xf32>
    %57 = vector.multi_reduction <maximumf>, %56, %cst_20 [1] : vector<128x128xf32> to vector<128xf32>
    %58 = vector.shape_cast %57 : vector<128xf32> to vector<128x1xf32>
    %59 = vector.broadcast %58 : vector<128x1xf32> to vector<128x128xf32>
    %60 = arith.subf %56, %59 : vector<128x128xf32>
    %61 = math.exp %60 : vector<128x128xf32>
    %cst_21 = arith.constant dense<0.000000e+00> : vector<128xf32>
    %62 = vector.multi_reduction <add>, %61, %cst_21 [1] : vector<128x128xf32> to vector<128xf32>
    %63 = vector.shape_cast %62 : vector<128xf32> to vector<128x1xf32>
    %64 = arith.truncf %61 : vector<128x128xf32> to vector<128x128xbf16>
    %cst_22 = arith.constant dense<0.000000e+00> : vector<128x32xf32>
    %65 = tpu.matmul %64, %54, %cst_22 {dimension_numbers = #tpu.dot_dimension_numbers<[1], [0], [0], [1], [0, 0, 1, 1], [], []>} : vector<128x128xbf16>, vector<128x32xbf16>, vector<128x32xf32> -> vector<128x32xf32>
    %66 = tpu.reciprocal %63 {approx = true} : vector<128x1xf32> -> vector<128x1xf32>
    %67 = vector.broadcast %66 : vector<128x1xf32> to vector<128x32xf32>
    %68 = arith.mulf %65, %67 : vector<128x32xf32>
    %69 = vector.extract_strided_slice %45 {offsets = [0, 32], sizes = [128, 32], strides = [1, 1]} : vector<128x128xf32> to vector<128x32xf32>
    %70 = arith.truncf %69 : vector<128x32xf32> to vector<128x32xbf16>
    %71 = vector.extract_strided_slice %48 {offsets = [0, 32], sizes = [128, 32], strides = [1, 1]} : vector<128x128xf32> to vector<128x32xf32>
    %72 = arith.truncf %71 : vector<128x32xf32> to vector<128x32xbf16>
    %73 = vector.extract_strided_slice %38 {offsets = [0, 32], sizes = [128, 32], strides = [1, 1]} : vector<128x128xf32> to vector<128x32xf32>
    %74 = arith.truncf %73 : vector<128x32xf32> to vector<128x32xbf16>
    %cst_23 = arith.constant dense<0.000000e+00> : vector<128x128xf32>
    %75 = tpu.matmul %70, %72, %cst_23 {dimension_numbers = #tpu.dot_dimension_numbers<[1], [1], [0], [0], [0, 0, 1, 0], [], []>} : vector<128x32xbf16>, vector<128x32xbf16>, vector<128x128xf32> -> vector<128x128xf32>
    %76 = arith.addf %75, %10 : vector<128x128xf32>
    %cst_24 = arith.constant dense<0xFF800000> : vector<128xf32>
    %77 = vector.multi_reduction <maximumf>, %76, %cst_24 [1] : vector<128x128xf32> to vector<128xf32>
    %78 = vector.shape_cast %77 : vector<128xf32> to vector<128x1xf32>
    %79 = vector.broadcast %78 : vector<128x1xf32> to vector<128x128xf32>
    %80 = arith.subf %76, %79 : vector<128x128xf32>
    %81 = math.exp %80 : vector<128x128xf32>
    %cst_25 = arith.constant dense<0.000000e+00> : vector<128xf32>
    %82 = vector.multi_reduction <add>, %81, %cst_25 [1] : vector<128x128xf32> to vector<128xf32>
    %83 = vector.shape_cast %82 : vector<128xf32> to vector<128x1xf32>
    %84 = arith.truncf %81 : vector<128x128xf32> to vector<128x128xbf16>
    %cst_26 = arith.constant dense<0.000000e+00> : vector<128x32xf32>
    %85 = tpu.matmul %84, %74, %cst_26 {dimension_numbers = #tpu.dot_dimension_numbers<[1], [0], [0], [1], [0, 0, 1, 1], [], []>} : vector<128x128xbf16>, vector<128x32xbf16>, vector<128x32xf32> -> vector<128x32xf32>
    %86 = tpu.reciprocal %83 {approx = true} : vector<128x1xf32> -> vector<128x1xf32>
    %87 = vector.broadcast %86 : vector<128x1xf32> to vector<128x32xf32>
    %88 = arith.mulf %85, %87 : vector<128x32xf32>
    %89 = vector.extract_strided_slice %45 {offsets = [0, 64], sizes = [128, 32], strides = [1, 1]} : vector<128x128xf32> to vector<128x32xf32>
    %90 = arith.truncf %89 : vector<128x32xf32> to vector<128x32xbf16>
    %91 = vector.extract_strided_slice %48 {offsets = [0, 64], sizes = [128, 32], strides = [1, 1]} : vector<128x128xf32> to vector<128x32xf32>
    %92 = arith.truncf %91 : vector<128x32xf32> to vector<128x32xbf16>
    %93 = vector.extract_strided_slice %38 {offsets = [0, 64], sizes = [128, 32], strides = [1, 1]} : vector<128x128xf32> to vector<128x32xf32>
    %94 = arith.truncf %93 : vector<128x32xf32> to vector<128x32xbf16>
    %cst_27 = arith.constant dense<0.000000e+00> : vector<128x128xf32>
    %95 = tpu.matmul %90, %92, %cst_27 {dimension_numbers = #tpu.dot_dimension_numbers<[1], [1], [0], [0], [0, 0, 1, 0], [], []>} : vector<128x32xbf16>, vector<128x32xbf16>, vector<128x128xf32> -> vector<128x128xf32>
    %96 = arith.addf %95, %10 : vector<128x128xf32>
    %cst_28 = arith.constant dense<0xFF800000> : vector<128xf32>
    %97 = vector.multi_reduction <maximumf>, %96, %cst_28 [1] : vector<128x128xf32> to vector<128xf32>
    %98 = vector.shape_cast %97 : vector<128xf32> to vector<128x1xf32>
    %99 = vector.broadcast %98 : vector<128x1xf32> to vector<128x128xf32>
    %100 = arith.subf %96, %99 : vector<128x128xf32>
    %101 = math.exp %100 : vector<128x128xf32>
    %cst_29 = arith.constant dense<0.000000e+00> : vector<128xf32>
    %102 = vector.multi_reduction <add>, %101, %cst_29 [1] : vector<128x128xf32> to vector<128xf32>
    %103 = vector.shape_cast %102 : vector<128xf32> to vector<128x1xf32>
    %104 = arith.truncf %101 : vector<128x128xf32> to vector<128x128xbf16>
    %cst_30 = arith.constant dense<0.000000e+00> : vector<128x32xf32>
    %105 = tpu.matmul %104, %94, %cst_30 {dimension_numbers = #tpu.dot_dimension_numbers<[1], [0], [0], [1], [0, 0, 1, 1], [], []>} : vector<128x128xbf16>, vector<128x32xbf16>, vector<128x32xf32> -> vector<128x32xf32>
    %106 = tpu.reciprocal %103 {approx = true} : vector<128x1xf32> -> vector<128x1xf32>
    %107 = vector.broadcast %106 : vector<128x1xf32> to vector<128x32xf32>
    %108 = arith.mulf %105, %107 : vector<128x32xf32>
    %109 = vector.extract_strided_slice %45 {offsets = [0, 96], sizes = [128, 32], strides = [1, 1]} : vector<128x128xf32> to vector<128x32xf32>
    %110 = arith.truncf %109 : vector<128x32xf32> to vector<128x32xbf16>
    %111 = vector.extract_strided_slice %48 {offsets = [0, 96], sizes = [128, 32], strides = [1, 1]} : vector<128x128xf32> to vector<128x32xf32>
    %112 = arith.truncf %111 : vector<128x32xf32> to vector<128x32xbf16>
    %113 = vector.extract_strided_slice %38 {offsets = [0, 96], sizes = [128, 32], strides = [1, 1]} : vector<128x128xf32> to vector<128x32xf32>
    %114 = arith.truncf %113 : vector<128x32xf32> to vector<128x32xbf16>
    %cst_31 = arith.constant dense<0.000000e+00> : vector<128x128xf32>
    %115 = tpu.matmul %110, %112, %cst_31 {dimension_numbers = #tpu.dot_dimension_numbers<[1], [1], [0], [0], [0, 0, 1, 0], [], []>} : vector<128x32xbf16>, vector<128x32xbf16>, vector<128x128xf32> -> vector<128x128xf32>
    %116 = arith.addf %115, %10 : vector<128x128xf32>
    %cst_32 = arith.constant dense<0xFF800000> : vector<128xf32>
    %117 = vector.multi_reduction <maximumf>, %116, %cst_32 [1] : vector<128x128xf32> to vector<128xf32>
    %118 = vector.shape_cast %117 : vector<128xf32> to vector<128x1xf32>
    %119 = vector.broadcast %118 : vector<128x1xf32> to vector<128x128xf32>
    %120 = arith.subf %116, %119 : vector<128x128xf32>
    %121 = math.exp %120 : vector<128x128xf32>
    %cst_33 = arith.constant dense<0.000000e+00> : vector<128xf32>
    %122 = vector.multi_reduction <add>, %121, %cst_33 [1] : vector<128x128xf32> to vector<128xf32>
    %123 = vector.shape_cast %122 : vector<128xf32> to vector<128x1xf32>
    %124 = arith.truncf %121 : vector<128x128xf32> to vector<128x128xbf16>
    %cst_34 = arith.constant dense<0.000000e+00> : vector<128x32xf32>
    %125 = tpu.matmul %124, %114, %cst_34 {dimension_numbers = #tpu.dot_dimension_numbers<[1], [0], [0], [1], [0, 0, 1, 1], [], []>} : vector<128x128xbf16>, vector<128x32xbf16>, vector<128x32xf32> -> vector<128x32xf32>
    %126 = tpu.reciprocal %123 {approx = true} : vector<128x1xf32> -> vector<128x1xf32>
    %127 = vector.broadcast %126 : vector<128x1xf32> to vector<128x32xf32>
    %128 = arith.mulf %125, %127 : vector<128x32xf32>
    %129 = tpu.concatenate %68, %88, %108, %128 in 1 : vector<128x32xf32>, vector<128x32xf32>, vector<128x32xf32>, vector<128x32xf32> -> vector<128x128xf32>
    %130 = arith.truncf %129 : vector<128x128xf32> to vector<128x128xbf16>
    %c0_35 = arith.constant 0 : index
    %c0_36 = arith.constant 0 : index
    %c0_37 = arith.constant 0 : index
    %131 = vector.load %arg7[%c0_35, %c0_36, %c0_37] : memref<2x128x128xbf16, #tpu.memory_space<vmem>>, vector<1x128x128xbf16>
    %132 = vector.shape_cast %131 : vector<1x128x128xbf16> to vector<128x128xbf16>
    %cst_38 = arith.constant dense<0.000000e+00> : vector<128x128xf32>
    %133 = tpu.matmul %130, %132, %cst_38 {dimension_numbers = #tpu.dot_dimension_numbers<[1], [0], [0], [1], [0, 0, 1, 1], [], []>} : vector<128x128xbf16>, vector<128x128xbf16>, vector<128x128xf32> -> vector<128x128xf32>
    %134 = arith.negf %41 : vector<128x256xf32>
    %135 = math.exp %134 : vector<128x256xf32>
    %cst_39 = arith.constant 1.000000e+00 : f32
    %136 = vector.broadcast %cst_39 : f32 to vector<128x256xf32>
    %137 = arith.addf %136, %135 : vector<128x256xf32>
    %138 = arith.divf %136, %137 : vector<128x256xf32>
    %139 = arith.mulf %41, %138 : vector<128x256xf32>
    %140 = arith.mulf %139, %42 : vector<128x256xf32>
    %141 = arith.truncf %140 : vector<128x256xf32> to vector<128x256xbf16>
    %c0_40 = arith.constant 0 : index
    %c0_41 = arith.constant 0 : index
    %c0_42 = arith.constant 0 : index
    %142 = vector.load %arg8[%c0_40, %c0_41, %c0_42] : memref<2x256x128xbf16, #tpu.memory_space<vmem>>, vector<1x256x128xbf16>
    %143 = vector.shape_cast %142 : vector<1x256x128xbf16> to vector<256x128xbf16>
    %cst_43 = arith.constant dense<0.000000e+00> : vector<128x128xf32>
    %144 = tpu.matmul %141, %143, %cst_43 {dimension_numbers = #tpu.dot_dimension_numbers<[1], [0], [0], [1], [0, 0, 1, 1], [], []>} : vector<128x256xbf16>, vector<256x128xbf16>, vector<128x128xf32> -> vector<128x128xf32>
    %145 = arith.addf %11, %133 : vector<128x128xf32>
    %146 = arith.addf %145, %144 : vector<128x128xf32>
    %cst_44 = arith.constant dense<0.000000e+00> : vector<128xf32>
    %147 = vector.multi_reduction <add>, %146, %cst_44 [1] : vector<128x128xf32> to vector<128xf32>
    %148 = vector.shape_cast %147 : vector<128xf32> to vector<128x1xf32>
    %cst_45 = arith.constant 1.280000e+02 : f32
    %149 = vector.broadcast %cst_45 : f32 to vector<128x1xf32>
    %150 = arith.divf %148, %149 : vector<128x1xf32>
    %151 = vector.broadcast %150 : vector<128x1xf32> to vector<128x128xf32>
    %152 = arith.subf %146, %151 : vector<128x128xf32>
    %153 = arith.mulf %152, %152 : vector<128x128xf32>
    %cst_46 = arith.constant dense<0.000000e+00> : vector<128xf32>
    %154 = vector.multi_reduction <add>, %153, %cst_46 [1] : vector<128x128xf32> to vector<128xf32>
    %155 = vector.shape_cast %154 : vector<128xf32> to vector<128x1xf32>
    %cst_47 = arith.constant 1.280000e+02 : f32
    %156 = vector.broadcast %cst_47 : f32 to vector<128x1xf32>
    %157 = arith.divf %155, %156 : vector<128x1xf32>
    %cst_48 = arith.constant 9.99999974E-6 : f32
    %158 = vector.broadcast %cst_48 : f32 to vector<128x1xf32>
    %159 = arith.addf %157, %158 : vector<128x1xf32>
    %160 = math.rsqrt %159 : vector<128x1xf32>
    %161 = vector.broadcast %160 : vector<128x1xf32> to vector<128x128xf32>
    %162 = arith.mulf %152, %161 : vector<128x128xf32>
    %c1 = arith.constant 1 : index
    %c0_49 = arith.constant 0 : index
    %c0_50 = arith.constant 0 : index
    %163 = vector.load %arg5[%c1, %c0_49, %c0_50] : memref<2x1x128xf32, #tpu.memory_space<vmem>>, vector<1x1x128xf32>
    %164 = vector.shape_cast %163 : vector<1x1x128xf32> to vector<1x128xf32>
    %165 = vector.broadcast %164 : vector<1x128xf32> to vector<128x128xf32>
    %166 = arith.mulf %162, %165 : vector<128x128xf32>
    %167 = arith.truncf %166 : vector<128x128xf32> to vector<128x128xbf16>
    %c1_51 = arith.constant 1 : index
    %c0_52 = arith.constant 0 : index
    %c0_53 = arith.constant 0 : index
    %168 = vector.load %arg6[%c1_51, %c0_52, %c0_53] : memref<2x128x1152xbf16, #tpu.memory_space<vmem>>, vector<1x128x1152xbf16>
    %169 = vector.shape_cast %168 : vector<1x128x1152xbf16> to vector<128x1152xbf16>
    %cst_54 = arith.constant dense<0.000000e+00> : vector<128x1152xf32>
    %170 = tpu.matmul %167, %169, %cst_54 {dimension_numbers = #tpu.dot_dimension_numbers<[1], [0], [0], [1], [0, 0, 1, 1], [], []>} : vector<128x128xbf16>, vector<128x1152xbf16>, vector<128x1152xf32> -> vector<128x1152xf32>
    %171 = vector.extract_strided_slice %170 {offsets = [0, 0], sizes = [128, 128], strides = [1, 1]} : vector<128x1152xf32> to vector<128x128xf32>
    %172 = vector.extract_strided_slice %170 {offsets = [0, 128], sizes = [128, 128], strides = [1, 1]} : vector<128x1152xf32> to vector<128x128xf32>
    %173 = vector.extract_strided_slice %170 {offsets = [0, 256], sizes = [128, 128], strides = [1, 1]} : vector<128x1152xf32> to vector<128x128xf32>
    %174 = vector.extract_strided_slice %170 {offsets = [0, 384], sizes = [128, 128], strides = [1, 1]} : vector<128x1152xf32> to vector<128x128xf32>
    %175 = vector.extract_strided_slice %170 {offsets = [0, 512], sizes = [128, 128], strides = [1, 1]} : vector<128x1152xf32> to vector<128x128xf32>
    %176 = vector.extract_strided_slice %170 {offsets = [0, 640], sizes = [128, 256], strides = [1, 1]} : vector<128x1152xf32> to vector<128x256xf32>
    %177 = vector.extract_strided_slice %170 {offsets = [0, 896], sizes = [128, 256], strides = [1, 1]} : vector<128x1152xf32> to vector<128x256xf32>
    %178 = arith.mulf %171, %3 : vector<128x128xf32>
    %179 = arith.mulf %174, %4 : vector<128x128xf32>
    %180 = arith.addf %178, %179 : vector<128x128xf32>
    %181 = arith.mulf %172, %3 : vector<128x128xf32>
    %182 = arith.mulf %175, %4 : vector<128x128xf32>
    %183 = arith.addf %181, %182 : vector<128x128xf32>
    %184 = vector.extract_strided_slice %180 {offsets = [0, 0], sizes = [128, 32], strides = [1, 1]} : vector<128x128xf32> to vector<128x32xf32>
    %185 = arith.truncf %184 : vector<128x32xf32> to vector<128x32xbf16>
    %186 = vector.extract_strided_slice %183 {offsets = [0, 0], sizes = [128, 32], strides = [1, 1]} : vector<128x128xf32> to vector<128x32xf32>
    %187 = arith.truncf %186 : vector<128x32xf32> to vector<128x32xbf16>
    %188 = vector.extract_strided_slice %173 {offsets = [0, 0], sizes = [128, 32], strides = [1, 1]} : vector<128x128xf32> to vector<128x32xf32>
    %189 = arith.truncf %188 : vector<128x32xf32> to vector<128x32xbf16>
    %cst_55 = arith.constant dense<0.000000e+00> : vector<128x128xf32>
    %190 = tpu.matmul %185, %187, %cst_55 {dimension_numbers = #tpu.dot_dimension_numbers<[1], [1], [0], [0], [0, 0, 1, 0], [], []>} : vector<128x32xbf16>, vector<128x32xbf16>, vector<128x128xf32> -> vector<128x128xf32>
    %191 = arith.addf %190, %10 : vector<128x128xf32>
    %cst_56 = arith.constant dense<0xFF800000> : vector<128xf32>
    %192 = vector.multi_reduction <maximumf>, %191, %cst_56 [1] : vector<128x128xf32> to vector<128xf32>
    %193 = vector.shape_cast %192 : vector<128xf32> to vector<128x1xf32>
    %194 = vector.broadcast %193 : vector<128x1xf32> to vector<128x128xf32>
    %195 = arith.subf %191, %194 : vector<128x128xf32>
    %196 = math.exp %195 : vector<128x128xf32>
    %cst_57 = arith.constant dense<0.000000e+00> : vector<128xf32>
    %197 = vector.multi_reduction <add>, %196, %cst_57 [1] : vector<128x128xf32> to vector<128xf32>
    %198 = vector.shape_cast %197 : vector<128xf32> to vector<128x1xf32>
    %199 = arith.truncf %196 : vector<128x128xf32> to vector<128x128xbf16>
    %cst_58 = arith.constant dense<0.000000e+00> : vector<128x32xf32>
    %200 = tpu.matmul %199, %189, %cst_58 {dimension_numbers = #tpu.dot_dimension_numbers<[1], [0], [0], [1], [0, 0, 1, 1], [], []>} : vector<128x128xbf16>, vector<128x32xbf16>, vector<128x32xf32> -> vector<128x32xf32>
    %201 = tpu.reciprocal %198 {approx = true} : vector<128x1xf32> -> vector<128x1xf32>
    %202 = vector.broadcast %201 : vector<128x1xf32> to vector<128x32xf32>
    %203 = arith.mulf %200, %202 : vector<128x32xf32>
    %204 = vector.extract_strided_slice %180 {offsets = [0, 32], sizes = [128, 32], strides = [1, 1]} : vector<128x128xf32> to vector<128x32xf32>
    %205 = arith.truncf %204 : vector<128x32xf32> to vector<128x32xbf16>
    %206 = vector.extract_strided_slice %183 {offsets = [0, 32], sizes = [128, 32], strides = [1, 1]} : vector<128x128xf32> to vector<128x32xf32>
    %207 = arith.truncf %206 : vector<128x32xf32> to vector<128x32xbf16>
    %208 = vector.extract_strided_slice %173 {offsets = [0, 32], sizes = [128, 32], strides = [1, 1]} : vector<128x128xf32> to vector<128x32xf32>
    %209 = arith.truncf %208 : vector<128x32xf32> to vector<128x32xbf16>
    %cst_59 = arith.constant dense<0.000000e+00> : vector<128x128xf32>
    %210 = tpu.matmul %205, %207, %cst_59 {dimension_numbers = #tpu.dot_dimension_numbers<[1], [1], [0], [0], [0, 0, 1, 0], [], []>} : vector<128x32xbf16>, vector<128x32xbf16>, vector<128x128xf32> -> vector<128x128xf32>
    %211 = arith.addf %210, %10 : vector<128x128xf32>
    %cst_60 = arith.constant dense<0xFF800000> : vector<128xf32>
    %212 = vector.multi_reduction <maximumf>, %211, %cst_60 [1] : vector<128x128xf32> to vector<128xf32>
    %213 = vector.shape_cast %212 : vector<128xf32> to vector<128x1xf32>
    %214 = vector.broadcast %213 : vector<128x1xf32> to vector<128x128xf32>
    %215 = arith.subf %211, %214 : vector<128x128xf32>
    %216 = math.exp %215 : vector<128x128xf32>
    %cst_61 = arith.constant dense<0.000000e+00> : vector<128xf32>
    %217 = vector.multi_reduction <add>, %216, %cst_61 [1] : vector<128x128xf32> to vector<128xf32>
    %218 = vector.shape_cast %217 : vector<128xf32> to vector<128x1xf32>
    %219 = arith.truncf %216 : vector<128x128xf32> to vector<128x128xbf16>
    %cst_62 = arith.constant dense<0.000000e+00> : vector<128x32xf32>
    %220 = tpu.matmul %219, %209, %cst_62 {dimension_numbers = #tpu.dot_dimension_numbers<[1], [0], [0], [1], [0, 0, 1, 1], [], []>} : vector<128x128xbf16>, vector<128x32xbf16>, vector<128x32xf32> -> vector<128x32xf32>
    %221 = tpu.reciprocal %218 {approx = true} : vector<128x1xf32> -> vector<128x1xf32>
    %222 = vector.broadcast %221 : vector<128x1xf32> to vector<128x32xf32>
    %223 = arith.mulf %220, %222 : vector<128x32xf32>
    %224 = vector.extract_strided_slice %180 {offsets = [0, 64], sizes = [128, 32], strides = [1, 1]} : vector<128x128xf32> to vector<128x32xf32>
    %225 = arith.truncf %224 : vector<128x32xf32> to vector<128x32xbf16>
    %226 = vector.extract_strided_slice %183 {offsets = [0, 64], sizes = [128, 32], strides = [1, 1]} : vector<128x128xf32> to vector<128x32xf32>
    %227 = arith.truncf %226 : vector<128x32xf32> to vector<128x32xbf16>
    %228 = vector.extract_strided_slice %173 {offsets = [0, 64], sizes = [128, 32], strides = [1, 1]} : vector<128x128xf32> to vector<128x32xf32>
    %229 = arith.truncf %228 : vector<128x32xf32> to vector<128x32xbf16>
    %cst_63 = arith.constant dense<0.000000e+00> : vector<128x128xf32>
    %230 = tpu.matmul %225, %227, %cst_63 {dimension_numbers = #tpu.dot_dimension_numbers<[1], [1], [0], [0], [0, 0, 1, 0], [], []>} : vector<128x32xbf16>, vector<128x32xbf16>, vector<128x128xf32> -> vector<128x128xf32>
    %231 = arith.addf %230, %10 : vector<128x128xf32>
    %cst_64 = arith.constant dense<0xFF800000> : vector<128xf32>
    %232 = vector.multi_reduction <maximumf>, %231, %cst_64 [1] : vector<128x128xf32> to vector<128xf32>
    %233 = vector.shape_cast %232 : vector<128xf32> to vector<128x1xf32>
    %234 = vector.broadcast %233 : vector<128x1xf32> to vector<128x128xf32>
    %235 = arith.subf %231, %234 : vector<128x128xf32>
    %236 = math.exp %235 : vector<128x128xf32>
    %cst_65 = arith.constant dense<0.000000e+00> : vector<128xf32>
    %237 = vector.multi_reduction <add>, %236, %cst_65 [1] : vector<128x128xf32> to vector<128xf32>
    %238 = vector.shape_cast %237 : vector<128xf32> to vector<128x1xf32>
    %239 = arith.truncf %236 : vector<128x128xf32> to vector<128x128xbf16>
    %cst_66 = arith.constant dense<0.000000e+00> : vector<128x32xf32>
    %240 = tpu.matmul %239, %229, %cst_66 {dimension_numbers = #tpu.dot_dimension_numbers<[1], [0], [0], [1], [0, 0, 1, 1], [], []>} : vector<128x128xbf16>, vector<128x32xbf16>, vector<128x32xf32> -> vector<128x32xf32>
    %241 = tpu.reciprocal %238 {approx = true} : vector<128x1xf32> -> vector<128x1xf32>
    %242 = vector.broadcast %241 : vector<128x1xf32> to vector<128x32xf32>
    %243 = arith.mulf %240, %242 : vector<128x32xf32>
    %244 = vector.extract_strided_slice %180 {offsets = [0, 96], sizes = [128, 32], strides = [1, 1]} : vector<128x128xf32> to vector<128x32xf32>
    %245 = arith.truncf %244 : vector<128x32xf32> to vector<128x32xbf16>
    %246 = vector.extract_strided_slice %183 {offsets = [0, 96], sizes = [128, 32], strides = [1, 1]} : vector<128x128xf32> to vector<128x32xf32>
    %247 = arith.truncf %246 : vector<128x32xf32> to vector<128x32xbf16>
    %248 = vector.extract_strided_slice %173 {offsets = [0, 96], sizes = [128, 32], strides = [1, 1]} : vector<128x128xf32> to vector<128x32xf32>
    %249 = arith.truncf %248 : vector<128x32xf32> to vector<128x32xbf16>
    %cst_67 = arith.constant dense<0.000000e+00> : vector<128x128xf32>
    %250 = tpu.matmul %245, %247, %cst_67 {dimension_numbers = #tpu.dot_dimension_numbers<[1], [1], [0], [0], [0, 0, 1, 0], [], []>} : vector<128x32xbf16>, vector<128x32xbf16>, vector<128x128xf32> -> vector<128x128xf32>
    %251 = arith.addf %250, %10 : vector<128x128xf32>
    %cst_68 = arith.constant dense<0xFF800000> : vector<128xf32>
    %252 = vector.multi_reduction <maximumf>, %251, %cst_68 [1] : vector<128x128xf32> to vector<128xf32>
    %253 = vector.shape_cast %252 : vector<128xf32> to vector<128x1xf32>
    %254 = vector.broadcast %253 : vector<128x1xf32> to vector<128x128xf32>
    %255 = arith.subf %251, %254 : vector<128x128xf32>
    %256 = math.exp %255 : vector<128x128xf32>
    %cst_69 = arith.constant dense<0.000000e+00> : vector<128xf32>
    %257 = vector.multi_reduction <add>, %256, %cst_69 [1] : vector<128x128xf32> to vector<128xf32>
    %258 = vector.shape_cast %257 : vector<128xf32> to vector<128x1xf32>
    %259 = arith.truncf %256 : vector<128x128xf32> to vector<128x128xbf16>
    %cst_70 = arith.constant dense<0.000000e+00> : vector<128x32xf32>
    %260 = tpu.matmul %259, %249, %cst_70 {dimension_numbers = #tpu.dot_dimension_numbers<[1], [0], [0], [1], [0, 0, 1, 1], [], []>} : vector<128x128xbf16>, vector<128x32xbf16>, vector<128x32xf32> -> vector<128x32xf32>
    %261 = tpu.reciprocal %258 {approx = true} : vector<128x1xf32> -> vector<128x1xf32>
    %262 = vector.broadcast %261 : vector<128x1xf32> to vector<128x32xf32>
    %263 = arith.mulf %260, %262 : vector<128x32xf32>
    %264 = tpu.concatenate %203, %223, %243, %263 in 1 : vector<128x32xf32>, vector<128x32xf32>, vector<128x32xf32>, vector<128x32xf32> -> vector<128x128xf32>
    %265 = arith.truncf %264 : vector<128x128xf32> to vector<128x128xbf16>
    %c1_71 = arith.constant 1 : index
    %c0_72 = arith.constant 0 : index
    %c0_73 = arith.constant 0 : index
    %266 = vector.load %arg7[%c1_71, %c0_72, %c0_73] : memref<2x128x128xbf16, #tpu.memory_space<vmem>>, vector<1x128x128xbf16>
    %267 = vector.shape_cast %266 : vector<1x128x128xbf16> to vector<128x128xbf16>
    %cst_74 = arith.constant dense<0.000000e+00> : vector<128x128xf32>
    %268 = tpu.matmul %265, %267, %cst_74 {dimension_numbers = #tpu.dot_dimension_numbers<[1], [0], [0], [1], [0, 0, 1, 1], [], []>} : vector<128x128xbf16>, vector<128x128xbf16>, vector<128x128xf32> -> vector<128x128xf32>
    %269 = arith.negf %176 : vector<128x256xf32>
    %270 = math.exp %269 : vector<128x256xf32>
    %cst_75 = arith.constant 1.000000e+00 : f32
    %271 = vector.broadcast %cst_75 : f32 to vector<128x256xf32>
    %272 = arith.addf %271, %270 : vector<128x256xf32>
    %273 = arith.divf %271, %272 : vector<128x256xf32>
    %274 = arith.mulf %176, %273 : vector<128x256xf32>
    %275 = arith.mulf %274, %177 : vector<128x256xf32>
    %276 = arith.truncf %275 : vector<128x256xf32> to vector<128x256xbf16>
    %c1_76 = arith.constant 1 : index
    %c0_77 = arith.constant 0 : index
    %c0_78 = arith.constant 0 : index
    %277 = vector.load %arg8[%c1_76, %c0_77, %c0_78] : memref<2x256x128xbf16, #tpu.memory_space<vmem>>, vector<1x256x128xbf16>
    %278 = vector.shape_cast %277 : vector<1x256x128xbf16> to vector<256x128xbf16>
    %cst_79 = arith.constant dense<0.000000e+00> : vector<128x128xf32>
    %279 = tpu.matmul %276, %278, %cst_79 {dimension_numbers = #tpu.dot_dimension_numbers<[1], [0], [0], [1], [0, 0, 1, 1], [], []>} : vector<128x256xbf16>, vector<256x128xbf16>, vector<128x128xf32> -> vector<128x128xf32>
    %280 = arith.addf %146, %268 : vector<128x128xf32>
    %281 = arith.addf %280, %279 : vector<128x128xf32>
    %c0_80 = arith.constant 0 : index
    %c0_81 = arith.constant 0 : index
    %282 = vector.load %arg10[%c0_80, %c0_81] : memref<128x128xf32, #tpu.memory_space<vmem>>, vector<128x128xf32>
    tpu.vector_store %arg10[%c0_80, %c0_81], %281 {strides = array<i32>} : memref<128x128xf32, #tpu.memory_space<vmem>>, vector<128x128xf32>,
    %c1_i32 = arith.constant 1 : i32
    %283 = arith.cmpi eq, %arg0, %c1_i32 : i32
    %284 = arith.extui %283 : i1 to i32
    %c0_i32_82 = arith.constant 0 : i32
    %285 = arith.cmpi ne, %284, %c0_i32_82 : i32
    scf.if %285 {
      %cst_83 = arith.constant dense<0.000000e+00> : vector<128xf32>
      %286 = vector.multi_reduction <add>, %281, %cst_83 [1] : vector<128x128xf32> to vector<128xf32>
      %287 = vector.shape_cast %286 : vector<128xf32> to vector<128x1xf32>
      %cst_84 = arith.constant 1.280000e+02 : f32
      %288 = vector.broadcast %cst_84 : f32 to vector<128x1xf32>
      %289 = arith.divf %287, %288 : vector<128x1xf32>
      %290 = vector.broadcast %289 : vector<128x1xf32> to vector<128x128xf32>
      %291 = arith.subf %281, %290 : vector<128x128xf32>
      %292 = arith.mulf %291, %291 : vector<128x128xf32>
      %cst_85 = arith.constant dense<0.000000e+00> : vector<128xf32>
      %293 = vector.multi_reduction <add>, %292, %cst_85 [1] : vector<128x128xf32> to vector<128xf32>
      %294 = vector.shape_cast %293 : vector<128xf32> to vector<128x1xf32>
      %cst_86 = arith.constant 1.280000e+02 : f32
      %295 = vector.broadcast %cst_86 : f32 to vector<128x1xf32>
      %296 = arith.divf %294, %295 : vector<128x1xf32>
      %cst_87 = arith.constant 9.99999974E-6 : f32
      %297 = vector.broadcast %cst_87 : f32 to vector<128x1xf32>
      %298 = arith.addf %296, %297 : vector<128x1xf32>
      %299 = math.rsqrt %298 : vector<128x1xf32>
      %300 = vector.broadcast %299 : vector<128x1xf32> to vector<128x128xf32>
      %301 = arith.mulf %291, %300 : vector<128x128xf32>
      %c0_88 = arith.constant 0 : index
      %c0_89 = arith.constant 0 : index
      %302 = vector.load %arg4[%c0_88, %c0_89] : memref<1x128xf32, #tpu.memory_space<vmem>>, vector<1x128xf32>
      %303 = vector.broadcast %302 : vector<1x128xf32> to vector<128x128xf32>
      %304 = arith.mulf %301, %303 : vector<128x128xf32>
      %c0_90 = arith.constant 0 : index
      %c0_91 = arith.constant 0 : index
      %305 = vector.load %arg9[%c0_90, %c0_91] : memref<128x128xf32, #tpu.memory_space<vmem>>, vector<128x128xf32>
      tpu.vector_store %arg9[%c0_90, %c0_91], %304 {strides = array<i32>} : memref<128x128xf32, #tpu.memory_space<vmem>>, vector<128x128xf32>,
    } else {
    }
    return
  }
  func.func @transform_0(%arg0: i32) -> (i32, i32) {
    %c0_i32 = arith.constant 0 : i32
    %c0_i32_0 = arith.constant 0 : i32
    %c0_i32_1 = arith.constant 0 : i32
    return %c0_i32, %c0_i32_0 : i32, i32
  }
  func.func @transform_1(%arg0: i32) -> (i32, i32) {
    %c0_i32 = arith.constant 0 : i32
    %c0_i32_0 = arith.constant 0 : i32
    %c0_i32_1 = arith.constant 0 : i32
    return %c0_i32, %c0_i32_0 : i32, i32
  }
  func.func @transform_2(%arg0: i32) -> (i32, i32) {
    %c0_i32 = arith.constant 0 : i32
    %c0_i32_0 = arith.constant 0 : i32
    %c0_i32_1 = arith.constant 0 : i32
    return %c0_i32, %c0_i32_0 : i32, i32
  }
  func.func @transform_3(%arg0: i32) -> (i32, i32) {
    %c0_i32 = arith.constant 0 : i32
    %c0_i32_0 = arith.constant 0 : i32
    %c0_i32_1 = arith.constant 0 : i32
    return %c0_i32, %c0_i32_0 : i32, i32
  }
  func.func @transform_4(%arg0: i32) -> (i32, i32, i32) {
    %c0_i32 = arith.constant 0 : i32
    %c0_i32_0 = arith.constant 0 : i32
    %c0_i32_1 = arith.constant 0 : i32
    return %arg0, %c0_i32, %c0_i32_0 : i32, i32, i32
  }
  func.func @transform_5(%arg0: i32) -> (i32, i32, i32) {
    %c0_i32 = arith.constant 0 : i32
    %c0_i32_0 = arith.constant 0 : i32
    %c0_i32_1 = arith.constant 0 : i32
    return %arg0, %c0_i32, %c0_i32_0 : i32, i32, i32
  }
  func.func @transform_6(%arg0: i32) -> (i32, i32, i32) {
    %c0_i32 = arith.constant 0 : i32
    %c0_i32_0 = arith.constant 0 : i32
    %c0_i32_1 = arith.constant 0 : i32
    return %arg0, %c0_i32, %c0_i32_0 : i32, i32, i32
  }
  func.func @transform_7(%arg0: i32) -> (i32, i32, i32) {
    %c0_i32 = arith.constant 0 : i32
    %c0_i32_0 = arith.constant 0 : i32
    %c0_i32_1 = arith.constant 0 : i32
    return %arg0, %c0_i32, %c0_i32_0 : i32, i32, i32
  }
  func.func @transform_8(%arg0: i32) -> (i32, i32) {
    %c0_i32 = arith.constant 0 : i32
    %c0_i32_0 = arith.constant 0 : i32
    %c0_i32_1 = arith.constant 0 : i32
    return %c0_i32, %c0_i32_0 : i32, i32
  }
}

</mosaic_0001>

<llo_original>
// kernel: cohere_model.1
$region0: #{cohere_model.1}
  #allocation0 [shape = 'u32[]', space=smem, size = 0x4, offset = 0x4, fixed_abs, tag = 'smem constant byte address 0x4 - core index']
  #allocation1 [shape = 'u32[144,128]{1,0:T(1,128)}', space=vmem, size = 0x12000, scoped, tag = 'internal scratch']
  #allocation2 [shape = 'f32[128,128]{1,0:T(8,128)}', space=vmem, size = 0x10000, scoped, tag = 'scratch operand']
  %s0 = inlined_call_operand.vmem [shape: f32[128,128], index: 0, kind: input, shape index: {}]
  %s1 = inlined_call_operand.vmem [shape: f32[128,128], index: 1, kind: input, shape index: {}]
  %s2 = inlined_call_operand.vmem [shape: f32[128,128], index: 2, kind: input, shape index: {}]
  %s3 = inlined_call_operand.vmem [shape: f32[1,128], index: 3, kind: input, shape index: {}]
  %s4 = inlined_call_operand.vmem [shape: f32[4,1,128], index: 4, kind: input, shape index: {}]
  %s5 = inlined_call_operand.vmem [shape: bf16[4,128,1152], index: 5, kind: input, shape index: {}]
  %s6 = inlined_call_operand.hbm [shape: bf16[4,128,128], index: 6, kind: input, shape index: {}]
  %s7 = inlined_call_operand.hbm [shape: bf16[4,256,128], index: 7, kind: input, shape index: {}]
  %s8 = inlined_call_operand.hbm [shape: f32[128,128], index: 8, kind: output, shape index: {}]
  %s9 = sld [smem:[#allocation0]]
  $region81: #{cohere_model.1} parent=0
    _
  %s11 = ssub.s32 1, %s9
  %s12 = scalar_select 0, %s11, %s9
  $region1: #{cohere_model.1} parent=0
    #allocation3 [shape = 'u8[131072]{0}', space=vmem, size = 0x20000, scoped, tag = 'input window, operand 6']
    #allocation4 [shape = 's32[2]{0}', space=sflag, size = 0x8, scoped, tag = 'scoped memory for cohere_model.1']
    #allocation5 [shape = 's32[2]{0}', space=sflag, size = 0x8, scoped, tag = 'scoped memory for cohere_model.1']
    #allocation6 [shape = 'u8[262144]{0}', space=vmem, size = 0x40000, scoped, tag = 'input window, operand 7']
    #allocation7 [shape = 's32[2]{0}', space=sflag, size = 0x8, scoped, tag = 'scoped memory for cohere_model.1']
    #allocation8 [shape = 'u8[65536]{0}', space=vmem, size = 0x10000, scoped, tag = 'output window, operand 0, single buffered']
    %13 = vsyncpa [#allocation4], 0
    %s14 = scalar_lea.sflag [#allocation4], 1
    %15 = vsyncpa %s14, 0
    %16 = vsyncpa [#allocation7], 0
    %s17 = scalar_lea.sflag [#allocation7], 1
    %18 = vsyncpa %s17, 0
    %19 = vsyncpa [#allocation5], 0
    loop: start=0, step=1, limit=4
    $region2: #{cohere_model.1} parent=1 // loop_pre_header
      _
    $region3: #{cohere_model.1} parent=1 // loop_header
      %s21 = sphi 0, %s25
      %p22 = scmp.ge.s32.totalorder %s21, 4
      %s29 = sphi 0, %s29
      %s31 = sphi 0, %s29
      %s32 = sphi 0, %s31
      %s46 = sphi 0, %s32
      %s50 = sphi 0, %s50
      %s52 = sphi 0, %s50
      %s53 = sphi 0, %s52
      %s67 = sphi 0, %s53
      %s71 = sphi 0, %s71
      %s73 = sphi 0, %s71
      %s74 = sphi 0, %s73
      %s88 = sphi 0, %s74
      %s92 = sphi 0, %s92
      %s94 = sphi 0, %s92
      %s95 = sphi 0, %s94
      %s109 = sphi 0, %s95
      %s115 = sphi 0, %s117
      %s118 = sphi 0, %s115
      %s119 = sphi 0, %s118
      %s135 = sphi 0, %s119
      %s141 = sphi 0, %s143
      %s144 = sphi 0, %s141
      %s145 = sphi 0, %s144
      %s161 = sphi 0, %s145
      %s167 = sphi 0, %s169
      %s170 = sphi 0, %s167
      %s171 = sphi 0, %s170
      %s187 = sphi 0, %s171
      %s193 = sphi 0, %s195
      %s196 = sphi 0, %s193
      %s197 = sphi 0, %s196
      %s213 = sphi 0, %s197
      %s217 = sphi 0, %s217
      %s219 = sphi 0, %s217
      %s220 = sphi 0, %s219
      %s234 = sphi 0, %s220
    $region4: #{cohere_model.1} parent=1 // loop_header_branch
      %24 = sbr.rel (%p22) target = $region8
    $region5: #{cohere_model.1} parent=1 // loop_body
      %s26 = ssub.s32 %s21, 1
      %s27 = ssub.s32 %s21, 2
      %s28 = sadd.s32 %s21, 1
      %s30 = sadd.s32 %s29, 1
      %p33 = scmp.eq.s32.totalorder %s21, 1
      %p34 = scmp.ne.s32.totalorder %s29, %s31
      %p35 = scmp.eq.s32.totalorder %s21, 0
      %p36 = por %p34, %p35
      %p37 = scmp.ne.s32.totalorder %s29, %s31
      %p38 = scmp.eq.s32.totalorder %s26, 1
      %p39 = por %p37, %p38
      %p40 = scmp.ne.s32.totalorder %s31, %s32
      %p41 = scmp.eq.s32.totalorder %s26, 0
      %p42 = por %p40, %p41
      %p43 = scmp.ne.s32.totalorder %s31, %s32
      %p44 = scmp.eq.s32.totalorder %s27, 1
      %p45 = por %p43, %p44
      %p47 = scmp.ne.s32.totalorder %s32, %s46
      %p48 = scmp.eq.s32.totalorder %s27, 0
      %p49 = por %p47, %p48
      %s51 = sadd.s32 %s50, 1
      %p54 = scmp.eq.s32.totalorder %s21, 1
      %p55 = scmp.ne.s32.totalorder %s50, %s52
      %p56 = scmp.eq.s32.totalorder %s21, 0
      %p57 = por %p55, %p56
      %p58 = scmp.ne.s32.totalorder %s50, %s52
      %p59 = scmp.eq.s32.totalorder %s26, 1
      %p60 = por %p58, %p59
      %p61 = scmp.ne.s32.totalorder %s52, %s53
      %p62 = scmp.eq.s32.totalorder %s26, 0
      %p63 = por %p61, %p62
      %p64 = scmp.ne.s32.totalorder %s52, %s53
      %p65 = scmp.eq.s32.totalorder %s27, 1
      %p66 = por %p64, %p65
      %p68 = scmp.ne.s32.totalorder %s53, %s67
      %p69 = scmp.eq.s32.totalorder %s27, 0
      %p70 = por %p68, %p69
      %s72 = sadd.s32 %s71, 1
      %p75 = scmp.eq.s32.totalorder %s21, 1
      %p76 = scmp.ne.s32.totalorder %s71, %s73
      %p77 = scmp.eq.s32.totalorder %s21, 0
      %p78 = por %p76, %p77
      %p79 = scmp.ne.s32.totalorder %s71, %s73
      %p80 = scmp.eq.s32.totalorder %s26, 1
      %p81 = por %p79, %p80
      %p82 = scmp.ne.s32.totalorder %s73, %s74
      %p83 = scmp.eq.s32.totalorder %s26, 0
      %p84 = por %p82, %p83
      %p85 = scmp.ne.s32.totalorder %s73, %s74
      %p86 = scmp.eq.s32.totalorder %s27, 1
      %p87 = por %p85, %p86
      %p89 = scmp.ne.s32.totalorder %s74, %s88
      %p90 = scmp.eq.s32.totalorder %s27, 0
      %p91 = por %p89, %p90
      %s93 = sadd.s32 %s92, 1
      %p96 = scmp.eq.s32.totalorder %s21, 1
      %p97 = scmp.ne.s32.totalorder %s92, %s94
      %p98 = scmp.eq.s32.totalorder %s21, 0
      %p99 = por %p97, %p98
      %p100 = scmp.ne.s32.totalorder %s92, %s94
      %p101 = scmp.eq.s32.totalorder %s26, 1
      %p102 = por %p100, %p101
      %p103 = scmp.ne.s32.totalorder %s94, %s95
      %p104 = scmp.eq.s32.totalorder %s26, 0
      %p105 = por %p103, %p104
      %p106 = scmp.ne.s32.totalorder %s94, %s95
      %p107 = scmp.eq.s32.totalorder %s27, 1
      %p108 = por %p106, %p107
      %p110 = scmp.ne.s32.totalorder %s95, %s109
      %p111 = scmp.eq.s32.totalorder %s27, 0
      %p112 = por %p110, %p111
      %s113 = ssub.s32 %s21, %s28
      %p114 = scmp.eq.s32.totalorder %s113, 0
      %s116 = sadd.s32 %s115, 1
      %s117 = scalar_select %p114, %s115, %s116
      %p120 = pneg %p114
      %p121 = scmp.eq.s32.totalorder %s21, 1
      %p122 = por %p120, %p121
      %p123 = scmp.ne.s32.totalorder %s115, %s118
      %p124 = scmp.eq.s32.totalorder %s21, 0
      %p125 = por %p123, %p124
      %p126 = scmp.ne.s32.totalorder %s115, %s118
      %p127 = scmp.eq.s32.totalorder %s26, 1
      %p128 = por %p126, %p127
      %p129 = scmp.ne.s32.totalorder %s118, %s119
      %p130 = scmp.eq.s32.totalorder %s26, 0
      %p131 = por %p129, %p130
      %p132 = scmp.ne.s32.totalorder %s118, %s119
      %p133 = scmp.eq.s32.totalorder %s27, 1
      %p134 = por %p132, %p133
      %p136 = scmp.ne.s32.totalorder %s119, %s135
      %p137 = scmp.eq.s32.totalorder %s27, 0
      %p138 = por %p136, %p137
      %s139 = ssub.s32 %s21, %s28
      %p140 = scmp.eq.s32.totalorder %s139, 0
      %s142 = sadd.s32 %s141, 1
      %s143 = scalar_select %p140, %s141, %s142
      %p146 = pneg %p140
      %p147 = scmp.eq.s32.totalorder %s21, 1
      %p148 = por %p146, %p147
      %p149 = scmp.ne.s32.totalorder %s141, %s144
      %p150 = scmp.eq.s32.totalorder %s21, 0
      %p151 = por %p149, %p150
      %p152 = scmp.ne.s32.totalorder %s141, %s144
      %p153 = scmp.eq.s32.totalorder %s26, 1
      %p154 = por %p152, %p153
      %p155 = scmp.ne.s32.totalorder %s144, %s145
      %p156 = scmp.eq.s32.totalorder %s26, 0
      %p157 = por %p155, %p156
      %p158 = scmp.ne.s32.totalorder %s144, %s145
      %p159 = scmp.eq.s32.totalorder %s27, 1
      %p160 = por %p158, %p159
      %p162 = scmp.ne.s32.totalorder %s145, %s161
      %p163 = scmp.eq.s32.totalorder %s27, 0
      %p164 = por %p162, %p163
      %s165 = ssub.s32 %s21, %s28
      %p166 = scmp.eq.s32.totalorder %s165, 0
      %s168 = sadd.s32 %s167, 1
      %s169 = scalar_select %p166, %s167, %s168
      %p172 = pneg %p166
      %p173 = scmp.eq.s32.totalorder %s21, 1
      %p174 = por %p172, %p173
      %p175 = scmp.ne.s32.totalorder %s167, %s170
      %p176 = scmp.eq.s32.totalorder %s21, 0
      %p177 = por %p175, %p176
      %p178 = scmp.ne.s32.totalorder %s167, %s170
      %p179 = scmp.eq.s32.totalorder %s26, 1
      %p180 = por %p178, %p179
      %p181 = scmp.ne.s32.totalorder %s170, %s171
      %p182 = scmp.eq.s32.totalorder %s26, 0
      %p183 = por %p181, %p182
      %p184 = scmp.ne.s32.totalorder %s170, %s171
      %p185 = scmp.eq.s32.totalorder %s27, 1
      %p186 = por %p184, %p185
      %p188 = scmp.ne.s32.totalorder %s171, %s187
      %p189 = scmp.eq.s32.totalorder %s27, 0
      %p190 = por %p188, %p189
      %s191 = ssub.s32 %s21, %s28
      %p192 = scmp.eq.s32.totalorder %s191, 0
      %s194 = sadd.s32 %s193, 1
      %s195 = scalar_select %p192, %s193, %s194
      %p198 = pneg %p192
      %p199 = scmp.eq.s32.totalorder %s21, 1
      %p200 = por %p198, %p199
      %p201 = scmp.ne.s32.totalorder %s193, %s196
      %p202 = scmp.eq.s32.totalorder %s21, 0
      %p203 = por %p201, %p202
      %p204 = scmp.ne.s32.totalorder %s193, %s196
      %p205 = scmp.eq.s32.totalorder %s26, 1
      %p206 = por %p204, %p205
      %p207 = scmp.ne.s32.totalorder %s196, %s197
      %p208 = scmp.eq.s32.totalorder %s26, 0
      %p209 = por %p207, %p208
      %p210 = scmp.ne.s32.totalorder %s196, %s197
      %p211 = scmp.eq.s32.totalorder %s27, 1
      %p212 = por %p210, %p211
      %p214 = scmp.ne.s32.totalorder %s197, %s213
      %p215 = scmp.eq.s32.totalorder %s27, 0
      %p216 = por %p214, %p215
      %s218 = sadd.s32 %s217, 1
      %p221 = scmp.eq.s32.totalorder %s21, 1
      %p222 = scmp.ne.s32.totalorder %s217, %s219
      %p223 = scmp.eq.s32.totalorder %s21, 0
      %p224 = por %p222, %p223
      %p225 = scmp.ne.s32.totalorder %s217, %s219
      %p226 = scmp.eq.s32.totalorder %s26, 1
      %p227 = por %p225, %p226
      %p228 = scmp.ne.s32.totalorder %s219, %s220
      %p229 = scmp.eq.s32.totalorder %s26, 0
      %p230 = por %p228, %p229
      %p231 = scmp.ne.s32.totalorder %s219, %s220
      %p232 = scmp.eq.s32.totalorder %s27, 1
      %p233 = por %p231, %p232
      %p235 = scmp.ne.s32.totalorder %s220, %s234
      %p236 = scmp.eq.s32.totalorder %s27, 0
      %p237 = por %p235, %p236
      %p238 = scmp.le.s32.totalorder 1, %s21
      %p239 = scmp.lt.s32.totalorder %s21, 3
      %p240 = pnand %p238, %p239
      %p241 = pneg %p240
      // Predicated region
      $region9: #{cohere_model.1} parent=5 // pred_check
        _
      $region10: #{cohere_model.1} parent=5 // pred_check_branch
        %243 = sbr.rel (%p240) target = $region12
      $region11: #{cohere_model.1} parent=5 // pred_region
        %s244 = ssub.s32 %s21, 1
        // Predicated region
        $region13: #{cohere_model.1} parent=11 // pred_check
          %p245 = pneg %p42
        $region14: #{cohere_model.1} parent=11 // pred_check_branch
          %247 = sbr.rel (%p245) target = $region16
        $region15: #{cohere_model.1} parent=11 // pred_region
          _
        $region16: #{cohere_model.1} parent=11 // pred_fallthru
          _
        // Predicated region
        $region17: #{cohere_model.1} parent=11 // pred_check
          %p248 = pneg %p63
        $region18: #{cohere_model.1} parent=11 // pred_check_branch
          %250 = sbr.rel (%p248) target = $region20
        $region19: #{cohere_model.1} parent=11 // pred_region
          _
        $region20: #{cohere_model.1} parent=11 // pred_fallthru
          _
        // Predicated region
        $region21: #{cohere_model.1} parent=11 // pred_check
          %p251 = pneg %p84
        $region22: #{cohere_model.1} parent=11 // pred_check_branch
          %253 = sbr.rel (%p251) target = $region24
        $region23: #{cohere_model.1} parent=11 // pred_region
          _
        $region24: #{cohere_model.1} parent=11 // pred_fallthru
          _
        // Predicated region
        $region25: #{cohere_model.1} parent=11 // pred_check
          %p254 = pneg %p105
        $region26: #{cohere_model.1} parent=11 // pred_check_branch
          %256 = sbr.rel (%p254) target = $region28
        $region27: #{cohere_model.1} parent=11 // pred_region
          _
        $region28: #{cohere_model.1} parent=11 // pred_fallthru
          _
      $region12: #{cohere_model.1} parent=5 // pred_fallthru
        _
      %p257 = scmp.lt.s32.totalorder %s21, 2
      // Predicated region
      $region29: #{cohere_model.1} parent=5 // pred_check
        %p258 = pneg %p257
      $region30: #{cohere_model.1} parent=5 // pred_check_branch
        %260 = sbr.rel (%p258) target = $region32
      $region31: #{cohere_model.1} parent=5 // pred_region
        // Predicated region
        $region33: #{cohere_model.1} parent=31 // pred_check
          %p261 = pneg %p125
        $region34: #{cohere_model.1} parent=31 // pred_check_branch
          %263 = sbr.rel (%p261) target = $region36
        $region35: #{cohere_model.1} parent=31 // pred_region
          %s264 = smul.u32 2, %s21
          %p265 = scmp.lt.s32.totalorder %s264, 3
          %s266 = scalar_select %p265, %s264, 3
          %s267 = scalar_lea.vmem %s4, %s266
          %s268 = smul.u32 2, %s21
        $region36: #{cohere_model.1} parent=31 // pred_fallthru
          _
        // Predicated region
        $region37: #{cohere_model.1} parent=31 // pred_check
          %p269 = pneg %p151
        $region38: #{cohere_model.1} parent=31 // pred_check_branch
          %271 = sbr.rel (%p269) target = $region40
        $region39: #{cohere_model.1} parent=31 // pred_region
          %s272 = smul.u32 2, %s21
          %p273 = scmp.lt.s32.totalorder %s272, 3
          %s274 = scalar_select %p273, %s272, 3
          %s275 = smul.addr %s274, 144
          %s276 = smul.addr %s275, 4
          %s277 = scalar_lea.vmem %s5, %s276
          %s278 = smul.u32 2, %s21
        $region40: #{cohere_model.1} parent=31 // pred_fallthru
          _
        // Predicated region
        $region41: #{cohere_model.1} parent=31 // pred_check
          %p279 = pneg %p177
        $region42: #{cohere_model.1} parent=31 // pred_check_branch
          %281 = sbr.rel (%p279) target = $region44
        $region43: #{cohere_model.1} parent=31 // pred_region
          %s282 = sand.u32 %s167, 1
          %s283 = scalar_lea.sflag [#allocation4], %s282
          %s284 = sand.u32 %s167, 1
          %s285 = smul.addr %s284, 128
          %s286 = scalar_lea.vmem [#allocation3], %s285
          %s287 = smul.u32 2, %s21
          %s289 = ssub.s32 2048, 2048
          %290 = vsyncadd %s283, %s289
          %s291 = smul.addr %s287, 16
          %s292 = smul.addr %s291, 64
          %s293 = scalar_lea.hbm %s6, %s292
          %s294 = sshll.u32 %s286, 4
          %s295 = int_to_ptr.vmem [resolvable:$true] %s294
          %300 = dma.hbm_to_vmem [thread:$0]  %s293, 2048, %s295, %s283, 64, 64, 4
        $region44: #{cohere_model.1} parent=31 // pred_fallthru
          _
        // Predicated region
        $region45: #{cohere_model.1} parent=31 // pred_check
          %p301 = pneg %p203
        $region46: #{cohere_model.1} parent=31 // pred_check_branch
          %303 = sbr.rel (%p301) target = $region48
        $region47: #{cohere_model.1} parent=31 // pred_region
          %s304 = sand.u32 %s193, 1
          %s305 = scalar_lea.sflag [#allocation7], %s304
          %s306 = sand.u32 %s193, 1
          %s307 = smul.addr %s306, 256
          %s308 = scalar_lea.vmem [#allocation6], %s307
          %s309 = smul.u32 2, %s21
          %s311 = ssub.s32 4096, 4096
          %312 = vsyncadd %s305, %s311
          %s313 = smul.addr %s309, 32
          %s314 = smul.addr %s313, 64
          %s315 = scalar_lea.hbm %s7, %s314
          %s316 = sshll.u32 %s308, 4
          %s317 = int_to_ptr.vmem [resolvable:$true] %s316
          %322 = dma.hbm_to_vmem [thread:$0]  %s315, 4096, %s317, %s305, 64, 64, 4
        $region48: #{cohere_model.1} parent=31 // pred_fallthru
          _
      $region32: #{cohere_model.1} parent=5 // pred_fallthru
        _
      %p323 = scmp.le.s32.totalorder 1, %s21
      %p324 = scmp.lt.s32.totalorder %s21, 3
      %p325 = pnand %p323, %p324
      %p326 = pneg %p325
      // Predicated region
      $region49: #{cohere_model.1} parent=5 // pred_check
        _
      $region50: #{cohere_model.1} parent=5 // pred_check_branch
        %328 = sbr.rel (%p325) target = $region52
      $region51: #{cohere_model.1} parent=5 // pred_region
        %s329 = ssub.s32 %s21, 1
        %s330 = sand.u32 %s170, 1
        %s331 = scalar_lea.sflag [#allocation4], %s330
        %s332 = sand.u32 %s170, 1
        %s333 = smul.addr %s332, 128
        %s334 = scalar_lea.vmem [#allocation3], %s333
        // Predicated region
        $region53: #{cohere_model.1} parent=51 // pred_check
          %p335 = pneg %p183
        $region54: #{cohere_model.1} parent=51 // pred_check_branch
          %337 = sbr.rel (%p335) target = $region56
        $region55: #{cohere_model.1} parent=51 // pred_region
          %338 = dma.done %s331, 2048
        $region56: #{cohere_model.1} parent=51 // pred_fallthru
          _
        %s339 = sand.u32 %s196, 1
        %s340 = scalar_lea.sflag [#allocation7], %s339
        %s341 = sand.u32 %s196, 1
        %s342 = smul.addr %s341, 256
        %s343 = scalar_lea.vmem [#allocation6], %s342
        // Predicated region
        $region57: #{cohere_model.1} parent=51 // pred_check
          %p344 = pneg %p209
        $region58: #{cohere_model.1} parent=51 // pred_check_branch
          %346 = sbr.rel (%p344) target = $region60
        $region59: #{cohere_model.1} parent=51 // pred_region
          %347 = dma.done %s340, 4096
        $region60: #{cohere_model.1} parent=51 // pred_fallthru
          _
        %p348 = pneg %p42
        %p349 = pneg %p39
        %p350 = pneg %p63
        %p351 = pneg %p60
        %p352 = pneg %p84
        %p353 = pneg %p81
        %p354 = pneg %p105
        %p355 = pneg %p102
        %s356 = smul.u32 2, %s26
        %p357 = scmp.lt.s32.totalorder %s356, 3
        %s358 = scalar_select %p357, %s356, 3
        %s359 = scalar_lea.vmem %s4, %s358
        %p360 = pneg %p131
        %p361 = pneg %p128
        %s362 = smul.u32 2, %s26
        %p363 = scmp.lt.s32.totalorder %s362, 3
        %s364 = scalar_select %p363, %s362, 3
        %s365 = smul.addr %s364, 144
        %s366 = smul.addr %s365, 4
        %s367 = scalar_lea.vmem %s5, %s366
        %p368 = pneg %p157
        %p369 = pneg %p154
        %s370 = sand.u32 %s170, 1
        %s371 = scalar_lea.sflag [#allocation4], %s370
        %s372 = sand.u32 %s170, 1
        %s373 = smul.addr %s372, 128
        %s374 = scalar_lea.vmem [#allocation3], %s373
        %p375 = pneg %p183
        %p376 = pneg %p180
        %s377 = sand.u32 %s196, 1
        %s378 = scalar_lea.sflag [#allocation7], %s377
        %s379 = sand.u32 %s196, 1
        %s380 = smul.addr %s379, 256
        %s381 = scalar_lea.vmem [#allocation6], %s380
        %p382 = pneg %p209
        %p383 = pneg %p206
        %p384 = pneg %p230
        %p385 = pneg %p227
        %s386 = smul.u32 2, %s26
        %p387 = scmp.lt.s32.totalorder %s386, 3
        %s388 = scalar_select %p387, %s386, 3
        %s389 = scalar_lea.vmem %s4, %s388
        %s390 = smul.u32 2, %s26
        %s391 = smul.u32 2, %s26
        %p392 = scmp.lt.s32.totalorder %s391, 3
        %s393 = scalar_select %p392, %s391, 3
        %s394 = smul.addr %s393, 144
        %s395 = smul.addr %s394, 4
        %s396 = scalar_lea.vmem %s5, %s395
        %s397 = smul.u32 2, %s26
        %s398 = smul.u32 2, %s26
        %s399 = smul.u32 2, %s26
        %p401 = scmp.eq.s32.totalorder %s26, 0
        // Predicated region
        $region61: #{cohere_model.1} parent=51 // pred_check
          %p402 = pneg %p401
        $region62: #{cohere_model.1} parent=51 // pred_check_branch
          %404 = sbr.rel (%p402) target = $region64
        $region63: #{cohere_model.1} parent=51 // pred_region
          %v405 = vld [vmem:[%s0] sm:$0xff]
          %v406 = vld [vmem:[%s0 + $0x8] sm:$0xff]
          %v407 = vld [vmem:[%s0 + $0x10] sm:$0xff]
          %v408 = vld [vmem:[%s0 + $0x18] sm:$0xff]
          %v409 = vld [vmem:[%s0 + $0x20] sm:$0xff]
          %v410 = vld [vmem:[%s0 + $0x28] sm:$0xff]
          %v411 = vld [vmem:[%s0 + $0x30] sm:$0xff]
          %v412 = vld [vmem:[%s0 + $0x38] sm:$0xff]
          %v413 = vld [vmem:[%s0 + $0x40] sm:$0xff]
          %v414 = vld [vmem:[%s0 + $0x48] sm:$0xff]
          %v415 = vld [vmem:[%s0 + $0x50] sm:$0xff]
          %v416 = vld [vmem:[%s0 + $0x58] sm:$0xff]
          %v417 = vld [vmem:[%s0 + $0x60] sm:$0xff]
          %v418 = vld [vmem:[%s0 + $0x68] sm:$0xff]
          %v419 = vld [vmem:[%s0 + $0x70] sm:$0xff]
          %v420 = vld [vmem:[%s0 + $0x78] sm:$0xff]
          %421 = vst [vmem:[#allocation2] sm:$0xff] %v405
          %422 = vst [vmem:[#allocation2 + $0x8] sm:$0xff] %v406
          %423 = vst [vmem:[#allocation2 + $0x10] sm:$0xff] %v407
          %424 = vst [vmem:[#allocation2 + $0x18] sm:$0xff] %v408
          %425 = vst [vmem:[#allocation2 + $0x20] sm:$0xff] %v409
          %426 = vst [vmem:[#allocation2 + $0x28] sm:$0xff] %v410
          %427 = vst [vmem:[#allocation2 + $0x30] sm:$0xff] %v411
          %428 = vst [vmem:[#allocation2 + $0x38] sm:$0xff] %v412
          %429 = vst [vmem:[#allocation2 + $0x40] sm:$0xff] %v413
          %430 = vst [vmem:[#allocation2 + $0x48] sm:$0xff] %v414
          %431 = vst [vmem:[#allocation2 + $0x50] sm:$0xff] %v415
          %432 = vst [vmem:[#allocation2 + $0x58] sm:$0xff] %v416
          %433 = vst [vmem:[#allocation2 + $0x60] sm:$0xff] %v417
          %434 = vst [vmem:[#allocation2 + $0x68] sm:$0xff] %v418
          %435 = vst [vmem:[#allocation2 + $0x70] sm:$0xff] %v419
          %436 = vst [vmem:[#allocation2 + $0x78] sm:$0xff] %v420
        $region64: #{cohere_model.1} parent=51 // pred_fallthru
          _
        %v437 = vld [vmem:[%s1] sm:$0xff]
        %v438 = vld [vmem:[%s1 + $0x8] sm:$0xff]
        %v439 = vld [vmem:[%s1 + $0x10] sm:$0xff]
        %v440 = vld [vmem:[%s1 + $0x18] sm:$0xff]
        %v441 = vld [vmem:[%s1 + $0x20] sm:$0xff]
        %v442 = vld [vmem:[%s1 + $0x28] sm:$0xff]
        %v443 = vld [vmem:[%s1 + $0x30] sm:$0xff]
        %v444 = vld [vmem:[%s1 + $0x38] sm:$0xff]
        %v445 = vld [vmem:[%s1 + $0x40] sm:$0xff]
        %v446 = vld [vmem:[%s1 + $0x48] sm:$0xff]
        %v447 = vld [vmem:[%s1 + $0x50] sm:$0xff]
        %v448 = vld [vmem:[%s1 + $0x58] sm:$0xff]
        %v449 = vld [vmem:[%s1 + $0x60] sm:$0xff]
        %v450 = vld [vmem:[%s1 + $0x68] sm:$0xff]
        %v451 = vld [vmem:[%s1 + $0x70] sm:$0xff]
        %v452 = vld [vmem:[%s1 + $0x78] sm:$0xff]
        %v453 = vld [vmem:[%s2] sm:$0xff]
        %v454 = vld [vmem:[%s2 + $0x8] sm:$0xff]
        %v455 = vld [vmem:[%s2 + $0x10] sm:$0xff]
        %v456 = vld [vmem:[%s2 + $0x18] sm:$0xff]
        %v457 = vld [vmem:[%s2 + $0x20] sm:$0xff]
        %v458 = vld [vmem:[%s2 + $0x28] sm:$0xff]
        %v459 = vld [vmem:[%s2 + $0x30] sm:$0xff]
        %v460 = vld [vmem:[%s2 + $0x38] sm:$0xff]
        %v461 = vld [vmem:[%s2 + $0x40] sm:$0xff]
        %v462 = vld [vmem:[%s2 + $0x48] sm:$0xff]
        %v463 = vld [vmem:[%s2 + $0x50] sm:$0xff]
        %v464 = vld [vmem:[%s2 + $0x58] sm:$0xff]
        %v465 = vld [vmem:[%s2 + $0x60] sm:$0xff]
        %v466 = vld [vmem:[%s2 + $0x68] sm:$0xff]
        %v467 = vld [vmem:[%s2 + $0x70] sm:$0xff]
        %v468 = vld [vmem:[%s2 + $0x78] sm:$0xff]
        %v469 = vlaneseq
        %v470 = vshrl.u32 %v469, 7
        %v471 = vadd.s32 %v470, 8
        %v472 = vadd.s32 %v470, 16
        %v473 = vadd.s32 %v470, 24
        %v474 = vadd.s32 %v470, 32
        %v475 = vadd.s32 %v470, 40
        %v476 = vadd.s32 %v470, 48
        %v477 = vadd.s32 %v470, 56
        %v478 = vadd.s32 %v470, 64
        %v479 = vadd.s32 %v470, 72
        %v480 = vadd.s32 %v470, 80
        %v481 = vadd.s32 %v470, 88
        %v482 = vadd.s32 %v470, 96
        %v483 = vadd.s32 %v470, 104
        %v484 = vadd.s32 %v470, 112
        %v485 = vadd.s32 %v470, 120
        %v486 = vlaneseq
        %v487 = vand.u32 %v486, 127
        %vm488 = vcmp.le.s32.totalorder %v487, %v470
        %vm489 = vcmp.le.s32.totalorder %v487, %v471
        %vm490 = vcmp.le.s32.totalorder %v487, %v472
        %vm491 = vcmp.le.s32.totalorder %v487, %v473
        %vm492 = vcmp.le.s32.totalorder %v487, %v474
        %vm493 = vcmp.le.s32.totalorder %v487, %v475
        %vm494 = vcmp.le.s32.totalorder %v487, %v476
        %vm495 = vcmp.le.s32.totalorder %v487, %v477
        %vm496 = vcmp.le.s32.totalorder %v487, %v478
        %vm497 = vcmp.le.s32.totalorder %v487, %v479
        %vm498 = vcmp.le.s32.totalorder %v487, %v480
        %vm499 = vcmp.le.s32.totalorder %v487, %v481
        %vm500 = vcmp.le.s32.totalorder %v487, %v482
        %vm501 = vcmp.le.s32.totalorder %v487, %v483
        %vm502 = vcmp.le.s32.totalorder %v487, %v484
        %vm503 = vcmp.le.s32.totalorder %v487, %v485
        %v504 = vsel %vm488, 0.0, -1e+30
        %v505 = vsel %vm489, 0.0, -1e+30
        %v506 = vsel %vm490, 0.0, -1e+30
        %v507 = vsel %vm491, 0.0, -1e+30
        %v508 = vsel %vm492, 0.0, -1e+30
        %v509 = vsel %vm493, 0.0, -1e+30
        %v510 = vsel %vm494, 0.0, -1e+30
        %v511 = vsel %vm495, 0.0, -1e+30
        %v512 = vsel %vm496, 0.0, -1e+30
        %v513 = vsel %vm497, 0.0, -1e+30
        %v514 = vsel %vm498, 0.0, -1e+30
        %v515 = vsel %vm499, 0.0, -1e+30
        %v516 = vsel %vm500, 0.0, -1e+30
        %v517 = vsel %vm501, 0.0, -1e+30
        %v518 = vsel %vm502, 0.0, -1e+30
        %v519 = vsel %vm503, 0.0, -1e+30
        %v520 = vld [vmem:[#allocation2] sm:$0xff]
        %v521 = vld [vmem:[#allocation2 + $0x8] sm:$0xff]
        %v522 = vld [vmem:[#allocation2 + $0x10] sm:$0xff]
        %v523 = vld [vmem:[#allocation2 + $0x18] sm:$0xff]
        %v524 = vld [vmem:[#allocation2 + $0x20] sm:$0xff]
        %v525 = vld [vmem:[#allocation2 + $0x28] sm:$0xff]
        %v526 = vld [vmem:[#allocation2 + $0x30] sm:$0xff]
        %v527 = vld [vmem:[#allocation2 + $0x38] sm:$0xff]
        %v528 = vld [vmem:[#allocation2 + $0x40] sm:$0xff]
        %v529 = vld [vmem:[#allocation2 + $0x48] sm:$0xff]
        %v530 = vld [vmem:[#allocation2 + $0x50] sm:$0xff]
        %v531 = vld [vmem:[#allocation2 + $0x58] sm:$0xff]
        %v532 = vld [vmem:[#allocation2 + $0x60] sm:$0xff]
        %v533 = vld [vmem:[#allocation2 + $0x68] sm:$0xff]
        %v534 = vld [vmem:[#allocation2 + $0x70] sm:$0xff]
        %v535 = vld [vmem:[#allocation2 + $0x78] sm:$0xff]
        %536 = vadd.xlane.f32.xlu0 %v520
        %v537 = vpop.xlane.xlu0 %536
        %538 = vadd.xlane.f32.xlu0 %v521
        %v539 = vpop.xlane.xlu0 %538
        %540 = vadd.xlane.f32.xlu0 %v522
        %v541 = vpop.xlane.xlu0 %540
        %542 = vadd.xlane.f32.xlu0 %v523
        %v543 = vpop.xlane.xlu0 %542
        %544 = vadd.xlane.f32.xlu0 %v524
        %v545 = vpop.xlane.xlu0 %544
        %546 = vadd.xlane.f32.xlu0 %v525
        %v547 = vpop.xlane.xlu0 %546
        %548 = vadd.xlane.f32.xlu0 %v526
        %v549 = vpop.xlane.xlu0 %548
        %550 = vadd.xlane.f32.xlu0 %v527
        %v551 = vpop.xlane.xlu0 %550
        %552 = vadd.xlane.f32.xlu0 %v528
        %v553 = vpop.xlane.xlu0 %552
        %554 = vadd.xlane.f32.xlu0 %v529
        %v555 = vpop.xlane.xlu0 %554
        %556 = vadd.xlane.f32.xlu0 %v530
        %v557 = vpop.xlane.xlu0 %556
        %558 = vadd.xlane.f32.xlu0 %v531
        %v559 = vpop.xlane.xlu0 %558
        %560 = vadd.xlane.f32.xlu0 %v532
        %v561 = vpop.xlane.xlu0 %560
        %562 = vadd.xlane.f32.xlu0 %v533
        %v563 = vpop.xlane.xlu0 %562
        %564 = vadd.xlane.f32.xlu0 %v534
        %v565 = vpop.xlane.xlu0 %564
        %566 = vadd.xlane.f32.xlu0 %v535
        %v567 = vpop.xlane.xlu0 %566
        %v568 = vrcp.pop 128.0
        %v569 = vmul.f32 %v537, %v568
        %v570 = vmul.f32 %v539, %v568
        %v571 = vmul.f32 %v541, %v568
        %v572 = vmul.f32 %v543, %v568
        %v573 = vmul.f32 %v545, %v568
        %v574 = vmul.f32 %v547, %v568
        %v575 = vmul.f32 %v549, %v568
        %v576 = vmul.f32 %v551, %v568
        %v577 = vmul.f32 %v553, %v568
        %v578 = vmul.f32 %v555, %v568
        %v579 = vmul.f32 %v557, %v568
        %v580 = vmul.f32 %v559, %v568
        %v581 = vmul.f32 %v561, %v568
        %v582 = vmul.f32 %v563, %v568
        %v583 = vmul.f32 %v565, %v568
        %v584 = vmul.f32 %v567, %v568
        %v585 = vsub.f32 %v520, %v569
        %v586 = vsub.f32 %v521, %v570
        %v587 = vsub.f32 %v522, %v571
        %v588 = vsub.f32 %v523, %v572
        %v589 = vsub.f32 %v524, %v573
        %v590 = vsub.f32 %v525, %v574
        %v591 = vsub.f32 %v526, %v575
        %v592 = vsub.f32 %v527, %v576
        %v593 = vsub.f32 %v528, %v577
        %v594 = vsub.f32 %v529, %v578
        %v595 = vsub.f32 %v530, %v579
        %v596 = vsub.f32 %v531, %v580
        %v597 = vsub.f32 %v532, %v581
        %v598 = vsub.f32 %v533, %v582
        %v599 = vsub.f32 %v534, %v583
        %v600 = vsub.f32 %v535, %v584
        %v601 = vmul.f32 %v585, %v585
        %v602 = vmul.f32 %v586, %v586
        %v603 = vmul.f32 %v587, %v587
        %v604 = vmul.f32 %v588, %v588
        %v605 = vmul.f32 %v589, %v589
        %v606 = vmul.f32 %v590, %v590
        %v607 = vmul.f32 %v591, %v591
        %v608 = vmul.f32 %v592, %v592
        %v609 = vmul.f32 %v593, %v593
        %v610 = vmul.f32 %v594, %v594
        %v611 = vmul.f32 %v595, %v595
        %v612 = vmul.f32 %v596, %v596
        %v613 = vmul.f32 %v597, %v597
        %v614 = vmul.f32 %v598, %v598
        %v615 = vmul.f32 %v599, %v599
        %v616 = vmul.f32 %v600, %v600
        %617 = vadd.xlane.f32.xlu0 %v601
        %v618 = vpop.xlane.xlu0 %617
        %619 = vadd.xlane.f32.xlu0 %v602
        %v620 = vpop.xlane.xlu0 %619
        %621 = vadd.xlane.f32.xlu0 %v603
        %v622 = vpop.xlane.xlu0 %621
        %623 = vadd.xlane.f32.xlu0 %v604
        %v624 = vpop.xlane.xlu0 %623
        %625 = vadd.xlane.f32.xlu0 %v605
        %v626 = vpop.xlane.xlu0 %625
        %627 = vadd.xlane.f32.xlu0 %v606
        %v628 = vpop.xlane.xlu0 %627
        %629 = vadd.xlane.f32.xlu0 %v607
        %v630 = vpop.xlane.xlu0 %629
        %631 = vadd.xlane.f32.xlu0 %v608
        %v632 = vpop.xlane.xlu0 %631
        %633 = vadd.xlane.f32.xlu0 %v609
        %v634 = vpop.xlane.xlu0 %633
        %635 = vadd.xlane.f32.xlu0 %v610
        %v636 = vpop.xlane.xlu0 %635
        %637 = vadd.xlane.f32.xlu0 %v611
        %v638 = vpop.xlane.xlu0 %637
        %639 = vadd.xlane.f32.xlu0 %v612
        %v640 = vpop.xlane.xlu0 %639
        %641 = vadd.xlane.f32.xlu0 %v613
        %v642 = vpop.xlane.xlu0 %641
        %643 = vadd.xlane.f32.xlu0 %v614
        %v644 = vpop.xlane.xlu0 %643
        %645 = vadd.xlane.f32.xlu0 %v615
        %v646 = vpop.xlane.xlu0 %645
        %647 = vadd.xlane.f32.xlu0 %v616
        %v648 = vpop.xlane.xlu0 %647
        %v649 = vmul.f32 %v618, %v568
        %v650 = vmul.f32 %v620, %v568
        %v651 = vmul.f32 %v622, %v568
        %v652 = vmul.f32 %v624, %v568
        %v653 = vmul.f32 %v626, %v568
        %v654 = vmul.f32 %v628, %v568
        %v655 = vmul.f32 %v630, %v568
        %v656 = vmul.f32 %v632, %v568
        %v657 = vmul.f32 %v634, %v568
        %v658 = vmul.f32 %v636, %v568
        %v659 = vmul.f32 %v638, %v568
        %v660 = vmul.f32 %v640, %v568
        %v661 = vmul.f32 %v642, %v568
        %v662 = vmul.f32 %v644, %v568
        %v663 = vmul.f32 %v646, %v568
        %v664 = vmul.f32 %v648, %v568
        %v665 = vadd.f32 %v649, 1e-05
        %v666 = vadd.f32 %v650, 1e-05
        %v667 = vadd.f32 %v651, 1e-05
        %v668 = vadd.f32 %v652, 1e-05
        %v669 = vadd.f32 %v653, 1e-05
        %v670 = vadd.f32 %v654, 1e-05
        %v671 = vadd.f32 %v655, 1e-05
        %v672 = vadd.f32 %v656, 1e-05
        %v673 = vadd.f32 %v657, 1e-05
        %v674 = vadd.f32 %v658, 1e-05
        %v675 = vadd.f32 %v659, 1e-05
        %v676 = vadd.f32 %v660, 1e-05
        %v677 = vadd.f32 %v661, 1e-05
        %v678 = vadd.f32 %v662, 1e-05
        %v679 = vadd.f32 %v663, 1e-05
        %v680 = vadd.f32 %v664, 1e-05
        %v681 = vrsqrt.pop %v665
        %v682 = vrsqrt.pop %v666
        %v683 = vrsqrt.pop %v667
        %v684 = vrsqrt.pop %v668
        %v685 = vrsqrt.pop %v669
        %v686 = vrsqrt.pop %v670
        %v687 = vrsqrt.pop %v671
        %v688 = vrsqrt.pop %v672
        %v689 = vrsqrt.pop %v673
        %v690 = vrsqrt.pop %v674
        %v691 = vrsqrt.pop %v675
        %v692 = vrsqrt.pop %v676
        %v693 = vrsqrt.pop %v677
        %v694 = vrsqrt.pop %v678
        %v695 = vrsqrt.pop %v679
        %v696 = vrsqrt.pop %v680
        %v697 = vmul.f32 %v585, %v681
        %v698 = vmul.f32 %v586, %v682
        %v699 = vmul.f32 %v587, %v683
        %v700 = vmul.f32 %v588, %v684
        %v701 = vmul.f32 %v589, %v685
        %v702 = vmul.f32 %v590, %v686
        %v703 = vmul.f32 %v591, %v687
        %v704 = vmul.f32 %v592, %v688
        %v705 = vmul.f32 %v593, %v689
        %v706 = vmul.f32 %v594, %v690
        %v707 = vmul.f32 %v595, %v691
        %v708 = vmul.f32 %v596, %v692
        %v709 = vmul.f32 %v597, %v693
        %v710 = vmul.f32 %v598, %v694
        %v711 = vmul.f32 %v599, %v695
        %v712 = vmul.f32 %v600, %v696
        %v713 = vld [vmem:[%s389] sm:$0x1]
        %v715 = vlaneseq
        %v716 = vshrl.u32 %v715, 7
        %v717 = vsub.s32 0, %v716
        %v718 = vrot.slane %v713, %v717
        %v720 = vmul.f32 %v697, %v718
        %v721 = vmul.f32 %v698, %v718
        %v722 = vmul.f32 %v699, %v718
        %v723 = vmul.f32 %v700, %v718
        %v724 = vmul.f32 %v701, %v718
        %v725 = vmul.f32 %v702, %v718
        %v726 = vmul.f32 %v703, %v718
        %v727 = vmul.f32 %v704, %v718
        %v728 = vmul.f32 %v705, %v718
        %v729 = vmul.f32 %v706, %v718
        %v730 = vmul.f32 %v707, %v718
        %v731 = vmul.f32 %v708, %v718
        %v732 = vmul.f32 %v709, %v718
        %v733 = vmul.f32 %v710, %v718
        %v734 = vmul.f32 %v711, %v718
        %v735 = vmul.f32 %v712, %v718
        %v736 = vpack.c.bf16 %v721, %v720
        %v737 = vpack.c.bf16 %v723, %v722
        %v738 = vpack.c.bf16 %v725, %v724
        %v739 = vpack.c.bf16 %v727, %v726
        %v740 = vpack.c.bf16 %v729, %v728
        %v741 = vpack.c.bf16 %v731, %v730
        %v742 = vpack.c.bf16 %v733, %v732
        %v743 = vpack.c.bf16 %v735, %v734
        %v744 = vld [vmem:[%s396] sm:$0xff]
        %v745 = vld [vmem:[%s396 + $0x8] sm:$0xff]
        %v746 = vld [vmem:[%s396 + $0x10] sm:$0xff]
        %v747 = vld [vmem:[%s396 + $0x18] sm:$0xff]
        %v748 = vld [vmem:[%s396 + $0x20] sm:$0xf]
        %v749 = vld [vmem:[%s396 + $0x24] sm:$0xff]
        %v750 = vld [vmem:[%s396 + $0x2c] sm:$0xff]
        %v751 = vld [vmem:[%s396 + $0x34] sm:$0xff]
        %v752 = vld [vmem:[%s396 + $0x3c] sm:$0xff]
        %v753 = vld [vmem:[%s396 + $0x44] sm:$0xf]
        %v754 = vld [vmem:[%s396 + $0x48] sm:$0xff]
        %v755 = vld [vmem:[%s396 + $0x50] sm:$0xff]
        %v756 = vld [vmem:[%s396 + $0x58] sm:$0xff]
        %v757 = vld [vmem:[%s396 + $0x60] sm:$0xff]
        %v758 = vld [vmem:[%s396 + $0x68] sm:$0xf]
        %v759 = vld [vmem:[%s396 + $0x6c] sm:$0xff]
        %v760 = vld [vmem:[%s396 + $0x74] sm:$0xff]
        %v761 = vld [vmem:[%s396 + $0x7c] sm:$0xff]
        %v762 = vld [vmem:[%s396 + $0x84] sm:$0xff]
        %v763 = vld [vmem:[%s396 + $0x8c] sm:$0xf]
        %v764 = vld [vmem:[%s396 + $0x90] sm:$0xff]
        %v765 = vld [vmem:[%s396 + $0x98] sm:$0xff]
        %v766 = vld [vmem:[%s396 + $0xa0] sm:$0xff]
        %v767 = vld [vmem:[%s396 + $0xa8] sm:$0xff]
        %v768 = vld [vmem:[%s396 + $0xb0] sm:$0xf]
        %v769 = vld [vmem:[%s396 + $0xb4] sm:$0xff]
        %v770 = vld [vmem:[%s396 + $0xbc] sm:$0xff]
        %v771 = vld [vmem:[%s396 + $0xc4] sm:$0xff]
        %v772 = vld [vmem:[%s396 + $0xcc] sm:$0xff]
        %v773 = vld [vmem:[%s396 + $0xd4] sm:$0xf]
        %v774 = vld [vmem:[%s396 + $0xd8] sm:$0xff]
        %v775 = vld [vmem:[%s396 + $0xe0] sm:$0xff]
        %v776 = vld [vmem:[%s396 + $0xe8] sm:$0xff]
        %v777 = vld [vmem:[%s396 + $0xf0] sm:$0xff]
        %v778 = vld [vmem:[%s396 + $0xf8] sm:$0xf]
        %v779 = vld [vmem:[%s396 + $0xfc] sm:$0xff]
        %v780 = vld [vmem:[%s396 + $0x104] sm:$0xff]
        %v781 = vld [vmem:[%s396 + $0x10c] sm:$0xff]
        %v782 = vld [vmem:[%s396 + $0x114] sm:$0xff]
        %v783 = vld [vmem:[%s396 + $0x11c] sm:$0xf]
        %v784 = vld [vmem:[%s396 + $0x120] sm:$0xff]
        %v785 = vld [vmem:[%s396 + $0x128] sm:$0xff]
        %v786 = vld [vmem:[%s396 + $0x130] sm:$0xff]
        %v787 = vld [vmem:[%s396 + $0x138] sm:$0xff]
        %v788 = vld [vmem:[%s396 + $0x140] sm:$0xf]
        %v789 = vld [vmem:[%s396 + $0x144] sm:$0xff]
        %v790 = vld [vmem:[%s396 + $0x14c] sm:$0xff]
        %v791 = vld [vmem:[%s396 + $0x154] sm:$0xff]
        %v792 = vld [vmem:[%s396 + $0x15c] sm:$0xff]
        %v793 = vld [vmem:[%s396 + $0x164] sm:$0xf]
        %v794 = vld [vmem:[%s396 + $0x168] sm:$0xff]
        %v795 = vld [vmem:[%s396 + $0x170] sm:$0xff]
        %v796 = vld [vmem:[%s396 + $0x178] sm:$0xff]
        %v797 = vld [vmem:[%s396 + $0x180] sm:$0xff]
        %v798 = vld [vmem:[%s396 + $0x188] sm:$0xf]
        %v799 = vld [vmem:[%s396 + $0x18c] sm:$0xff]
        %v800 = vld [vmem:[%s396 + $0x194] sm:$0xff]
        %v801 = vld [vmem:[%s396 + $0x19c] sm:$0xff]
        %v802 = vld [vmem:[%s396 + $0x1a4] sm:$0xff]
        %v803 = vld [vmem:[%s396 + $0x1ac] sm:$0xf]
        %v804 = vld [vmem:[%s396 + $0x1b0] sm:$0xff]
        %v805 = vld [vmem:[%s396 + $0x1b8] sm:$0xff]
        %v806 = vld [vmem:[%s396 + $0x1c0] sm:$0xff]
        %v807 = vld [vmem:[%s396 + $0x1c8] sm:$0xff]
        %v808 = vld [vmem:[%s396 + $0x1d0] sm:$0xf]
        %v809 = vld [vmem:[%s396 + $0x1d4] sm:$0xff]
        %v810 = vld [vmem:[%s396 + $0x1dc] sm:$0xff]
        %v811 = vld [vmem:[%s396 + $0x1e4] sm:$0xff]
        %v812 = vld [vmem:[%s396 + $0x1ec] sm:$0xff]
        %v813 = vld [vmem:[%s396 + $0x1f4] sm:$0xf]
        %v814 = vld [vmem:[%s396 + $0x1f8] sm:$0xff]
        %v815 = vld [vmem:[%s396 + $0x200] sm:$0xff]
        %v816 = vld [vmem:[%s396 + $0x208] sm:$0xff]
        %v817 = vld [vmem:[%s396 + $0x210] sm:$0xff]
        %v818 = vld [vmem:[%s396 + $0x218] sm:$0xf]
        %v819 = vld [vmem:[%s396 + $0x21c] sm:$0xff]
        %v820 = vld [vmem:[%s396 + $0x224] sm:$0xff]
        %v821 = vld [vmem:[%s396 + $0x22c] sm:$0xff]
        %v822 = vld [vmem:[%s396 + $0x234] sm:$0xff]
        %v823 = vld [vmem:[%s396 + $0x23c] sm:$0xf]
        %v904 = vunpack.c.l.b16 %v744
        %v905 = vunpack.c.h.b16 %v744
        %v906 = vunpack.c.l.b16 %v745
        %v907 = vunpack.c.h.b16 %v745
        %v908 = vunpack.c.l.b16 %v746
        %v909 = vunpack.c.h.b16 %v746
        %v910 = vunpack.c.l.b16 %v747
        %v911 = vunpack.c.h.b16 %v747
        %v912 = vunpack.c.l.b16 %v748
        %v913 = vunpack.c.l.b16 %v749
        %v914 = vunpack.c.h.b16 %v749
        %v915 = vunpack.c.l.b16 %v750
        %v916 = vunpack.c.h.b16 %v750
        %v917 = vunpack.c.l.b16 %v751
        %v918 = vunpack.c.h.b16 %v751
        %v919 = vunpack.c.l.b16 %v752
        %v920 = vunpack.c.h.b16 %v752
        %v921 = vunpack.c.l.b16 %v753
        %v922 = vunpack.c.l.b16 %v754
        %v923 = vunpack.c.h.b16 %v754
        %v924 = vunpack.c.l.b16 %v755
        %v925 = vunpack.c.h.b16 %v755
        %v926 = vunpack.c.l.b16 %v756
        %v927 = vunpack.c.h.b16 %v756
        %v928 = vunpack.c.l.b16 %v757
        %v929 = vunpack.c.h.b16 %v757
        %v930 = vunpack.c.l.b16 %v758
        %v931 = vunpack.c.l.b16 %v759
        %v932 = vunpack.c.h.b16 %v759
        %v933 = vunpack.c.l.b16 %v760
        %v934 = vunpack.c.h.b16 %v760
        %v935 = vunpack.c.l.b16 %v761
        %v936 = vunpack.c.h.b16 %v761
        %v937 = vunpack.c.l.b16 %v762
        %v938 = vunpack.c.h.b16 %v762
        %v939 = vunpack.c.l.b16 %v763
        %v940 = vunpack.c.l.b16 %v764
        %v941 = vunpack.c.h.b16 %v764
        %v942 = vunpack.c.l.b16 %v765
        %v943 = vunpack.c.h.b16 %v765
        %v944 = vunpack.c.l.b16 %v766
        %v945 = vunpack.c.h.b16 %v766
        %v946 = vunpack.c.l.b16 %v767
        %v947 = vunpack.c.h.b16 %v767
        %v948 = vunpack.c.l.b16 %v768
        %v949 = vunpack.c.l.b16 %v769
        %v950 = vunpack.c.h.b16 %v769
        %v951 = vunpack.c.l.b16 %v770
        %v952 = vunpack.c.h.b16 %v770
        %v953 = vunpack.c.l.b16 %v771
        %v954 = vunpack.c.h.b16 %v771
        %v955 = vunpack.c.l.b16 %v772
        %v956 = vunpack.c.h.b16 %v772
        %v957 = vunpack.c.l.b16 %v773
        %v958 = vunpack.c.l.b16 %v774
        %v959 = vunpack.c.h.b16 %v774
        %v960 = vunpack.c.l.b16 %v775
        %v961 = vunpack.c.h.b16 %v775
        %v962 = vunpack.c.l.b16 %v776
        %v963 = vunpack.c.h.b16 %v776
        %v964 = vunpack.c.l.b16 %v777
        %v965 = vunpack.c.h.b16 %v777
        %v966 = vunpack.c.l.b16 %v778
        %v967 = vunpack.c.l.b16 %v779
        %v968 = vunpack.c.h.b16 %v779
        %v969 = vunpack.c.l.b16 %v780
        %v970 = vunpack.c.h.b16 %v780
        %v971 = vunpack.c.l.b16 %v781
        %v972 = vunpack.c.h.b16 %v781
        %v973 = vunpack.c.l.b16 %v782
        %v974 = vunpack.c.h.b16 %v782
        %v975 = vunpack.c.l.b16 %v783
        %v976 = vunpack.c.l.b16 %v784
        %v977 = vunpack.c.h.b16 %v784
        %v978 = vunpack.c.l.b16 %v785
        %v979 = vunpack.c.h.b16 %v785
        %v980 = vunpack.c.l.b16 %v786
        %v981 = vunpack.c.h.b16 %v786
        %v982 = vunpack.c.l.b16 %v787
        %v983 = vunpack.c.h.b16 %v787
        %v984 = vunpack.c.l.b16 %v788
        %v985 = vunpack.c.l.b16 %v789
        %v986 = vunpack.c.h.b16 %v789
        %v987 = vunpack.c.l.b16 %v790
        %v988 = vunpack.c.h.b16 %v790
        %v989 = vunpack.c.l.b16 %v791
        %v990 = vunpack.c.h.b16 %v791
        %v991 = vunpack.c.l.b16 %v792
        %v992 = vunpack.c.h.b16 %v792
        %v993 = vunpack.c.l.b16 %v793
        %v994 = vunpack.c.l.b16 %v794
        %v995 = vunpack.c.h.b16 %v794
        %v996 = vunpack.c.l.b16 %v795
        %v997 = vunpack.c.h.b16 %v795
        %v998 = vunpack.c.l.b16 %v796
        %v999 = vunpack.c.h.b16 %v796
        %v1000 = vunpack.c.l.b16 %v797
        %v1001 = vunpack.c.h.b16 %v797
        %v1002 = vunpack.c.l.b16 %v798
        %v1003 = vunpack.c.l.b16 %v799
        %v1004 = vunpack.c.h.b16 %v799
        %v1005 = vunpack.c.l.b16 %v800
        %v1006 = vunpack.c.h.b16 %v800
        %v1007 = vunpack.c.l.b16 %v801
        %v1008 = vunpack.c.h.b16 %v801
        %v1009 = vunpack.c.l.b16 %v802
        %v1010 = vunpack.c.h.b16 %v802
        %v1011 = vunpack.c.l.b16 %v803
        %v1012 = vunpack.c.l.b16 %v804
        %v1013 = vunpack.c.h.b16 %v804
        %v1014 = vunpack.c.l.b16 %v805
        %v1015 = vunpack.c.h.b16 %v805
        %v1016 = vunpack.c.l.b16 %v806
        %v1017 = vunpack.c.h.b16 %v806
        %v1018 = vunpack.c.l.b16 %v807
        %v1019 = vunpack.c.h.b16 %v807
        %v1020 = vunpack.c.l.b16 %v808
        %v1021 = vunpack.c.l.b16 %v809
        %v1022 = vunpack.c.h.b16 %v809
        %v1023 = vunpack.c.l.b16 %v810
        %v1024 = vunpack.c.h.b16 %v810
        %v1025 = vunpack.c.l.b16 %v811
        %v1026 = vunpack.c.h.b16 %v811
        %v1027 = vunpack.c.l.b16 %v812
        %v1028 = vunpack.c.h.b16 %v812
        %v1029 = vunpack.c.l.b16 %v813
        %v1030 = vunpack.c.l.b16 %v814
        %v1031 = vunpack.c.h.b16 %v814
        %v1032 = vunpack.c.l.b16 %v815
        %v1033 = vunpack.c.h.b16 %v815
        %v1034 = vunpack.c.l.b16 %v816
        %v1035 = vunpack.c.h.b16 %v816
        %v1036 = vunpack.c.l.b16 %v817
        %v1037 = vunpack.c.h.b16 %v817
        %v1038 = vunpack.c.l.b16 %v818
        %v1039 = vunpack.c.l.b16 %v819
        %v1040 = vunpack.c.h.b16 %v819
        %v1041 = vunpack.c.l.b16 %v820
        %v1042 = vunpack.c.h.b16 %v820
        %v1043 = vunpack.c.l.b16 %v821
        %v1044 = vunpack.c.h.b16 %v821
        %v1045 = vunpack.c.l.b16 %v822
        %v1046 = vunpack.c.h.b16 %v822
        %v1047 = vunpack.c.l.b16 %v823
        %v1048 = vpack.c.b16 %v913, %v904
        %v1049 = vpack.c.b16 %v914, %v905
        %v1050 = vpack.c.b16 %v915, %v906
        %v1051 = vpack.c.b16 %v916, %v907
        %v1052 = vpack.c.b16 %v917, %v908
        %v1053 = vpack.c.b16 %v918, %v909
        %v1054 = vpack.c.b16 %v919, %v910
        %v1055 = vpack.c.b16 %v920, %v911
        %v1056 = vpack.c.b16 %v921, %v912
        %v1057 = vpack.c.b16 %v931, %v922
        %v1058 = vpack.c.b16 %v932, %v923
        %v1059 = vpack.c.b16 %v933, %v924
        %v1060 = vpack.c.b16 %v934, %v925
        %v1061 = vpack.c.b16 %v935, %v926
        %v1062 = vpack.c.b16 %v936, %v927
        %v1063 = vpack.c.b16 %v937, %v928
        %v1064 = vpack.c.b16 %v938, %v929
        %v1065 = vpack.c.b16 %v939, %v930
        %v1066 = vpack.c.b16 %v949, %v940
        %v1067 = vpack.c.b16 %v950, %v941
        %v1068 = vpack.c.b16 %v951, %v942
        %v1069 = vpack.c.b16 %v952, %v943
        %v1070 = vpack.c.b16 %v953, %v944
        %v1071 = vpack.c.b16 %v954, %v945
        %v1072 = vpack.c.b16 %v955, %v946
        %v1073 = vpack.c.b16 %v956, %v947
        %v1074 = vpack.c.b16 %v957, %v948
        %v1075 = vpack.c.b16 %v967, %v958
        %v1076 = vpack.c.b16 %v968, %v959
        %v1077 = vpack.c.b16 %v969, %v960
        %v1078 = vpack.c.b16 %v970, %v961
        %v1079 = vpack.c.b16 %v971, %v962
        %v1080 = vpack.c.b16 %v972, %v963
        %v1081 = vpack.c.b16 %v973, %v964
        %v1082 = vpack.c.b16 %v974, %v965
        %v1083 = vpack.c.b16 %v975, %v966
        %v1084 = vpack.c.b16 %v985, %v976
        %v1085 = vpack.c.b16 %v986, %v977
        %v1086 = vpack.c.b16 %v987, %v978
        %v1087 = vpack.c.b16 %v988, %v979
        %v1088 = vpack.c.b16 %v989, %v980
        %v1089 = vpack.c.b16 %v990, %v981
        %v1090 = vpack.c.b16 %v991, %v982
        %v1091 = vpack.c.b16 %v992, %v983
        %v1092 = vpack.c.b16 %v993, %v984
        %v1093 = vpack.c.b16 %v1003, %v994
        %v1094 = vpack.c.b16 %v1004, %v995
        %v1095 = vpack.c.b16 %v1005, %v996
        %v1096 = vpack.c.b16 %v1006, %v997
        %v1097 = vpack.c.b16 %v1007, %v998
        %v1098 = vpack.c.b16 %v1008, %v999
        %v1099 = vpack.c.b16 %v1009, %v1000
        %v1100 = vpack.c.b16 %v1010, %v1001
        %v1101 = vpack.c.b16 %v1011, %v1002
        %v1102 = vpack.c.b16 %v1021, %v1012
        %v1103 = vpack.c.b16 %v1022, %v1013
        %v1104 = vpack.c.b16 %v1023, %v1014
        %v1105 = vpack.c.b16 %v1024, %v1015
        %v1106 = vpack.c.b16 %v1025, %v1016
        %v1107 = vpack.c.b16 %v1026, %v1017
        %v1108 = vpack.c.b16 %v1027, %v1018
        %v1109 = vpack.c.b16 %v1028, %v1019
        %v1110 = vpack.c.b16 %v1029, %v1020
        %v1111 = vpack.c.b16 %v1039, %v1030
        %v1112 = vpack.c.b16 %v1040, %v1031
        %v1113 = vpack.c.b16 %v1041, %v1032
        %v1114 = vpack.c.b16 %v1042, %v1033
        %v1115 = vpack.c.b16 %v1043, %v1034
        %v1116 = vpack.c.b16 %v1044, %v1035
        %v1117 = vpack.c.b16 %v1045, %v1036
        %v1118 = vpack.c.b16 %v1046, %v1037
        %v1119 = vpack.c.b16 %v1047, %v1038
        %1192 = vmatprep.subr.bf16.mxu0 %v1049
        %1193 = vmatpush1.bf16.msra.mxu0 %v1048
        %1194 = vmatprep.subr.bf16.mxu0 %v1058
        %1195 = vmatpush1.bf16.msra.mxu0 %v1057
        %1196 = vmatprep.subr.bf16.mxu0 %v1067
        %1197 = vmatpush1.bf16.msra.mxu0 %v1066
        %1198 = vmatprep.subr.bf16.mxu0 %v1076
        %1199 = vmatpush1.bf16.msra.mxu0 %v1075
        %1200 = vmatprep.subr.bf16.mxu0 %v1085
        %1201 = vmatpush1.bf16.msra.mxu0 %v1084
        %1202 = vmatprep.subr.bf16.mxu0 %v1094
        %1203 = vmatpush1.bf16.msra.mxu0 %v1093
        %1204 = vmatprep.subr.bf16.mxu0 %v1103
        %1205 = vmatpush1.bf16.msra.mxu0 %v1102
        %1206 = vmatprep.subr.bf16.mxu0 %v1112
        %1207 = vmatpush1.bf16.msra.mxu0 %v1111
        %1208 = vmatprep.subr.bf16.mxu0 0
        %1209 = vmatpush1.bf16.msra.mxu0 0
        %1210 = vmatprep.subr.bf16.mxu0 0
        %1211 = vmatpush1.bf16.msra.mxu0 0
        %1212 = vmatprep.subr.bf16.mxu0 0
        %1213 = vmatpush1.bf16.msra.mxu0 0
        %1214 = vmatprep.subr.bf16.mxu0 0
        %1215 = vmatpush1.bf16.msra.mxu0 0
        %1216 = vmatprep.subr.bf16.mxu0 0
        %1217 = vmatpush1.bf16.msra.mxu0 0
        %1218 = vmatprep.subr.bf16.mxu0 0
        %1219 = vmatpush1.bf16.msra.mxu0 0
        %1220 = vmatprep.subr.bf16.mxu0 0
        %1221 = vmatpush1.bf16.msra.mxu0 0
        %1222 = vmatprep.subr.bf16.mxu0 0
        %1223 = vmatpush1.bf16.msra.mxu0 0
        %1224 = vmatprep.mubr.bf16.mxu0 0
        %1225 = vmatmul.mubr.bf16.gmra.mrb[0].mxu0 %v736
        %v1226 = vpop.f32.mrb[0].mxu0
        %v1227 = vadd.f32 0.0, %v1226
        %v1228 = vpop.f32.mrb[0].mxu0
        %v1229 = vadd.f32 0.0, %v1228
        %v1230 = vpop.f32.mrb[0].mxu0
        %v1231 = vadd.f32 0.0, %v1230
        %v1232 = vpop.f32.mrb[0].mxu0
        %v1233 = vadd.f32 0.0, %v1232
        %1234 = vmatprep.mubr.bf16.mxu0 0
        %1235 = vmatmul.mubr.bf16.gmra.mrb[0].mxu0 %v737
        %v1236 = vpop.f32.mrb[0].mxu0
        %v1237 = vadd.f32 0.0, %v1236
        %v1238 = vpop.f32.mrb[0].mxu0
        %v1239 = vadd.f32 0.0, %v1238
        %v1240 = vpop.f32.mrb[0].mxu0
        %v1241 = vadd.f32 0.0, %v1240
        %v1242 = vpop.f32.mrb[0].mxu0
        %v1243 = vadd.f32 0.0, %v1242
        %1244 = vmatprep.mubr.bf16.mxu0 0
        %1245 = vmatmul.mubr.bf16.gmra.mrb[0].mxu0 %v738
        %v1246 = vpop.f32.mrb[0].mxu0
        %v1247 = vadd.f32 0.0, %v1246
        %v1248 = vpop.f32.mrb[0].mxu0
        %v1249 = vadd.f32 0.0, %v1248
        %v1250 = vpop.f32.mrb[0].mxu0
        %v1251 = vadd.f32 0.0, %v1250
        %v1252 = vpop.f32.mrb[0].mxu0
        %v1253 = vadd.f32 0.0, %v1252
        %1254 = vmatprep.mubr.bf16.mxu0 0
        %1255 = vmatmul.mubr.bf16.gmra.mrb[0].mxu0 %v739
        %v1256 = vpop.f32.mrb[0].mxu0
        %v1257 = vadd.f32 0.0, %v1256
        %v1258 = vpop.f32.mrb[0].mxu0
        %v1259 = vadd.f32 0.0, %v1258
        %v1260 = vpop.f32.mrb[0].mxu0
        %v1261 = vadd.f32 0.0, %v1260
        %v1262 = vpop.f32.mrb[0].mxu0
        %v1263 = vadd.f32 0.0, %v1262
        %1264 = vmatprep.mubr.bf16.mxu0 0
        %1265 = vmatmul.mubr.bf16.gmra.mrb[0].mxu0 %v740
        %v1266 = vpop.f32.mrb[0].mxu0
        %v1267 = vadd.f32 0.0, %v1266
        %v1268 = vpop.f32.mrb[0].mxu0
        %v1269 = vadd.f32 0.0, %v1268
        %v1270 = vpop.f32.mrb[0].mxu0
        %v1271 = vadd.f32 0.0, %v1270
        %v1272 = vpop.f32.mrb[0].mxu0
        %v1273 = vadd.f32 0.0, %v1272
        %1274 = vmatprep.mubr.bf16.mxu0 0
        %1275 = vmatmul.mubr.bf16.gmra.mrb[0].mxu0 %v741
        %v1276 = vpop.f32.mrb[0].mxu0
        %v1277 = vadd.f32 0.0, %v1276
        %v1278 = vpop.f32.mrb[0].mxu0
        %v1279 = vadd.f32 0.0, %v1278
        %v1280 = vpop.f32.mrb[0].mxu0
        %v1281 = vadd.f32 0.0, %v1280
        %v1282 = vpop.f32.mrb[0].mxu0
        %v1283 = vadd.f32 0.0, %v1282
        %1284 = vmatprep.mubr.bf16.mxu0 0
        %1285 = vmatmul.mubr.bf16.gmra.mrb[0].mxu0 %v742
        %v1286 = vpop.f32.mrb[0].mxu0
        %v1287 = vadd.f32 0.0, %v1286
        %v1288 = vpop.f32.mrb[0].mxu0
        %v1289 = vadd.f32 0.0, %v1288
        %v1290 = vpop.f32.mrb[0].mxu0
        %v1291 = vadd.f32 0.0, %v1290
        %v1292 = vpop.f32.mrb[0].mxu0
        %v1293 = vadd.f32 0.0, %v1292
        %1294 = vmatprep.mubr.bf16.mxu0 0
        %1295 = vmatmul.mubr.bf16.gmra.mrb[0].mxu0 %v743
        %v1296 = vpop.f32.mrb[0].mxu0
        %v1297 = vadd.f32 0.0, %v1296
        %v1298 = vpop.f32.mrb[0].mxu0
        %v1299 = vadd.f32 0.0, %v1298
        %v1300 = vpop.f32.mrb[0].mxu0
        %v1301 = vadd.f32 0.0, %v1300
        %v1302 = vpop.f32.mrb[0].mxu0
        %v1303 = vadd.f32 0.0, %v1302
        %1304 = vdwg.mxu0
        %1305 = vmatprep.subr.bf16.mxu0 %v1051
        %1306 = vmatpush1.bf16.msra.mxu0 %v1050
        %1307 = vmatprep.subr.bf16.mxu0 %v1060
        %1308 = vmatpush1.bf16.msra.mxu0 %v1059
        %1309 = vmatprep.subr.bf16.mxu0 %v1069
        %1310 = vmatpush1.bf16.msra.mxu0 %v1068
        %1311 = vmatprep.subr.bf16.mxu0 %v1078
        %1312 = vmatpush1.bf16.msra.mxu0 %v1077
        %1313 = vmatprep.subr.bf16.mxu0 %v1087
        %1314 = vmatpush1.bf16.msra.mxu0 %v1086
        %1315 = vmatprep.subr.bf16.mxu0 %v1096
        %1316 = vmatpush1.bf16.msra.mxu0 %v1095
        %1317 = vmatprep.subr.bf16.mxu0 %v1105
        %1318 = vmatpush1.bf16.msra.mxu0 %v1104
        %1319 = vmatprep.subr.bf16.mxu0 %v1114
        %1320 = vmatpush1.bf16.msra.mxu0 %v1113
        %1321 = vmatprep.subr.bf16.mxu0 0
        %1322 = vmatpush1.bf16.msra.mxu0 0
        %1323 = vmatprep.subr.bf16.mxu0 0
        %1324 = vmatpush1.bf16.msra.mxu0 0
        %1325 = vmatprep.subr.bf16.mxu0 0
        %1326 = vmatpush1.bf16.msra.mxu0 0
        %1327 = vmatprep.subr.bf16.mxu0 0
        %1328 = vmatpush1.bf16.msra.mxu0 0
        %1329 = vmatprep.subr.bf16.mxu0 0
        %1330 = vmatpush1.bf16.msra.mxu0 0
        %1331 = vmatprep.subr.bf16.mxu0 0
        %1332 = vmatpush1.bf16.msra.mxu0 0
        %1333 = vmatprep.subr.bf16.mxu0 0
        %1334 = vmatpush1.bf16.msra.mxu0 0
        %1335 = vmatprep.subr.bf16.mxu0 0
        %1336 = vmatpush1.bf16.msra.mxu0 0
        %1337 = vmatprep.mubr.bf16.mxu0 0
        %1338 = vmatmul.mubr.bf16.gmra.mrb[0].mxu0 %v736
        %v1339 = vpop.f32.mrb[0].mxu0
        %v1340 = vadd.f32 0.0, %v1339
        %v1341 = vpop.f32.mrb[0].mxu0
        %v1342 = vadd.f32 0.0, %v1341
        %v1343 = vpop.f32.mrb[0].mxu0
        %v1344 = vadd.f32 0.0, %v1343
        %v1345 = vpop.f32.mrb[0].mxu0
        %v1346 = vadd.f32 0.0, %v1345
        %1347 = vmatprep.mubr.bf16.mxu0 0
        %1348 = vmatmul.mubr.bf16.gmra.mrb[0].mxu0 %v737
        %v1349 = vpop.f32.mrb[0].mxu0
        %v1350 = vadd.f32 0.0, %v1349
        %v1351 = vpop.f32.mrb[0].mxu0
        %v1352 = vadd.f32 0.0, %v1351
        %v1353 = vpop.f32.mrb[0].mxu0
        %v1354 = vadd.f32 0.0, %v1353
        %v1355 = vpop.f32.mrb[0].mxu0
        %v1356 = vadd.f32 0.0, %v1355
        %1357 = vmatprep.mubr.bf16.mxu0 0
        %1358 = vmatmul.mubr.bf16.gmra.mrb[0].mxu0 %v738
        %v1359 = vpop.f32.mrb[0].mxu0
        %v1360 = vadd.f32 0.0, %v1359
        %v1361 = vpop.f32.mrb[0].mxu0
        %v1362 = vadd.f32 0.0, %v1361
        %v1363 = vpop.f32.mrb[0].mxu0
        %v1364 = vadd.f32 0.0, %v1363
        %v1365 = vpop.f32.mrb[0].mxu0
        %v1366 = vadd.f32 0.0, %v1365
        %1367 = vmatprep.mubr.bf16.mxu0 0
        %1368 = vmatmul.mubr.bf16.gmra.mrb[0].mxu0 %v739
        %v1369 = vpop.f32.mrb[0].mxu0
        %v1370 = vadd.f32 0.0, %v1369
        %v1371 = vpop.f32.mrb[0].mxu0
        %v1372 = vadd.f32 0.0, %v1371
        %v1373 = vpop.f32.mrb[0].mxu0
        %v1374 = vadd.f32 0.0, %v1373
        %v1375 = vpop.f32.mrb[0].mxu0
        %v1376 = vadd.f32 0.0, %v1375
        %1377 = vmatprep.mubr.bf16.mxu0 0
        %1378 = vmatmul.mubr.bf16.gmra.mrb[0].mxu0 %v740
        %v1379 = vpop.f32.mrb[0].mxu0
        %v1380 = vadd.f32 0.0, %v1379
        %v1381 = vpop.f32.mrb[0].mxu0
        %v1382 = vadd.f32 0.0, %v1381
        %v1383 = vpop.f32.mrb[0].mxu0
        %v1384 = vadd.f32 0.0, %v1383
        %v1385 = vpop.f32.mrb[0].mxu0
        %v1386 = vadd.f32 0.0, %v1385
        %1387 = vmatprep.mubr.bf16.mxu0 0
        %1388 = vmatmul.mubr.bf16.gmra.mrb[0].mxu0 %v741
        %v1389 = vpop.f32.mrb[0].mxu0
        %v1390 = vadd.f32 0.0, %v1389
        %v1391 = vpop.f32.mrb[0].mxu0
        %v1392 = vadd.f32 0.0, %v1391
        %v1393 = vpop.f32.mrb[0].mxu0
        %v1394 = vadd.f32 0.0, %v1393
        %v1395 = vpop.f32.mrb[0].mxu0
        %v1396 = vadd.f32 0.0, %v1395
        %1397 = vmatprep.mubr.bf16.mxu0 0
        %1398 = vmatmul.mubr.bf16.gmra.mrb[0].mxu0 %v742
        %v1399 = vpop.f32.mrb[0].mxu0
        %v1400 = vadd.f32 0.0, %v1399
        %v1401 = vpop.f32.mrb[0].mxu0
        %v1402 = vadd.f32 0.0, %v1401
        %v1403 = vpop.f32.mrb[0].mxu0
        %v1404 = vadd.f32 0.0, %v1403
        %v1405 = vpop.f32.mrb[0].mxu0
        %v1406 = vadd.f32 0.0, %v1405
        %1407 = vmatprep.mubr.bf16.mxu0 0
        %1408 = vmatmul.mubr.bf16.gmra.mrb[0].mxu0 %v743
        %v1409 = vpop.f32.mrb[0].mxu0
        %v1410 = vadd.f32 0.0, %v1409
        %v1411 = vpop.f32.mrb[0].mxu0
        %v1412 = vadd.f32 0.0, %v1411
        %v1413 = vpop.f32.mrb[0].mxu0
        %v1414 = vadd.f32 0.0, %v1413
        %v1415 = vpop.f32.mrb[0].mxu0
        %v1416 = vadd.f32 0.0, %v1415
        %1417 = vdwg.mxu0
        %1418 = vmatprep.subr.bf16.mxu0 %v1053
        %1419 = vmatpush1.bf16.msra.mxu0 %v1052
        %1420 = vmatprep.subr.bf16.mxu0 %v1062
        %1421 = vmatpush1.bf16.msra.mxu0 %v1061
        %1422 = vmatprep.subr.bf16.mxu0 %v1071
        %1423 = vmatpush1.bf16.msra.mxu0 %v1070
        %1424 = vmatprep.subr.bf16.mxu0 %v1080
        %1425 = vmatpush1.bf16.msra.mxu0 %v1079
        %1426 = vmatprep.subr.bf16.mxu0 %v1089
        %1427 = vmatpush1.bf16.msra.mxu0 %v1088
        %1428 = vmatprep.subr.bf16.mxu0 %v1098
        %1429 = vmatpush1.bf16.msra.mxu0 %v1097
        %1430 = vmatprep.subr.bf16.mxu0 %v1107
        %1431 = vmatpush1.bf16.msra.mxu0 %v1106
        %1432 = vmatprep.subr.bf16.mxu0 %v1116
        %1433 = vmatpush1.bf16.msra.mxu0 %v1115
        %1434 = vmatprep.subr.bf16.mxu0 0
        %1435 = vmatpush1.bf16.msra.mxu0 0
        %1436 = vmatprep.subr.bf16.mxu0 0
        %1437 = vmatpush1.bf16.msra.mxu0 0
        %1438 = vmatprep.subr.bf16.mxu0 0
        %1439 = vmatpush1.bf16.msra.mxu0 0
        %1440 = vmatprep.subr.bf16.mxu0 0
        %1441 = vmatpush1.bf16.msra.mxu0 0
        %1442 = vmatprep.subr.bf16.mxu0 0
        %1443 = vmatpush1.bf16.msra.mxu0 0
        %1444 = vmatprep.subr.bf16.mxu0 0
        %1445 = vmatpush1.bf16.msra.mxu0 0
        %1446 = vmatprep.subr.bf16.mxu0 0
        %1447 = vmatpush1.bf16.msra.mxu0 0
        %1448 = vmatprep.subr.bf16.mxu0 0
        %1449 = vmatpush1.bf16.msra.mxu0 0
        %1450 = vmatprep.mubr.bf16.mxu0 0
        %1451 = vmatmul.mubr.bf16.gmra.mrb[0].mxu0 %v736
        %v1452 = vpop.f32.mrb[0].mxu0
        %v1453 = vadd.f32 0.0, %v1452
        %v1454 = vpop.f32.mrb[0].mxu0
        %v1455 = vadd.f32 0.0, %v1454
        %v1456 = vpop.f32.mrb[0].mxu0
        %v1457 = vadd.f32 0.0, %v1456
        %v1458 = vpop.f32.mrb[0].mxu0
        %v1459 = vadd.f32 0.0, %v1458
        %1460 = vmatprep.mubr.bf16.mxu0 0
        %1461 = vmatmul.mubr.bf16.gmra.mrb[0].mxu0 %v737
        %v1462 = vpop.f32.mrb[0].mxu0
        %v1463 = vadd.f32 0.0, %v1462
        %v1464 = vpop.f32.mrb[0].mxu0
        %v1465 = vadd.f32 0.0, %v1464
        %v1466 = vpop.f32.mrb[0].mxu0
        %v1467 = vadd.f32 0.0, %v1466
        %v1468 = vpop.f32.mrb[0].mxu0
        %v1469 = vadd.f32 0.0, %v1468
        %1470 = vmatprep.mubr.bf16.mxu0 0
        %1471 = vmatmul.mubr.bf16.gmra.mrb[0].mxu0 %v738
        %v1472 = vpop.f32.mrb[0].mxu0
        %v1473 = vadd.f32 0.0, %v1472
        %v1474 = vpop.f32.mrb[0].mxu0
        %v1475 = vadd.f32 0.0, %v1474
        %v1476 = vpop.f32.mrb[0].mxu0
        %v1477 = vadd.f32 0.0, %v1476
        %v1478 = vpop.f32.mrb[0].mxu0
        %v1479 = vadd.f32 0.0, %v1478
        %1480 = vmatprep.mubr.bf16.mxu0 0
        %1481 = vmatmul.mubr.bf16.gmra.mrb[0].mxu0 %v739
        %v1482 = vpop.f32.mrb[0].mxu0
        %v1483 = vadd.f32 0.0, %v1482
        %v1484 = vpop.f32.mrb[0].mxu0
        %v1485 = vadd.f32 0.0, %v1484
        %v1486 = vpop.f32.mrb[0].mxu0
        %v1487 = vadd.f32 0.0, %v1486
        %v1488 = vpop.f32.mrb[0].mxu0
        %v1489 = vadd.f32 0.0, %v1488
        %1490 = vmatprep.mubr.bf16.mxu0 0
        %1491 = vmatmul.mubr.bf16.gmra.mrb[0].mxu0 %v740
        %v1492 = vpop.f32.mrb[0].mxu0
        %v1493 = vadd.f32 0.0, %v1492
        %v1494 = vpop.f32.mrb[0].mxu0
        %v1495 = vadd.f32 0.0, %v1494
        %v1496 = vpop.f32.mrb[0].mxu0
        %v1497 = vadd.f32 0.0, %v1496
        %v1498 = vpop.f32.mrb[0].mxu0
        %v1499 = vadd.f32 0.0, %v1498
        %1500 = vmatprep.mubr.bf16.mxu0 0
        %1501 = vmatmul.mubr.bf16.gmra.mrb[0].mxu0 %v741
        %v1502 = vpop.f32.mrb[0].mxu0
        %v1503 = vadd.f32 0.0, %v1502
        %v1504 = vpop.f32.mrb[0].mxu0
        %v1505 = vadd.f32 0.0, %v1504
        %v1506 = vpop.f32.mrb[0].mxu0
        %v1507 = vadd.f32 0.0, %v1506
        %v1508 = vpop.f32.mrb[0].mxu0
        %v1509 = vadd.f32 0.0, %v1508
        %1510 = vmatprep.mubr.bf16.mxu0 0
        %1511 = vmatmul.mubr.bf16.gmra.mrb[0].mxu0 %v742
        %v1512 = vpop.f32.mrb[0].mxu0
        %v1513 = vadd.f32 0.0, %v1512
        %v1514 = vpop.f32.mrb[0].mxu0
        %v1515 = vadd.f32 0.0, %v1514
        %v1516 = vpop.f32.mrb[0].mxu0
        %v1517 = vadd.f32 0.0, %v1516
        %v1518 = vpop.f32.mrb[0].mxu0
        %v1519 = vadd.f32 0.0, %v1518
        %1520 = vmatprep.mubr.bf16.mxu0 0
        %1521 = vmatmul.mubr.bf16.gmra.mrb[0].mxu0 %v743
        %v1522 = vpop.f32.mrb[0].mxu0
        %v1523 = vadd.f32 0.0, %v1522
        %v1524 = vpop.f32.mrb[0].mxu0
        %v1525 = vadd.f32 0.0, %v1524
        %v1526 = vpop.f32.mrb[0].mxu0
        %v1527 = vadd.f32 0.0, %v1526
        %v1528 = vpop.f32.mrb[0].mxu0
        %v1529 = vadd.f32 0.0, %v1528
        %1530 = vdwg.mxu0
        %1531 = vmatprep.subr.bf16.mxu0 %v1055
        %1532 = vmatpush1.bf16.msra.mxu0 %v1054
        %1533 = vmatprep.subr.bf16.mxu0 %v1064
        %1534 = vmatpush1.bf16.msra.mxu0 %v1063
        %1535 = vmatprep.subr.bf16.mxu0 %v1073
        %1536 = vmatpush1.bf16.msra.mxu0 %v1072
        %1537 = vmatprep.subr.bf16.mxu0 %v1082
        %1538 = vmatpush1.bf16.msra.mxu0 %v1081
        %1539 = vmatprep.subr.bf16.mxu0 %v1091
        %1540 = vmatpush1.bf16.msra.mxu0 %v1090
        %1541 = vmatprep.subr.bf16.mxu0 %v1100
        %1542 = vmatpush1.bf16.msra.mxu0 %v1099
        %1543 = vmatprep.subr.bf16.mxu0 %v1109
        %1544 = vmatpush1.bf16.msra.mxu0 %v1108
        %1545 = vmatprep.subr.bf16.mxu0 %v1118
        %1546 = vmatpush1.bf16.msra.mxu0 %v1117
        %1547 = vmatprep.subr.bf16.mxu0 0
        %1548 = vmatpush1.bf16.msra.mxu0 0
        %1549 = vmatprep.subr.bf16.mxu0 0
        %1550 = vmatpush1.bf16.msra.mxu0 0
        %1551 = vmatprep.subr.bf16.mxu0 0
        %1552 = vmatpush1.bf16.msra.mxu0 0
        %1553 = vmatprep.subr.bf16.mxu0 0
        %1554 = vmatpush1.bf16.msra.mxu0 0
        %1555 = vmatprep.subr.bf16.mxu0 0
        %1556 = vmatpush1.bf16.msra.mxu0 0
        %1557 = vmatprep.subr.bf16.mxu0 0
        %1558 = vmatpush1.bf16.msra.mxu0 0
        %1559 = vmatprep.subr.bf16.mxu0 0
        %1560 = vmatpush1.bf16.msra.mxu0 0
        %1561 = vmatprep.subr.bf16.mxu0 0
        %1562 = vmatpush1.bf16.msra.mxu0 0
        %1563 = vmatprep.mubr.bf16.mxu0 0
        %1564 = vmatmul.mubr.bf16.gmra.mrb[0].mxu0 %v736
        %v1565 = vpop.f32.mrb[0].mxu0
        %v1566 = vadd.f32 0.0, %v1565
        %v1567 = vpop.f32.mrb[0].mxu0
        %v1568 = vadd.f32 0.0, %v1567
        %v1569 = vpop.f32.mrb[0].mxu0
        %v1570 = vadd.f32 0.0, %v1569
        %v1571 = vpop.f32.mrb[0].mxu0
        %v1572 = vadd.f32 0.0, %v1571
        %1573 = vmatprep.mubr.bf16.mxu0 0
        %1574 = vmatmul.mubr.bf16.gmra.mrb[0].mxu0 %v737
        %v1575 = vpop.f32.mrb[0].mxu0
        %v1576 = vadd.f32 0.0, %v1575
        %v1577 = vpop.f32.mrb[0].mxu0
        %v1578 = vadd.f32 0.0, %v1577
        %v1579 = vpop.f32.mrb[0].mxu0
        %v1580 = vadd.f32 0.0, %v1579
        %v1581 = vpop.f32.mrb[0].mxu0
        %v1582 = vadd.f32 0.0, %v1581
        %1583 = vmatprep.mubr.bf16.mxu0 0
        %1584 = vmatmul.mubr.bf16.gmra.mrb[0].mxu0 %v738
        %v1585 = vpop.f32.mrb[0].mxu0
        %v1586 = vadd.f32 0.0, %v1585
        %v1587 = vpop.f32.mrb[0].mxu0
        %v1588 = vadd.f32 0.0, %v1587
        %v1589 = vpop.f32.mrb[0].mxu0
        %v1590 = vadd.f32 0.0, %v1589
        %v1591 = vpop.f32.mrb[0].mxu0
        %v1592 = vadd.f32 0.0, %v1591
        %1593 = vmatprep.mubr.bf16.mxu0 0
        %1594 = vmatmul.mubr.bf16.gmra.mrb[0].mxu0 %v739
        %v1595 = vpop.f32.mrb[0].mxu0
        %v1596 = vadd.f32 0.0, %v1595
        %v1597 = vpop.f32.mrb[0].mxu0
        %v1598 = vadd.f32 0.0, %v1597
        %v1599 = vpop.f32.mrb[0].mxu0
        %v1600 = vadd.f32 0.0, %v1599
        %v1601 = vpop.f32.mrb[0].mxu0
        %v1602 = vadd.f32 0.0, %v1601
        %1603 = vmatprep.mubr.bf16.mxu0 0
        %1604 = vmatmul.mubr.bf16.gmra.mrb[0].mxu0 %v740
        %v1605 = vpop.f32.mrb[0].mxu0
        %v1606 = vadd.f32 0.0, %v1605
        %v1607 = vpop.f32.mrb[0].mxu0
        %v1608 = vadd.f32 0.0, %v1607
        %v1609 = vpop.f32.mrb[0].mxu0
        %v1610 = vadd.f32 0.0, %v1609
        %v1611 = vpop.f32.mrb[0].mxu0
        %v1612 = vadd.f32 0.0, %v1611
        %1613 = vmatprep.mubr.bf16.mxu0 0
        %1614 = vmatmul.mubr.bf16.gmra.mrb[0].mxu0 %v741
        %v1615 = vpop.f32.mrb[0].mxu0
        %v1616 = vadd.f32 0.0, %v1615
        %v1617 = vpop.f32.mrb[0].mxu0
        %v1618 = vadd.f32 0.0, %v1617
        %v1619 = vpop.f32.mrb[0].mxu0
        %v1620 = vadd.f32 0.0, %v1619
        %v1621 = vpop.f32.mrb[0].mxu0
        %v1622 = vadd.f32 0.0, %v1621
        %1623 = vmatprep.mubr.bf16.mxu0 0
        %1624 = vmatmul.mubr.bf16.gmra.mrb[0].mxu0 %v742
        %v1625 = vpop.f32.mrb[0].mxu0
        %v1626 = vadd.f32 0.0, %v1625
        %v1627 = vpop.f32.mrb[0].mxu0
        %v1628 = vadd.f32 0.0, %v1627
        %v1629 = vpop.f32.mrb[0].mxu0
        %v1630 = vadd.f32 0.0, %v1629
        %v1631 = vpop.f32.mrb[0].mxu0
        %v1632 = vadd.f32 0.0, %v1631
        %1633 = vmatprep.mubr.bf16.mxu0 0
        %1634 = vmatmul.mubr.bf16.gmra.mrb[0].mxu0 %v743
        %v1635 = vpop.f32.mrb[0].mxu0
        %v1636 = vadd.f32 0.0, %v1635
        %v1637 = vpop.f32.mrb[0].mxu0
        %v1638 = vadd.f32 0.0, %v1637
        %v1639 = vpop.f32.mrb[0].mxu0
        %v1640 = vadd.f32 0.0, %v1639
        %v1641 = vpop.f32.mrb[0].mxu0
        %v1642 = vadd.f32 0.0, %v1641
        %1643 = vdwg.mxu0
        %1644 = vmatprep.subr.bf16.mxu0 0
        %1645 = vmatpush1.bf16.msra.mxu0 %v1056
        %1646 = vmatprep.subr.bf16.mxu0 0
        %1647 = vmatpush1.bf16.msra.mxu0 %v1065
        %1648 = vmatprep.subr.bf16.mxu0 0
        %1649 = vmatpush1.bf16.msra.mxu0 %v1074
        %1650 = vmatprep.subr.bf16.mxu0 0
        %1651 = vmatpush1.bf16.msra.mxu0 %v1083
        %1652 = vmatprep.subr.bf16.mxu0 0
        %1653 = vmatpush1.bf16.msra.mxu0 %v1092
        %1654 = vmatprep.subr.bf16.mxu0 0
        %1655 = vmatpush1.bf16.msra.mxu0 %v1101
        %1656 = vmatprep.subr.bf16.mxu0 0
        %1657 = vmatpush1.bf16.msra.mxu0 %v1110
        %1658 = vmatprep.subr.bf16.mxu0 0
        %1659 = vmatpush1.bf16.msra.mxu0 %v1119
        %1660 = vmatprep.subr.bf16.mxu0 0
        %1661 = vmatpush1.bf16.msra.mxu0 0
        %1662 = vmatprep.subr.bf16.mxu0 0
        %1663 = vmatpush1.bf16.msra.mxu0 0
        %1664 = vmatprep.subr.bf16.mxu0 0
        %1665 = vmatpush1.bf16.msra.mxu0 0
        %1666 = vmatprep.subr.bf16.mxu0 0
        %1667 = vmatpush1.bf16.msra.mxu0 0
        %1668 = vmatprep.subr.bf16.mxu0 0
        %1669 = vmatpush1.bf16.msra.mxu0 0
        %1670 = vmatprep.subr.bf16.mxu0 0
        %1671 = vmatpush1.bf16.msra.mxu0 0
        %1672 = vmatprep.subr.bf16.mxu0 0
        %1673 = vmatpush1.bf16.msra.mxu0 0
        %1674 = vmatprep.subr.bf16.mxu0 0
        %1675 = vmatpush1.bf16.msra.mxu0 0
        %1676 = vmatprep.mubr.bf16.mxu0 0
        %1677 = vmatmul.mubr.bf16.gmra.mrb[0].mxu0 %v736
        %v1678 = vpop.f32.mrb[0].mxu0
        %v1679 = vadd.f32 0.0, %v1678
        %v1680 = vpop.f32.mrb[0].mxu0
        %v1681 = vpop.f32.mrb[0].mxu0
        %v1682 = vadd.f32 0.0, %v1681
        %v1683 = vpop.f32.mrb[0].mxu0
        %1684 = vmatprep.mubr.bf16.mxu0 0
        %1685 = vmatmul.mubr.bf16.gmra.mrb[0].mxu0 %v737
        %v1686 = vpop.f32.mrb[0].mxu0
        %v1687 = vadd.f32 0.0, %v1686
        %v1688 = vpop.f32.mrb[0].mxu0
        %v1689 = vpop.f32.mrb[0].mxu0
        %v1690 = vadd.f32 0.0, %v1689
        %v1691 = vpop.f32.mrb[0].mxu0
        %1692 = vmatprep.mubr.bf16.mxu0 0
        %1693 = vmatmul.mubr.bf16.gmra.mrb[0].mxu0 %v738
        %v1694 = vpop.f32.mrb[0].mxu0
        %v1695 = vadd.f32 0.0, %v1694
        %v1696 = vpop.f32.mrb[0].mxu0
        %v1697 = vpop.f32.mrb[0].mxu0
        %v1698 = vadd.f32 0.0, %v1697
        %v1699 = vpop.f32.mrb[0].mxu0
        %1700 = vmatprep.mubr.bf16.mxu0 0
        %1701 = vmatmul.mubr.bf16.gmra.mrb[0].mxu0 %v739
        %v1702 = vpop.f32.mrb[0].mxu0
        %v1703 = vadd.f32 0.0, %v1702
        %v1704 = vpop.f32.mrb[0].mxu0
        %v1705 = vpop.f32.mrb[0].mxu0
        %v1706 = vadd.f32 0.0, %v1705
        %v1707 = vpop.f32.mrb[0].mxu0
        %1708 = vmatprep.mubr.bf16.mxu0 0
        %1709 = vmatmul.mubr.bf16.gmra.mrb[0].mxu0 %v740
        %v1710 = vpop.f32.mrb[0].mxu0
        %v1711 = vadd.f32 0.0, %v1710
        %v1712 = vpop.f32.mrb[0].mxu0
        %v1713 = vpop.f32.mrb[0].mxu0
        %v1714 = vadd.f32 0.0, %v1713
        %v1715 = vpop.f32.mrb[0].mxu0
        %1716 = vmatprep.mubr.bf16.mxu0 0
        %1717 = vmatmul.mubr.bf16.gmra.mrb[0].mxu0 %v741
        %v1718 = vpop.f32.mrb[0].mxu0
        %v1719 = vadd.f32 0.0, %v1718
        %v1720 = vpop.f32.mrb[0].mxu0
        %v1721 = vpop.f32.mrb[0].mxu0
        %v1722 = vadd.f32 0.0, %v1721
        %v1723 = vpop.f32.mrb[0].mxu0
        %1724 = vmatprep.mubr.bf16.mxu0 0
        %1725 = vmatmul.mubr.bf16.gmra.mrb[0].mxu0 %v742
        %v1726 = vpop.f32.mrb[0].mxu0
        %v1727 = vadd.f32 0.0, %v1726
        %v1728 = vpop.f32.mrb[0].mxu0
        %v1729 = vpop.f32.mrb[0].mxu0
        %v1730 = vadd.f32 0.0, %v1729
        %v1731 = vpop.f32.mrb[0].mxu0
        %1732 = vmatprep.mubr.bf16.mxu0 0
        %1733 = vmatmul.mubr.bf16.gmra.mrb[0].mxu0 %v743
        %v1734 = vpop.f32.mrb[0].mxu0
        %v1735 = vadd.f32 0.0, %v1734
        %v1736 = vpop.f32.mrb[0].mxu0
        %v1737 = vpop.f32.mrb[0].mxu0
        %v1738 = vadd.f32 0.0, %v1737
        %v1739 = vpop.f32.mrb[0].mxu0
        %1740 = vdwg.mxu0
        %v1741 = vmul.f32 %v1227, %v437
        %v1742 = vmul.f32 %v1231, %v438
        %v1743 = vmul.f32 %v1237, %v439
        %v1744 = vmul.f32 %v1241, %v440
        %v1745 = vmul.f32 %v1247, %v441
        %v1746 = vmul.f32 %v1251, %v442
        %v1747 = vmul.f32 %v1257, %v443
        %v1748 = vmul.f32 %v1261, %v444
        %v1749 = vmul.f32 %v1267, %v445
        %v1750 = vmul.f32 %v1271, %v446
        %v1751 = vmul.f32 %v1277, %v447
        %v1752 = vmul.f32 %v1281, %v448
        %v1753 = vmul.f32 %v1287, %v449
        %v1754 = vmul.f32 %v1291, %v450
        %v1755 = vmul.f32 %v1297, %v451
        %v1756 = vmul.f32 %v1301, %v452
        %v1757 = vmul.f32 %v1342, %v453
        %v1758 = vmul.f32 %v1346, %v454
        %v1759 = vmul.f32 %v1352, %v455
        %v1760 = vmul.f32 %v1356, %v456
        %v1761 = vmul.f32 %v1362, %v457
        %v1762 = vmul.f32 %v1366, %v458
        %v1763 = vmul.f32 %v1372, %v459
        %v1764 = vmul.f32 %v1376, %v460
        %v1765 = vmul.f32 %v1382, %v461
        %v1766 = vmul.f32 %v1386, %v462
        %v1767 = vmul.f32 %v1392, %v463
        %v1768 = vmul.f32 %v1396, %v464
        %v1769 = vmul.f32 %v1402, %v465
        %v1770 = vmul.f32 %v1406, %v466
        %v1771 = vmul.f32 %v1412, %v467
        %v1772 = vmul.f32 %v1416, %v468
        %v1773 = vadd.f32 %v1741, %v1757
        %v1774 = vadd.f32 %v1742, %v1758
        %v1775 = vadd.f32 %v1743, %v1759
        %v1776 = vadd.f32 %v1744, %v1760
        %v1777 = vadd.f32 %v1745, %v1761
        %v1778 = vadd.f32 %v1746, %v1762
        %v1779 = vadd.f32 %v1747, %v1763
        %v1780 = vadd.f32 %v1748, %v1764
        %v1781 = vadd.f32 %v1749, %v1765
        %v1782 = vadd.f32 %v1750, %v1766
        %v1783 = vadd.f32 %v1751, %v1767
        %v1784 = vadd.f32 %v1752, %v1768
        %v1785 = vadd.f32 %v1753, %v1769
        %v1786 = vadd.f32 %v1754, %v1770
        %v1787 = vadd.f32 %v1755, %v1771
        %v1788 = vadd.f32 %v1756, %v1772
        %v1789 = vmul.f32 %v1229, %v437
        %v1790 = vmul.f32 %v1233, %v438
        %v1791 = vmul.f32 %v1239, %v439
        %v1792 = vmul.f32 %v1243, %v440
        %v1793 = vmul.f32 %v1249, %v441
        %v1794 = vmul.f32 %v1253, %v442
        %v1795 = vmul.f32 %v1259, %v443
        %v1796 = vmul.f32 %v1263, %v444
        %v1797 = vmul.f32 %v1269, %v445
        %v1798 = vmul.f32 %v1273, %v446
        %v1799 = vmul.f32 %v1279, %v447
        %v1800 = vmul.f32 %v1283, %v448
        %v1801 = vmul.f32 %v1289, %v449
        %v1802 = vmul.f32 %v1293, %v450
        %v1803 = vmul.f32 %v1299, %v451
        %v1804 = vmul.f32 %v1303, %v452
        %v1805 = vmul.f32 %v1453, %v453
        %v1806 = vmul.f32 %v1457, %v454
        %v1807 = vmul.f32 %v1463, %v455
        %v1808 = vmul.f32 %v1467, %v456
        %v1809 = vmul.f32 %v1473, %v457
        %v1810 = vmul.f32 %v1477, %v458
        %v1811 = vmul.f32 %v1483, %v459
        %v1812 = vmul.f32 %v1487, %v460
        %v1813 = vmul.f32 %v1493, %v461
        %v1814 = vmul.f32 %v1497, %v462
        %v1815 = vmul.f32 %v1503, %v463
        %v1816 = vmul.f32 %v1507, %v464
        %v1817 = vmul.f32 %v1513, %v465
        %v1818 = vmul.f32 %v1517, %v466
        %v1819 = vmul.f32 %v1523, %v467
        %v1820 = vmul.f32 %v1527, %v468
        %v1821 = vadd.f32 %v1789, %v1805
        %v1822 = vadd.f32 %v1790, %v1806
        %v1823 = vadd.f32 %v1791, %v1807
        %v1824 = vadd.f32 %v1792, %v1808
        %v1825 = vadd.f32 %v1793, %v1809
        %v1826 = vadd.f32 %v1794, %v1810
        %v1827 = vadd.f32 %v1795, %v1811
        %v1828 = vadd.f32 %v1796, %v1812
        %v1829 = vadd.f32 %v1797, %v1813
        %v1830 = vadd.f32 %v1798, %v1814
        %v1831 = vadd.f32 %v1799, %v1815
        %v1832 = vadd.f32 %v1800, %v1816
        %v1833 = vadd.f32 %v1801, %v1817
        %v1834 = vadd.f32 %v1802, %v1818
        %v1835 = vadd.f32 %v1803, %v1819
        %v1836 = vadd.f32 %v1804, %v1820
        %v1837 = vpack.c.bf16 %v1774, %v1773
        %v1838 = vpack.c.bf16 %v1776, %v1775
        %v1839 = vpack.c.bf16 %v1778, %v1777
        %v1840 = vpack.c.bf16 %v1780, %v1779
        %v1841 = vpack.c.bf16 %v1782, %v1781
        %v1842 = vpack.c.bf16 %v1784, %v1783
        %v1843 = vpack.c.bf16 %v1786, %v1785
        %v1844 = vpack.c.bf16 %v1788, %v1787
        %v1845 = vpack.c.bf16 %v1822, %v1821
        %v1846 = vpack.c.bf16 %v1824, %v1823
        %v1847 = vpack.c.bf16 %v1826, %v1825
        %v1848 = vpack.c.bf16 %v1828, %v1827
        %v1849 = vpack.c.bf16 %v1830, %v1829
        %v1850 = vpack.c.bf16 %v1832, %v1831
        %v1851 = vpack.c.bf16 %v1834, %v1833
        %v1852 = vpack.c.bf16 %v1836, %v1835
        %v1853 = vpack.c.bf16 %v1344, %v1340
        %v1854 = vpack.c.bf16 %v1354, %v1350
        %v1855 = vpack.c.bf16 %v1364, %v1360
        %v1856 = vpack.c.bf16 %v1374, %v1370
        %v1857 = vpack.c.bf16 %v1384, %v1380
        %v1858 = vpack.c.bf16 %v1394, %v1390
        %v1859 = vpack.c.bf16 %v1404, %v1400
        %v1860 = vpack.c.bf16 %v1414, %v1410
        %vm1861 = vcmask 261120
        %v1863 = vsel %vm1861, %v1837, 0
        %v1866 = vsel %vm1861, %v1838, 0
        %v1869 = vsel %vm1861, %v1839, 0
        %v1872 = vsel %vm1861, %v1840, 0
        %v1875 = vsel %vm1861, %v1841, 0
        %v1878 = vsel %vm1861, %v1842, 0
        %v1881 = vsel %vm1861, %v1843, 0
        %v1884 = vsel %vm1861, %v1844, 0
        %v1887 = vsel %vm1861, %v1845, 0
        %v1890 = vsel %vm1861, %v1846, 0
        %v1893 = vsel %vm1861, %v1847, 0
        %v1896 = vsel %vm1861, %v1848, 0
        %v1899 = vsel %vm1861, %v1849, 0
        %v1902 = vsel %vm1861, %v1850, 0
        %v1905 = vsel %vm1861, %v1851, 0
        %v1908 = vsel %vm1861, %v1852, 0
        %1910 = vmatprep.subr.bf16.mxu0 0
        %1911 = vmatpush1.bf16.xpose.msra.mxu0 %v1887
        %1912 = vmatprep.subr.bf16.mxu0 0
        %1913 = vmatpush1.bf16.xpose.msra.mxu0 %v1890
        %1914 = vmatprep.subr.bf16.mxu0 0
        %1915 = vmatpush1.bf16.xpose.msra.mxu0 %v1893
        %1916 = vmatprep.subr.bf16.mxu0 0
        %1917 = vmatpush1.bf16.xpose.msra.mxu0 %v1896
        %1918 = vmatprep.subr.bf16.mxu0 0
        %1919 = vmatpush1.bf16.xpose.msra.mxu0 %v1899
        %1920 = vmatprep.subr.bf16.mxu0 0
        %1921 = vmatpush1.bf16.xpose.msra.mxu0 %v1902
        %1922 = vmatprep.subr.bf16.mxu0 0
        %1923 = vmatpush1.bf16.xpose.msra.mxu0 %v1905
        %1924 = vmatprep.subr.bf16.mxu0 0
        %1925 = vmatpush1.bf16.xpose.msra.mxu0 %v1908
        %1926 = vmatprep.subr.bf16.mxu0 0
        %1927 = vmatpush1.bf16.xpose.msra.mxu0 0
        %1928 = vmatprep.subr.bf16.mxu0 0
        %1929 = vmatpush1.bf16.xpose.msra.mxu0 0
        %1930 = vmatprep.subr.bf16.mxu0 0
        %1931 = vmatpush1.bf16.xpose.msra.mxu0 0
        %1932 = vmatprep.subr.bf16.mxu0 0
        %1933 = vmatpush1.bf16.xpose.msra.mxu0 0
        %1934 = vmatprep.subr.bf16.mxu0 0
        %1935 = vmatpush1.bf16.xpose.msra.mxu0 0
        %1936 = vmatprep.subr.bf16.mxu0 0
        %1937 = vmatpush1.bf16.xpose.msra.mxu0 0
        %1938 = vmatprep.subr.bf16.mxu0 0
        %1939 = vmatpush1.bf16.xpose.msra.mxu0 0
        %1940 = vmatprep.subr.bf16.mxu0 0
        %1941 = vmatpush1.bf16.xpose.msra.mxu0 0
        %1942 = vmatprep.mubr.bf16.mxu0 0
        %1943 = vmatmul.mubr.bf16.gmra.mrb[0].mxu0 %v1863
        %v1944 = vpop.f32.mrb[0].mxu0
        %v1945 = vadd.f32 %v504, %v1944
        %v1946 = vpop.f32.mrb[0].mxu0
        %v1947 = vpop.f32.mrb[0].mxu0
        %v1948 = vadd.f32 %v505, %v1947
        %v1949 = vpop.f32.mrb[0].mxu0
        %1950 = vmatprep.mubr.bf16.mxu0 0
        %1951 = vmatmul.mubr.bf16.gmra.mrb[0].mxu0 %v1866
        %v1952 = vpop.f32.mrb[0].mxu0
        %v1953 = vadd.f32 %v506, %v1952
        %v1954 = vpop.f32.mrb[0].mxu0
        %v1955 = vpop.f32.mrb[0].mxu0
        %v1956 = vadd.f32 %v507, %v1955
        %v1957 = vpop.f32.mrb[0].mxu0
        %1958 = vmatprep.mubr.bf16.mxu0 0
        %1959 = vmatmul.mubr.bf16.gmra.mrb[0].mxu0 %v1869
        %v1960 = vpop.f32.mrb[0].mxu0
        %v1961 = vadd.f32 %v508, %v1960
        %v1962 = vpop.f32.mrb[0].mxu0
        %v1963 = vpop.f32.mrb[0].mxu0
        %v1964 = vadd.f32 %v509, %v1963
        %v1965 = vpop.f32.mrb[0].mxu0
        %1966 = vmatprep.mubr.bf16.mxu0 0
        %1967 = vmatmul.mubr.bf16.gmra.mrb[0].mxu0 %v1872
        %v1968 = vpop.f32.mrb[0].mxu0
        %v1969 = vadd.f32 %v510, %v1968
        %v1970 = vpop.f32.mrb[0].mxu0
        %v1971 = vpop.f32.mrb[0].mxu0
        %v1972 = vadd.f32 %v511, %v1971
        %v1973 = vpop.f32.mrb[0].mxu0
        %1974 = vmatprep.mubr.bf16.mxu0 0
        %1975 = vmatmul.mubr.bf16.gmra.mrb[0].mxu0 %v1875
        %v1976 = vpop.f32.mrb[0].mxu0
        %v1977 = vadd.f32 %v512, %v1976
        %v1978 = vpop.f32.mrb[0].mxu0
        %v1979 = vpop.f32.mrb[0].mxu0
        %v1980 = vadd.f32 %v513, %v1979
        %v1981 = vpop.f32.mrb[0].mxu0
        %1982 = vmatprep.mubr.bf16.mxu0 0
        %1983 = vmatmul.mubr.bf16.gmra.mrb[0].mxu0 %v1878
        %v1984 = vpop.f32.mrb[0].mxu0
        %v1985 = vadd.f32 %v514, %v1984
        %v1986 = vpop.f32.mrb[0].mxu0
        %v1987 = vpop.f32.mrb[0].mxu0
        %v1988 = vadd.f32 %v515, %v1987
        %v1989 = vpop.f32.mrb[0].mxu0
        %1990 = vmatprep.mubr.bf16.mxu0 0
        %1991 = vmatmul.mubr.bf16.gmra.mrb[0].mxu0 %v1881
        %v1992 = vpop.f32.mrb[0].mxu0
        %v1993 = vadd.f32 %v516, %v1992
        %v1994 = vpop.f32.mrb[0].mxu0
        %v1995 = vpop.f32.mrb[0].mxu0
        %v1996 = vadd.f32 %v517, %v1995
        %v1997 = vpop.f32.mrb[0].mxu0
        %1998 = vmatprep.mubr.bf16.mxu0 0
        %1999 = vmatmul.mubr.bf16.gmra.mrb[0].mxu0 %v1884
        %v2000 = vpop.f32.mrb[0].mxu0
        %v2001 = vadd.f32 %v518, %v2000
        %v2002 = vpop.f32.mrb[0].mxu0
        %v2003 = vpop.f32.mrb[0].mxu0
        %v2004 = vadd.f32 %v519, %v2003
        %v2005 = vpop.f32.mrb[0].mxu0
        %2006 = vdwg.mxu0
        %2007 = vmax.xlane.f32.xlu0 %v1945
        %v2008 = vpop.xlane.xlu0 %2007
        %2009 = vmax.xlane.f32.xlu0 %v1948
        %v2010 = vpop.xlane.xlu0 %2009
        %2011 = vmax.xlane.f32.xlu0 %v1953
        %v2012 = vpop.xlane.xlu0 %2011
        %2013 = vmax.xlane.f32.xlu0 %v1956
        %v2014 = vpop.xlane.xlu0 %2013
        %2015 = vmax.xlane.f32.xlu0 %v1961
        %v2016 = vpop.xlane.xlu0 %2015
        %2017 = vmax.xlane.f32.xlu0 %v1964
        %v2018 = vpop.xlane.xlu0 %2017
        %2019 = vmax.xlane.f32.xlu0 %v1969
        %v2020 = vpop.xlane.xlu0 %2019
        %2021 = vmax.xlane.f32.xlu0 %v1972
        %v2022 = vpop.xlane.xlu0 %2021
        %2023 = vmax.xlane.f32.xlu0 %v1977
        %v2024 = vpop.xlane.xlu0 %2023
        %2025 = vmax.xlane.f32.xlu0 %v1980
        %v2026 = vpop.xlane.xlu0 %2025
        %2027 = vmax.xlane.f32.xlu0 %v1985
        %v2028 = vpop.xlane.xlu0 %2027
        %2029 = vmax.xlane.f32.xlu0 %v1988
        %v2030 = vpop.xlane.xlu0 %2029
        %2031 = vmax.xlane.f32.xlu0 %v1993
        %v2032 = vpop.xlane.xlu0 %2031
        %2033 = vmax.xlane.f32.xlu0 %v1996
        %v2034 = vpop.xlane.xlu0 %2033
        %2035 = vmax.xlane.f32.xlu0 %v2001
        %v2036 = vpop.xlane.xlu0 %2035
        %2037 = vmax.xlane.f32.xlu0 %v2004
        %v2038 = vpop.xlane.xlu0 %2037
        %v2039 = vsub.f32 %v1945, %v2008
        %v2040 = vsub.f32 %v1948, %v2010
        %v2041 = vsub.f32 %v1953, %v2012
        %v2042 = vsub.f32 %v1956, %v2014
        %v2043 = vsub.f32 %v1961, %v2016
        %v2044 = vsub.f32 %v1964, %v2018
        %v2045 = vsub.f32 %v1969, %v2020
        %v2046 = vsub.f32 %v1972, %v2022
        %v2047 = vsub.f32 %v1977, %v2024
        %v2048 = vsub.f32 %v1980, %v2026
        %v2049 = vsub.f32 %v1985, %v2028
        %v2050 = vsub.f32 %v1988, %v2030
        %v2051 = vsub.f32 %v1993, %v2032
        %v2052 = vsub.f32 %v1996, %v2034
        %v2053 = vsub.f32 %v2001, %v2036
        %v2054 = vsub.f32 %v2004, %v2038
        %v2055 = vmul.f32 %v2039, 1.442695
        %v2056 = vpow.pop %v2055
        %v2057 = vmul.f32 %v2040, 1.442695
        %v2058 = vpow.pop %v2057
        %v2059 = vmul.f32 %v2041, 1.442695
        %v2060 = vpow.pop %v2059
        %v2061 = vmul.f32 %v2042, 1.442695
        %v2062 = vpow.pop %v2061
        %v2063 = vmul.f32 %v2043, 1.442695
        %v2064 = vpow.pop %v2063
        %v2065 = vmul.f32 %v2044, 1.442695
        %v2066 = vpow.pop %v2065
        %v2067 = vmul.f32 %v2045, 1.442695
        %v2068 = vpow.pop %v2067
        %v2069 = vmul.f32 %v2046, 1.442695
        %v2070 = vpow.pop %v2069
        %v2071 = vmul.f32 %v2047, 1.442695
        %v2072 = vpow.pop %v2071
        %v2073 = vmul.f32 %v2048, 1.442695
        %v2074 = vpow.pop %v2073
        %v2075 = vmul.f32 %v2049, 1.442695
        %v2076 = vpow.pop %v2075
        %v2077 = vmul.f32 %v2050, 1.442695
        %v2078 = vpow.pop %v2077
        %v2079 = vmul.f32 %v2051, 1.442695
        %v2080 = vpow.pop %v2079
        %v2081 = vmul.f32 %v2052, 1.442695
        %v2082 = vpow.pop %v2081
        %v2083 = vmul.f32 %v2053, 1.442695
        %v2084 = vpow.pop %v2083
        %v2085 = vmul.f32 %v2054, 1.442695
        %v2086 = vpow.pop %v2085
        %2087 = vadd.xlane.f32.xlu0 %v2056
        %v2088 = vpop.xlane.xlu0 %2087
        %2089 = vadd.xlane.f32.xlu0 %v2058
        %v2090 = vpop.xlane.xlu0 %2089
        %2091 = vadd.xlane.f32.xlu0 %v2060
        %v2092 = vpop.xlane.xlu0 %2091
        %2093 = vadd.xlane.f32.xlu0 %v2062
        %v2094 = vpop.xlane.xlu0 %2093
        %2095 = vadd.xlane.f32.xlu0 %v2064
        %v2096 = vpop.xlane.xlu0 %2095
        %2097 = vadd.xlane.f32.xlu0 %v2066
        %v2098 = vpop.xlane.xlu0 %2097
        %2099 = vadd.xlane.f32.xlu0 %v2068
        %v2100 = vpop.xlane.xlu0 %2099
        %2101 = vadd.xlane.f32.xlu0 %v2070
        %v2102 = vpop.xlane.xlu0 %2101
        %2103 = vadd.xlane.f32.xlu0 %v2072
        %v2104 = vpop.xlane.xlu0 %2103
        %2105 = vadd.xlane.f32.xlu0 %v2074
        %v2106 = vpop.xlane.xlu0 %2105
        %2107 = vadd.xlane.f32.xlu0 %v2076
        %v2108 = vpop.xlane.xlu0 %2107
        %2109 = vadd.xlane.f32.xlu0 %v2078
        %v2110 = vpop.xlane.xlu0 %2109
        %2111 = vadd.xlane.f32.xlu0 %v2080
        %v2112 = vpop.xlane.xlu0 %2111
        %2113 = vadd.xlane.f32.xlu0 %v2082
        %v2114 = vpop.xlane.xlu0 %2113
        %2115 = vadd.xlane.f32.xlu0 %v2084
        %v2116 = vpop.xlane.xlu0 %2115
        %2117 = vadd.xlane.f32.xlu0 %v2086
        %v2118 = vpop.xlane.xlu0 %2117
        %v2119 = vpack.c.bf16 %v2058, %v2056
        %v2120 = vpack.c.bf16 %v2062, %v2060
        %v2121 = vpack.c.bf16 %v2066, %v2064
        %v2122 = vpack.c.bf16 %v2070, %v2068
        %v2123 = vpack.c.bf16 %v2074, %v2072
        %v2124 = vpack.c.bf16 %v2078, %v2076
        %v2125 = vpack.c.bf16 %v2082, %v2080
        %v2126 = vpack.c.bf16 %v2086, %v2084
        %2127 = vmatprep.subr.bf16.mxu0 0
        %2128 = vmatpush1.bf16.msra.mxu0 %v1853
        %2129 = vmatprep.subr.bf16.mxu0 0
        %2130 = vmatpush1.bf16.msra.mxu0 %v1854
        %2131 = vmatprep.subr.bf16.mxu0 0
        %2132 = vmatpush1.bf16.msra.mxu0 %v1855
        %2133 = vmatprep.subr.bf16.mxu0 0
        %2134 = vmatpush1.bf16.msra.mxu0 %v1856
        %2135 = vmatprep.subr.bf16.mxu0 0
        %2136 = vmatpush1.bf16.msra.mxu0 %v1857
        %2137 = vmatprep.subr.bf16.mxu0 0
        %2138 = vmatpush1.bf16.msra.mxu0 %v1858
        %2139 = vmatprep.subr.bf16.mxu0 0
        %2140 = vmatpush1.bf16.msra.mxu0 %v1859
        %2141 = vmatprep.subr.bf16.mxu0 0
        %2142 = vmatpush1.bf16.msra.mxu0 %v1860
        %2143 = vmatprep.subr.bf16.mxu0 0
        %2144 = vmatpush1.bf16.msra.mxu0 0
        %2145 = vmatprep.subr.bf16.mxu0 0
        %2146 = vmatpush1.bf16.msra.mxu0 0
        %2147 = vmatprep.subr.bf16.mxu0 0
        %2148 = vmatpush1.bf16.msra.mxu0 0
        %2149 = vmatprep.subr.bf16.mxu0 0
        %2150 = vmatpush1.bf16.msra.mxu0 0
        %2151 = vmatprep.subr.bf16.mxu0 0
        %2152 = vmatpush1.bf16.msra.mxu0 0
        %2153 = vmatprep.subr.bf16.mxu0 0
        %2154 = vmatpush1.bf16.msra.mxu0 0
        %2155 = vmatprep.subr.bf16.mxu0 0
        %2156 = vmatpush1.bf16.msra.mxu0 0
        %2157 = vmatprep.subr.bf16.mxu0 0
        %2158 = vmatpush1.bf16.msra.mxu0 0
        %2159 = vmatprep.mubr.bf16.mxu0 0
        %2160 = vmatmul.mubr.bf16.gmra.mrb[0].mxu0 %v2119
        %v2161 = vpop.f32.mrb[0].mxu0
        %v2162 = vadd.f32 0.0, %v2161
        %v2163 = vpop.f32.mrb[0].mxu0
        %v2164 = vpop.f32.mrb[0].mxu0
        %v2165 = vadd.f32 0.0, %v2164
        %v2166 = vpop.f32.mrb[0].mxu0
        %2167 = vmatprep.mubr.bf16.mxu0 0
        %2168 = vmatmul.mubr.bf16.gmra.mrb[0].mxu0 %v2120
        %v2169 = vpop.f32.mrb[0].mxu0
        %v2170 = vadd.f32 0.0, %v2169
        %v2171 = vpop.f32.mrb[0].mxu0
        %v2172 = vpop.f32.mrb[0].mxu0
        %v2173 = vadd.f32 0.0, %v2172
        %v2174 = vpop.f32.mrb[0].mxu0
        %2175 = vmatprep.mubr.bf16.mxu0 0
        %2176 = vmatmul.mubr.bf16.gmra.mrb[0].mxu0 %v2121
        %v2177 = vpop.f32.mrb[0].mxu0
        %v2178 = vadd.f32 0.0, %v2177
        %v2179 = vpop.f32.mrb[0].mxu0
        %v2180 = vpop.f32.mrb[0].mxu0
        %v2181 = vadd.f32 0.0, %v2180
        %v2182 = vpop.f32.mrb[0].mxu0
        %2183 = vmatprep.mubr.bf16.mxu0 0
        %2184 = vmatmul.mubr.bf16.gmra.mrb[0].mxu0 %v2122
        %v2185 = vpop.f32.mrb[0].mxu0
        %v2186 = vadd.f32 0.0, %v2185
        %v2187 = vpop.f32.mrb[0].mxu0
        %v2188 = vpop.f32.mrb[0].mxu0
        %v2189 = vadd.f32 0.0, %v2188
        %v2190 = vpop.f32.mrb[0].mxu0
        %2191 = vmatprep.mubr.bf16.mxu0 0
        %2192 = vmatmul.mubr.bf16.gmra.mrb[0].mxu0 %v2123
        %v2193 = vpop.f32.mrb[0].mxu0
        %v2194 = vadd.f32 0.0, %v2193
        %v2195 = vpop.f32.mrb[0].mxu0
        %v2196 = vpop.f32.mrb[0].mxu0
        %v2197 = vadd.f32 0.0, %v2196
        %v2198 = vpop.f32.mrb[0].mxu0
        %2199 = vmatprep.mubr.bf16.mxu0 0
        %2200 = vmatmul.mubr.bf16.gmra.mrb[0].mxu0 %v2124
        %v2201 = vpop.f32.mrb[0].mxu0
        %v2202 = vadd.f32 0.0, %v2201
        %v2203 = vpop.f32.mrb[0].mxu0
        %v2204 = vpop.f32.mrb[0].mxu0
        %v2205 = vadd.f32 0.0, %v2204
        %v2206 = vpop.f32.mrb[0].mxu0
        %2207 = vmatprep.mubr.bf16.mxu0 0
        %2208 = vmatmul.mubr.bf16.gmra.mrb[0].mxu0 %v2125
        %v2209 = vpop.f32.mrb[0].mxu0
        %v2210 = vadd.f32 0.0, %v2209
        %v2211 = vpop.f32.mrb[0].mxu0
        %v2212 = vpop.f32.mrb[0].mxu0
        %v2213 = vadd.f32 0.0, %v2212
        %v2214 = vpop.f32.mrb[0].mxu0
        %2215 = vmatprep.mubr.bf16.mxu0 0
        %2216 = vmatmul.mubr.bf16.gmra.mrb[0].mxu0 %v2126
        %v2217 = vpop.f32.mrb[0].mxu0
        %v2218 = vadd.f32 0.0, %v2217
        %v2219 = vpop.f32.mrb[0].mxu0
        %v2220 = vpop.f32.mrb[0].mxu0
        %v2221 = vadd.f32 0.0, %v2220
        %v2222 = vpop.f32.mrb[0].mxu0
        %2223 = vdwg.mxu0
        %v2224 = vrcp.pop %v2088
        %v2225 = vrcp.pop %v2090
        %v2226 = vrcp.pop %v2092
        %v2227 = vrcp.pop %v2094
        %v2228 = vrcp.pop %v2096
        %v2229 = vrcp.pop %v2098
        %v2230 = vrcp.pop %v2100
        %v2231 = vrcp.pop %v2102
        %v2232 = vrcp.pop %v2104
        %v2233 = vrcp.pop %v2106
        %v2234 = vrcp.pop %v2108
        %v2235 = vrcp.pop %v2110
        %v2236 = vrcp.pop %v2112
        %v2237 = vrcp.pop %v2114
        %v2238 = vrcp.pop %v2116
        %v2239 = vrcp.pop %v2118
        %v2240 = vmul.f32 %v2162, %v2224
        %v2241 = vmul.f32 %v2165, %v2225
        %v2242 = vmul.f32 %v2170, %v2226
        %v2243 = vmul.f32 %v2173, %v2227
        %v2244 = vmul.f32 %v2178, %v2228
        %v2245 = vmul.f32 %v2181, %v2229
        %v2246 = vmul.f32 %v2186, %v2230
        %v2247 = vmul.f32 %v2189, %v2231
        %v2248 = vmul.f32 %v2194, %v2232
        %v2249 = vmul.f32 %v2197, %v2233
        %v2250 = vmul.f32 %v2202, %v2234
        %v2251 = vmul.f32 %v2205, %v2235
        %v2252 = vmul.f32 %v2210, %v2236
        %v2253 = vmul.f32 %v2213, %v2237
        %v2254 = vmul.f32 %v2218, %v2238
        %v2255 = vmul.f32 %v2221, %v2239
        %2264 = vrot.lane.b32.xlu0 %v1837, 96
        %v2265 = vpop.permute.xlu0 %2264
        %2266 = vrot.lane.b32.xlu0 %v1838, 96
        %v2267 = vpop.permute.xlu0 %2266
        %2268 = vrot.lane.b32.xlu0 %v1839, 96
        %v2269 = vpop.permute.xlu0 %2268
        %2270 = vrot.lane.b32.xlu0 %v1840, 96
        %v2271 = vpop.permute.xlu0 %2270
        %2272 = vrot.lane.b32.xlu0 %v1841, 96
        %v2273 = vpop.permute.xlu0 %2272
        %2274 = vrot.lane.b32.xlu0 %v1842, 96
        %v2275 = vpop.permute.xlu0 %2274
        %2276 = vrot.lane.b32.xlu0 %v1843, 96
        %v2277 = vpop.permute.xlu0 %2276
        %2278 = vrot.lane.b32.xlu0 %v1844, 96
        %v2279 = vpop.permute.xlu0 %2278
        %2288 = vrot.lane.b32.xlu0 %v1845, 96
        %v2289 = vpop.permute.xlu0 %2288
        %2290 = vrot.lane.b32.xlu0 %v1846, 96
        %v2291 = vpop.permute.xlu0 %2290
        %2292 = vrot.lane.b32.xlu0 %v1847, 96
        %v2293 = vpop.permute.xlu0 %2292
        %2294 = vrot.lane.b32.xlu0 %v1848, 96
        %v2295 = vpop.permute.xlu0 %2294
        %2296 = vrot.lane.b32.xlu0 %v1849, 96
        %v2297 = vpop.permute.xlu0 %2296
        %2298 = vrot.lane.b32.xlu0 %v1850, 96
        %v2299 = vpop.permute.xlu0 %2298
        %2300 = vrot.lane.b32.xlu0 %v1851, 96
        %v2301 = vpop.permute.xlu0 %2300
        %2302 = vrot.lane.b32.xlu0 %v1852, 96
        %v2303 = vpop.permute.xlu0 %2302
        %v2305 = vsel %vm1861, %v2265, 0
        %v2308 = vsel %vm1861, %v2267, 0
        %v2311 = vsel %vm1861, %v2269, 0
        %v2314 = vsel %vm1861, %v2271, 0
        %v2317 = vsel %vm1861, %v2273, 0
        %v2320 = vsel %vm1861, %v2275, 0
        %v2323 = vsel %vm1861, %v2277, 0
        %v2326 = vsel %vm1861, %v2279, 0
        %v2329 = vsel %vm1861, %v2289, 0
        %v2332 = vsel %vm1861, %v2291, 0
        %v2335 = vsel %vm1861, %v2293, 0
        %v2338 = vsel %vm1861, %v2295, 0
        %v2341 = vsel %vm1861, %v2297, 0
        %v2344 = vsel %vm1861, %v2299, 0
        %v2347 = vsel %vm1861, %v2301, 0
        %v2350 = vsel %vm1861, %v2303, 0
        %2352 = vmatprep.subr.bf16.mxu0 0
        %2353 = vmatpush1.bf16.xpose.msra.mxu0 %v2329
        %2354 = vmatprep.subr.bf16.mxu0 0
        %2355 = vmatpush1.bf16.xpose.msra.mxu0 %v2332
        %2356 = vmatprep.subr.bf16.mxu0 0
        %2357 = vmatpush1.bf16.xpose.msra.mxu0 %v2335
        %2358 = vmatprep.subr.bf16.mxu0 0
        %2359 = vmatpush1.bf16.xpose.msra.mxu0 %v2338
        %2360 = vmatprep.subr.bf16.mxu0 0
        %2361 = vmatpush1.bf16.xpose.msra.mxu0 %v2341
        %2362 = vmatprep.subr.bf16.mxu0 0
        %2363 = vmatpush1.bf16.xpose.msra.mxu0 %v2344
        %2364 = vmatprep.subr.bf16.mxu0 0
        %2365 = vmatpush1.bf16.xpose.msra.mxu0 %v2347
        %2366 = vmatprep.subr.bf16.mxu0 0
        %2367 = vmatpush1.bf16.xpose.msra.mxu0 %v2350
        %2368 = vmatprep.subr.bf16.mxu0 0
        %2369 = vmatpush1.bf16.xpose.msra.mxu0 0
        %2370 = vmatprep.subr.bf16.mxu0 0
        %2371 = vmatpush1.bf16.xpose.msra.mxu0 0
        %2372 = vmatprep.subr.bf16.mxu0 0
        %2373 = vmatpush1.bf16.xpose.msra.mxu0 0
        %2374 = vmatprep.subr.bf16.mxu0 0
        %2375 = vmatpush1.bf16.xpose.msra.mxu0 0
        %2376 = vmatprep.subr.bf16.mxu0 0
        %2377 = vmatpush1.bf16.xpose.msra.mxu0 0
        %2378 = vmatprep.subr.bf16.mxu0 0
        %2379 = vmatpush1.bf16.xpose.msra.mxu0 0
        %2380 = vmatprep.subr.bf16.mxu0 0
        %2381 = vmatpush1.bf16.xpose.msra.mxu0 0
        %2382 = vmatprep.subr.bf16.mxu0 0
        %2383 = vmatpush1.bf16.xpose.msra.mxu0 0
        %2384 = vmatprep.mubr.bf16.mxu0 0
        %2385 = vmatmul.mubr.bf16.gmra.mrb[0].mxu0 %v2305
        %v2386 = vpop.f32.mrb[0].mxu0
        %v2387 = vadd.f32 %v504, %v2386
        %v2388 = vpop.f32.mrb[0].mxu0
        %v2389 = vpop.f32.mrb[0].mxu0
        %v2390 = vadd.f32 %v505, %v2389
        %v2391 = vpop.f32.mrb[0].mxu0
        %2392 = vmatprep.mubr.bf16.mxu0 0
        %2393 = vmatmul.mubr.bf16.gmra.mrb[0].mxu0 %v2308
        %v2394 = vpop.f32.mrb[0].mxu0
        %v2395 = vadd.f32 %v506, %v2394
        %v2396 = vpop.f32.mrb[0].mxu0
        %v2397 = vpop.f32.mrb[0].mxu0
        %v2398 = vadd.f32 %v507, %v2397
        %v2399 = vpop.f32.mrb[0].mxu0
        %2400 = vmatprep.mubr.bf16.mxu0 0
        %2401 = vmatmul.mubr.bf16.gmra.mrb[0].mxu0 %v2311
        %v2402 = vpop.f32.mrb[0].mxu0
        %v2403 = vadd.f32 %v508, %v2402
        %v2404 = vpop.f32.mrb[0].mxu0
        %v2405 = vpop.f32.mrb[0].mxu0
        %v2406 = vadd.f32 %v509, %v2405
        %v2407 = vpop.f32.mrb[0].mxu0
        %2408 = vmatprep.mubr.bf16.mxu0 0
        %2409 = vmatmul.mubr.bf16.gmra.mrb[0].mxu0 %v2314
        %v2410 = vpop.f32.mrb[0].mxu0
        %v2411 = vadd.f32 %v510, %v2410
        %v2412 = vpop.f32.mrb[0].mxu0
        %v2413 = vpop.f32.mrb[0].mxu0
        %v2414 = vadd.f32 %v511, %v2413
        %v2415 = vpop.f32.mrb[0].mxu0
        %2416 = vmatprep.mubr.bf16.mxu0 0
        %2417 = vmatmul.mubr.bf16.gmra.mrb[0].mxu0 %v2317
        %v2418 = vpop.f32.mrb[0].mxu0
        %v2419 = vadd.f32 %v512, %v2418
        %v2420 = vpop.f32.mrb[0].mxu0
        %v2421 = vpop.f32.mrb[0].mxu0
        %v2422 = vadd.f32 %v513, %v2421
        %v2423 = vpop.f32.mrb[0].mxu0
        %2424 = vmatprep.mubr.bf16.mxu0 0
        %2425 = vmatmul.mubr.bf16.gmra.mrb[0].mxu0 %v2320
        %v2426 = vpop.f32.mrb[0].mxu0
        %v2427 = vadd.f32 %v514, %v2426
        %v2428 = vpop.f32.mrb[0].mxu0
        %v2429 = vpop.f32.mrb[0].mxu0
        %v2430 = vadd.f32 %v515, %v2429
        %v2431 = vpop.f32.mrb[0].mxu0
        %2432 = vmatprep.mubr.bf16.mxu0 0
        %2433 = vmatmul.mubr.bf16.gmra.mrb[0].mxu0 %v2323
        %v2434 = vpop.f32.mrb[0].mxu0
        %v2435 = vadd.f32 %v516, %v2434
        %v2436 = vpop.f32.mrb[0].mxu0
        %v2437 = vpop.f32.mrb[0].mxu0
        %v2438 = vadd.f32 %v517, %v2437
        %v2439 = vpop.f32.mrb[0].mxu0
        %2440 = vmatprep.mubr.bf16.mxu0 0
        %2441 = vmatmul.mubr.bf16.gmra.mrb[0].mxu0 %v2326
        %v2442 = vpop.f32.mrb[0].mxu0
        %v2443 = vadd.f32 %v518, %v2442
        %v2444 = vpop.f32.mrb[0].mxu0
        %v2445 = vpop.f32.mrb[0].mxu0
        %v2446 = vadd.f32 %v519, %v2445
        %v2447 = vpop.f32.mrb[0].mxu0
        %2448 = vdwg.mxu0
        %2449 = vmax.xlane.f32.xlu0 %v2387
        %v2450 = vpop.xlane.xlu0 %2449
        %2451 = vmax.xlane.f32.xlu0 %v2390
        %v2452 = vpop.xlane.xlu0 %2451
        %2453 = vmax.xlane.f32.xlu0 %v2395
        %v2454 = vpop.xlane.xlu0 %2453
        %2455 = vmax.xlane.f32.xlu0 %v2398
        %v2456 = vpop.xlane.xlu0 %2455
        %2457 = vmax.xlane.f32.xlu0 %v2403
        %v2458 = vpop.xlane.xlu0 %2457
        %2459 = vmax.xlane.f32.xlu0 %v2406
        %v2460 = vpop.xlane.xlu0 %2459
        %2461 = vmax.xlane.f32.xlu0 %v2411
        %v2462 = vpop.xlane.xlu0 %2461
        %2463 = vmax.xlane.f32.xlu0 %v2414
        %v2464 = vpop.xlane.xlu0 %2463
        %2465 = vmax.xlane.f32.xlu0 %v2419
        %v2466 = vpop.xlane.xlu0 %2465
        %2467 = vmax.xlane.f32.xlu0 %v2422
        %v2468 = vpop.xlane.xlu0 %2467
        %2469 = vmax.xlane.f32.xlu0 %v2427
        %v2470 = vpop.xlane.xlu0 %2469
        %2471 = vmax.xlane.f32.xlu0 %v2430
        %v2472 = vpop.xlane.xlu0 %2471
        %2473 = vmax.xlane.f32.xlu0 %v2435
        %v2474 = vpop.xlane.xlu0 %2473
        %2475 = vmax.xlane.f32.xlu0 %v2438
        %v2476 = vpop.xlane.xlu0 %2475
        %2477 = vmax.xlane.f32.xlu0 %v2443
        %v2478 = vpop.xlane.xlu0 %2477
        %2479 = vmax.xlane.f32.xlu0 %v2446
        %v2480 = vpop.xlane.xlu0 %2479
        %v2481 = vsub.f32 %v2387, %v2450
        %v2482 = vsub.f32 %v2390, %v2452
        %v2483 = vsub.f32 %v2395, %v2454
        %v2484 = vsub.f32 %v2398, %v2456
        %v2485 = vsub.f32 %v2403, %v2458
        %v2486 = vsub.f32 %v2406, %v2460
        %v2487 = vsub.f32 %v2411, %v2462
        %v2488 = vsub.f32 %v2414, %v2464
        %v2489 = vsub.f32 %v2419, %v2466
        %v2490 = vsub.f32 %v2422, %v2468
        %v2491 = vsub.f32 %v2427, %v2470
        %v2492 = vsub.f32 %v2430, %v2472
        %v2493 = vsub.f32 %v2435, %v2474
        %v2494 = vsub.f32 %v2438, %v2476
        %v2495 = vsub.f32 %v2443, %v2478
        %v2496 = vsub.f32 %v2446, %v2480
        %v2497 = vmul.f32 %v2481, 1.442695
        %v2498 = vpow.pop %v2497
        %v2499 = vmul.f32 %v2482, 1.442695
        %v2500 = vpow.pop %v2499
        %v2501 = vmul.f32 %v2483, 1.442695
        %v2502 = vpow.pop %v2501
        %v2503 = vmul.f32 %v2484, 1.442695
        %v2504 = vpow.pop %v2503
        %v2505 = vmul.f32 %v2485, 1.442695
        %v2506 = vpow.pop %v2505
        %v2507 = vmul.f32 %v2486, 1.442695
        %v2508 = vpow.pop %v2507
        %v2509 = vmul.f32 %v2487, 1.442695
        %v2510 = vpow.pop %v2509
        %v2511 = vmul.f32 %v2488, 1.442695
        %v2512 = vpow.pop %v2511
        %v2513 = vmul.f32 %v2489, 1.442695
        %v2514 = vpow.pop %v2513
        %v2515 = vmul.f32 %v2490, 1.442695
        %v2516 = vpow.pop %v2515
        %v2517 = vmul.f32 %v2491, 1.442695
        %v2518 = vpow.pop %v2517
        %v2519 = vmul.f32 %v2492, 1.442695
        %v2520 = vpow.pop %v2519
        %v2521 = vmul.f32 %v2493, 1.442695
        %v2522 = vpow.pop %v2521
        %v2523 = vmul.f32 %v2494, 1.442695
        %v2524 = vpow.pop %v2523
        %v2525 = vmul.f32 %v2495, 1.442695
        %v2526 = vpow.pop %v2525
        %v2527 = vmul.f32 %v2496, 1.442695
        %v2528 = vpow.pop %v2527
        %2529 = vadd.xlane.f32.xlu0 %v2498
        %v2530 = vpop.xlane.xlu0 %2529
        %2531 = vadd.xlane.f32.xlu0 %v2500
        %v2532 = vpop.xlane.xlu0 %2531
        %2533 = vadd.xlane.f32.xlu0 %v2502
        %v2534 = vpop.xlane.xlu0 %2533
        %2535 = vadd.xlane.f32.xlu0 %v2504
        %v2536 = vpop.xlane.xlu0 %2535
        %2537 = vadd.xlane.f32.xlu0 %v2506
        %v2538 = vpop.xlane.xlu0 %2537
        %2539 = vadd.xlane.f32.xlu0 %v2508
        %v2540 = vpop.xlane.xlu0 %2539
        %2541 = vadd.xlane.f32.xlu0 %v2510
        %v2542 = vpop.xlane.xlu0 %2541
        %2543 = vadd.xlane.f32.xlu0 %v2512
        %v2544 = vpop.xlane.xlu0 %2543
        %2545 = vadd.xlane.f32.xlu0 %v2514
        %v2546 = vpop.xlane.xlu0 %2545
        %2547 = vadd.xlane.f32.xlu0 %v2516
        %v2548 = vpop.xlane.xlu0 %2547
        %2549 = vadd.xlane.f32.xlu0 %v2518
        %v2550 = vpop.xlane.xlu0 %2549
        %2551 = vadd.xlane.f32.xlu0 %v2520
        %v2552 = vpop.xlane.xlu0 %2551
        %2553 = vadd.xlane.f32.xlu0 %v2522
        %v2554 = vpop.xlane.xlu0 %2553
        %2555 = vadd.xlane.f32.xlu0 %v2524
        %v2556 = vpop.xlane.xlu0 %2555
        %2557 = vadd.xlane.f32.xlu0 %v2526
        %v2558 = vpop.xlane.xlu0 %2557
        %2559 = vadd.xlane.f32.xlu0 %v2528
        %v2560 = vpop.xlane.xlu0 %2559
        %v2561 = vpack.c.bf16 %v2500, %v2498
        %v2562 = vpack.c.bf16 %v2504, %v2502
        %v2563 = vpack.c.bf16 %v2508, %v2506
        %v2564 = vpack.c.bf16 %v2512, %v2510
        %v2565 = vpack.c.bf16 %v2516, %v2514
        %v2566 = vpack.c.bf16 %v2520, %v2518
        %v2567 = vpack.c.bf16 %v2524, %v2522
        %v2568 = vpack.c.bf16 %v2528, %v2526
        %2577 = vrot.lane.b32.xlu0 %v1853, 96
        %v2578 = vpop.permute.xlu0 %2577
        %2579 = vrot.lane.b32.xlu0 %v1854, 96
        %v2580 = vpop.permute.xlu0 %2579
        %2581 = vrot.lane.b32.xlu0 %v1855, 96
        %v2582 = vpop.permute.xlu0 %2581
        %2583 = vrot.lane.b32.xlu0 %v1856, 96
        %v2584 = vpop.permute.xlu0 %2583
        %2585 = vrot.lane.b32.xlu0 %v1857, 96
        %v2586 = vpop.permute.xlu0 %2585
        %2587 = vrot.lane.b32.xlu0 %v1858, 96
        %v2588 = vpop.permute.xlu0 %2587
        %2589 = vrot.lane.b32.xlu0 %v1859, 96
        %v2590 = vpop.permute.xlu0 %2589
        %2591 = vrot.lane.b32.xlu0 %v1860, 96
        %v2592 = vpop.permute.xlu0 %2591
        %2601 = vmatprep.subr.bf16.mxu0 0
        %2602 = vmatpush1.bf16.msra.mxu0 %v2578
        %2603 = vmatprep.subr.bf16.mxu0 0
        %2604 = vmatpush1.bf16.msra.mxu0 %v2580
        %2605 = vmatprep.subr.bf16.mxu0 0
        %2606 = vmatpush1.bf16.msra.mxu0 %v2582
        %2607 = vmatprep.subr.bf16.mxu0 0
        %2608 = vmatpush1.bf16.msra.mxu0 %v2584
        %2609 = vmatprep.subr.bf16.mxu0 0
        %2610 = vmatpush1.bf16.msra.mxu0 %v2586
        %2611 = vmatprep.subr.bf16.mxu0 0
        %2612 = vmatpush1.bf16.msra.mxu0 %v2588
        %2613 = vmatprep.subr.bf16.mxu0 0
        %2614 = vmatpush1.bf16.msra.mxu0 %v2590
        %2615 = vmatprep.subr.bf16.mxu0 0
        %2616 = vmatpush1.bf16.msra.mxu0 %v2592
        %2617 = vmatprep.subr.bf16.mxu0 0
        %2618 = vmatpush1.bf16.msra.mxu0 0
        %2619 = vmatprep.subr.bf16.mxu0 0
        %2620 = vmatpush1.bf16.msra.mxu0 0
        %2621 = vmatprep.subr.bf16.mxu0 0
        %2622 = vmatpush1.bf16.msra.mxu0 0
        %2623 = vmatprep.subr.bf16.mxu0 0
        %2624 = vmatpush1.bf16.msra.mxu0 0
        %2625 = vmatprep.subr.bf16.mxu0 0
        %2626 = vmatpush1.bf16.msra.mxu0 0
        %2627 = vmatprep.subr.bf16.mxu0 0
        %2628 = vmatpush1.bf16.msra.mxu0 0
        %2629 = vmatprep.subr.bf16.mxu0 0
        %2630 = vmatpush1.bf16.msra.mxu0 0
        %2631 = vmatprep.subr.bf16.mxu0 0
        %2632 = vmatpush1.bf16.msra.mxu0 0
        %2633 = vmatprep.mubr.bf16.mxu0 0
        %2634 = vmatmul.mubr.bf16.gmra.mrb[0].mxu0 %v2561
        %v2635 = vpop.f32.mrb[0].mxu0
        %v2636 = vadd.f32 0.0, %v2635
        %v2637 = vpop.f32.mrb[0].mxu0
        %v2638 = vpop.f32.mrb[0].mxu0
        %v2639 = vadd.f32 0.0, %v2638
        %v2640 = vpop.f32.mrb[0].mxu0
        %2641 = vmatprep.mubr.bf16.mxu0 0
        %2642 = vmatmul.mubr.bf16.gmra.mrb[0].mxu0 %v2562
        %v2643 = vpop.f32.mrb[0].mxu0
        %v2644 = vadd.f32 0.0, %v2643
        %v2645 = vpop.f32.mrb[0].mxu0
        %v2646 = vpop.f32.mrb[0].mxu0
        %v2647 = vadd.f32 0.0, %v2646
        %v2648 = vpop.f32.mrb[0].mxu0
        %2649 = vmatprep.mubr.bf16.mxu0 0
        %2650 = vmatmul.mubr.bf16.gmra.mrb[0].mxu0 %v2563
        %v2651 = vpop.f32.mrb[0].mxu0
        %v2652 = vadd.f32 0.0, %v2651
        %v2653 = vpop.f32.mrb[0].mxu0
        %v2654 = vpop.f32.mrb[0].mxu0
        %v2655 = vadd.f32 0.0, %v2654
        %v2656 = vpop.f32.mrb[0].mxu0
        %2657 = vmatprep.mubr.bf16.mxu0 0
        %2658 = vmatmul.mubr.bf16.gmra.mrb[0].mxu0 %v2564
        %v2659 = vpop.f32.mrb[0].mxu0
        %v2660 = vadd.f32 0.0, %v2659
        %v2661 = vpop.f32.mrb[0].mxu0
        %v2662 = vpop.f32.mrb[0].mxu0
        %v2663 = vadd.f32 0.0, %v2662
        %v2664 = vpop.f32.mrb[0].mxu0
        %2665 = vmatprep.mubr.bf16.mxu0 0
        %2666 = vmatmul.mubr.bf16.gmra.mrb[0].mxu0 %v2565
        %v2667 = vpop.f32.mrb[0].mxu0
        %v2668 = vadd.f32 0.0, %v2667
        %v2669 = vpop.f32.mrb[0].mxu0
        %v2670 = vpop.f32.mrb[0].mxu0
        %v2671 = vadd.f32 0.0, %v2670
        %v2672 = vpop.f32.mrb[0].mxu0
        %2673 = vmatprep.mubr.bf16.mxu0 0
        %2674 = vmatmul.mubr.bf16.gmra.mrb[0].mxu0 %v2566
        %v2675 = vpop.f32.mrb[0].mxu0
        %v2676 = vadd.f32 0.0, %v2675
        %v2677 = vpop.f32.mrb[0].mxu0
        %v2678 = vpop.f32.mrb[0].mxu0
        %v2679 = vadd.f32 0.0, %v2678
        %v2680 = vpop.f32.mrb[0].mxu0
        %2681 = vmatprep.mubr.bf16.mxu0 0
        %2682 = vmatmul.mubr.bf16.gmra.mrb[0].mxu0 %v2567
        %v2683 = vpop.f32.mrb[0].mxu0
        %v2684 = vadd.f32 0.0, %v2683
        %v2685 = vpop.f32.mrb[0].mxu0
        %v2686 = vpop.f32.mrb[0].mxu0
        %v2687 = vadd.f32 0.0, %v2686
        %v2688 = vpop.f32.mrb[0].mxu0
        %2689 = vmatprep.mubr.bf16.mxu0 0
        %2690 = vmatmul.mubr.bf16.gmra.mrb[0].mxu0 %v2568
        %v2691 = vpop.f32.mrb[0].mxu0
        %v2692 = vadd.f32 0.0, %v2691
        %v2693 = vpop.f32.mrb[0].mxu0
        %v2694 = vpop.f32.mrb[0].mxu0
        %v2695 = vadd.f32 0.0, %v2694
        %v2696 = vpop.f32.mrb[0].mxu0
        %2697 = vdwg.mxu0
        %v2698 = vrcp.pop %v2530
        %v2699 = vrcp.pop %v2532
        %v2700 = vrcp.pop %v2534
        %v2701 = vrcp.pop %v2536
        %v2702 = vrcp.pop %v2538
        %v2703 = vrcp.pop %v2540
        %v2704 = vrcp.pop %v2542
        %v2705 = vrcp.pop %v2544
        %v2706 = vrcp.pop %v2546
        %v2707 = vrcp.pop %v2548
        %v2708 = vrcp.pop %v2550
        %v2709 = vrcp.pop %v2552
        %v2710 = vrcp.pop %v2554
        %v2711 = vrcp.pop %v2556
        %v2712 = vrcp.pop %v2558
        %v2713 = vrcp.pop %v2560
        %v2714 = vmul.f32 %v2636, %v2698
        %v2715 = vmul.f32 %v2639, %v2699
        %v2716 = vmul.f32 %v2644, %v2700
        %v2717 = vmul.f32 %v2647, %v2701
        %v2718 = vmul.f32 %v2652, %v2702
        %v2719 = vmul.f32 %v2655, %v2703
        %v2720 = vmul.f32 %v2660, %v2704
        %v2721 = vmul.f32 %v2663, %v2705
        %v2722 = vmul.f32 %v2668, %v2706
        %v2723 = vmul.f32 %v2671, %v2707
        %v2724 = vmul.f32 %v2676, %v2708
        %v2725 = vmul.f32 %v2679, %v2709
        %v2726 = vmul.f32 %v2684, %v2710
        %v2727 = vmul.f32 %v2687, %v2711
        %v2728 = vmul.f32 %v2692, %v2712
        %v2729 = vmul.f32 %v2695, %v2713
        %2730 = vrot.lane.b32.xlu0 %v1837, 64
        %v2731 = vpop.permute.xlu0 %2730
        %2732 = vrot.lane.b32.xlu0 %v1838, 64
        %v2733 = vpop.permute.xlu0 %2732
        %2734 = vrot.lane.b32.xlu0 %v1839, 64
        %v2735 = vpop.permute.xlu0 %2734
        %2736 = vrot.lane.b32.xlu0 %v1840, 64
        %v2737 = vpop.permute.xlu0 %2736
        %2738 = vrot.lane.b32.xlu0 %v1841, 64
        %v2739 = vpop.permute.xlu0 %2738
        %2740 = vrot.lane.b32.xlu0 %v1842, 64
        %v2741 = vpop.permute.xlu0 %2740
        %2742 = vrot.lane.b32.xlu0 %v1843, 64
        %v2743 = vpop.permute.xlu0 %2742
        %2744 = vrot.lane.b32.xlu0 %v1844, 64
        %v2745 = vpop.permute.xlu0 %2744
        %2746 = vrot.lane.b32.xlu0 %v1845, 64
        %v2747 = vpop.permute.xlu0 %2746
        %2748 = vrot.lane.b32.xlu0 %v1846, 64
        %v2749 = vpop.permute.xlu0 %2748
        %2750 = vrot.lane.b32.xlu0 %v1847, 64
        %v2751 = vpop.permute.xlu0 %2750
        %2752 = vrot.lane.b32.xlu0 %v1848, 64
        %v2753 = vpop.permute.xlu0 %2752
        %2754 = vrot.lane.b32.xlu0 %v1849, 64
        %v2755 = vpop.permute.xlu0 %2754
        %2756 = vrot.lane.b32.xlu0 %v1850, 64
        %v2757 = vpop.permute.xlu0 %2756
        %2758 = vrot.lane.b32.xlu0 %v1851, 64
        %v2759 = vpop.permute.xlu0 %2758
        %2760 = vrot.lane.b32.xlu0 %v1852, 64
        %v2761 = vpop.permute.xlu0 %2760
        %v2763 = vsel %vm1861, %v2731, 0
        %v2766 = vsel %vm1861, %v2733, 0
        %v2769 = vsel %vm1861, %v2735, 0
        %v2772 = vsel %vm1861, %v2737, 0
        %v2775 = vsel %vm1861, %v2739, 0
        %v2778 = vsel %vm1861, %v2741, 0
        %v2781 = vsel %vm1861, %v2743, 0
        %v2784 = vsel %vm1861, %v2745, 0
        %v2787 = vsel %vm1861, %v2747, 0
        %v2790 = vsel %vm1861, %v2749, 0
        %v2793 = vsel %vm1861, %v2751, 0
        %v2796 = vsel %vm1861, %v2753, 0
        %v2799 = vsel %vm1861, %v2755, 0
        %v2802 = vsel %vm1861, %v2757, 0
        %v2805 = vsel %vm1861, %v2759, 0
        %v2808 = vsel %vm1861, %v2761, 0
        %2810 = vmatprep.subr.bf16.mxu0 0
        %2811 = vmatpush1.bf16.xpose.msra.mxu0 %v2787
        %2812 = vmatprep.subr.bf16.mxu0 0
        %2813 = vmatpush1.bf16.xpose.msra.mxu0 %v2790
        %2814 = vmatprep.subr.bf16.mxu0 0
        %2815 = vmatpush1.bf16.xpose.msra.mxu0 %v2793
        %2816 = vmatprep.subr.bf16.mxu0 0
        %2817 = vmatpush1.bf16.xpose.msra.mxu0 %v2796
        %2818 = vmatprep.subr.bf16.mxu0 0
        %2819 = vmatpush1.bf16.xpose.msra.mxu0 %v2799
        %2820 = vmatprep.subr.bf16.mxu0 0
        %2821 = vmatpush1.bf16.xpose.msra.mxu0 %v2802
        %2822 = vmatprep.subr.bf16.mxu0 0
        %2823 = vmatpush1.bf16.xpose.msra.mxu0 %v2805
        %2824 = vmatprep.subr.bf16.mxu0 0
        %2825 = vmatpush1.bf16.xpose.msra.mxu0 %v2808
        %2826 = vmatprep.subr.bf16.mxu0 0
        %2827 = vmatpush1.bf16.xpose.msra.mxu0 0
        %2828 = vmatprep.subr.bf16.mxu0 0
        %2829 = vmatpush1.bf16.xpose.msra.mxu0 0
        %2830 = vmatprep.subr.bf16.mxu0 0
        %2831 = vmatpush1.bf16.xpose.msra.mxu0 0
        %2832 = vmatprep.subr.bf16.mxu0 0
        %2833 = vmatpush1.bf16.xpose.msra.mxu0 0
        %2834 = vmatprep.subr.bf16.mxu0 0
        %2835 = vmatpush1.bf16.xpose.msra.mxu0 0
        %2836 = vmatprep.subr.bf16.mxu0 0
        %2837 = vmatpush1.bf16.xpose.msra.mxu0 0
        %2838 = vmatprep.subr.bf16.mxu0 0
        %2839 = vmatpush1.bf16.xpose.msra.mxu0 0
        %2840 = vmatprep.subr.bf16.mxu0 0
        %2841 = vmatpush1.bf16.xpose.msra.mxu0 0
        %2842 = vmatprep.mubr.bf16.mxu0 0
        %2843 = vmatmul.mubr.bf16.gmra.mrb[0].mxu0 %v2763
        %v2844 = vpop.f32.mrb[0].mxu0
        %v2845 = vadd.f32 %v504, %v2844
        %v2846 = vpop.f32.mrb[0].mxu0
        %v2847 = vpop.f32.mrb[0].mxu0
        %v2848 = vadd.f32 %v505, %v2847
        %v2849 = vpop.f32.mrb[0].mxu0
        %2850 = vmatprep.mubr.bf16.mxu0 0
        %2851 = vmatmul.mubr.bf16.gmra.mrb[0].mxu0 %v2766
        %v2852 = vpop.f32.mrb[0].mxu0
        %v2853 = vadd.f32 %v506, %v2852
        %v2854 = vpop.f32.mrb[0].mxu0
        %v2855 = vpop.f32.mrb[0].mxu0
        %v2856 = vadd.f32 %v507, %v2855
        %v2857 = vpop.f32.mrb[0].mxu0
        %2858 = vmatprep.mubr.bf16.mxu0 0
        %2859 = vmatmul.mubr.bf16.gmra.mrb[0].mxu0 %v2769
        %v2860 = vpop.f32.mrb[0].mxu0
        %v2861 = vadd.f32 %v508, %v2860
        %v2862 = vpop.f32.mrb[0].mxu0
        %v2863 = vpop.f32.mrb[0].mxu0
        %v2864 = vadd.f32 %v509, %v2863
        %v2865 = vpop.f32.mrb[0].mxu0
        %2866 = vmatprep.mubr.bf16.mxu0 0
        %2867 = vmatmul.mubr.bf16.gmra.mrb[0].mxu0 %v2772
        %v2868 = vpop.f32.mrb[0].mxu0
        %v2869 = vadd.f32 %v510, %v2868
        %v2870 = vpop.f32.mrb[0].mxu0
        %v2871 = vpop.f32.mrb[0].mxu0
        %v2872 = vadd.f32 %v511, %v2871
        %v2873 = vpop.f32.mrb[0].mxu0
        %2874 = vmatprep.mubr.bf16.mxu0 0
        %2875 = vmatmul.mubr.bf16.gmra.mrb[0].mxu0 %v2775
        %v2876 = vpop.f32.mrb[0].mxu0
        %v2877 = vadd.f32 %v512, %v2876
        %v2878 = vpop.f32.mrb[0].mxu0
        %v2879 = vpop.f32.mrb[0].mxu0
        %v2880 = vadd.f32 %v513, %v2879
        %v2881 = vpop.f32.mrb[0].mxu0
        %2882 = vmatprep.mubr.bf16.mxu0 0
        %2883 = vmatmul.mubr.bf16.gmra.mrb[0].mxu0 %v2778
        %v2884 = vpop.f32.mrb[0].mxu0
        %v2885 = vadd.f32 %v514, %v2884
        %v2886 = vpop.f32.mrb[0].mxu0
        %v2887 = vpop.f32.mrb[0].mxu0
        %v2888 = vadd.f32 %v515, %v2887
        %v2889 = vpop.f32.mrb[0].mxu0
        %2890 = vmatprep.mubr.bf16.mxu0 0
        %2891 = vmatmul.mubr.bf16.gmra.mrb[0].mxu0 %v2781
        %v2892 = vpop.f32.mrb[0].mxu0
        %v2893 = vadd.f32 %v516, %v2892
        %v2894 = vpop.f32.mrb[0].mxu0
        %v2895 = vpop.f32.mrb[0].mxu0
        %v2896 = vadd.f32 %v517, %v2895
        %v2897 = vpop.f32.mrb[0].mxu0
        %2898 = vmatprep.mubr.bf16.mxu0 0
        %2899 = vmatmul.mubr.bf16.gmra.mrb[0].mxu0 %v2784
        %v2900 = vpop.f32.mrb[0].mxu0
        %v2901 = vadd.f32 %v518, %v2900
        %v2902 = vpop.f32.mrb[0].mxu0
        %v2903 = vpop.f32.mrb[0].mxu0
        %v2904 = vadd.f32 %v519, %v2903
        %v2905 = vpop.f32.mrb[0].mxu0
        %2906 = vdwg.mxu0
        %2907 = vmax.xlane.f32.xlu0 %v2845
        %v2908 = vpop.xlane.xlu0 %2907
        %2909 = vmax.xlane.f32.xlu0 %v2848
        %v2910 = vpop.xlane.xlu0 %2909
        %2911 = vmax.xlane.f32.xlu0 %v2853
        %v2912 = vpop.xlane.xlu0 %2911
        %2913 = vmax.xlane.f32.xlu0 %v2856
        %v2914 = vpop.xlane.xlu0 %2913
        %2915 = vmax.xlane.f32.xlu0 %v2861
        %v2916 = vpop.xlane.xlu0 %2915
        %2917 = vmax.xlane.f32.xlu0 %v2864
        %v2918 = vpop.xlane.xlu0 %2917
        %2919 = vmax.xlane.f32.xlu0 %v2869
        %v2920 = vpop.xlane.xlu0 %2919
        %2921 = vmax.xlane.f32.xlu0 %v2872
        %v2922 = vpop.xlane.xlu0 %2921
        %2923 = vmax.xlane.f32.xlu0 %v2877
        %v2924 = vpop.xlane.xlu0 %2923
        %2925 = vmax.xlane.f32.xlu0 %v2880
        %v2926 = vpop.xlane.xlu0 %2925
        %2927 = vmax.xlane.f32.xlu0 %v2885
        %v2928 = vpop.xlane.xlu0 %2927
        %2929 = vmax.xlane.f32.xlu0 %v2888
        %v2930 = vpop.xlane.xlu0 %2929
        %2931 = vmax.xlane.f32.xlu0 %v2893
        %v2932 = vpop.xlane.xlu0 %2931
        %2933 = vmax.xlane.f32.xlu0 %v2896
        %v2934 = vpop.xlane.xlu0 %2933
        %2935 = vmax.xlane.f32.xlu0 %v2901
        %v2936 = vpop.xlane.xlu0 %2935
        %2937 = vmax.xlane.f32.xlu0 %v2904
        %v2938 = vpop.xlane.xlu0 %2937
        %v2939 = vsub.f32 %v2845, %v2908
        %v2940 = vsub.f32 %v2848, %v2910
        %v2941 = vsub.f32 %v2853, %v2912
        %v2942 = vsub.f32 %v2856, %v2914
        %v2943 = vsub.f32 %v2861, %v2916
        %v2944 = vsub.f32 %v2864, %v2918
        %v2945 = vsub.f32 %v2869, %v2920
        %v2946 = vsub.f32 %v2872, %v2922
        %v2947 = vsub.f32 %v2877, %v2924
        %v2948 = vsub.f32 %v2880, %v2926
        %v2949 = vsub.f32 %v2885, %v2928
        %v2950 = vsub.f32 %v2888, %v2930
        %v2951 = vsub.f32 %v2893, %v2932
        %v2952 = vsub.f32 %v2896, %v2934
        %v2953 = vsub.f32 %v2901, %v2936
        %v2954 = vsub.f32 %v2904, %v2938
        %v2955 = vmul.f32 %v2939, 1.442695
        %v2956 = vpow.pop %v2955
        %v2957 = vmul.f32 %v2940, 1.442695
        %v2958 = vpow.pop %v2957
        %v2959 = vmul.f32 %v2941, 1.442695
        %v2960 = vpow.pop %v2959
        %v2961 = vmul.f32 %v2942, 1.442695
        %v2962 = vpow.pop %v2961
        %v2963 = vmul.f32 %v2943, 1.442695
        %v2964 = vpow.pop %v2963
        %v2965 = vmul.f32 %v2944, 1.442695
        %v2966 = vpow.pop %v2965
        %v2967 = vmul.f32 %v2945, 1.442695
        %v2968 = vpow.pop %v2967
        %v2969 = vmul.f32 %v2946, 1.442695
        %v2970 = vpow.pop %v2969
        %v2971 = vmul.f32 %v2947, 1.442695
        %v2972 = vpow.pop %v2971
        %v2973 = vmul.f32 %v2948, 1.442695
        %v2974 = vpow.pop %v2973
        %v2975 = vmul.f32 %v2949, 1.442695
        %v2976 = vpow.pop %v2975
        %v2977 = vmul.f32 %v2950, 1.442695
        %v2978 = vpow.pop %v2977
        %v2979 = vmul.f32 %v2951, 1.442695
        %v2980 = vpow.pop %v2979
        %v2981 = vmul.f32 %v2952, 1.442695
        %v2982 = vpow.pop %v2981
        %v2983 = vmul.f32 %v2953, 1.442695
        %v2984 = vpow.pop %v2983
        %v2985 = vmul.f32 %v2954, 1.442695
        %v2986 = vpow.pop %v2985
        %2987 = vadd.xlane.f32.xlu0 %v2956
        %v2988 = vpop.xlane.xlu0 %2987
        %2989 = vadd.xlane.f32.xlu0 %v2958
        %v2990 = vpop.xlane.xlu0 %2989
        %2991 = vadd.xlane.f32.xlu0 %v2960
        %v2992 = vpop.xlane.xlu0 %2991
        %2993 = vadd.xlane.f32.xlu0 %v2962
        %v2994 = vpop.xlane.xlu0 %2993
        %2995 = vadd.xlane.f32.xlu0 %v2964
        %v2996 = vpop.xlane.xlu0 %2995
        %2997 = vadd.xlane.f32.xlu0 %v2966
        %v2998 = vpop.xlane.xlu0 %2997
        %2999 = vadd.xlane.f32.xlu0 %v2968
        %v3000 = vpop.xlane.xlu0 %2999
        %3001 = vadd.xlane.f32.xlu0 %v2970
        %v3002 = vpop.xlane.xlu0 %3001
        %3003 = vadd.xlane.f32.xlu0 %v2972
        %v3004 = vpop.xlane.xlu0 %3003
        %3005 = vadd.xlane.f32.xlu0 %v2974
        %v3006 = vpop.xlane.xlu0 %3005
        %3007 = vadd.xlane.f32.xlu0 %v2976
        %v3008 = vpop.xlane.xlu0 %3007
        %3009 = vadd.xlane.f32.xlu0 %v2978
        %v3010 = vpop.xlane.xlu0 %3009
        %3011 = vadd.xlane.f32.xlu0 %v2980
        %v3012 = vpop.xlane.xlu0 %3011
        %3013 = vadd.xlane.f32.xlu0 %v2982
        %v3014 = vpop.xlane.xlu0 %3013
        %3015 = vadd.xlane.f32.xlu0 %v2984
        %v3016 = vpop.xlane.xlu0 %3015
        %3017 = vadd.xlane.f32.xlu0 %v2986
        %v3018 = vpop.xlane.xlu0 %3017
        %v3019 = vpack.c.bf16 %v2958, %v2956
        %v3020 = vpack.c.bf16 %v2962, %v2960
        %v3021 = vpack.c.bf16 %v2966, %v2964
        %v3022 = vpack.c.bf16 %v2970, %v2968
        %v3023 = vpack.c.bf16 %v2974, %v2972
        %v3024 = vpack.c.bf16 %v2978, %v2976
        %v3025 = vpack.c.bf16 %v2982, %v2980
        %v3026 = vpack.c.bf16 %v2986, %v2984
        %3027 = vrot.lane.b32.xlu0 %v1853, 64
        %v3028 = vpop.permute.xlu0 %3027
        %3029 = vrot.lane.b32.xlu0 %v1854, 64
        %v3030 = vpop.permute.xlu0 %3029
        %3031 = vrot.lane.b32.xlu0 %v1855, 64
        %v3032 = vpop.permute.xlu0 %3031
        %3033 = vrot.lane.b32.xlu0 %v1856, 64
        %v3034 = vpop.permute.xlu0 %3033
        %3035 = vrot.lane.b32.xlu0 %v1857, 64
        %v3036 = vpop.permute.xlu0 %3035
        %3037 = vrot.lane.b32.xlu0 %v1858, 64
        %v3038 = vpop.permute.xlu0 %3037
        %3039 = vrot.lane.b32.xlu0 %v1859, 64
        %v3040 = vpop.permute.xlu0 %3039
        %3041 = vrot.lane.b32.xlu0 %v1860, 64
        %v3042 = vpop.permute.xlu0 %3041
        %3051 = vmatprep.subr.bf16.mxu0 0
        %3052 = vmatpush1.bf16.msra.mxu0 %v3028
        %3053 = vmatprep.subr.bf16.mxu0 0
        %3054 = vmatpush1.bf16.msra.mxu0 %v3030
        %3055 = vmatprep.subr.bf16.mxu0 0
        %3056 = vmatpush1.bf16.msra.mxu0 %v3032
        %3057 = vmatprep.subr.bf16.mxu0 0
        %3058 = vmatpush1.bf16.msra.mxu0 %v3034
        %3059 = vmatprep.subr.bf16.mxu0 0
        %3060 = vmatpush1.bf16.msra.mxu0 %v3036
        %3061 = vmatprep.subr.bf16.mxu0 0
        %3062 = vmatpush1.bf16.msra.mxu0 %v3038
        %3063 = vmatprep.subr.bf16.mxu0 0
        %3064 = vmatpush1.bf16.msra.mxu0 %v3040
        %3065 = vmatprep.subr.bf16.mxu0 0
        %3066 = vmatpush1.bf16.msra.mxu0 %v3042
        %3067 = vmatprep.subr.bf16.mxu0 0
        %3068 = vmatpush1.bf16.msra.mxu0 0
        %3069 = vmatprep.subr.bf16.mxu0 0
        %3070 = vmatpush1.bf16.msra.mxu0 0
        %3071 = vmatprep.subr.bf16.mxu0 0
        %3072 = vmatpush1.bf16.msra.mxu0 0
        %3073 = vmatprep.subr.bf16.mxu0 0
        %3074 = vmatpush1.bf16.msra.mxu0 0
        %3075 = vmatprep.subr.bf16.mxu0 0
        %3076 = vmatpush1.bf16.msra.mxu0 0
        %3077 = vmatprep.subr.bf16.mxu0 0
        %3078 = vmatpush1.bf16.msra.mxu0 0
        %3079 = vmatprep.subr.bf16.mxu0 0
        %3080 = vmatpush1.bf16.msra.mxu0 0
        %3081 = vmatprep.subr.bf16.mxu0 0
        %3082 = vmatpush1.bf16.msra.mxu0 0
        %3083 = vmatprep.mubr.bf16.mxu0 0
        %3084 = vmatmul.mubr.bf16.gmra.mrb[0].mxu0 %v3019
        %v3085 = vpop.f32.mrb[0].mxu0
        %v3086 = vadd.f32 0.0, %v3085
        %v3087 = vpop.f32.mrb[0].mxu0
        %v3088 = vpop.f32.mrb[0].mxu0
        %v3089 = vadd.f32 0.0, %v3088
        %v3090 = vpop.f32.mrb[0].mxu0
        %3091 = vmatprep.mubr.bf16.mxu0 0
        %3092 = vmatmul.mubr.bf16.gmra.mrb[0].mxu0 %v3020
        %v3093 = vpop.f32.mrb[0].mxu0
        %v3094 = vadd.f32 0.0, %v3093
        %v3095 = vpop.f32.mrb[0].mxu0
        %v3096 = vpop.f32.mrb[0].mxu0
        %v3097 = vadd.f32 0.0, %v3096
        %v3098 = vpop.f32.mrb[0].mxu0
        %3099 = vmatprep.mubr.bf16.mxu0 0
        %3100 = vmatmul.mubr.bf16.gmra.mrb[0].mxu0 %v3021
        %v3101 = vpop.f32.mrb[0].mxu0
        %v3102 = vadd.f32 0.0, %v3101
        %v3103 = vpop.f32.mrb[0].mxu0
        %v3104 = vpop.f32.mrb[0].mxu0
        %v3105 = vadd.f32 0.0, %v3104
        %v3106 = vpop.f32.mrb[0].mxu0
        %3107 = vmatprep.mubr.bf16.mxu0 0
        %3108 = vmatmul.mubr.bf16.gmra.mrb[0].mxu0 %v3022
        %v3109 = vpop.f32.mrb[0].mxu0
        %v3110 = vadd.f32 0.0, %v3109
        %v3111 = vpop.f32.mrb[0].mxu0
        %v3112 = vpop.f32.mrb[0].mxu0
        %v3113 = vadd.f32 0.0, %v3112
        %v3114 = vpop.f32.mrb[0].mxu0
        %3115 = vmatprep.mubr.bf16.mxu0 0
        %3116 = vmatmul.mubr.bf16.gmra.mrb[0].mxu0 %v3023
        %v3117 = vpop.f32.mrb[0].mxu0
        %v3118 = vadd.f32 0.0, %v3117
        %v3119 = vpop.f32.mrb[0].mxu0
        %v3120 = vpop.f32.mrb[0].mxu0
        %v3121 = vadd.f32 0.0, %v3120
        %v3122 = vpop.f32.mrb[0].mxu0
        %3123 = vmatprep.mubr.bf16.mxu0 0
        %3124 = vmatmul.mubr.bf16.gmra.mrb[0].mxu0 %v3024
        %v3125 = vpop.f32.mrb[0].mxu0
        %v3126 = vadd.f32 0.0, %v3125
        %v3127 = vpop.f32.mrb[0].mxu0
        %v3128 = vpop.f32.mrb[0].mxu0
        %v3129 = vadd.f32 0.0, %v3128
        %v3130 = vpop.f32.mrb[0].mxu0
        %3131 = vmatprep.mubr.bf16.mxu0 0
        %3132 = vmatmul.mubr.bf16.gmra.mrb[0].mxu0 %v3025
        %v3133 = vpop.f32.mrb[0].mxu0
        %v3134 = vadd.f32 0.0, %v3133
        %v3135 = vpop.f32.mrb[0].mxu0
        %v3136 = vpop.f32.mrb[0].mxu0
        %v3137 = vadd.f32 0.0, %v3136
        %v3138 = vpop.f32.mrb[0].mxu0
        %3139 = vmatprep.mubr.bf16.mxu0 0
        %3140 = vmatmul.mubr.bf16.gmra.mrb[0].mxu0 %v3026
        %v3141 = vpop.f32.mrb[0].mxu0
        %v3142 = vadd.f32 0.0, %v3141
        %v3143 = vpop.f32.mrb[0].mxu0
        %v3144 = vpop.f32.mrb[0].mxu0
        %v3145 = vadd.f32 0.0, %v3144
        %v3146 = vpop.f32.mrb[0].mxu0
        %3147 = vdwg.mxu0
        %v3148 = vrcp.pop %v2988
        %v3149 = vrcp.pop %v2990
        %v3150 = vrcp.pop %v2992
        %v3151 = vrcp.pop %v2994
        %v3152 = vrcp.pop %v2996
        %v3153 = vrcp.pop %v2998
        %v3154 = vrcp.pop %v3000
        %v3155 = vrcp.pop %v3002
        %v3156 = vrcp.pop %v3004
        %v3157 = vrcp.pop %v3006
        %v3158 = vrcp.pop %v3008
        %v3159 = vrcp.pop %v3010
        %v3160 = vrcp.pop %v3012
        %v3161 = vrcp.pop %v3014
        %v3162 = vrcp.pop %v3016
        %v3163 = vrcp.pop %v3018
        %v3164 = vmul.f32 %v3086, %v3148
        %v3165 = vmul.f32 %v3089, %v3149
        %v3166 = vmul.f32 %v3094, %v3150
        %v3167 = vmul.f32 %v3097, %v3151
        %v3168 = vmul.f32 %v3102, %v3152
        %v3169 = vmul.f32 %v3105, %v3153
        %v3170 = vmul.f32 %v3110, %v3154
        %v3171 = vmul.f32 %v3113, %v3155
        %v3172 = vmul.f32 %v3118, %v3156
        %v3173 = vmul.f32 %v3121, %v3157
        %v3174 = vmul.f32 %v3126, %v3158
        %v3175 = vmul.f32 %v3129, %v3159
        %v3176 = vmul.f32 %v3134, %v3160
        %v3177 = vmul.f32 %v3137, %v3161
        %v3178 = vmul.f32 %v3142, %v3162
        %v3179 = vmul.f32 %v3145, %v3163
        %3180 = vrot.lane.b32.xlu0 %v1837, 32
        %v3181 = vpop.permute.xlu0 %3180
        %3182 = vrot.lane.b32.xlu0 %v1838, 32
        %v3183 = vpop.permute.xlu0 %3182
        %3184 = vrot.lane.b32.xlu0 %v1839, 32
        %v3185 = vpop.permute.xlu0 %3184
        %3186 = vrot.lane.b32.xlu0 %v1840, 32
        %v3187 = vpop.permute.xlu0 %3186
        %3188 = vrot.lane.b32.xlu0 %v1841, 32
        %v3189 = vpop.permute.xlu0 %3188
        %3190 = vrot.lane.b32.xlu0 %v1842, 32
        %v3191 = vpop.permute.xlu0 %3190
        %3192 = vrot.lane.b32.xlu0 %v1843, 32
        %v3193 = vpop.permute.xlu0 %3192
        %3194 = vrot.lane.b32.xlu0 %v1844, 32
        %v3195 = vpop.permute.xlu0 %3194
        %3196 = vrot.lane.b32.xlu0 %v1845, 32
        %v3197 = vpop.permute.xlu0 %3196
        %3198 = vrot.lane.b32.xlu0 %v1846, 32
        %v3199 = vpop.permute.xlu0 %3198
        %3200 = vrot.lane.b32.xlu0 %v1847, 32
        %v3201 = vpop.permute.xlu0 %3200
        %3202 = vrot.lane.b32.xlu0 %v1848, 32
        %v3203 = vpop.permute.xlu0 %3202
        %3204 = vrot.lane.b32.xlu0 %v1849, 32
        %v3205 = vpop.permute.xlu0 %3204
        %3206 = vrot.lane.b32.xlu0 %v1850, 32
        %v3207 = vpop.permute.xlu0 %3206
        %3208 = vrot.lane.b32.xlu0 %v1851, 32
        %v3209 = vpop.permute.xlu0 %3208
        %3210 = vrot.lane.b32.xlu0 %v1852, 32
        %v3211 = vpop.permute.xlu0 %3210
        %v3213 = vsel %vm1861, %v3181, 0
        %v3216 = vsel %vm1861, %v3183, 0
        %v3219 = vsel %vm1861, %v3185, 0
        %v3222 = vsel %vm1861, %v3187, 0
        %v3225 = vsel %vm1861, %v3189, 0
        %v3228 = vsel %vm1861, %v3191, 0
        %v3231 = vsel %vm1861, %v3193, 0
        %v3234 = vsel %vm1861, %v3195, 0
        %v3237 = vsel %vm1861, %v3197, 0
        %v3240 = vsel %vm1861, %v3199, 0
        %v3243 = vsel %vm1861, %v3201, 0
        %v3246 = vsel %vm1861, %v3203, 0
        %v3249 = vsel %vm1861, %v3205, 0
        %v3252 = vsel %vm1861, %v3207, 0
        %v3255 = vsel %vm1861, %v3209, 0
        %v3258 = vsel %vm1861, %v3211, 0
        %3260 = vmatprep.subr.bf16.mxu0 0
        %3261 = vmatpush1.bf16.xpose.msra.mxu0 %v3237
        %3262 = vmatprep.subr.bf16.mxu0 0
        %3263 = vmatpush1.bf16.xpose.msra.mxu0 %v3240
        %3264 = vmatprep.subr.bf16.mxu0 0
        %3265 = vmatpush1.bf16.xpose.msra.mxu0 %v3243
        %3266 = vmatprep.subr.bf16.mxu0 0
        %3267 = vmatpush1.bf16.xpose.msra.mxu0 %v3246
        %3268 = vmatprep.subr.bf16.mxu0 0
        %3269 = vmatpush1.bf16.xpose.msra.mxu0 %v3249
        %3270 = vmatprep.subr.bf16.mxu0 0
        %3271 = vmatpush1.bf16.xpose.msra.mxu0 %v3252
        %3272 = vmatprep.subr.bf16.mxu0 0
        %3273 = vmatpush1.bf16.xpose.msra.mxu0 %v3255
        %3274 = vmatprep.subr.bf16.mxu0 0
        %3275 = vmatpush1.bf16.xpose.msra.mxu0 %v3258
        %3276 = vmatprep.subr.bf16.mxu0 0
        %3277 = vmatpush1.bf16.xpose.msra.mxu0 0
        %3278 = vmatprep.subr.bf16.mxu0 0
        %3279 = vmatpush1.bf16.xpose.msra.mxu0 0
        %3280 = vmatprep.subr.bf16.mxu0 0
        %3281 = vmatpush1.bf16.xpose.msra.mxu0 0
        %3282 = vmatprep.subr.bf16.mxu0 0
        %3283 = vmatpush1.bf16.xpose.msra.mxu0 0
        %3284 = vmatprep.subr.bf16.mxu0 0
        %3285 = vmatpush1.bf16.xpose.msra.mxu0 0
        %3286 = vmatprep.subr.bf16.mxu0 0
        %3287 = vmatpush1.bf16.xpose.msra.mxu0 0
        %3288 = vmatprep.subr.bf16.mxu0 0
        %3289 = vmatpush1.bf16.xpose.msra.mxu0 0
        %3290 = vmatprep.subr.bf16.mxu0 0
        %3291 = vmatpush1.bf16.xpose.msra.mxu0 0
        %3292 = vmatprep.mubr.bf16.mxu0 0
        %3293 = vmatmul.mubr.bf16.gmra.mrb[0].mxu0 %v3213
        %v3294 = vpop.f32.mrb[0].mxu0
        %v3295 = vadd.f32 %v504, %v3294
        %v3296 = vpop.f32.mrb[0].mxu0
        %v3297 = vpop.f32.mrb[0].mxu0
        %v3298 = vadd.f32 %v505, %v3297
        %v3299 = vpop.f32.mrb[0].mxu0
        %3300 = vmatprep.mubr.bf16.mxu0 0
        %3301 = vmatmul.mubr.bf16.gmra.mrb[0].mxu0 %v3216
        %v3302 = vpop.f32.mrb[0].mxu0
        %v3303 = vadd.f32 %v506, %v3302
        %v3304 = vpop.f32.mrb[0].mxu0
        %v3305 = vpop.f32.mrb[0].mxu0
        %v3306 = vadd.f32 %v507, %v3305
        %v3307 = vpop.f32.mrb[0].mxu0
        %3308 = vmatprep.mubr.bf16.mxu0 0
        %3309 = vmatmul.mubr.bf16.gmra.mrb[0].mxu0 %v3219
        %v3310 = vpop.f32.mrb[0].mxu0
        %v3311 = vadd.f32 %v508, %v3310
        %v3312 = vpop.f32.mrb[0].mxu0
        %v3313 = vpop.f32.mrb[0].mxu0
        %v3314 = vadd.f32 %v509, %v3313
        %v3315 = vpop.f32.mrb[0].mxu0
        %3316 = vmatprep.mubr.bf16.mxu0 0
        %3317 = vmatmul.mubr.bf16.gmra.mrb[0].mxu0 %v3222
        %v3318 = vpop.f32.mrb[0].mxu0
        %v3319 = vadd.f32 %v510, %v3318
        %v3320 = vpop.f32.mrb[0].mxu0
        %v3321 = vpop.f32.mrb[0].mxu0
        %v3322 = vadd.f32 %v511, %v3321
        %v3323 = vpop.f32.mrb[0].mxu0
        %3324 = vmatprep.mubr.bf16.mxu0 0
        %3325 = vmatmul.mubr.bf16.gmra.mrb[0].mxu0 %v3225
        %v3326 = vpop.f32.mrb[0].mxu0
        %v3327 = vadd.f32 %v512, %v3326
        %v3328 = vpop.f32.mrb[0].mxu0
        %v3329 = vpop.f32.mrb[0].mxu0
        %v3330 = vadd.f32 %v513, %v3329
        %v3331 = vpop.f32.mrb[0].mxu0
        %3332 = vmatprep.mubr.bf16.mxu0 0
        %3333 = vmatmul.mubr.bf16.gmra.mrb[0].mxu0 %v3228
        %v3334 = vpop.f32.mrb[0].mxu0
        %v3335 = vadd.f32 %v514, %v3334
        %v3336 = vpop.f32.mrb[0].mxu0
        %v3337 = vpop.f32.mrb[0].mxu0
        %v3338 = vadd.f32 %v515, %v3337
        %v3339 = vpop.f32.mrb[0].mxu0
        %3340 = vmatprep.mubr.bf16.mxu0 0
        %3341 = vmatmul.mubr.bf16.gmra.mrb[0].mxu0 %v3231
        %v3342 = vpop.f32.mrb[0].mxu0
        %v3343 = vadd.f32 %v516, %v3342
        %v3344 = vpop.f32.mrb[0].mxu0
        %v3345 = vpop.f32.mrb[0].mxu0
        %v3346 = vadd.f32 %v517, %v3345
        %v3347 = vpop.f32.mrb[0].mxu0
        %3348 = vmatprep.mubr.bf16.mxu0 0
        %3349 = vmatmul.mubr.bf16.gmra.mrb[0].mxu0 %v3234
        %v3350 = vpop.f32.mrb[0].mxu0
        %v3351 = vadd.f32 %v518, %v3350
        %v3352 = vpop.f32.mrb[0].mxu0
        %v3353 = vpop.f32.mrb[0].mxu0
        %v3354 = vadd.f32 %v519, %v3353
        %v3355 = vpop.f32.mrb[0].mxu0
        %3356 = vdwg.mxu0
        %3357 = vmax.xlane.f32.xlu0 %v3295
        %v3358 = vpop.xlane.xlu0 %3357
        %3359 = vmax.xlane.f32.xlu0 %v3298
        %v3360 = vpop.xlane.xlu0 %3359
        %3361 = vmax.xlane.f32.xlu0 %v3303
        %v3362 = vpop.xlane.xlu0 %3361
        %3363 = vmax.xlane.f32.xlu0 %v3306
        %v3364 = vpop.xlane.xlu0 %3363
        %3365 = vmax.xlane.f32.xlu0 %v3311
        %v3366 = vpop.xlane.xlu0 %3365
        %3367 = vmax.xlane.f32.xlu0 %v3314
        %v3368 = vpop.xlane.xlu0 %3367
        %3369 = vmax.xlane.f32.xlu0 %v3319
        %v3370 = vpop.xlane.xlu0 %3369
        %3371 = vmax.xlane.f32.xlu0 %v3322
        %v3372 = vpop.xlane.xlu0 %3371
        %3373 = vmax.xlane.f32.xlu0 %v3327
        %v3374 = vpop.xlane.xlu0 %3373
        %3375 = vmax.xlane.f32.xlu0 %v3330
        %v3376 = vpop.xlane.xlu0 %3375
        %3377 = vmax.xlane.f32.xlu0 %v3335
        %v3378 = vpop.xlane.xlu0 %3377
        %3379 = vmax.xlane.f32.xlu0 %v3338
        %v3380 = vpop.xlane.xlu0 %3379
        %3381 = vmax.xlane.f32.xlu0 %v3343
        %v3382 = vpop.xlane.xlu0 %3381
        %3383 = vmax.xlane.f32.xlu0 %v3346
        %v3384 = vpop.xlane.xlu0 %3383
        %3385 = vmax.xlane.f32.xlu0 %v3351
        %v3386 = vpop.xlane.xlu0 %3385
        %3387 = vmax.xlane.f32.xlu0 %v3354
        %v3388 = vpop.xlane.xlu0 %3387
        %v3389 = vsub.f32 %v3295, %v3358
        %v3390 = vsub.f32 %v3298, %v3360
        %v3391 = vsub.f32 %v3303, %v3362
        %v3392 = vsub.f32 %v3306, %v3364
        %v3393 = vsub.f32 %v3311, %v3366
        %v3394 = vsub.f32 %v3314, %v3368
        %v3395 = vsub.f32 %v3319, %v3370
        %v3396 = vsub.f32 %v3322, %v3372
        %v3397 = vsub.f32 %v3327, %v3374
        %v3398 = vsub.f32 %v3330, %v3376
        %v3399 = vsub.f32 %v3335, %v3378
        %v3400 = vsub.f32 %v3338, %v3380
        %v3401 = vsub.f32 %v3343, %v3382
        %v3402 = vsub.f32 %v3346, %v3384
        %v3403 = vsub.f32 %v3351, %v3386
        %v3404 = vsub.f32 %v3354, %v3388
        %v3405 = vmul.f32 %v3389, 1.442695
        %v3406 = vpow.pop %v3405
        %v3407 = vmul.f32 %v3390, 1.442695
        %v3408 = vpow.pop %v3407
        %v3409 = vmul.f32 %v3391, 1.442695
        %v3410 = vpow.pop %v3409
        %v3411 = vmul.f32 %v3392, 1.442695
        %v3412 = vpow.pop %v3411
        %v3413 = vmul.f32 %v3393, 1.442695
        %v3414 = vpow.pop %v3413
        %v3415 = vmul.f32 %v3394, 1.442695
        %v3416 = vpow.pop %v3415
        %v3417 = vmul.f32 %v3395, 1.442695
        %v3418 = vpow.pop %v3417
        %v3419 = vmul.f32 %v3396, 1.442695
        %v3420 = vpow.pop %v3419
        %v3421 = vmul.f32 %v3397, 1.442695
        %v3422 = vpow.pop %v3421
        %v3423 = vmul.f32 %v3398, 1.442695
        %v3424 = vpow.pop %v3423
        %v3425 = vmul.f32 %v3399, 1.442695
        %v3426 = vpow.pop %v3425
        %v3427 = vmul.f32 %v3400, 1.442695
        %v3428 = vpow.pop %v3427
        %v3429 = vmul.f32 %v3401, 1.442695
        %v3430 = vpow.pop %v3429
        %v3431 = vmul.f32 %v3402, 1.442695
        %v3432 = vpow.pop %v3431
        %v3433 = vmul.f32 %v3403, 1.442695
        %v3434 = vpow.pop %v3433
        %v3435 = vmul.f32 %v3404, 1.442695
        %v3436 = vpow.pop %v3435
        %3437 = vadd.xlane.f32.xlu0 %v3406
        %v3438 = vpop.xlane.xlu0 %3437
        %3439 = vadd.xlane.f32.xlu0 %v3408
        %v3440 = vpop.xlane.xlu0 %3439
        %3441 = vadd.xlane.f32.xlu0 %v3410
        %v3442 = vpop.xlane.xlu0 %3441
        %3443 = vadd.xlane.f32.xlu0 %v3412
        %v3444 = vpop.xlane.xlu0 %3443
        %3445 = vadd.xlane.f32.xlu0 %v3414
        %v3446 = vpop.xlane.xlu0 %3445
        %3447 = vadd.xlane.f32.xlu0 %v3416
        %v3448 = vpop.xlane.xlu0 %3447
        %3449 = vadd.xlane.f32.xlu0 %v3418
        %v3450 = vpop.xlane.xlu0 %3449
        %3451 = vadd.xlane.f32.xlu0 %v3420
        %v3452 = vpop.xlane.xlu0 %3451
        %3453 = vadd.xlane.f32.xlu0 %v3422
        %v3454 = vpop.xlane.xlu0 %3453
        %3455 = vadd.xlane.f32.xlu0 %v3424
        %v3456 = vpop.xlane.xlu0 %3455
        %3457 = vadd.xlane.f32.xlu0 %v3426
        %v3458 = vpop.xlane.xlu0 %3457
        %3459 = vadd.xlane.f32.xlu0 %v3428
        %v3460 = vpop.xlane.xlu0 %3459
        %3461 = vadd.xlane.f32.xlu0 %v3430
        %v3462 = vpop.xlane.xlu0 %3461
        %3463 = vadd.xlane.f32.xlu0 %v3432
        %v3464 = vpop.xlane.xlu0 %3463
        %3465 = vadd.xlane.f32.xlu0 %v3434
        %v3466 = vpop.xlane.xlu0 %3465
        %3467 = vadd.xlane.f32.xlu0 %v3436
        %v3468 = vpop.xlane.xlu0 %3467
        %v3469 = vpack.c.bf16 %v3408, %v3406
        %v3470 = vpack.c.bf16 %v3412, %v3410
        %v3471 = vpack.c.bf16 %v3416, %v3414
        %v3472 = vpack.c.bf16 %v3420, %v3418
        %v3473 = vpack.c.bf16 %v3424, %v3422
        %v3474 = vpack.c.bf16 %v3428, %v3426
        %v3475 = vpack.c.bf16 %v3432, %v3430
        %v3476 = vpack.c.bf16 %v3436, %v3434
        %3477 = vrot.lane.b32.xlu0 %v1853, 32
        %v3478 = vpop.permute.xlu0 %3477
        %3479 = vrot.lane.b32.xlu0 %v1854, 32
        %v3480 = vpop.permute.xlu0 %3479
        %3481 = vrot.lane.b32.xlu0 %v1855, 32
        %v3482 = vpop.permute.xlu0 %3481
        %3483 = vrot.lane.b32.xlu0 %v1856, 32
        %v3484 = vpop.permute.xlu0 %3483
        %3485 = vrot.lane.b32.xlu0 %v1857, 32
        %v3486 = vpop.permute.xlu0 %3485
        %3487 = vrot.lane.b32.xlu0 %v1858, 32
        %v3488 = vpop.permute.xlu0 %3487
        %3489 = vrot.lane.b32.xlu0 %v1859, 32
        %v3490 = vpop.permute.xlu0 %3489
        %3491 = vrot.lane.b32.xlu0 %v1860, 32
        %v3492 = vpop.permute.xlu0 %3491
        %3501 = vmatprep.subr.bf16.mxu0 0
        %3502 = vmatpush1.bf16.msra.mxu0 %v3478
        %3503 = vmatprep.subr.bf16.mxu0 0
        %3504 = vmatpush1.bf16.msra.mxu0 %v3480
        %3505 = vmatprep.subr.bf16.mxu0 0
        %3506 = vmatpush1.bf16.msra.mxu0 %v3482
        %3507 = vmatprep.subr.bf16.mxu0 0
        %3508 = vmatpush1.bf16.msra.mxu0 %v3484
        %3509 = vmatprep.subr.bf16.mxu0 0
        %3510 = vmatpush1.bf16.msra.mxu0 %v3486
        %3511 = vmatprep.subr.bf16.mxu0 0
        %3512 = vmatpush1.bf16.msra.mxu0 %v3488
        %3513 = vmatprep.subr.bf16.mxu0 0
        %3514 = vmatpush1.bf16.msra.mxu0 %v3490
        %3515 = vmatprep.subr.bf16.mxu0 0
        %3516 = vmatpush1.bf16.msra.mxu0 %v3492
        %3517 = vmatprep.subr.bf16.mxu0 0
        %3518 = vmatpush1.bf16.msra.mxu0 0
        %3519 = vmatprep.subr.bf16.mxu0 0
        %3520 = vmatpush1.bf16.msra.mxu0 0
        %3521 = vmatprep.subr.bf16.mxu0 0
        %3522 = vmatpush1.bf16.msra.mxu0 0
        %3523 = vmatprep.subr.bf16.mxu0 0
        %3524 = vmatpush1.bf16.msra.mxu0 0
        %3525 = vmatprep.subr.bf16.mxu0 0
        %3526 = vmatpush1.bf16.msra.mxu0 0
        %3527 = vmatprep.subr.bf16.mxu0 0
        %3528 = vmatpush1.bf16.msra.mxu0 0
        %3529 = vmatprep.subr.bf16.mxu0 0
        %3530 = vmatpush1.bf16.msra.mxu0 0
        %3531 = vmatprep.subr.bf16.mxu0 0
        %3532 = vmatpush1.bf16.msra.mxu0 0
        %3533 = vmatprep.mubr.bf16.mxu0 0
        %3534 = vmatmul.mubr.bf16.gmra.mrb[0].mxu0 %v3469
        %v3535 = vpop.f32.mrb[0].mxu0
        %v3536 = vadd.f32 0.0, %v3535
        %v3537 = vpop.f32.mrb[0].mxu0
        %v3538 = vpop.f32.mrb[0].mxu0
        %v3539 = vadd.f32 0.0, %v3538
        %v3540 = vpop.f32.mrb[0].mxu0
        %3541 = vmatprep.mubr.bf16.mxu0 0
        %3542 = vmatmul.mubr.bf16.gmra.mrb[0].mxu0 %v3470
        %v3543 = vpop.f32.mrb[0].mxu0
        %v3544 = vadd.f32 0.0, %v3543
        %v3545 = vpop.f32.mrb[0].mxu0
        %v3546 = vpop.f32.mrb[0].mxu0
        %v3547 = vadd.f32 0.0, %v3546
        %v3548 = vpop.f32.mrb[0].mxu0
        %3549 = vmatprep.mubr.bf16.mxu0 0
        %3550 = vmatmul.mubr.bf16.gmra.mrb[0].mxu0 %v3471
        %v3551 = vpop.f32.mrb[0].mxu0
        %v3552 = vadd.f32 0.0, %v3551
        %v3553 = vpop.f32.mrb[0].mxu0
        %v3554 = vpop.f32.mrb[0].mxu0
        %v3555 = vadd.f32 0.0, %v3554
        %v3556 = vpop.f32.mrb[0].mxu0
        %3557 = vmatprep.mubr.bf16.mxu0 0
        %3558 = vmatmul.mubr.bf16.gmra.mrb[0].mxu0 %v3472
        %v3559 = vpop.f32.mrb[0].mxu0
        %v3560 = vadd.f32 0.0, %v3559
        %v3561 = vpop.f32.mrb[0].mxu0
        %v3562 = vpop.f32.mrb[0].mxu0
        %v3563 = vadd.f32 0.0, %v3562
        %v3564 = vpop.f32.mrb[0].mxu0
        %3565 = vmatprep.mubr.bf16.mxu0 0
        %3566 = vmatmul.mubr.bf16.gmra.mrb[0].mxu0 %v3473
        %v3567 = vpop.f32.mrb[0].mxu0
        %v3568 = vadd.f32 0.0, %v3567
        %v3569 = vpop.f32.mrb[0].mxu0
        %v3570 = vpop.f32.mrb[0].mxu0
        %v3571 = vadd.f32 0.0, %v3570
        %v3572 = vpop.f32.mrb[0].mxu0
        %3573 = vmatprep.mubr.bf16.mxu0 0
        %3574 = vmatmul.mubr.bf16.gmra.mrb[0].mxu0 %v3474
        %v3575 = vpop.f32.mrb[0].mxu0
        %v3576 = vadd.f32 0.0, %v3575
        %v3577 = vpop.f32.mrb[0].mxu0
        %v3578 = vpop.f32.mrb[0].mxu0
        %v3579 = vadd.f32 0.0, %v3578
        %v3580 = vpop.f32.mrb[0].mxu0
        %3581 = vmatprep.mubr.bf16.mxu0 0
        %3582 = vmatmul.mubr.bf16.gmra.mrb[0].mxu0 %v3475
        %v3583 = vpop.f32.mrb[0].mxu0
        %v3584 = vadd.f32 0.0, %v3583
        %v3585 = vpop.f32.mrb[0].mxu0
        %v3586 = vpop.f32.mrb[0].mxu0
        %v3587 = vadd.f32 0.0, %v3586
        %v3588 = vpop.f32.mrb[0].mxu0
        %3589 = vmatprep.mubr.bf16.mxu0 0
        %3590 = vmatmul.mubr.bf16.gmra.mrb[0].mxu0 %v3476
        %v3591 = vpop.f32.mrb[0].mxu0
        %v3592 = vadd.f32 0.0, %v3591
        %v3593 = vpop.f32.mrb[0].mxu0
        %v3594 = vpop.f32.mrb[0].mxu0
        %v3595 = vadd.f32 0.0, %v3594
        %v3596 = vpop.f32.mrb[0].mxu0
        %3597 = vdwg.mxu0
        %v3598 = vrcp.pop %v3438
        %v3599 = vrcp.pop %v3440
        %v3600 = vrcp.pop %v3442
        %v3601 = vrcp.pop %v3444
        %v3602 = vrcp.pop %v3446
        %v3603 = vrcp.pop %v3448
        %v3604 = vrcp.pop %v3450
        %v3605 = vrcp.pop %v3452
        %v3606 = vrcp.pop %v3454
        %v3607 = vrcp.pop %v3456
        %v3608 = vrcp.pop %v3458
        %v3609 = vrcp.pop %v3460
        %v3610 = vrcp.pop %v3462
        %v3611 = vrcp.pop %v3464
        %v3612 = vrcp.pop %v3466
        %v3613 = vrcp.pop %v3468
        %v3614 = vmul.f32 %v3536, %v3598
        %v3615 = vmul.f32 %v3539, %v3599
        %v3616 = vmul.f32 %v3544, %v3600
        %v3617 = vmul.f32 %v3547, %v3601
        %v3618 = vmul.f32 %v3552, %v3602
        %v3619 = vmul.f32 %v3555, %v3603
        %v3620 = vmul.f32 %v3560, %v3604
        %v3621 = vmul.f32 %v3563, %v3605
        %v3622 = vmul.f32 %v3568, %v3606
        %v3623 = vmul.f32 %v3571, %v3607
        %v3624 = vmul.f32 %v3576, %v3608
        %v3625 = vmul.f32 %v3579, %v3609
        %v3626 = vmul.f32 %v3584, %v3610
        %v3627 = vmul.f32 %v3587, %v3611
        %v3628 = vmul.f32 %v3592, %v3612
        %v3629 = vmul.f32 %v3595, %v3613
        %3646 = vrot.lane.b32.xlu0 %v2714, 32
        %v3647 = vpop.permute.xlu0 %3646
        %3648 = vrot.lane.b32.xlu0 %v2715, 32
        %v3649 = vpop.permute.xlu0 %3648
        %3650 = vrot.lane.b32.xlu0 %v2716, 32
        %v3651 = vpop.permute.xlu0 %3650
        %3652 = vrot.lane.b32.xlu0 %v2717, 32
        %v3653 = vpop.permute.xlu0 %3652
        %3654 = vrot.lane.b32.xlu0 %v2718, 32
        %v3655 = vpop.permute.xlu0 %3654
        %3656 = vrot.lane.b32.xlu0 %v2719, 32
        %v3657 = vpop.permute.xlu0 %3656
        %3658 = vrot.lane.b32.xlu0 %v2720, 32
        %v3659 = vpop.permute.xlu0 %3658
        %3660 = vrot.lane.b32.xlu0 %v2721, 32
        %v3661 = vpop.permute.xlu0 %3660
        %3662 = vrot.lane.b32.xlu0 %v2722, 32
        %v3663 = vpop.permute.xlu0 %3662
        %3664 = vrot.lane.b32.xlu0 %v2723, 32
        %v3665 = vpop.permute.xlu0 %3664
        %3666 = vrot.lane.b32.xlu0 %v2724, 32
        %v3667 = vpop.permute.xlu0 %3666
        %3668 = vrot.lane.b32.xlu0 %v2725, 32
        %v3669 = vpop.permute.xlu0 %3668
        %3670 = vrot.lane.b32.xlu0 %v2726, 32
        %v3671 = vpop.permute.xlu0 %3670
        %3672 = vrot.lane.b32.xlu0 %v2727, 32
        %v3673 = vpop.permute.xlu0 %3672
        %3674 = vrot.lane.b32.xlu0 %v2728, 32
        %v3675 = vpop.permute.xlu0 %3674
        %3676 = vrot.lane.b32.xlu0 %v2729, 32
        %v3677 = vpop.permute.xlu0 %3676
        %3710 = vrot.lane.b32.xlu0 %v3164, 64
        %v3711 = vpop.permute.xlu0 %3710
        %3712 = vrot.lane.b32.xlu0 %v3165, 64
        %v3713 = vpop.permute.xlu0 %3712
        %3714 = vrot.lane.b32.xlu0 %v3166, 64
        %v3715 = vpop.permute.xlu0 %3714
        %3716 = vrot.lane.b32.xlu0 %v3167, 64
        %v3717 = vpop.permute.xlu0 %3716
        %3718 = vrot.lane.b32.xlu0 %v3168, 64
        %v3719 = vpop.permute.xlu0 %3718
        %3720 = vrot.lane.b32.xlu0 %v3169, 64
        %v3721 = vpop.permute.xlu0 %3720
        %3722 = vrot.lane.b32.xlu0 %v3170, 64
        %v3723 = vpop.permute.xlu0 %3722
        %3724 = vrot.lane.b32.xlu0 %v3171, 64
        %v3725 = vpop.permute.xlu0 %3724
        %3726 = vrot.lane.b32.xlu0 %v3172, 64
        %v3727 = vpop.permute.xlu0 %3726
        %3728 = vrot.lane.b32.xlu0 %v3173, 64
        %v3729 = vpop.permute.xlu0 %3728
        %3730 = vrot.lane.b32.xlu0 %v3174, 64
        %v3731 = vpop.permute.xlu0 %3730
        %3732 = vrot.lane.b32.xlu0 %v3175, 64
        %v3733 = vpop.permute.xlu0 %3732
        %3734 = vrot.lane.b32.xlu0 %v3176, 64
        %v3735 = vpop.permute.xlu0 %3734
        %3736 = vrot.lane.b32.xlu0 %v3177, 64
        %v3737 = vpop.permute.xlu0 %3736
        %3738 = vrot.lane.b32.xlu0 %v3178, 64
        %v3739 = vpop.permute.xlu0 %3738
        %3740 = vrot.lane.b32.xlu0 %v3179, 64
        %v3741 = vpop.permute.xlu0 %3740
        %3774 = vrot.lane.b32.xlu0 %v3614, 96
        %v3775 = vpop.permute.xlu0 %3774
        %3776 = vrot.lane.b32.xlu0 %v3615, 96
        %v3777 = vpop.permute.xlu0 %3776
        %3778 = vrot.lane.b32.xlu0 %v3616, 96
        %v3779 = vpop.permute.xlu0 %3778
        %3780 = vrot.lane.b32.xlu0 %v3617, 96
        %v3781 = vpop.permute.xlu0 %3780
        %3782 = vrot.lane.b32.xlu0 %v3618, 96
        %v3783 = vpop.permute.xlu0 %3782
        %3784 = vrot.lane.b32.xlu0 %v3619, 96
        %v3785 = vpop.permute.xlu0 %3784
        %3786 = vrot.lane.b32.xlu0 %v3620, 96
        %v3787 = vpop.permute.xlu0 %3786
        %3788 = vrot.lane.b32.xlu0 %v3621, 96
        %v3789 = vpop.permute.xlu0 %3788
        %3790 = vrot.lane.b32.xlu0 %v3622, 96
        %v3791 = vpop.permute.xlu0 %3790
        %3792 = vrot.lane.b32.xlu0 %v3623, 96
        %v3793 = vpop.permute.xlu0 %3792
        %3794 = vrot.lane.b32.xlu0 %v3624, 96
        %v3795 = vpop.permute.xlu0 %3794
        %3796 = vrot.lane.b32.xlu0 %v3625, 96
        %v3797 = vpop.permute.xlu0 %3796
        %3798 = vrot.lane.b32.xlu0 %v3626, 96
        %v3799 = vpop.permute.xlu0 %3798
        %3800 = vrot.lane.b32.xlu0 %v3627, 96
        %v3801 = vpop.permute.xlu0 %3800
        %3802 = vrot.lane.b32.xlu0 %v3628, 96
        %v3803 = vpop.permute.xlu0 %3802
        %3804 = vrot.lane.b32.xlu0 %v3629, 96
        %v3805 = vpop.permute.xlu0 %3804
        %v3822 = vsel %vm1861, %v2240, %v3647
        %v3823 = vsel %vm1861, %v2241, %v3649
        %v3824 = vsel %vm1861, %v2242, %v3651
        %v3825 = vsel %vm1861, %v2243, %v3653
        %v3826 = vsel %vm1861, %v2244, %v3655
        %v3827 = vsel %vm1861, %v2245, %v3657
        %v3828 = vsel %vm1861, %v2246, %v3659
        %v3829 = vsel %vm1861, %v2247, %v3661
        %v3830 = vsel %vm1861, %v2248, %v3663
        %v3831 = vsel %vm1861, %v2249, %v3665
        %v3832 = vsel %vm1861, %v2250, %v3667
        %v3833 = vsel %vm1861, %v2251, %v3669
        %v3834 = vsel %vm1861, %v2252, %v3671
        %v3835 = vsel %vm1861, %v2253, %v3673
        %v3836 = vsel %vm1861, %v2254, %v3675
        %v3837 = vsel %vm1861, %v2255, %v3677
        %vm3838 = vcmask 523264
        %v3839 = vsel %vm3838, %v3822, %v3711
        %v3840 = vsel %vm3838, %v3823, %v3713
        %v3841 = vsel %vm3838, %v3824, %v3715
        %v3842 = vsel %vm3838, %v3825, %v3717
        %v3843 = vsel %vm3838, %v3826, %v3719
        %v3844 = vsel %vm3838, %v3827, %v3721
        %v3845 = vsel %vm3838, %v3828, %v3723
        %v3846 = vsel %vm3838, %v3829, %v3725
        %v3847 = vsel %vm3838, %v3830, %v3727
        %v3848 = vsel %vm3838, %v3831, %v3729
        %v3849 = vsel %vm3838, %v3832, %v3731
        %v3850 = vsel %vm3838, %v3833, %v3733
        %v3851 = vsel %vm3838, %v3834, %v3735
        %v3852 = vsel %vm3838, %v3835, %v3737
        %v3853 = vsel %vm3838, %v3836, %v3739
        %v3854 = vsel %vm3838, %v3837, %v3741
        %vm3855 = vcmask 785408
        %v3856 = vsel %vm3855, %v3839, %v3775
        %v3857 = vsel %vm3855, %v3840, %v3777
        %v3858 = vsel %vm3855, %v3841, %v3779
        %v3859 = vsel %vm3855, %v3842, %v3781
        %v3860 = vsel %vm3855, %v3843, %v3783
        %v3861 = vsel %vm3855, %v3844, %v3785
        %v3862 = vsel %vm3855, %v3845, %v3787
        %v3863 = vsel %vm3855, %v3846, %v3789
        %v3864 = vsel %vm3855, %v3847, %v3791
        %v3865 = vsel %vm3855, %v3848, %v3793
        %v3866 = vsel %vm3855, %v3849, %v3795
        %v3867 = vsel %vm3855, %v3850, %v3797
        %v3868 = vsel %vm3855, %v3851, %v3799
        %v3869 = vsel %vm3855, %v3852, %v3801
        %v3870 = vsel %vm3855, %v3853, %v3803
        %v3871 = vsel %vm3855, %v3854, %v3805
        %v3872 = vpack.c.bf16 %v3857, %v3856
        %v3873 = vpack.c.bf16 %v3859, %v3858
        %v3874 = vpack.c.bf16 %v3861, %v3860
        %v3875 = vpack.c.bf16 %v3863, %v3862
        %v3876 = vpack.c.bf16 %v3865, %v3864
        %v3877 = vpack.c.bf16 %v3867, %v3866
        %v3878 = vpack.c.bf16 %v3869, %v3868
        %v3879 = vpack.c.bf16 %v3871, %v3870
        %v3880 = vld [vmem:[%s334] sm:$0xf]
        %v3881 = vld [vmem:[%s334 + $0x4] sm:$0xf]
        %v3882 = vld [vmem:[%s334 + $0x8] sm:$0xf]
        %v3883 = vld [vmem:[%s334 + $0xc] sm:$0xf]
        %v3884 = vld [vmem:[%s334 + $0x10] sm:$0xf]
        %v3885 = vld [vmem:[%s334 + $0x14] sm:$0xf]
        %v3886 = vld [vmem:[%s334 + $0x18] sm:$0xf]
        %v3887 = vld [vmem:[%s334 + $0x1c] sm:$0xf]
        %v3888 = vld [vmem:[%s334 + $0x20] sm:$0xf]
        %v3889 = vld [vmem:[%s334 + $0x24] sm:$0xf]
        %v3890 = vld [vmem:[%s334 + $0x28] sm:$0xf]
        %v3891 = vld [vmem:[%s334 + $0x2c] sm:$0xf]
        %v3892 = vld [vmem:[%s334 + $0x30] sm:$0xf]
        %v3893 = vld [vmem:[%s334 + $0x34] sm:$0xf]
        %v3894 = vld [vmem:[%s334 + $0x38] sm:$0xf]
        %v3895 = vld [vmem:[%s334 + $0x3c] sm:$0xf]
        %v3912 = vunpack.c.l.b16 %v3880
        %v3913 = vunpack.c.l.b16 %v3881
        %v3914 = vunpack.c.l.b16 %v3882
        %v3915 = vunpack.c.l.b16 %v3883
        %v3916 = vunpack.c.l.b16 %v3884
        %v3917 = vunpack.c.l.b16 %v3885
        %v3918 = vunpack.c.l.b16 %v3886
        %v3919 = vunpack.c.l.b16 %v3887
        %v3920 = vunpack.c.l.b16 %v3888
        %v3921 = vunpack.c.l.b16 %v3889
        %v3922 = vunpack.c.l.b16 %v3890
        %v3923 = vunpack.c.l.b16 %v3891
        %v3924 = vunpack.c.l.b16 %v3892
        %v3925 = vunpack.c.l.b16 %v3893
        %v3926 = vunpack.c.l.b16 %v3894
        %v3927 = vunpack.c.l.b16 %v3895
        %v3928 = vpack.c.b16 %v3913, %v3912
        %v3929 = vpack.c.b16 %v3915, %v3914
        %v3930 = vpack.c.b16 %v3917, %v3916
        %v3931 = vpack.c.b16 %v3919, %v3918
        %v3932 = vpack.c.b16 %v3921, %v3920
        %v3933 = vpack.c.b16 %v3923, %v3922
        %v3934 = vpack.c.b16 %v3925, %v3924
        %v3935 = vpack.c.b16 %v3927, %v3926
        %3944 = vmatprep.subr.bf16.mxu0 0
        %3945 = vmatpush1.bf16.msra.mxu0 %v3928
        %3946 = vmatprep.subr.bf16.mxu0 0
        %3947 = vmatpush1.bf16.msra.mxu0 %v3929
        %3948 = vmatprep.subr.bf16.mxu0 0
        %3949 = vmatpush1.bf16.msra.mxu0 %v3930
        %3950 = vmatprep.subr.bf16.mxu0 0
        %3951 = vmatpush1.bf16.msra.mxu0 %v3931
        %3952 = vmatprep.subr.bf16.mxu0 0
        %3953 = vmatpush1.bf16.msra.mxu0 %v3932
        %3954 = vmatprep.subr.bf16.mxu0 0
        %3955 = vmatpush1.bf16.msra.mxu0 %v3933
        %3956 = vmatprep.subr.bf16.mxu0 0
        %3957 = vmatpush1.bf16.msra.mxu0 %v3934
        %3958 = vmatprep.subr.bf16.mxu0 0
        %3959 = vmatpush1.bf16.msra.mxu0 %v3935
        %3960 = vmatprep.subr.bf16.mxu0 0
        %3961 = vmatpush1.bf16.msra.mxu0 0
        %3962 = vmatprep.subr.bf16.mxu0 0
        %3963 = vmatpush1.bf16.msra.mxu0 0
        %3964 = vmatprep.subr.bf16.mxu0 0
        %3965 = vmatpush1.bf16.msra.mxu0 0
        %3966 = vmatprep.subr.bf16.mxu0 0
        %3967 = vmatpush1.bf16.msra.mxu0 0
        %3968 = vmatprep.subr.bf16.mxu0 0
        %3969 = vmatpush1.bf16.msra.mxu0 0
        %3970 = vmatprep.subr.bf16.mxu0 0
        %3971 = vmatpush1.bf16.msra.mxu0 0
        %3972 = vmatprep.subr.bf16.mxu0 0
        %3973 = vmatpush1.bf16.msra.mxu0 0
        %3974 = vmatprep.subr.bf16.mxu0 0
        %3975 = vmatpush1.bf16.msra.mxu0 0
        %3976 = vmatprep.mubr.bf16.mxu0 0
        %3977 = vmatmul.mubr.bf16.gmra.mrb[0].mxu0 %v3872
        %v3978 = vpop.f32.mrb[0].mxu0
        %v3979 = vadd.f32 0.0, %v3978
        %v3980 = vpop.f32.mrb[0].mxu0
        %v3981 = vpop.f32.mrb[0].mxu0
        %v3982 = vadd.f32 0.0, %v3981
        %v3983 = vpop.f32.mrb[0].mxu0
        %3984 = vmatprep.mubr.bf16.mxu0 0
        %3985 = vmatmul.mubr.bf16.gmra.mrb[0].mxu0 %v3873
        %v3986 = vpop.f32.mrb[0].mxu0
        %v3987 = vadd.f32 0.0, %v3986
        %v3988 = vpop.f32.mrb[0].mxu0
        %v3989 = vpop.f32.mrb[0].mxu0
        %v3990 = vadd.f32 0.0, %v3989
        %v3991 = vpop.f32.mrb[0].mxu0
        %3992 = vmatprep.mubr.bf16.mxu0 0
        %3993 = vmatmul.mubr.bf16.gmra.mrb[0].mxu0 %v3874
        %v3994 = vpop.f32.mrb[0].mxu0
        %v3995 = vadd.f32 0.0, %v3994
        %v3996 = vpop.f32.mrb[0].mxu0
        %v3997 = vpop.f32.mrb[0].mxu0
        %v3998 = vadd.f32 0.0, %v3997
        %v3999 = vpop.f32.mrb[0].mxu0
        %4000 = vmatprep.mubr.bf16.mxu0 0
        %4001 = vmatmul.mubr.bf16.gmra.mrb[0].mxu0 %v3875
        %v4002 = vpop.f32.mrb[0].mxu0
        %v4003 = vadd.f32 0.0, %v4002
        %v4004 = vpop.f32.mrb[0].mxu0
        %v4005 = vpop.f32.mrb[0].mxu0
        %v4006 = vadd.f32 0.0, %v4005
        %v4007 = vpop.f32.mrb[0].mxu0
        %4008 = vmatprep.mubr.bf16.mxu0 0
        %4009 = vmatmul.mubr.bf16.gmra.mrb[0].mxu0 %v3876
        %v4010 = vpop.f32.mrb[0].mxu0
        %v4011 = vadd.f32 0.0, %v4010
        %v4012 = vpop.f32.mrb[0].mxu0
        %v4013 = vpop.f32.mrb[0].mxu0
        %v4014 = vadd.f32 0.0, %v4013
        %v4015 = vpop.f32.mrb[0].mxu0
        %4016 = vmatprep.mubr.bf16.mxu0 0
        %4017 = vmatmul.mubr.bf16.gmra.mrb[0].mxu0 %v3877
        %v4018 = vpop.f32.mrb[0].mxu0
        %v4019 = vadd.f32 0.0, %v4018
        %v4020 = vpop.f32.mrb[0].mxu0
        %v4021 = vpop.f32.mrb[0].mxu0
        %v4022 = vadd.f32 0.0, %v4021
        %v4023 = vpop.f32.mrb[0].mxu0
        %4024 = vmatprep.mubr.bf16.mxu0 0
        %4025 = vmatmul.mubr.bf16.gmra.mrb[0].mxu0 %v3878
        %v4026 = vpop.f32.mrb[0].mxu0
        %v4027 = vadd.f32 0.0, %v4026
        %v4028 = vpop.f32.mrb[0].mxu0
        %v4029 = vpop.f32.mrb[0].mxu0
        %v4030 = vadd.f32 0.0, %v4029
        %v4031 = vpop.f32.mrb[0].mxu0
        %4032 = vmatprep.mubr.bf16.mxu0 0
        %4033 = vmatmul.mubr.bf16.gmra.mrb[0].mxu0 %v3879
        %v4034 = vpop.f32.mrb[0].mxu0
        %v4035 = vadd.f32 0.0, %v4034
        %v4036 = vpop.f32.mrb[0].mxu0
        %v4037 = vpop.f32.mrb[0].mxu0
        %v4038 = vadd.f32 0.0, %v4037
        %v4039 = vpop.f32.mrb[0].mxu0
        %4040 = vdwg.mxu0
        %v4041 = vxor.u32 %v1455, 2147483648
        %v4042 = vxor.u32 %v1566, 2147483648
        %v4043 = vxor.u32 %v1459, 2147483648
        %v4044 = vxor.u32 %v1570, 2147483648
        %v4045 = vxor.u32 %v1465, 2147483648
        %v4046 = vxor.u32 %v1576, 2147483648
        %v4047 = vxor.u32 %v1469, 2147483648
        %v4048 = vxor.u32 %v1580, 2147483648
        %v4049 = vxor.u32 %v1475, 2147483648
        %v4050 = vxor.u32 %v1586, 2147483648
        %v4051 = vxor.u32 %v1479, 2147483648
        %v4052 = vxor.u32 %v1590, 2147483648
        %v4053 = vxor.u32 %v1485, 2147483648
        %v4054 = vxor.u32 %v1596, 2147483648
        %v4055 = vxor.u32 %v1489, 2147483648
        %v4056 = vxor.u32 %v1600, 2147483648
        %v4057 = vxor.u32 %v1495, 2147483648
        %v4058 = vxor.u32 %v1606, 2147483648
        %v4059 = vxor.u32 %v1499, 2147483648
        %v4060 = vxor.u32 %v1610, 2147483648
        %v4061 = vxor.u32 %v1505, 2147483648
        %v4062 = vxor.u32 %v1616, 2147483648
        %v4063 = vxor.u32 %v1509, 2147483648
        %v4064 = vxor.u32 %v1620, 2147483648
        %v4065 = vxor.u32 %v1515, 2147483648
        %v4066 = vxor.u32 %v1626, 2147483648
        %v4067 = vxor.u32 %v1519, 2147483648
        %v4068 = vxor.u32 %v1630, 2147483648
        %v4069 = vxor.u32 %v1525, 2147483648
        %v4070 = vxor.u32 %v1636, 2147483648
        %v4071 = vxor.u32 %v1529, 2147483648
        %v4072 = vxor.u32 %v1640, 2147483648
        %v4073 = vmul.f32 %v4041, 1.442695
        %v4074 = vpow.pop %v4073
        %v4075 = vmul.f32 %v4042, 1.442695
        %v4076 = vpow.pop %v4075
        %v4077 = vmul.f32 %v4043, 1.442695
        %v4078 = vpow.pop %v4077
        %v4079 = vmul.f32 %v4044, 1.442695
        %v4080 = vpow.pop %v4079
        %v4081 = vmul.f32 %v4045, 1.442695
        %v4082 = vpow.pop %v4081
        %v4083 = vmul.f32 %v4046, 1.442695
        %v4084 = vpow.pop %v4083
        %v4085 = vmul.f32 %v4047, 1.442695
        %v4086 = vpow.pop %v4085
        %v4087 = vmul.f32 %v4048, 1.442695
        %v4088 = vpow.pop %v4087
        %v4089 = vmul.f32 %v4049, 1.442695
        %v4090 = vpow.pop %v4089
        %v4091 = vmul.f32 %v4050, 1.442695
        %v4092 = vpow.pop %v4091
        %v4093 = vmul.f32 %v4051, 1.442695
        %v4094 = vpow.pop %v4093
        %v4095 = vmul.f32 %v4052, 1.442695
        %v4096 = vpow.pop %v4095
        %v4097 = vmul.f32 %v4053, 1.442695
        %v4098 = vpow.pop %v4097
        %v4099 = vmul.f32 %v4054, 1.442695
        %v4100 = vpow.pop %v4099
        %v4101 = vmul.f32 %v4055, 1.442695
        %v4102 = vpow.pop %v4101
        %v4103 = vmul.f32 %v4056, 1.442695
        %v4104 = vpow.pop %v4103
        %v4105 = vmul.f32 %v4057, 1.442695
        %v4106 = vpow.pop %v4105
        %v4107 = vmul.f32 %v4058, 1.442695
        %v4108 = vpow.pop %v4107
        %v4109 = vmul.f32 %v4059, 1.442695
        %v4110 = vpow.pop %v4109
        %v4111 = vmul.f32 %v4060, 1.442695
        %v4112 = vpow.pop %v4111
        %v4113 = vmul.f32 %v4061, 1.442695
        %v4114 = vpow.pop %v4113
        %v4115 = vmul.f32 %v4062, 1.442695
        %v4116 = vpow.pop %v4115
        %v4117 = vmul.f32 %v4063, 1.442695
        %v4118 = vpow.pop %v4117
        %v4119 = vmul.f32 %v4064, 1.442695
        %v4120 = vpow.pop %v4119
        %v4121 = vmul.f32 %v4065, 1.442695
        %v4122 = vpow.pop %v4121
        %v4123 = vmul.f32 %v4066, 1.442695
        %v4124 = vpow.pop %v4123
        %v4125 = vmul.f32 %v4067, 1.442695
        %v4126 = vpow.pop %v4125
        %v4127 = vmul.f32 %v4068, 1.442695
        %v4128 = vpow.pop %v4127
        %v4129 = vmul.f32 %v4069, 1.442695
        %v4130 = vpow.pop %v4129
        %v4131 = vmul.f32 %v4070, 1.442695
        %v4132 = vpow.pop %v4131
        %v4133 = vmul.f32 %v4071, 1.442695
        %v4134 = vpow.pop %v4133
        %v4135 = vmul.f32 %v4072, 1.442695
        %v4136 = vpow.pop %v4135
        %v4137 = vadd.f32 %v4074, 1.0
        %v4138 = vadd.f32 %v4076, 1.0
        %v4139 = vadd.f32 %v4078, 1.0
        %v4140 = vadd.f32 %v4080, 1.0
        %v4141 = vadd.f32 %v4082, 1.0
        %v4142 = vadd.f32 %v4084, 1.0
        %v4143 = vadd.f32 %v4086, 1.0
        %v4144 = vadd.f32 %v4088, 1.0
        %v4145 = vadd.f32 %v4090, 1.0
        %v4146 = vadd.f32 %v4092, 1.0
        %v4147 = vadd.f32 %v4094, 1.0
        %v4148 = vadd.f32 %v4096, 1.0
        %v4149 = vadd.f32 %v4098, 1.0
        %v4150 = vadd.f32 %v4100, 1.0
        %v4151 = vadd.f32 %v4102, 1.0
        %v4152 = vadd.f32 %v4104, 1.0
        %v4153 = vadd.f32 %v4106, 1.0
        %v4154 = vadd.f32 %v4108, 1.0
        %v4155 = vadd.f32 %v4110, 1.0
        %v4156 = vadd.f32 %v4112, 1.0
        %v4157 = vadd.f32 %v4114, 1.0
        %v4158 = vadd.f32 %v4116, 1.0
        %v4159 = vadd.f32 %v4118, 1.0
        %v4160 = vadd.f32 %v4120, 1.0
        %v4161 = vadd.f32 %v4122, 1.0
        %v4162 = vadd.f32 %v4124, 1.0
        %v4163 = vadd.f32 %v4126, 1.0
        %v4164 = vadd.f32 %v4128, 1.0
        %v4165 = vadd.f32 %v4130, 1.0
        %v4166 = vadd.f32 %v4132, 1.0
        %v4167 = vadd.f32 %v4134, 1.0
        %v4168 = vadd.f32 %v4136, 1.0
        %v4169 = vrcp.pop %v4137
        %v4170 = vmul.f32 1.0, %v4169
        %v4171 = vrcp.pop %v4138
        %v4172 = vmul.f32 1.0, %v4171
        %v4173 = vrcp.pop %v4139
        %v4174 = vmul.f32 1.0, %v4173
        %v4175 = vrcp.pop %v4140
        %v4176 = vmul.f32 1.0, %v4175
        %v4177 = vrcp.pop %v4141
        %v4178 = vmul.f32 1.0, %v4177
        %v4179 = vrcp.pop %v4142
        %v4180 = vmul.f32 1.0, %v4179
        %v4181 = vrcp.pop %v4143
        %v4182 = vmul.f32 1.0, %v4181
        %v4183 = vrcp.pop %v4144
        %v4184 = vmul.f32 1.0, %v4183
        %v4185 = vrcp.pop %v4145
        %v4186 = vmul.f32 1.0, %v4185
        %v4187 = vrcp.pop %v4146
        %v4188 = vmul.f32 1.0, %v4187
        %v4189 = vrcp.pop %v4147
        %v4190 = vmul.f32 1.0, %v4189
        %v4191 = vrcp.pop %v4148
        %v4192 = vmul.f32 1.0, %v4191
        %v4193 = vrcp.pop %v4149
        %v4194 = vmul.f32 1.0, %v4193
        %v4195 = vrcp.pop %v4150
        %v4196 = vmul.f32 1.0, %v4195
        %v4197 = vrcp.pop %v4151
        %v4198 = vmul.f32 1.0, %v4197
        %v4199 = vrcp.pop %v4152
        %v4200 = vmul.f32 1.0, %v4199
        %v4201 = vrcp.pop %v4153
        %v4202 = vmul.f32 1.0, %v4201
        %v4203 = vrcp.pop %v4154
        %v4204 = vmul.f32 1.0, %v4203
        %v4205 = vrcp.pop %v4155
        %v4206 = vmul.f32 1.0, %v4205
        %v4207 = vrcp.pop %v4156
        %v4208 = vmul.f32 1.0, %v4207
        %v4209 = vrcp.pop %v4157
        %v4210 = vmul.f32 1.0, %v4209
        %v4211 = vrcp.pop %v4158
        %v4212 = vmul.f32 1.0, %v4211
        %v4213 = vrcp.pop %v4159
        %v4214 = vmul.f32 1.0, %v4213
        %v4215 = vrcp.pop %v4160
        %v4216 = vmul.f32 1.0, %v4215
        %v4217 = vrcp.pop %v4161
        %v4218 = vmul.f32 1.0, %v4217
        %v4219 = vrcp.pop %v4162
        %v4220 = vmul.f32 1.0, %v4219
        %v4221 = vrcp.pop %v4163
        %v4222 = vmul.f32 1.0, %v4221
        %v4223 = vrcp.pop %v4164
        %v4224 = vmul.f32 1.0, %v4223
        %v4225 = vrcp.pop %v4165
        %v4226 = vmul.f32 1.0, %v4225
        %v4227 = vrcp.pop %v4166
        %v4228 = vmul.f32 1.0, %v4227
        %v4229 = vrcp.pop %v4167
        %v4230 = vmul.f32 1.0, %v4229
        %v4231 = vrcp.pop %v4168
        %v4232 = vmul.f32 1.0, %v4231
        %v4233 = vmul.f32 %v1455, %v4170
        %v4234 = vmul.f32 %v1566, %v4172
        %v4235 = vmul.f32 %v1459, %v4174
        %v4236 = vmul.f32 %v1570, %v4176
        %v4237 = vmul.f32 %v1465, %v4178
        %v4238 = vmul.f32 %v1576, %v4180
        %v4239 = vmul.f32 %v1469, %v4182
        %v4240 = vmul.f32 %v1580, %v4184
        %v4241 = vmul.f32 %v1475, %v4186
        %v4242 = vmul.f32 %v1586, %v4188
        %v4243 = vmul.f32 %v1479, %v4190
        %v4244 = vmul.f32 %v1590, %v4192
        %v4245 = vmul.f32 %v1485, %v4194
        %v4246 = vmul.f32 %v1596, %v4196
        %v4247 = vmul.f32 %v1489, %v4198
        %v4248 = vmul.f32 %v1600, %v4200
        %v4249 = vmul.f32 %v1495, %v4202
        %v4250 = vmul.f32 %v1606, %v4204
        %v4251 = vmul.f32 %v1499, %v4206
        %v4252 = vmul.f32 %v1610, %v4208
        %v4253 = vmul.f32 %v1505, %v4210
        %v4254 = vmul.f32 %v1616, %v4212
        %v4255 = vmul.f32 %v1509, %v4214
        %v4256 = vmul.f32 %v1620, %v4216
        %v4257 = vmul.f32 %v1515, %v4218
        %v4258 = vmul.f32 %v1626, %v4220
        %v4259 = vmul.f32 %v1519, %v4222
        %v4260 = vmul.f32 %v1630, %v4224
        %v4261 = vmul.f32 %v1525, %v4226
        %v4262 = vmul.f32 %v1636, %v4228
        %v4263 = vmul.f32 %v1529, %v4230
        %v4264 = vmul.f32 %v1640, %v4232
        %v4265 = vmul.f32 %v4233, %v1568
        %v4266 = vmul.f32 %v4234, %v1679
        %v4267 = vmul.f32 %v4235, %v1572
        %v4268 = vmul.f32 %v4236, %v1682
        %v4269 = vmul.f32 %v4237, %v1578
        %v4270 = vmul.f32 %v4238, %v1687
        %v4271 = vmul.f32 %v4239, %v1582
        %v4272 = vmul.f32 %v4240, %v1690
        %v4273 = vmul.f32 %v4241, %v1588
        %v4274 = vmul.f32 %v4242, %v1695
        %v4275 = vmul.f32 %v4243, %v1592
        %v4276 = vmul.f32 %v4244, %v1698
        %v4277 = vmul.f32 %v4245, %v1598
        %v4278 = vmul.f32 %v4246, %v1703
        %v4279 = vmul.f32 %v4247, %v1602
        %v4280 = vmul.f32 %v4248, %v1706
        %v4281 = vmul.f32 %v4249, %v1608
        %v4282 = vmul.f32 %v4250, %v1711
        %v4283 = vmul.f32 %v4251, %v1612
        %v4284 = vmul.f32 %v4252, %v1714
        %v4285 = vmul.f32 %v4253, %v1618
        %v4286 = vmul.f32 %v4254, %v1719
        %v4287 = vmul.f32 %v4255, %v1622
        %v4288 = vmul.f32 %v4256, %v1722
        %v4289 = vmul.f32 %v4257, %v1628
        %v4290 = vmul.f32 %v4258, %v1727
        %v4291 = vmul.f32 %v4259, %v1632
        %v4292 = vmul.f32 %v4260, %v1730
        %v4293 = vmul.f32 %v4261, %v1638
        %v4294 = vmul.f32 %v4262, %v1735
        %v4295 = vmul.f32 %v4263, %v1642
        %v4296 = vmul.f32 %v4264, %v1738
        %v4297 = vpack.c.bf16 %v4267, %v4265
        %v4298 = vpack.c.bf16 %v4268, %v4266
        %v4299 = vpack.c.bf16 %v4271, %v4269
        %v4300 = vpack.c.bf16 %v4272, %v4270
        %v4301 = vpack.c.bf16 %v4275, %v4273
        %v4302 = vpack.c.bf16 %v4276, %v4274
        %v4303 = vpack.c.bf16 %v4279, %v4277
        %v4304 = vpack.c.bf16 %v4280, %v4278
        %v4305 = vpack.c.bf16 %v4283, %v4281
        %v4306 = vpack.c.bf16 %v4284, %v4282
        %v4307 = vpack.c.bf16 %v4287, %v4285
        %v4308 = vpack.c.bf16 %v4288, %v4286
        %v4309 = vpack.c.bf16 %v4291, %v4289
        %v4310 = vpack.c.bf16 %v4292, %v4290
        %v4311 = vpack.c.bf16 %v4295, %v4293
        %v4312 = vpack.c.bf16 %v4296, %v4294
        %v4313 = vld [vmem:[%s343] sm:$0xf]
        %v4314 = vld [vmem:[%s343 + $0x4] sm:$0xf]
        %v4315 = vld [vmem:[%s343 + $0x8] sm:$0xf]
        %v4316 = vld [vmem:[%s343 + $0xc] sm:$0xf]
        %v4317 = vld [vmem:[%s343 + $0x10] sm:$0xf]
        %v4318 = vld [vmem:[%s343 + $0x14] sm:$0xf]
        %v4319 = vld [vmem:[%s343 + $0x18] sm:$0xf]
        %v4320 = vld [vmem:[%s343 + $0x1c] sm:$0xf]
        %v4321 = vld [vmem:[%s343 + $0x20] sm:$0xf]
        %v4322 = vld [vmem:[%s343 + $0x24] sm:$0xf]
        %v4323 = vld [vmem:[%s343 + $0x28] sm:$0xf]
        %v4324 = vld [vmem:[%s343 + $0x2c] sm:$0xf]
        %v4325 = vld [vmem:[%s343 + $0x30] sm:$0xf]
        %v4326 = vld [vmem:[%s343 + $0x34] sm:$0xf]
        %v4327 = vld [vmem:[%s343 + $0x38] sm:$0xf]
        %v4328 = vld [vmem:[%s343 + $0x3c] sm:$0xf]
        %v4329 = vld [vmem:[%s343 + $0x40] sm:$0xf]
        %v4330 = vld [vmem:[%s343 + $0x44] sm:$0xf]
        %v4331 = vld [vmem:[%s343 + $0x48] sm:$0xf]
        %v4332 = vld [vmem:[%s343 + $0x4c] sm:$0xf]
        %v4333 = vld [vmem:[%s343 + $0x50] sm:$0xf]
        %v4334 = vld [vmem:[%s343 + $0x54] sm:$0xf]
        %v4335 = vld [vmem:[%s343 + $0x58] sm:$0xf]
        %v4336 = vld [vmem:[%s343 + $0x5c] sm:$0xf]
        %v4337 = vld [vmem:[%s343 + $0x60] sm:$0xf]
        %v4338 = vld [vmem:[%s343 + $0x64] sm:$0xf]
        %v4339 = vld [vmem:[%s343 + $0x68] sm:$0xf]
        %v4340 = vld [vmem:[%s343 + $0x6c] sm:$0xf]
        %v4341 = vld [vmem:[%s343 + $0x70] sm:$0xf]
        %v4342 = vld [vmem:[%s343 + $0x74] sm:$0xf]
        %v4343 = vld [vmem:[%s343 + $0x78] sm:$0xf]
        %v4344 = vld [vmem:[%s343 + $0x7c] sm:$0xf]
        %v4377 = vunpack.c.l.b16 %v4313
        %v4378 = vunpack.c.l.b16 %v4314
        %v4379 = vunpack.c.l.b16 %v4315
        %v4380 = vunpack.c.l.b16 %v4316
        %v4381 = vunpack.c.l.b16 %v4317
        %v4382 = vunpack.c.l.b16 %v4318
        %v4383 = vunpack.c.l.b16 %v4319
        %v4384 = vunpack.c.l.b16 %v4320
        %v4385 = vunpack.c.l.b16 %v4321
        %v4386 = vunpack.c.l.b16 %v4322
        %v4387 = vunpack.c.l.b16 %v4323
        %v4388 = vunpack.c.l.b16 %v4324
        %v4389 = vunpack.c.l.b16 %v4325
        %v4390 = vunpack.c.l.b16 %v4326
        %v4391 = vunpack.c.l.b16 %v4327
        %v4392 = vunpack.c.l.b16 %v4328
        %v4393 = vunpack.c.l.b16 %v4329
        %v4394 = vunpack.c.l.b16 %v4330
        %v4395 = vunpack.c.l.b16 %v4331
        %v4396 = vunpack.c.l.b16 %v4332
        %v4397 = vunpack.c.l.b16 %v4333
        %v4398 = vunpack.c.l.b16 %v4334
        %v4399 = vunpack.c.l.b16 %v4335
        %v4400 = vunpack.c.l.b16 %v4336
        %v4401 = vunpack.c.l.b16 %v4337
        %v4402 = vunpack.c.l.b16 %v4338
        %v4403 = vunpack.c.l.b16 %v4339
        %v4404 = vunpack.c.l.b16 %v4340
        %v4405 = vunpack.c.l.b16 %v4341
        %v4406 = vunpack.c.l.b16 %v4342
        %v4407 = vunpack.c.l.b16 %v4343
        %v4408 = vunpack.c.l.b16 %v4344
        %v4409 = vpack.c.b16 %v4378, %v4377
        %v4410 = vpack.c.b16 %v4380, %v4379
        %v4411 = vpack.c.b16 %v4382, %v4381
        %v4412 = vpack.c.b16 %v4384, %v4383
        %v4413 = vpack.c.b16 %v4386, %v4385
        %v4414 = vpack.c.b16 %v4388, %v4387
        %v4415 = vpack.c.b16 %v4390, %v4389
        %v4416 = vpack.c.b16 %v4392, %v4391
        %v4417 = vpack.c.b16 %v4394, %v4393
        %v4418 = vpack.c.b16 %v4396, %v4395
        %v4419 = vpack.c.b16 %v4398, %v4397
        %v4420 = vpack.c.b16 %v4400, %v4399
        %v4421 = vpack.c.b16 %v4402, %v4401
        %v4422 = vpack.c.b16 %v4404, %v4403
        %v4423 = vpack.c.b16 %v4406, %v4405
        %v4424 = vpack.c.b16 %v4408, %v4407
        %4441 = vmatprep.subr.bf16.mxu0 0
        %4442 = vmatpush1.bf16.msra.mxu0 %v4409
        %4443 = vmatprep.subr.bf16.mxu0 0
        %4444 = vmatpush1.bf16.msra.mxu0 %v4410
        %4445 = vmatprep.subr.bf16.mxu0 0
        %4446 = vmatpush1.bf16.msra.mxu0 %v4411
        %4447 = vmatprep.subr.bf16.mxu0 0
        %4448 = vmatpush1.bf16.msra.mxu0 %v4412
        %4449 = vmatprep.subr.bf16.mxu0 0
        %4450 = vmatpush1.bf16.msra.mxu0 %v4413
        %4451 = vmatprep.subr.bf16.mxu0 0
        %4452 = vmatpush1.bf16.msra.mxu0 %v4414
        %4453 = vmatprep.subr.bf16.mxu0 0
        %4454 = vmatpush1.bf16.msra.mxu0 %v4415
        %4455 = vmatprep.subr.bf16.mxu0 0
        %4456 = vmatpush1.bf16.msra.mxu0 %v4416
        %4457 = vmatprep.subr.bf16.mxu0 0
        %4458 = vmatpush1.bf16.msra.mxu0 %v4417
        %4459 = vmatprep.subr.bf16.mxu0 0
        %4460 = vmatpush1.bf16.msra.mxu0 %v4418
        %4461 = vmatprep.subr.bf16.mxu0 0
        %4462 = vmatpush1.bf16.msra.mxu0 %v4419
        %4463 = vmatprep.subr.bf16.mxu0 0
        %4464 = vmatpush1.bf16.msra.mxu0 %v4420
        %4465 = vmatprep.subr.bf16.mxu0 0
        %4466 = vmatpush1.bf16.msra.mxu0 %v4421
        %4467 = vmatprep.subr.bf16.mxu0 0
        %4468 = vmatpush1.bf16.msra.mxu0 %v4422
        %4469 = vmatprep.subr.bf16.mxu0 0
        %4470 = vmatpush1.bf16.msra.mxu0 %v4423
        %4471 = vmatprep.subr.bf16.mxu0 0
        %4472 = vmatpush1.bf16.msra.mxu0 %v4424
        %4473 = vmatprep.mubr.bf16.mxu0 %v4298
        %4474 = vmatmul.mubr.bf16.gmra.mrb[0].mxu0 %v4297
        %v4475 = vpop.f32.mrb[0].mxu0
        %v4476 = vadd.f32 0.0, %v4475
        %v4477 = vpop.f32.mrb[0].mxu0
        %v4478 = vpop.f32.mrb[0].mxu0
        %v4479 = vadd.f32 0.0, %v4478
        %v4480 = vpop.f32.mrb[0].mxu0
        %4481 = vmatprep.mubr.bf16.mxu0 %v4300
        %4482 = vmatmul.mubr.bf16.gmra.mrb[0].mxu0 %v4299
        %v4483 = vpop.f32.mrb[0].mxu0
        %v4484 = vadd.f32 0.0, %v4483
        %v4485 = vpop.f32.mrb[0].mxu0
        %v4486 = vpop.f32.mrb[0].mxu0
        %v4487 = vadd.f32 0.0, %v4486
        %v4488 = vpop.f32.mrb[0].mxu0
        %4489 = vmatprep.mubr.bf16.mxu0 %v4302
        %4490 = vmatmul.mubr.bf16.gmra.mrb[0].mxu0 %v4301
        %v4491 = vpop.f32.mrb[0].mxu0
        %v4492 = vadd.f32 0.0, %v4491
        %v4493 = vpop.f32.mrb[0].mxu0
        %v4494 = vpop.f32.mrb[0].mxu0
        %v4495 = vadd.f32 0.0, %v4494
        %v4496 = vpop.f32.mrb[0].mxu0
        %4497 = vmatprep.mubr.bf16.mxu0 %v4304
        %4498 = vmatmul.mubr.bf16.gmra.mrb[0].mxu0 %v4303
        %v4499 = vpop.f32.mrb[0].mxu0
        %v4500 = vadd.f32 0.0, %v4499
        %v4501 = vpop.f32.mrb[0].mxu0
        %v4502 = vpop.f32.mrb[0].mxu0
        %v4503 = vadd.f32 0.0, %v4502
        %v4504 = vpop.f32.mrb[0].mxu0
        %4505 = vmatprep.mubr.bf16.mxu0 %v4306
        %4506 = vmatmul.mubr.bf16.gmra.mrb[0].mxu0 %v4305
        %v4507 = vpop.f32.mrb[0].mxu0
        %v4508 = vadd.f32 0.0, %v4507
        %v4509 = vpop.f32.mrb[0].mxu0
        %v4510 = vpop.f32.mrb[0].mxu0
        %v4511 = vadd.f32 0.0, %v4510
        %v4512 = vpop.f32.mrb[0].mxu0
        %4513 = vmatprep.mubr.bf16.mxu0 %v4308
        %4514 = vmatmul.mubr.bf16.gmra.mrb[0].mxu0 %v4307
        %v4515 = vpop.f32.mrb[0].mxu0
        %v4516 = vadd.f32 0.0, %v4515
        %v4517 = vpop.f32.mrb[0].mxu0
        %v4518 = vpop.f32.mrb[0].mxu0
        %v4519 = vadd.f32 0.0, %v4518
        %v4520 = vpop.f32.mrb[0].mxu0
        %4521 = vmatprep.mubr.bf16.mxu0 %v4310
        %4522 = vmatmul.mubr.bf16.gmra.mrb[0].mxu0 %v4309
        %v4523 = vpop.f32.mrb[0].mxu0
        %v4524 = vadd.f32 0.0, %v4523
        %v4525 = vpop.f32.mrb[0].mxu0
        %v4526 = vpop.f32.mrb[0].mxu0
        %v4527 = vadd.f32 0.0, %v4526
        %v4528 = vpop.f32.mrb[0].mxu0
        %4529 = vmatprep.mubr.bf16.mxu0 %v4312
        %4530 = vmatmul.mubr.bf16.gmra.mrb[0].mxu0 %v4311
        %v4531 = vpop.f32.mrb[0].mxu0
        %v4532 = vadd.f32 0.0, %v4531
        %v4533 = vpop.f32.mrb[0].mxu0
        %v4534 = vpop.f32.mrb[0].mxu0
        %v4535 = vadd.f32 0.0, %v4534
        %v4536 = vpop.f32.mrb[0].mxu0
        %4537 = vdwg.mxu0
        %v4538 = vadd.f32 %v520, %v3979
        %v4539 = vadd.f32 %v521, %v3982
        %v4540 = vadd.f32 %v522, %v3987
        %v4541 = vadd.f32 %v523, %v3990
        %v4542 = vadd.f32 %v524, %v3995
        %v4543 = vadd.f32 %v525, %v3998
        %v4544 = vadd.f32 %v526, %v4003
        %v4545 = vadd.f32 %v527, %v4006
        %v4546 = vadd.f32 %v528, %v4011
        %v4547 = vadd.f32 %v529, %v4014
        %v4548 = vadd.f32 %v530, %v4019
        %v4549 = vadd.f32 %v531, %v4022
        %v4550 = vadd.f32 %v532, %v4027
        %v4551 = vadd.f32 %v533, %v4030
        %v4552 = vadd.f32 %v534, %v4035
        %v4553 = vadd.f32 %v535, %v4038
        %v4554 = vadd.f32 %v4538, %v4476
        %v4555 = vadd.f32 %v4539, %v4479
        %v4556 = vadd.f32 %v4540, %v4484
        %v4557 = vadd.f32 %v4541, %v4487
        %v4558 = vadd.f32 %v4542, %v4492
        %v4559 = vadd.f32 %v4543, %v4495
        %v4560 = vadd.f32 %v4544, %v4500
        %v4561 = vadd.f32 %v4545, %v4503
        %v4562 = vadd.f32 %v4546, %v4508
        %v4563 = vadd.f32 %v4547, %v4511
        %v4564 = vadd.f32 %v4548, %v4516
        %v4565 = vadd.f32 %v4549, %v4519
        %v4566 = vadd.f32 %v4550, %v4524
        %v4567 = vadd.f32 %v4551, %v4527
        %v4568 = vadd.f32 %v4552, %v4532
        %v4569 = vadd.f32 %v4553, %v4535
        %4570 = vadd.xlane.f32.xlu0 %v4554
        %v4571 = vpop.xlane.xlu0 %4570
        %4572 = vadd.xlane.f32.xlu0 %v4555
        %v4573 = vpop.xlane.xlu0 %4572
        %4574 = vadd.xlane.f32.xlu0 %v4556
        %v4575 = vpop.xlane.xlu0 %4574
        %4576 = vadd.xlane.f32.xlu0 %v4557
        %v4577 = vpop.xlane.xlu0 %4576
        %4578 = vadd.xlane.f32.xlu0 %v4558
        %v4579 = vpop.xlane.xlu0 %4578
        %4580 = vadd.xlane.f32.xlu0 %v4559
        %v4581 = vpop.xlane.xlu0 %4580
        %4582 = vadd.xlane.f32.xlu0 %v4560
        %v4583 = vpop.xlane.xlu0 %4582
        %4584 = vadd.xlane.f32.xlu0 %v4561
        %v4585 = vpop.xlane.xlu0 %4584
        %4586 = vadd.xlane.f32.xlu0 %v4562
        %v4587 = vpop.xlane.xlu0 %4586
        %4588 = vadd.xlane.f32.xlu0 %v4563
        %v4589 = vpop.xlane.xlu0 %4588
        %4590 = vadd.xlane.f32.xlu0 %v4564
        %v4591 = vpop.xlane.xlu0 %4590
        %4592 = vadd.xlane.f32.xlu0 %v4565
        %v4593 = vpop.xlane.xlu0 %4592
        %4594 = vadd.xlane.f32.xlu0 %v4566
        %v4595 = vpop.xlane.xlu0 %4594
        %4596 = vadd.xlane.f32.xlu0 %v4567
        %v4597 = vpop.xlane.xlu0 %4596
        %4598 = vadd.xlane.f32.xlu0 %v4568
        %v4599 = vpop.xlane.xlu0 %4598
        %4600 = vadd.xlane.f32.xlu0 %v4569
        %v4601 = vpop.xlane.xlu0 %4600
        %v4602 = vmul.f32 %v4571, %v568
        %v4603 = vmul.f32 %v4573, %v568
        %v4604 = vmul.f32 %v4575, %v568
        %v4605 = vmul.f32 %v4577, %v568
        %v4606 = vmul.f32 %v4579, %v568
        %v4607 = vmul.f32 %v4581, %v568
        %v4608 = vmul.f32 %v4583, %v568
        %v4609 = vmul.f32 %v4585, %v568
        %v4610 = vmul.f32 %v4587, %v568
        %v4611 = vmul.f32 %v4589, %v568
        %v4612 = vmul.f32 %v4591, %v568
        %v4613 = vmul.f32 %v4593, %v568
        %v4614 = vmul.f32 %v4595, %v568
        %v4615 = vmul.f32 %v4597, %v568
        %v4616 = vmul.f32 %v4599, %v568
        %v4617 = vmul.f32 %v4601, %v568
        %v4618 = vsub.f32 %v4554, %v4602
        %v4619 = vsub.f32 %v4555, %v4603
        %v4620 = vsub.f32 %v4556, %v4604
        %v4621 = vsub.f32 %v4557, %v4605
        %v4622 = vsub.f32 %v4558, %v4606
        %v4623 = vsub.f32 %v4559, %v4607
        %v4624 = vsub.f32 %v4560, %v4608
        %v4625 = vsub.f32 %v4561, %v4609
        %v4626 = vsub.f32 %v4562, %v4610
        %v4627 = vsub.f32 %v4563, %v4611
        %v4628 = vsub.f32 %v4564, %v4612
        %v4629 = vsub.f32 %v4565, %v4613
        %v4630 = vsub.f32 %v4566, %v4614
        %v4631 = vsub.f32 %v4567, %v4615
        %v4632 = vsub.f32 %v4568, %v4616
        %v4633 = vsub.f32 %v4569, %v4617
        %v4634 = vmul.f32 %v4618, %v4618
        %v4635 = vmul.f32 %v4619, %v4619
        %v4636 = vmul.f32 %v4620, %v4620
        %v4637 = vmul.f32 %v4621, %v4621
        %v4638 = vmul.f32 %v4622, %v4622
        %v4639 = vmul.f32 %v4623, %v4623
        %v4640 = vmul.f32 %v4624, %v4624
        %v4641 = vmul.f32 %v4625, %v4625
        %v4642 = vmul.f32 %v4626, %v4626
        %v4643 = vmul.f32 %v4627, %v4627
        %v4644 = vmul.f32 %v4628, %v4628
        %v4645 = vmul.f32 %v4629, %v4629
        %v4646 = vmul.f32 %v4630, %v4630
        %v4647 = vmul.f32 %v4631, %v4631
        %v4648 = vmul.f32 %v4632, %v4632
        %v4649 = vmul.f32 %v4633, %v4633
        %4650 = vadd.xlane.f32.xlu0 %v4634
        %v4651 = vpop.xlane.xlu0 %4650
        %4652 = vadd.xlane.f32.xlu0 %v4635
        %v4653 = vpop.xlane.xlu0 %4652
        %4654 = vadd.xlane.f32.xlu0 %v4636
        %v4655 = vpop.xlane.xlu0 %4654
        %4656 = vadd.xlane.f32.xlu0 %v4637
        %v4657 = vpop.xlane.xlu0 %4656
        %4658 = vadd.xlane.f32.xlu0 %v4638
        %v4659 = vpop.xlane.xlu0 %4658
        %4660 = vadd.xlane.f32.xlu0 %v4639
        %v4661 = vpop.xlane.xlu0 %4660
        %4662 = vadd.xlane.f32.xlu0 %v4640
        %v4663 = vpop.xlane.xlu0 %4662
        %4664 = vadd.xlane.f32.xlu0 %v4641
        %v4665 = vpop.xlane.xlu0 %4664
        %4666 = vadd.xlane.f32.xlu0 %v4642
        %v4667 = vpop.xlane.xlu0 %4666
        %4668 = vadd.xlane.f32.xlu0 %v4643
        %v4669 = vpop.xlane.xlu0 %4668
        %4670 = vadd.xlane.f32.xlu0 %v4644
        %v4671 = vpop.xlane.xlu0 %4670
        %4672 = vadd.xlane.f32.xlu0 %v4645
        %v4673 = vpop.xlane.xlu0 %4672
        %4674 = vadd.xlane.f32.xlu0 %v4646
        %v4675 = vpop.xlane.xlu0 %4674
        %4676 = vadd.xlane.f32.xlu0 %v4647
        %v4677 = vpop.xlane.xlu0 %4676
        %4678 = vadd.xlane.f32.xlu0 %v4648
        %v4679 = vpop.xlane.xlu0 %4678
        %4680 = vadd.xlane.f32.xlu0 %v4649
        %v4681 = vpop.xlane.xlu0 %4680
        %v4682 = vmul.f32 %v4651, %v568
        %v4683 = vmul.f32 %v4653, %v568
        %v4684 = vmul.f32 %v4655, %v568
        %v4685 = vmul.f32 %v4657, %v568
        %v4686 = vmul.f32 %v4659, %v568
        %v4687 = vmul.f32 %v4661, %v568
        %v4688 = vmul.f32 %v4663, %v568
        %v4689 = vmul.f32 %v4665, %v568
        %v4690 = vmul.f32 %v4667, %v568
        %v4691 = vmul.f32 %v4669, %v568
        %v4692 = vmul.f32 %v4671, %v568
        %v4693 = vmul.f32 %v4673, %v568
        %v4694 = vmul.f32 %v4675, %v568
        %v4695 = vmul.f32 %v4677, %v568
        %v4696 = vmul.f32 %v4679, %v568
        %v4697 = vmul.f32 %v4681, %v568
        %v4698 = vadd.f32 %v4682, 1e-05
        %v4699 = vadd.f32 %v4683, 1e-05
        %v4700 = vadd.f32 %v4684, 1e-05
        %v4701 = vadd.f32 %v4685, 1e-05
        %v4702 = vadd.f32 %v4686, 1e-05
        %v4703 = vadd.f32 %v4687, 1e-05
        %v4704 = vadd.f32 %v4688, 1e-05
        %v4705 = vadd.f32 %v4689, 1e-05
        %v4706 = vadd.f32 %v4690, 1e-05
        %v4707 = vadd.f32 %v4691, 1e-05
        %v4708 = vadd.f32 %v4692, 1e-05
        %v4709 = vadd.f32 %v4693, 1e-05
        %v4710 = vadd.f32 %v4694, 1e-05
        %v4711 = vadd.f32 %v4695, 1e-05
        %v4712 = vadd.f32 %v4696, 1e-05
        %v4713 = vadd.f32 %v4697, 1e-05
        %v4714 = vrsqrt.pop %v4698
        %v4715 = vrsqrt.pop %v4699
        %v4716 = vrsqrt.pop %v4700
        %v4717 = vrsqrt.pop %v4701
        %v4718 = vrsqrt.pop %v4702
        %v4719 = vrsqrt.pop %v4703
        %v4720 = vrsqrt.pop %v4704
        %v4721 = vrsqrt.pop %v4705
        %v4722 = vrsqrt.pop %v4706
        %v4723 = vrsqrt.pop %v4707
        %v4724 = vrsqrt.pop %v4708
        %v4725 = vrsqrt.pop %v4709
        %v4726 = vrsqrt.pop %v4710
        %v4727 = vrsqrt.pop %v4711
        %v4728 = vrsqrt.pop %v4712
        %v4729 = vrsqrt.pop %v4713
        %v4730 = vmul.f32 %v4618, %v4714
        %v4731 = vmul.f32 %v4619, %v4715
        %v4732 = vmul.f32 %v4620, %v4716
        %v4733 = vmul.f32 %v4621, %v4717
        %v4734 = vmul.f32 %v4622, %v4718
        %v4735 = vmul.f32 %v4623, %v4719
        %v4736 = vmul.f32 %v4624, %v4720
        %v4737 = vmul.f32 %v4625, %v4721
        %v4738 = vmul.f32 %v4626, %v4722
        %v4739 = vmul.f32 %v4627, %v4723
        %v4740 = vmul.f32 %v4628, %v4724
        %v4741 = vmul.f32 %v4629, %v4725
        %v4742 = vmul.f32 %v4630, %v4726
        %v4743 = vmul.f32 %v4631, %v4727
        %v4744 = vmul.f32 %v4632, %v4728
        %v4745 = vmul.f32 %v4633, %v4729
        %s4746 = scalar_lea.vmem %s389, 1
        %v4747 = vld [vmem:[%s4746] sm:$0x1]
        %v4749 = vlaneseq
        %v4750 = vshrl.u32 %v4749, 7
        %v4751 = vsub.s32 0, %v4750
        %v4752 = vrot.slane %v4747, %v4751
        %v4754 = vmul.f32 %v4730, %v4752
        %v4755 = vmul.f32 %v4731, %v4752
        %v4756 = vmul.f32 %v4732, %v4752
        %v4757 = vmul.f32 %v4733, %v4752
        %v4758 = vmul.f32 %v4734, %v4752
        %v4759 = vmul.f32 %v4735, %v4752
        %v4760 = vmul.f32 %v4736, %v4752
        %v4761 = vmul.f32 %v4737, %v4752
        %v4762 = vmul.f32 %v4738, %v4752
        %v4763 = vmul.f32 %v4739, %v4752
        %v4764 = vmul.f32 %v4740, %v4752
        %v4765 = vmul.f32 %v4741, %v4752
        %v4766 = vmul.f32 %v4742, %v4752
        %v4767 = vmul.f32 %v4743, %v4752
        %v4768 = vmul.f32 %v4744, %v4752
        %v4769 = vmul.f32 %v4745, %v4752
        %v4770 = vpack.c.bf16 %v4755, %v4754
        %v4771 = vpack.c.bf16 %v4757, %v4756
        %v4772 = vpack.c.bf16 %v4759, %v4758
        %v4773 = vpack.c.bf16 %v4761, %v4760
        %v4774 = vpack.c.bf16 %v4763, %v4762
        %v4775 = vpack.c.bf16 %v4765, %v4764
        %v4776 = vpack.c.bf16 %v4767, %v4766
        %v4777 = vpack.c.bf16 %v4769, %v4768
        %s4778 = scalar_lea.vmem %s396, 576
        %v4779 = vld [vmem:[%s4778] sm:$0xff]
        %v4780 = vld [vmem:[%s4778 + $0x8] sm:$0xff]
        %v4781 = vld [vmem:[%s4778 + $0x10] sm:$0xff]
        %v4782 = vld [vmem:[%s4778 + $0x18] sm:$0xff]
        %v4783 = vld [vmem:[%s4778 + $0x20] sm:$0xf]
        %v4784 = vld [vmem:[%s4778 + $0x24] sm:$0xff]
        %v4785 = vld [vmem:[%s4778 + $0x2c] sm:$0xff]
        %v4786 = vld [vmem:[%s4778 + $0x34] sm:$0xff]
        %v4787 = vld [vmem:[%s4778 + $0x3c] sm:$0xff]
        %v4788 = vld [vmem:[%s4778 + $0x44] sm:$0xf]
        %v4789 = vld [vmem:[%s4778 + $0x48] sm:$0xff]
        %v4790 = vld [vmem:[%s4778 + $0x50] sm:$0xff]
        %v4791 = vld [vmem:[%s4778 + $0x58] sm:$0xff]
        %v4792 = vld [vmem:[%s4778 + $0x60] sm:$0xff]
        %v4793 = vld [vmem:[%s4778 + $0x68] sm:$0xf]
        %v4794 = vld [vmem:[%s4778 + $0x6c] sm:$0xff]
        %v4795 = vld [vmem:[%s4778 + $0x74] sm:$0xff]
        %v4796 = vld [vmem:[%s4778 + $0x7c] sm:$0xff]
        %v4797 = vld [vmem:[%s4778 + $0x84] sm:$0xff]
        %v4798 = vld [vmem:[%s4778 + $0x8c] sm:$0xf]
        %v4799 = vld [vmem:[%s4778 + $0x90] sm:$0xff]
        %v4800 = vld [vmem:[%s4778 + $0x98] sm:$0xff]
        %v4801 = vld [vmem:[%s4778 + $0xa0] sm:$0xff]
        %v4802 = vld [vmem:[%s4778 + $0xa8] sm:$0xff]
        %v4803 = vld [vmem:[%s4778 + $0xb0] sm:$0xf]
        %v4804 = vld [vmem:[%s4778 + $0xb4] sm:$0xff]
        %v4805 = vld [vmem:[%s4778 + $0xbc] sm:$0xff]
        %v4806 = vld [vmem:[%s4778 + $0xc4] sm:$0xff]
        %v4807 = vld [vmem:[%s4778 + $0xcc] sm:$0xff]
        %v4808 = vld [vmem:[%s4778 + $0xd4] sm:$0xf]
        %v4809 = vld [vmem:[%s4778 + $0xd8] sm:$0xff]
        %v4810 = vld [vmem:[%s4778 + $0xe0] sm:$0xff]
        %v4811 = vld [vmem:[%s4778 + $0xe8] sm:$0xff]
        %v4812 = vld [vmem:[%s4778 + $0xf0] sm:$0xff]
        %v4813 = vld [vmem:[%s4778 + $0xf8] sm:$0xf]
        %v4814 = vld [vmem:[%s4778 + $0xfc] sm:$0xff]
        %v4815 = vld [vmem:[%s4778 + $0x104] sm:$0xff]
        %v4816 = vld [vmem:[%s4778 + $0x10c] sm:$0xff]
        %v4817 = vld [vmem:[%s4778 + $0x114] sm:$0xff]
        %v4818 = vld [vmem:[%s4778 + $0x11c] sm:$0xf]
        %v4819 = vld [vmem:[%s4778 + $0x120] sm:$0xff]
        %v4820 = vld [vmem:[%s4778 + $0x128] sm:$0xff]
        %v4821 = vld [vmem:[%s4778 + $0x130] sm:$0xff]
        %v4822 = vld [vmem:[%s4778 + $0x138] sm:$0xff]
        %v4823 = vld [vmem:[%s4778 + $0x140] sm:$0xf]
        %v4824 = vld [vmem:[%s4778 + $0x144] sm:$0xff]
        %v4825 = vld [vmem:[%s4778 + $0x14c] sm:$0xff]
        %v4826 = vld [vmem:[%s4778 + $0x154] sm:$0xff]
        %v4827 = vld [vmem:[%s4778 + $0x15c] sm:$0xff]
        %v4828 = vld [vmem:[%s4778 + $0x164] sm:$0xf]
        %v4829 = vld [vmem:[%s4778 + $0x168] sm:$0xff]
        %v4830 = vld [vmem:[%s4778 + $0x170] sm:$0xff]
        %v4831 = vld [vmem:[%s4778 + $0x178] sm:$0xff]
        %v4832 = vld [vmem:[%s4778 + $0x180] sm:$0xff]
        %v4833 = vld [vmem:[%s4778 + $0x188] sm:$0xf]
        %v4834 = vld [vmem:[%s4778 + $0x18c] sm:$0xff]
        %v4835 = vld [vmem:[%s4778 + $0x194] sm:$0xff]
        %v4836 = vld [vmem:[%s4778 + $0x19c] sm:$0xff]
        %v4837 = vld [vmem:[%s4778 + $0x1a4] sm:$0xff]
        %v4838 = vld [vmem:[%s4778 + $0x1ac] sm:$0xf]
        %v4839 = vld [vmem:[%s4778 + $0x1b0] sm:$0xff]
        %v4840 = vld [vmem:[%s4778 + $0x1b8] sm:$0xff]
        %v4841 = vld [vmem:[%s4778 + $0x1c0] sm:$0xff]
        %v4842 = vld [vmem:[%s4778 + $0x1c8] sm:$0xff]
        %v4843 = vld [vmem:[%s4778 + $0x1d0] sm:$0xf]
        %v4844 = vld [vmem:[%s4778 + $0x1d4] sm:$0xff]
        %v4845 = vld [vmem:[%s4778 + $0x1dc] sm:$0xff]
        %v4846 = vld [vmem:[%s4778 + $0x1e4] sm:$0xff]
        %v4847 = vld [vmem:[%s4778 + $0x1ec] sm:$0xff]
        %v4848 = vld [vmem:[%s4778 + $0x1f4] sm:$0xf]
        %v4849 = vld [vmem:[%s4778 + $0x1f8] sm:$0xff]
        %v4850 = vld [vmem:[%s4778 + $0x200] sm:$0xff]
        %v4851 = vld [vmem:[%s4778 + $0x208] sm:$0xff]
        %v4852 = vld [vmem:[%s4778 + $0x210] sm:$0xff]
        %v4853 = vld [vmem:[%s4778 + $0x218] sm:$0xf]
        %v4854 = vld [vmem:[%s4778 + $0x21c] sm:$0xff]
        %v4855 = vld [vmem:[%s4778 + $0x224] sm:$0xff]
        %v4856 = vld [vmem:[%s4778 + $0x22c] sm:$0xff]
        %v4857 = vld [vmem:[%s4778 + $0x234] sm:$0xff]
        %v4858 = vld [vmem:[%s4778 + $0x23c] sm:$0xf]
        %v4939 = vunpack.c.l.b16 %v4779
        %v4940 = vunpack.c.h.b16 %v4779
        %v4941 = vunpack.c.l.b16 %v4780
        %v4942 = vunpack.c.h.b16 %v4780
        %v4943 = vunpack.c.l.b16 %v4781
        %v4944 = vunpack.c.h.b16 %v4781
        %v4945 = vunpack.c.l.b16 %v4782
        %v4946 = vunpack.c.h.b16 %v4782
        %v4947 = vunpack.c.l.b16 %v4783
        %v4948 = vunpack.c.l.b16 %v4784
        %v4949 = vunpack.c.h.b16 %v4784
        %v4950 = vunpack.c.l.b16 %v4785
        %v4951 = vunpack.c.h.b16 %v4785
        %v4952 = vunpack.c.l.b16 %v4786
        %v4953 = vunpack.c.h.b16 %v4786
        %v4954 = vunpack.c.l.b16 %v4787
        %v4955 = vunpack.c.h.b16 %v4787
        %v4956 = vunpack.c.l.b16 %v4788
        %v4957 = vunpack.c.l.b16 %v4789
        %v4958 = vunpack.c.h.b16 %v4789
        %v4959 = vunpack.c.l.b16 %v4790
        %v4960 = vunpack.c.h.b16 %v4790
        %v4961 = vunpack.c.l.b16 %v4791
        %v4962 = vunpack.c.h.b16 %v4791
        %v4963 = vunpack.c.l.b16 %v4792
        %v4964 = vunpack.c.h.b16 %v4792
        %v4965 = vunpack.c.l.b16 %v4793
        %v4966 = vunpack.c.l.b16 %v4794
        %v4967 = vunpack.c.h.b16 %v4794
        %v4968 = vunpack.c.l.b16 %v4795
        %v4969 = vunpack.c.h.b16 %v4795
        %v4970 = vunpack.c.l.b16 %v4796
        %v4971 = vunpack.c.h.b16 %v4796
        %v4972 = vunpack.c.l.b16 %v4797
        %v4973 = vunpack.c.h.b16 %v4797
        %v4974 = vunpack.c.l.b16 %v4798
        %v4975 = vunpack.c.l.b16 %v4799
        %v4976 = vunpack.c.h.b16 %v4799
        %v4977 = vunpack.c.l.b16 %v4800
        %v4978 = vunpack.c.h.b16 %v4800
        %v4979 = vunpack.c.l.b16 %v4801
        %v4980 = vunpack.c.h.b16 %v4801
        %v4981 = vunpack.c.l.b16 %v4802
        %v4982 = vunpack.c.h.b16 %v4802
        %v4983 = vunpack.c.l.b16 %v4803
        %v4984 = vunpack.c.l.b16 %v4804
        %v4985 = vunpack.c.h.b16 %v4804
        %v4986 = vunpack.c.l.b16 %v4805
        %v4987 = vunpack.c.h.b16 %v4805
        %v4988 = vunpack.c.l.b16 %v4806
        %v4989 = vunpack.c.h.b16 %v4806
        %v4990 = vunpack.c.l.b16 %v4807
        %v4991 = vunpack.c.h.b16 %v4807
        %v4992 = vunpack.c.l.b16 %v4808
        %v4993 = vunpack.c.l.b16 %v4809
        %v4994 = vunpack.c.h.b16 %v4809
        %v4995 = vunpack.c.l.b16 %v4810
        %v4996 = vunpack.c.h.b16 %v4810
        %v4997 = vunpack.c.l.b16 %v4811
        %v4998 = vunpack.c.h.b16 %v4811
        %v4999 = vunpack.c.l.b16 %v4812
        %v5000 = vunpack.c.h.b16 %v4812
        %v5001 = vunpack.c.l.b16 %v4813
        %v5002 = vunpack.c.l.b16 %v4814
        %v5003 = vunpack.c.h.b16 %v4814
        %v5004 = vunpack.c.l.b16 %v4815
        %v5005 = vunpack.c.h.b16 %v4815
        %v5006 = vunpack.c.l.b16 %v4816
        %v5007 = vunpack.c.h.b16 %v4816
        %v5008 = vunpack.c.l.b16 %v4817
        %v5009 = vunpack.c.h.b16 %v4817
        %v5010 = vunpack.c.l.b16 %v4818
        %v5011 = vunpack.c.l.b16 %v4819
        %v5012 = vunpack.c.h.b16 %v4819
        %v5013 = vunpack.c.l.b16 %v4820
        %v5014 = vunpack.c.h.b16 %v4820
        %v5015 = vunpack.c.l.b16 %v4821
        %v5016 = vunpack.c.h.b16 %v4821
        %v5017 = vunpack.c.l.b16 %v4822
        %v5018 = vunpack.c.h.b16 %v4822
        %v5019 = vunpack.c.l.b16 %v4823
        %v5020 = vunpack.c.l.b16 %v4824
        %v5021 = vunpack.c.h.b16 %v4824
        %v5022 = vunpack.c.l.b16 %v4825
        %v5023 = vunpack.c.h.b16 %v4825
        %v5024 = vunpack.c.l.b16 %v4826
        %v5025 = vunpack.c.h.b16 %v4826
        %v5026 = vunpack.c.l.b16 %v4827
        %v5027 = vunpack.c.h.b16 %v4827
        %v5028 = vunpack.c.l.b16 %v4828
        %v5029 = vunpack.c.l.b16 %v4829
        %v5030 = vunpack.c.h.b16 %v4829
        %v5031 = vunpack.c.l.b16 %v4830
        %v5032 = vunpack.c.h.b16 %v4830
        %v5033 = vunpack.c.l.b16 %v4831
        %v5034 = vunpack.c.h.b16 %v4831
        %v5035 = vunpack.c.l.b16 %v4832
        %v5036 = vunpack.c.h.b16 %v4832
        %v5037 = vunpack.c.l.b16 %v4833
        %v5038 = vunpack.c.l.b16 %v4834
        %v5039 = vunpack.c.h.b16 %v4834
        %v5040 = vunpack.c.l.b16 %v4835
        %v5041 = vunpack.c.h.b16 %v4835
        %v5042 = vunpack.c.l.b16 %v4836
        %v5043 = vunpack.c.h.b16 %v4836
        %v5044 = vunpack.c.l.b16 %v4837
        %v5045 = vunpack.c.h.b16 %v4837
        %v5046 = vunpack.c.l.b16 %v4838
        %v5047 = vunpack.c.l.b16 %v4839
        %v5048 = vunpack.c.h.b16 %v4839
        %v5049 = vunpack.c.l.b16 %v4840
        %v5050 = vunpack.c.h.b16 %v4840
        %v5051 = vunpack.c.l.b16 %v4841
        %v5052 = vunpack.c.h.b16 %v4841
        %v5053 = vunpack.c.l.b16 %v4842
        %v5054 = vunpack.c.h.b16 %v4842
        %v5055 = vunpack.c.l.b16 %v4843
        %v5056 = vunpack.c.l.b16 %v4844
        %v5057 = vunpack.c.h.b16 %v4844
        %v5058 = vunpack.c.l.b16 %v4845
        %v5059 = vunpack.c.h.b16 %v4845
        %v5060 = vunpack.c.l.b16 %v4846
        %v5061 = vunpack.c.h.b16 %v4846
        %v5062 = vunpack.c.l.b16 %v4847
        %v5063 = vunpack.c.h.b16 %v4847
        %v5064 = vunpack.c.l.b16 %v4848
        %v5065 = vunpack.c.l.b16 %v4849
        %v5066 = vunpack.c.h.b16 %v4849
        %v5067 = vunpack.c.l.b16 %v4850
        %v5068 = vunpack.c.h.b16 %v4850
        %v5069 = vunpack.c.l.b16 %v4851
        %v5070 = vunpack.c.h.b16 %v4851
        %v5071 = vunpack.c.l.b16 %v4852
        %v5072 = vunpack.c.h.b16 %v4852
        %v5073 = vunpack.c.l.b16 %v4853
        %v5074 = vunpack.c.l.b16 %v4854
        %v5075 = vunpack.c.h.b16 %v4854
        %v5076 = vunpack.c.l.b16 %v4855
        %v5077 = vunpack.c.h.b16 %v4855
        %v5078 = vunpack.c.l.b16 %v4856
        %v5079 = vunpack.c.h.b16 %v4856
        %v5080 = vunpack.c.l.b16 %v4857
        %v5081 = vunpack.c.h.b16 %v4857
        %v5082 = vunpack.c.l.b16 %v4858
        %v5083 = vpack.c.b16 %v4948, %v4939
        %v5084 = vpack.c.b16 %v4949, %v4940
        %v5085 = vpack.c.b16 %v4950, %v4941
        %v5086 = vpack.c.b16 %v4951, %v4942
        %v5087 = vpack.c.b16 %v4952, %v4943
        %v5088 = vpack.c.b16 %v4953, %v4944
        %v5089 = vpack.c.b16 %v4954, %v4945
        %v5090 = vpack.c.b16 %v4955, %v4946
        %v5091 = vpack.c.b16 %v4956, %v4947
        %v5092 = vpack.c.b16 %v4966, %v4957
        %v5093 = vpack.c.b16 %v4967, %v4958
        %v5094 = vpack.c.b16 %v4968, %v4959
        %v5095 = vpack.c.b16 %v4969, %v4960
        %v5096 = vpack.c.b16 %v4970, %v4961
        %v5097 = vpack.c.b16 %v4971, %v4962
        %v5098 = vpack.c.b16 %v4972, %v4963
        %v5099 = vpack.c.b16 %v4973, %v4964
        %v5100 = vpack.c.b16 %v4974, %v4965
        %v5101 = vpack.c.b16 %v4984, %v4975
        %v5102 = vpack.c.b16 %v4985, %v4976
        %v5103 = vpack.c.b16 %v4986, %v4977
        %v5104 = vpack.c.b16 %v4987, %v4978
        %v5105 = vpack.c.b16 %v4988, %v4979
        %v5106 = vpack.c.b16 %v4989, %v4980
        %v5107 = vpack.c.b16 %v4990, %v4981
        %v5108 = vpack.c.b16 %v4991, %v4982
        %v5109 = vpack.c.b16 %v4992, %v4983
        %v5110 = vpack.c.b16 %v5002, %v4993
        %v5111 = vpack.c.b16 %v5003, %v4994
        %v5112 = vpack.c.b16 %v5004, %v4995
        %v5113 = vpack.c.b16 %v5005, %v4996
        %v5114 = vpack.c.b16 %v5006, %v4997
        %v5115 = vpack.c.b16 %v5007, %v4998
        %v5116 = vpack.c.b16 %v5008, %v4999
        %v5117 = vpack.c.b16 %v5009, %v5000
        %v5118 = vpack.c.b16 %v5010, %v5001
        %v5119 = vpack.c.b16 %v5020, %v5011
        %v5120 = vpack.c.b16 %v5021, %v5012
        %v5121 = vpack.c.b16 %v5022, %v5013
        %v5122 = vpack.c.b16 %v5023, %v5014
        %v5123 = vpack.c.b16 %v5024, %v5015
        %v5124 = vpack.c.b16 %v5025, %v5016
        %v5125 = vpack.c.b16 %v5026, %v5017
        %v5126 = vpack.c.b16 %v5027, %v5018
        %v5127 = vpack.c.b16 %v5028, %v5019
        %v5128 = vpack.c.b16 %v5038, %v5029
        %v5129 = vpack.c.b16 %v5039, %v5030
        %v5130 = vpack.c.b16 %v5040, %v5031
        %v5131 = vpack.c.b16 %v5041, %v5032
        %v5132 = vpack.c.b16 %v5042, %v5033
        %v5133 = vpack.c.b16 %v5043, %v5034
        %v5134 = vpack.c.b16 %v5044, %v5035
        %v5135 = vpack.c.b16 %v5045, %v5036
        %v5136 = vpack.c.b16 %v5046, %v5037
        %v5137 = vpack.c.b16 %v5056, %v5047
        %v5138 = vpack.c.b16 %v5057, %v5048
        %v5139 = vpack.c.b16 %v5058, %v5049
        %v5140 = vpack.c.b16 %v5059, %v5050
        %v5141 = vpack.c.b16 %v5060, %v5051
        %v5142 = vpack.c.b16 %v5061, %v5052
        %v5143 = vpack.c.b16 %v5062, %v5053
        %v5144 = vpack.c.b16 %v5063, %v5054
        %v5145 = vpack.c.b16 %v5064, %v5055
        %v5146 = vpack.c.b16 %v5074, %v5065
        %v5147 = vpack.c.b16 %v5075, %v5066
        %v5148 = vpack.c.b16 %v5076, %v5067
        %v5149 = vpack.c.b16 %v5077, %v5068
        %v5150 = vpack.c.b16 %v5078, %v5069
        %v5151 = vpack.c.b16 %v5079, %v5070
        %v5152 = vpack.c.b16 %v5080, %v5071
        %v5153 = vpack.c.b16 %v5081, %v5072
        %v5154 = vpack.c.b16 %v5082, %v5073
        %5227 = vmatprep.subr.bf16.mxu0 %v5084
        %5228 = vmatpush1.bf16.msra.mxu0 %v5083
        %5229 = vmatprep.subr.bf16.mxu0 %v5093
        %5230 = vmatpush1.bf16.msra.mxu0 %v5092
        %5231 = vmatprep.subr.bf16.mxu0 %v5102
        %5232 = vmatpush1.bf16.msra.mxu0 %v5101
        %5233 = vmatprep.subr.bf16.mxu0 %v5111
        %5234 = vmatpush1.bf16.msra.mxu0 %v5110
        %5235 = vmatprep.subr.bf16.mxu0 %v5120
        %5236 = vmatpush1.bf16.msra.mxu0 %v5119
        %5237 = vmatprep.subr.bf16.mxu0 %v5129
        %5238 = vmatpush1.bf16.msra.mxu0 %v5128
        %5239 = vmatprep.subr.bf16.mxu0 %v5138
        %5240 = vmatpush1.bf16.msra.mxu0 %v5137
        %5241 = vmatprep.subr.bf16.mxu0 %v5147
        %5242 = vmatpush1.bf16.msra.mxu0 %v5146
        %5243 = vmatprep.subr.bf16.mxu0 0
        %5244 = vmatpush1.bf16.msra.mxu0 0
        %5245 = vmatprep.subr.bf16.mxu0 0
        %5246 = vmatpush1.bf16.msra.mxu0 0
        %5247 = vmatprep.subr.bf16.mxu0 0
        %5248 = vmatpush1.bf16.msra.mxu0 0
        %5249 = vmatprep.subr.bf16.mxu0 0
        %5250 = vmatpush1.bf16.msra.mxu0 0
        %5251 = vmatprep.subr.bf16.mxu0 0
        %5252 = vmatpush1.bf16.msra.mxu0 0
        %5253 = vmatprep.subr.bf16.mxu0 0
        %5254 = vmatpush1.bf16.msra.mxu0 0
        %5255 = vmatprep.subr.bf16.mxu0 0
        %5256 = vmatpush1.bf16.msra.mxu0 0
        %5257 = vmatprep.subr.bf16.mxu0 0
        %5258 = vmatpush1.bf16.msra.mxu0 0
        %5259 = vmatprep.mubr.bf16.mxu0 0
        %5260 = vmatmul.mubr.bf16.gmra.mrb[0].mxu0 %v4770
        %v5261 = vpop.f32.mrb[0].mxu0
        %v5262 = vadd.f32 0.0, %v5261
        %v5263 = vpop.f32.mrb[0].mxu0
        %v5264 = vadd.f32 0.0, %v5263
        %v5265 = vpop.f32.mrb[0].mxu0
        %v5266 = vadd.f32 0.0, %v5265
        %v5267 = vpop.f32.mrb[0].mxu0
        %v5268 = vadd.f32 0.0, %v5267
        %5269 = vmatprep.mubr.bf16.mxu0 0
        %5270 = vmatmul.mubr.bf16.gmra.mrb[0].mxu0 %v4771
        %v5271 = vpop.f32.mrb[0].mxu0
        %v5272 = vadd.f32 0.0, %v5271
        %v5273 = vpop.f32.mrb[0].mxu0
        %v5274 = vadd.f32 0.0, %v5273
        %v5275 = vpop.f32.mrb[0].mxu0
        %v5276 = vadd.f32 0.0, %v5275
        %v5277 = vpop.f32.mrb[0].mxu0
        %v5278 = vadd.f32 0.0, %v5277
        %5279 = vmatprep.mubr.bf16.mxu0 0
        %5280 = vmatmul.mubr.bf16.gmra.mrb[0].mxu0 %v4772
        %v5281 = vpop.f32.mrb[0].mxu0
        %v5282 = vadd.f32 0.0, %v5281
        %v5283 = vpop.f32.mrb[0].mxu0
        %v5284 = vadd.f32 0.0, %v5283
        %v5285 = vpop.f32.mrb[0].mxu0
        %v5286 = vadd.f32 0.0, %v5285
        %v5287 = vpop.f32.mrb[0].mxu0
        %v5288 = vadd.f32 0.0, %v5287
        %5289 = vmatprep.mubr.bf16.mxu0 0
        %5290 = vmatmul.mubr.bf16.gmra.mrb[0].mxu0 %v4773
        %v5291 = vpop.f32.mrb[0].mxu0
        %v5292 = vadd.f32 0.0, %v5291
        %v5293 = vpop.f32.mrb[0].mxu0
        %v5294 = vadd.f32 0.0, %v5293
        %v5295 = vpop.f32.mrb[0].mxu0
        %v5296 = vadd.f32 0.0, %v5295
        %v5297 = vpop.f32.mrb[0].mxu0
        %v5298 = vadd.f32 0.0, %v5297
        %5299 = vmatprep.mubr.bf16.mxu0 0
        %5300 = vmatmul.mubr.bf16.gmra.mrb[0].mxu0 %v4774
        %v5301 = vpop.f32.mrb[0].mxu0
        %v5302 = vadd.f32 0.0, %v5301
        %v5303 = vpop.f32.mrb[0].mxu0
        %v5304 = vadd.f32 0.0, %v5303
        %v5305 = vpop.f32.mrb[0].mxu0
        %v5306 = vadd.f32 0.0, %v5305
        %v5307 = vpop.f32.mrb[0].mxu0
        %v5308 = vadd.f32 0.0, %v5307
        %5309 = vmatprep.mubr.bf16.mxu0 0
        %5310 = vmatmul.mubr.bf16.gmra.mrb[0].mxu0 %v4775
        %v5311 = vpop.f32.mrb[0].mxu0
        %v5312 = vadd.f32 0.0, %v5311
        %v5313 = vpop.f32.mrb[0].mxu0
        %v5314 = vadd.f32 0.0, %v5313
        %v5315 = vpop.f32.mrb[0].mxu0
        %v5316 = vadd.f32 0.0, %v5315
        %v5317 = vpop.f32.mrb[0].mxu0
        %v5318 = vadd.f32 0.0, %v5317
        %5319 = vmatprep.mubr.bf16.mxu0 0
        %5320 = vmatmul.mubr.bf16.gmra.mrb[0].mxu0 %v4776
        %v5321 = vpop.f32.mrb[0].mxu0
        %v5322 = vadd.f32 0.0, %v5321
        %v5323 = vpop.f32.mrb[0].mxu0
        %v5324 = vadd.f32 0.0, %v5323
        %v5325 = vpop.f32.mrb[0].mxu0
        %v5326 = vadd.f32 0.0, %v5325
        %v5327 = vpop.f32.mrb[0].mxu0
        %v5328 = vadd.f32 0.0, %v5327
        %5329 = vmatprep.mubr.bf16.mxu0 0
        %5330 = vmatmul.mubr.bf16.gmra.mrb[0].mxu0 %v4777
        %v5331 = vpop.f32.mrb[0].mxu0
        %v5332 = vadd.f32 0.0, %v5331
        %v5333 = vpop.f32.mrb[0].mxu0
        %v5334 = vadd.f32 0.0, %v5333
        %v5335 = vpop.f32.mrb[0].mxu0
        %v5336 = vadd.f32 0.0, %v5335
        %v5337 = vpop.f32.mrb[0].mxu0
        %v5338 = vadd.f32 0.0, %v5337
        %5339 = vdwg.mxu0
        %5340 = vmatprep.subr.bf16.mxu0 %v5086
        %5341 = vmatpush1.bf16.msra.mxu0 %v5085
        %5342 = vmatprep.subr.bf16.mxu0 %v5095
        %5343 = vmatpush1.bf16.msra.mxu0 %v5094
        %5344 = vmatprep.subr.bf16.mxu0 %v5104
        %5345 = vmatpush1.bf16.msra.mxu0 %v5103
        %5346 = vmatprep.subr.bf16.mxu0 %v5113
        %5347 = vmatpush1.bf16.msra.mxu0 %v5112
        %5348 = vmatprep.subr.bf16.mxu0 %v5122
        %5349 = vmatpush1.bf16.msra.mxu0 %v5121
        %5350 = vmatprep.subr.bf16.mxu0 %v5131
        %5351 = vmatpush1.bf16.msra.mxu0 %v5130
        %5352 = vmatprep.subr.bf16.mxu0 %v5140
        %5353 = vmatpush1.bf16.msra.mxu0 %v5139
        %5354 = vmatprep.subr.bf16.mxu0 %v5149
        %5355 = vmatpush1.bf16.msra.mxu0 %v5148
        %5356 = vmatprep.subr.bf16.mxu0 0
        %5357 = vmatpush1.bf16.msra.mxu0 0
        %5358 = vmatprep.subr.bf16.mxu0 0
        %5359 = vmatpush1.bf16.msra.mxu0 0
        %5360 = vmatprep.subr.bf16.mxu0 0
        %5361 = vmatpush1.bf16.msra.mxu0 0
        %5362 = vmatprep.subr.bf16.mxu0 0
        %5363 = vmatpush1.bf16.msra.mxu0 0
        %5364 = vmatprep.subr.bf16.mxu0 0
        %5365 = vmatpush1.bf16.msra.mxu0 0
        %5366 = vmatprep.subr.bf16.mxu0 0
        %5367 = vmatpush1.bf16.msra.mxu0 0
        %5368 = vmatprep.subr.bf16.mxu0 0
        %5369 = vmatpush1.bf16.msra.mxu0 0
        %5370 = vmatprep.subr.bf16.mxu0 0
        %5371 = vmatpush1.bf16.msra.mxu0 0
        %5372 = vmatprep.mubr.bf16.mxu0 0
        %5373 = vmatmul.mubr.bf16.gmra.mrb[0].mxu0 %v4770
        %v5374 = vpop.f32.mrb[0].mxu0
        %v5375 = vadd.f32 0.0, %v5374
        %v5376 = vpop.f32.mrb[0].mxu0
        %v5377 = vadd.f32 0.0, %v5376
        %v5378 = vpop.f32.mrb[0].mxu0
        %v5379 = vadd.f32 0.0, %v5378
        %v5380 = vpop.f32.mrb[0].mxu0
        %v5381 = vadd.f32 0.0, %v5380
        %5382 = vmatprep.mubr.bf16.mxu0 0
        %5383 = vmatmul.mubr.bf16.gmra.mrb[0].mxu0 %v4771
        %v5384 = vpop.f32.mrb[0].mxu0
        %v5385 = vadd.f32 0.0, %v5384
        %v5386 = vpop.f32.mrb[0].mxu0
        %v5387 = vadd.f32 0.0, %v5386
        %v5388 = vpop.f32.mrb[0].mxu0
        %v5389 = vadd.f32 0.0, %v5388
        %v5390 = vpop.f32.mrb[0].mxu0
        %v5391 = vadd.f32 0.0, %v5390
        %5392 = vmatprep.mubr.bf16.mxu0 0
        %5393 = vmatmul.mubr.bf16.gmra.mrb[0].mxu0 %v4772
        %v5394 = vpop.f32.mrb[0].mxu0
        %v5395 = vadd.f32 0.0, %v5394
        %v5396 = vpop.f32.mrb[0].mxu0
        %v5397 = vadd.f32 0.0, %v5396
        %v5398 = vpop.f32.mrb[0].mxu0
        %v5399 = vadd.f32 0.0, %v5398
        %v5400 = vpop.f32.mrb[0].mxu0
        %v5401 = vadd.f32 0.0, %v5400
        %5402 = vmatprep.mubr.bf16.mxu0 0
        %5403 = vmatmul.mubr.bf16.gmra.mrb[0].mxu0 %v4773
        %v5404 = vpop.f32.mrb[0].mxu0
        %v5405 = vadd.f32 0.0, %v5404
        %v5406 = vpop.f32.mrb[0].mxu0
        %v5407 = vadd.f32 0.0, %v5406
        %v5408 = vpop.f32.mrb[0].mxu0
        %v5409 = vadd.f32 0.0, %v5408
        %v5410 = vpop.f32.mrb[0].mxu0
        %v5411 = vadd.f32 0.0, %v5410
        %5412 = vmatprep.mubr.bf16.mxu0 0
        %5413 = vmatmul.mubr.bf16.gmra.mrb[0].mxu0 %v4774
        %v5414 = vpop.f32.mrb[0].mxu0
        %v5415 = vadd.f32 0.0, %v5414
        %v5416 = vpop.f32.mrb[0].mxu0
        %v5417 = vadd.f32 0.0, %v5416
        %v5418 = vpop.f32.mrb[0].mxu0
        %v5419 = vadd.f32 0.0, %v5418
        %v5420 = vpop.f32.mrb[0].mxu0
        %v5421 = vadd.f32 0.0, %v5420
        %5422 = vmatprep.mubr.bf16.mxu0 0
        %5423 = vmatmul.mubr.bf16.gmra.mrb[0].mxu0 %v4775
        %v5424 = vpop.f32.mrb[0].mxu0
        %v5425 = vadd.f32 0.0, %v5424
        %v5426 = vpop.f32.mrb[0].mxu0
        %v5427 = vadd.f32 0.0, %v5426
        %v5428 = vpop.f32.mrb[0].mxu0
        %v5429 = vadd.f32 0.0, %v5428
        %v5430 = vpop.f32.mrb[0].mxu0
        %v5431 = vadd.f32 0.0, %v5430
        %5432 = vmatprep.mubr.bf16.mxu0 0
        %5433 = vmatmul.mubr.bf16.gmra.mrb[0].mxu0 %v4776
        %v5434 = vpop.f32.mrb[0].mxu0
        %v5435 = vadd.f32 0.0, %v5434
        %v5436 = vpop.f32.mrb[0].mxu0
        %v5437 = vadd.f32 0.0, %v5436
        %v5438 = vpop.f32.mrb[0].mxu0
        %v5439 = vadd.f32 0.0, %v5438
        %v5440 = vpop.f32.mrb[0].mxu0
        %v5441 = vadd.f32 0.0, %v5440
        %5442 = vmatprep.mubr.bf16.mxu0 0
        %5443 = vmatmul.mubr.bf16.gmra.mrb[0].mxu0 %v4777
        %v5444 = vpop.f32.mrb[0].mxu0
        %v5445 = vadd.f32 0.0, %v5444
        %v5446 = vpop.f32.mrb[0].mxu0
        %v5447 = vadd.f32 0.0, %v5446
        %v5448 = vpop.f32.mrb[0].mxu0
        %v5449 = vadd.f32 0.0, %v5448
        %v5450 = vpop.f32.mrb[0].mxu0
        %v5451 = vadd.f32 0.0, %v5450
        %5452 = vdwg.mxu0
        %5453 = vmatprep.subr.bf16.mxu0 %v5088
        %5454 = vmatpush1.bf16.msra.mxu0 %v5087
        %5455 = vmatprep.subr.bf16.mxu0 %v5097
        %5456 = vmatpush1.bf16.msra.mxu0 %v5096
        %5457 = vmatprep.subr.bf16.mxu0 %v5106
        %5458 = vmatpush1.bf16.msra.mxu0 %v5105
        %5459 = vmatprep.subr.bf16.mxu0 %v5115
        %5460 = vmatpush1.bf16.msra.mxu0 %v5114
        %5461 = vmatprep.subr.bf16.mxu0 %v5124
        %5462 = vmatpush1.bf16.msra.mxu0 %v5123
        %5463 = vmatprep.subr.bf16.mxu0 %v5133
        %5464 = vmatpush1.bf16.msra.mxu0 %v5132
        %5465 = vmatprep.subr.bf16.mxu0 %v5142
        %5466 = vmatpush1.bf16.msra.mxu0 %v5141
        %5467 = vmatprep.subr.bf16.mxu0 %v5151
        %5468 = vmatpush1.bf16.msra.mxu0 %v5150
        %5469 = vmatprep.subr.bf16.mxu0 0
        %5470 = vmatpush1.bf16.msra.mxu0 0
        %5471 = vmatprep.subr.bf16.mxu0 0
        %5472 = vmatpush1.bf16.msra.mxu0 0
        %5473 = vmatprep.subr.bf16.mxu0 0
        %5474 = vmatpush1.bf16.msra.mxu0 0
        %5475 = vmatprep.subr.bf16.mxu0 0
        %5476 = vmatpush1.bf16.msra.mxu0 0
        %5477 = vmatprep.subr.bf16.mxu0 0
        %5478 = vmatpush1.bf16.msra.mxu0 0
        %5479 = vmatprep.subr.bf16.mxu0 0
        %5480 = vmatpush1.bf16.msra.mxu0 0
        %5481 = vmatprep.subr.bf16.mxu0 0
        %5482 = vmatpush1.bf16.msra.mxu0 0
        %5483 = vmatprep.subr.bf16.mxu0 0
        %5484 = vmatpush1.bf16.msra.mxu0 0
        %5485 = vmatprep.mubr.bf16.mxu0 0
        %5486 = vmatmul.mubr.bf16.gmra.mrb[0].mxu0 %v4770
        %v5487 = vpop.f32.mrb[0].mxu0
        %v5488 = vadd.f32 0.0, %v5487
        %v5489 = vpop.f32.mrb[0].mxu0
        %v5490 = vadd.f32 0.0, %v5489
        %v5491 = vpop.f32.mrb[0].mxu0
        %v5492 = vadd.f32 0.0, %v5491
        %v5493 = vpop.f32.mrb[0].mxu0
        %v5494 = vadd.f32 0.0, %v5493
        %5495 = vmatprep.mubr.bf16.mxu0 0
        %5496 = vmatmul.mubr.bf16.gmra.mrb[0].mxu0 %v4771
        %v5497 = vpop.f32.mrb[0].mxu0
        %v5498 = vadd.f32 0.0, %v5497
        %v5499 = vpop.f32.mrb[0].mxu0
        %v5500 = vadd.f32 0.0, %v5499
        %v5501 = vpop.f32.mrb[0].mxu0
        %v5502 = vadd.f32 0.0, %v5501
        %v5503 = vpop.f32.mrb[0].mxu0
        %v5504 = vadd.f32 0.0, %v5503
        %5505 = vmatprep.mubr.bf16.mxu0 0
        %5506 = vmatmul.mubr.bf16.gmra.mrb[0].mxu0 %v4772
        %v5507 = vpop.f32.mrb[0].mxu0
        %v5508 = vadd.f32 0.0, %v5507
        %v5509 = vpop.f32.mrb[0].mxu0
        %v5510 = vadd.f32 0.0, %v5509
        %v5511 = vpop.f32.mrb[0].mxu0
        %v5512 = vadd.f32 0.0, %v5511
        %v5513 = vpop.f32.mrb[0].mxu0
        %v5514 = vadd.f32 0.0, %v5513
        %5515 = vmatprep.mubr.bf16.mxu0 0
        %5516 = vmatmul.mubr.bf16.gmra.mrb[0].mxu0 %v4773
        %v5517 = vpop.f32.mrb[0].mxu0
        %v5518 = vadd.f32 0.0, %v5517
        %v5519 = vpop.f32.mrb[0].mxu0
        %v5520 = vadd.f32 0.0, %v5519
        %v5521 = vpop.f32.mrb[0].mxu0
        %v5522 = vadd.f32 0.0, %v5521
        %v5523 = vpop.f32.mrb[0].mxu0
        %v5524 = vadd.f32 0.0, %v5523
        %5525 = vmatprep.mubr.bf16.mxu0 0
        %5526 = vmatmul.mubr.bf16.gmra.mrb[0].mxu0 %v4774
        %v5527 = vpop.f32.mrb[0].mxu0
        %v5528 = vadd.f32 0.0, %v5527
        %v5529 = vpop.f32.mrb[0].mxu0
        %v5530 = vadd.f32 0.0, %v5529
        %v5531 = vpop.f32.mrb[0].mxu0
        %v5532 = vadd.f32 0.0, %v5531
        %v5533 = vpop.f32.mrb[0].mxu0
        %v5534 = vadd.f32 0.0, %v5533
        %5535 = vmatprep.mubr.bf16.mxu0 0
        %5536 = vmatmul.mubr.bf16.gmra.mrb[0].mxu0 %v4775
        %v5537 = vpop.f32.mrb[0].mxu0
        %v5538 = vadd.f32 0.0, %v5537
        %v5539 = vpop.f32.mrb[0].mxu0
        %v5540 = vadd.f32 0.0, %v5539
        %v5541 = vpop.f32.mrb[0].mxu0
        %v5542 = vadd.f32 0.0, %v5541
        %v5543 = vpop.f32.mrb[0].mxu0
        %v5544 = vadd.f32 0.0, %v5543
        %5545 = vmatprep.mubr.bf16.mxu0 0
        %5546 = vmatmul.mubr.bf16.gmra.mrb[0].mxu0 %v4776
        %v5547 = vpop.f32.mrb[0].mxu0
        %v5548 = vadd.f32 0.0, %v5547
        %v5549 = vpop.f32.mrb[0].mxu0
        %v5550 = vadd.f32 0.0, %v5549
        %v5551 = vpop.f32.mrb[0].mxu0
        %v5552 = vadd.f32 0.0, %v5551
        %v5553 = vpop.f32.mrb[0].mxu0
        %v5554 = vadd.f32 0.0, %v5553
        %5555 = vmatprep.mubr.bf16.mxu0 0
        %5556 = vmatmul.mubr.bf16.gmra.mrb[0].mxu0 %v4777
        %v5557 = vpop.f32.mrb[0].mxu0
        %v5558 = vadd.f32 0.0, %v5557
        %v5559 = vpop.f32.mrb[0].mxu0
        %v5560 = vadd.f32 0.0, %v5559
        %v5561 = vpop.f32.mrb[0].mxu0
        %v5562 = vadd.f32 0.0, %v5561
        %v5563 = vpop.f32.mrb[0].mxu0
        %v5564 = vadd.f32 0.0, %v5563
        %5565 = vdwg.mxu0
        %5566 = vmatprep.subr.bf16.mxu0 %v5090
        %5567 = vmatpush1.bf16.msra.mxu0 %v5089
        %5568 = vmatprep.subr.bf16.mxu0 %v5099
        %5569 = vmatpush1.bf16.msra.mxu0 %v5098
        %5570 = vmatprep.subr.bf16.mxu0 %v5108
        %5571 = vmatpush1.bf16.msra.mxu0 %v5107
        %5572 = vmatprep.subr.bf16.mxu0 %v5117
        %5573 = vmatpush1.bf16.msra.mxu0 %v5116
        %5574 = vmatprep.subr.bf16.mxu0 %v5126
        %5575 = vmatpush1.bf16.msra.mxu0 %v5125
        %5576 = vmatprep.subr.bf16.mxu0 %v5135
        %5577 = vmatpush1.bf16.msra.mxu0 %v5134
        %5578 = vmatprep.subr.bf16.mxu0 %v5144
        %5579 = vmatpush1.bf16.msra.mxu0 %v5143
        %5580 = vmatprep.subr.bf16.mxu0 %v5153
        %5581 = vmatpush1.bf16.msra.mxu0 %v5152
        %5582 = vmatprep.subr.bf16.mxu0 0
        %5583 = vmatpush1.bf16.msra.mxu0 0
        %5584 = vmatprep.subr.bf16.mxu0 0
        %5585 = vmatpush1.bf16.msra.mxu0 0
        %5586 = vmatprep.subr.bf16.mxu0 0
        %5587 = vmatpush1.bf16.msra.mxu0 0
        %5588 = vmatprep.subr.bf16.mxu0 0
        %5589 = vmatpush1.bf16.msra.mxu0 0
        %5590 = vmatprep.subr.bf16.mxu0 0
        %5591 = vmatpush1.bf16.msra.mxu0 0
        %5592 = vmatprep.subr.bf16.mxu0 0
        %5593 = vmatpush1.bf16.msra.mxu0 0
        %5594 = vmatprep.subr.bf16.mxu0 0
        %5595 = vmatpush1.bf16.msra.mxu0 0
        %5596 = vmatprep.subr.bf16.mxu0 0
        %5597 = vmatpush1.bf16.msra.mxu0 0
        %5598 = vmatprep.mubr.bf16.mxu0 0
        %5599 = vmatmul.mubr.bf16.gmra.mrb[0].mxu0 %v4770
        %v5600 = vpop.f32.mrb[0].mxu0
        %v5601 = vadd.f32 0.0, %v5600
        %v5602 = vpop.f32.mrb[0].mxu0
        %v5603 = vadd.f32 0.0, %v5602
        %v5604 = vpop.f32.mrb[0].mxu0
        %v5605 = vadd.f32 0.0, %v5604
        %v5606 = vpop.f32.mrb[0].mxu0
        %v5607 = vadd.f32 0.0, %v5606
        %5608 = vmatprep.mubr.bf16.mxu0 0
        %5609 = vmatmul.mubr.bf16.gmra.mrb[0].mxu0 %v4771
        %v5610 = vpop.f32.mrb[0].mxu0
        %v5611 = vadd.f32 0.0, %v5610
        %v5612 = vpop.f32.mrb[0].mxu0
        %v5613 = vadd.f32 0.0, %v5612
        %v5614 = vpop.f32.mrb[0].mxu0
        %v5615 = vadd.f32 0.0, %v5614
        %v5616 = vpop.f32.mrb[0].mxu0
        %v5617 = vadd.f32 0.0, %v5616
        %5618 = vmatprep.mubr.bf16.mxu0 0
        %5619 = vmatmul.mubr.bf16.gmra.mrb[0].mxu0 %v4772
        %v5620 = vpop.f32.mrb[0].mxu0
        %v5621 = vadd.f32 0.0, %v5620
        %v5622 = vpop.f32.mrb[0].mxu0
        %v5623 = vadd.f32 0.0, %v5622
        %v5624 = vpop.f32.mrb[0].mxu0
        %v5625 = vadd.f32 0.0, %v5624
        %v5626 = vpop.f32.mrb[0].mxu0
        %v5627 = vadd.f32 0.0, %v5626
        %5628 = vmatprep.mubr.bf16.mxu0 0
        %5629 = vmatmul.mubr.bf16.gmra.mrb[0].mxu0 %v4773
        %v5630 = vpop.f32.mrb[0].mxu0
        %v5631 = vadd.f32 0.0, %v5630
        %v5632 = vpop.f32.mrb[0].mxu0
        %v5633 = vadd.f32 0.0, %v5632
        %v5634 = vpop.f32.mrb[0].mxu0
        %v5635 = vadd.f32 0.0, %v5634
        %v5636 = vpop.f32.mrb[0].mxu0
        %v5637 = vadd.f32 0.0, %v5636
        %5638 = vmatprep.mubr.bf16.mxu0 0
        %5639 = vmatmul.mubr.bf16.gmra.mrb[0].mxu0 %v4774
        %v5640 = vpop.f32.mrb[0].mxu0
        %v5641 = vadd.f32 0.0, %v5640
        %v5642 = vpop.f32.mrb[0].mxu0
        %v5643 = vadd.f32 0.0, %v5642
        %v5644 = vpop.f32.mrb[0].mxu0
        %v5645 = vadd.f32 0.0, %v5644
        %v5646 = vpop.f32.mrb[0].mxu0
        %v5647 = vadd.f32 0.0, %v5646
        %5648 = vmatprep.mubr.bf16.mxu0 0
        %5649 = vmatmul.mubr.bf16.gmra.mrb[0].mxu0 %v4775
        %v5650 = vpop.f32.mrb[0].mxu0
        %v5651 = vadd.f32 0.0, %v5650
        %v5652 = vpop.f32.mrb[0].mxu0
        %v5653 = vadd.f32 0.0, %v5652
        %v5654 = vpop.f32.mrb[0].mxu0
        %v5655 = vadd.f32 0.0, %v5654
        %v5656 = vpop.f32.mrb[0].mxu0
        %v5657 = vadd.f32 0.0, %v5656
        %5658 = vmatprep.mubr.bf16.mxu0 0
        %5659 = vmatmul.mubr.bf16.gmra.mrb[0].mxu0 %v4776
        %v5660 = vpop.f32.mrb[0].mxu0
        %v5661 = vadd.f32 0.0, %v5660
        %v5662 = vpop.f32.mrb[0].mxu0
        %v5663 = vadd.f32 0.0, %v5662
        %v5664 = vpop.f32.mrb[0].mxu0
        %v5665 = vadd.f32 0.0, %v5664
        %v5666 = vpop.f32.mrb[0].mxu0
        %v5667 = vadd.f32 0.0, %v5666
        %5668 = vmatprep.mubr.bf16.mxu0 0
        %5669 = vmatmul.mubr.bf16.gmra.mrb[0].mxu0 %v4777
        %v5670 = vpop.f32.mrb[0].mxu0
        %v5671 = vadd.f32 0.0, %v5670
        %v5672 = vpop.f32.mrb[0].mxu0
        %v5673 = vadd.f32 0.0, %v5672
        %v5674 = vpop.f32.mrb[0].mxu0
        %v5675 = vadd.f32 0.0, %v5674
        %v5676 = vpop.f32.mrb[0].mxu0
        %v5677 = vadd.f32 0.0, %v5676
        %5678 = vdwg.mxu0
        %5679 = vmatprep.subr.bf16.mxu0 0
        %5680 = vmatpush1.bf16.msra.mxu0 %v5091
        %5681 = vmatprep.subr.bf16.mxu0 0
        %5682 = vmatpush1.bf16.msra.mxu0 %v5100
        %5683 = vmatprep.subr.bf16.mxu0 0
        %5684 = vmatpush1.bf16.msra.mxu0 %v5109
        %5685 = vmatprep.subr.bf16.mxu0 0
        %5686 = vmatpush1.bf16.msra.mxu0 %v5118
        %5687 = vmatprep.subr.bf16.mxu0 0
        %5688 = vmatpush1.bf16.msra.mxu0 %v5127
        %5689 = vmatprep.subr.bf16.mxu0 0
        %5690 = vmatpush1.bf16.msra.mxu0 %v5136
        %5691 = vmatprep.subr.bf16.mxu0 0
        %5692 = vmatpush1.bf16.msra.mxu0 %v5145
        %5693 = vmatprep.subr.bf16.mxu0 0
        %5694 = vmatpush1.bf16.msra.mxu0 %v5154
        %5695 = vmatprep.subr.bf16.mxu0 0
        %5696 = vmatpush1.bf16.msra.mxu0 0
        %5697 = vmatprep.subr.bf16.mxu0 0
        %5698 = vmatpush1.bf16.msra.mxu0 0
        %5699 = vmatprep.subr.bf16.mxu0 0
        %5700 = vmatpush1.bf16.msra.mxu0 0
        %5701 = vmatprep.subr.bf16.mxu0 0
        %5702 = vmatpush1.bf16.msra.mxu0 0
        %5703 = vmatprep.subr.bf16.mxu0 0
        %5704 = vmatpush1.bf16.msra.mxu0 0
        %5705 = vmatprep.subr.bf16.mxu0 0
        %5706 = vmatpush1.bf16.msra.mxu0 0
        %5707 = vmatprep.subr.bf16.mxu0 0
        %5708 = vmatpush1.bf16.msra.mxu0 0
        %5709 = vmatprep.subr.bf16.mxu0 0
        %5710 = vmatpush1.bf16.msra.mxu0 0
        %5711 = vmatprep.mubr.bf16.mxu0 0
        %5712 = vmatmul.mubr.bf16.gmra.mrb[0].mxu0 %v4770
        %v5713 = vpop.f32.mrb[0].mxu0
        %v5714 = vadd.f32 0.0, %v5713
        %v5715 = vpop.f32.mrb[0].mxu0
        %v5716 = vpop.f32.mrb[0].mxu0
        %v5717 = vadd.f32 0.0, %v5716
        %v5718 = vpop.f32.mrb[0].mxu0
        %5719 = vmatprep.mubr.bf16.mxu0 0
        %5720 = vmatmul.mubr.bf16.gmra.mrb[0].mxu0 %v4771
        %v5721 = vpop.f32.mrb[0].mxu0
        %v5722 = vadd.f32 0.0, %v5721
        %v5723 = vpop.f32.mrb[0].mxu0
        %v5724 = vpop.f32.mrb[0].mxu0
        %v5725 = vadd.f32 0.0, %v5724
        %v5726 = vpop.f32.mrb[0].mxu0
        %5727 = vmatprep.mubr.bf16.mxu0 0
        %5728 = vmatmul.mubr.bf16.gmra.mrb[0].mxu0 %v4772
        %v5729 = vpop.f32.mrb[0].mxu0
        %v5730 = vadd.f32 0.0, %v5729
        %v5731 = vpop.f32.mrb[0].mxu0
        %v5732 = vpop.f32.mrb[0].mxu0
        %v5733 = vadd.f32 0.0, %v5732
        %v5734 = vpop.f32.mrb[0].mxu0
        %5735 = vmatprep.mubr.bf16.mxu0 0
        %5736 = vmatmul.mubr.bf16.gmra.mrb[0].mxu0 %v4773
        %v5737 = vpop.f32.mrb[0].mxu0
        %v5738 = vadd.f32 0.0, %v5737
        %v5739 = vpop.f32.mrb[0].mxu0
        %v5740 = vpop.f32.mrb[0].mxu0
        %v5741 = vadd.f32 0.0, %v5740
        %v5742 = vpop.f32.mrb[0].mxu0
        %5743 = vmatprep.mubr.bf16.mxu0 0
        %5744 = vmatmul.mubr.bf16.gmra.mrb[0].mxu0 %v4774
        %v5745 = vpop.f32.mrb[0].mxu0
        %v5746 = vadd.f32 0.0, %v5745
        %v5747 = vpop.f32.mrb[0].mxu0
        %v5748 = vpop.f32.mrb[0].mxu0
        %v5749 = vadd.f32 0.0, %v5748
        %v5750 = vpop.f32.mrb[0].mxu0
        %5751 = vmatprep.mubr.bf16.mxu0 0
        %5752 = vmatmul.mubr.bf16.gmra.mrb[0].mxu0 %v4775
        %v5753 = vpop.f32.mrb[0].mxu0
        %v5754 = vadd.f32 0.0, %v5753
        %v5755 = vpop.f32.mrb[0].mxu0
        %v5756 = vpop.f32.mrb[0].mxu0
        %v5757 = vadd.f32 0.0, %v5756
        %v5758 = vpop.f32.mrb[0].mxu0
        %5759 = vmatprep.mubr.bf16.mxu0 0
        %5760 = vmatmul.mubr.bf16.gmra.mrb[0].mxu0 %v4776
        %v5761 = vpop.f32.mrb[0].mxu0
        %v5762 = vadd.f32 0.0, %v5761
        %v5763 = vpop.f32.mrb[0].mxu0
        %v5764 = vpop.f32.mrb[0].mxu0
        %v5765 = vadd.f32 0.0, %v5764
        %v5766 = vpop.f32.mrb[0].mxu0
        %5767 = vmatprep.mubr.bf16.mxu0 0
        %5768 = vmatmul.mubr.bf16.gmra.mrb[0].mxu0 %v4777
        %v5769 = vpop.f32.mrb[0].mxu0
        %v5770 = vadd.f32 0.0, %v5769
        %v5771 = vpop.f32.mrb[0].mxu0
        %v5772 = vpop.f32.mrb[0].mxu0
        %v5773 = vadd.f32 0.0, %v5772
        %v5774 = vpop.f32.mrb[0].mxu0
        %5775 = vdwg.mxu0
        %v5776 = vmul.f32 %v5262, %v437
        %v5777 = vmul.f32 %v5266, %v438
        %v5778 = vmul.f32 %v5272, %v439
        %v5779 = vmul.f32 %v5276, %v440
        %v5780 = vmul.f32 %v5282, %v441
        %v5781 = vmul.f32 %v5286, %v442
        %v5782 = vmul.f32 %v5292, %v443
        %v5783 = vmul.f32 %v5296, %v444
        %v5784 = vmul.f32 %v5302, %v445
        %v5785 = vmul.f32 %v5306, %v446
        %v5786 = vmul.f32 %v5312, %v447
        %v5787 = vmul.f32 %v5316, %v448
        %v5788 = vmul.f32 %v5322, %v449
        %v5789 = vmul.f32 %v5326, %v450
        %v5790 = vmul.f32 %v5332, %v451
        %v5791 = vmul.f32 %v5336, %v452
        %v5792 = vmul.f32 %v5377, %v453
        %v5793 = vmul.f32 %v5381, %v454
        %v5794 = vmul.f32 %v5387, %v455
        %v5795 = vmul.f32 %v5391, %v456
        %v5796 = vmul.f32 %v5397, %v457
        %v5797 = vmul.f32 %v5401, %v458
        %v5798 = vmul.f32 %v5407, %v459
        %v5799 = vmul.f32 %v5411, %v460
        %v5800 = vmul.f32 %v5417, %v461
        %v5801 = vmul.f32 %v5421, %v462
        %v5802 = vmul.f32 %v5427, %v463
        %v5803 = vmul.f32 %v5431, %v464
        %v5804 = vmul.f32 %v5437, %v465
        %v5805 = vmul.f32 %v5441, %v466
        %v5806 = vmul.f32 %v5447, %v467
        %v5807 = vmul.f32 %v5451, %v468
        %v5808 = vadd.f32 %v5776, %v5792
        %v5809 = vadd.f32 %v5777, %v5793
        %v5810 = vadd.f32 %v5778, %v5794
        %v5811 = vadd.f32 %v5779, %v5795
        %v5812 = vadd.f32 %v5780, %v5796
        %v5813 = vadd.f32 %v5781, %v5797
        %v5814 = vadd.f32 %v5782, %v5798
        %v5815 = vadd.f32 %v5783, %v5799
        %v5816 = vadd.f32 %v5784, %v5800
        %v5817 = vadd.f32 %v5785, %v5801
        %v5818 = vadd.f32 %v5786, %v5802
        %v5819 = vadd.f32 %v5787, %v5803
        %v5820 = vadd.f32 %v5788, %v5804
        %v5821 = vadd.f32 %v5789, %v5805
        %v5822 = vadd.f32 %v5790, %v5806
        %v5823 = vadd.f32 %v5791, %v5807
        %v5824 = vmul.f32 %v5264, %v437
        %v5825 = vmul.f32 %v5268, %v438
        %v5826 = vmul.f32 %v5274, %v439
        %v5827 = vmul.f32 %v5278, %v440
        %v5828 = vmul.f32 %v5284, %v441
        %v5829 = vmul.f32 %v5288, %v442
        %v5830 = vmul.f32 %v5294, %v443
        %v5831 = vmul.f32 %v5298, %v444
        %v5832 = vmul.f32 %v5304, %v445
        %v5833 = vmul.f32 %v5308, %v446
        %v5834 = vmul.f32 %v5314, %v447
        %v5835 = vmul.f32 %v5318, %v448
        %v5836 = vmul.f32 %v5324, %v449
        %v5837 = vmul.f32 %v5328, %v450
        %v5838 = vmul.f32 %v5334, %v451
        %v5839 = vmul.f32 %v5338, %v452
        %v5840 = vmul.f32 %v5488, %v453
        %v5841 = vmul.f32 %v5492, %v454
        %v5842 = vmul.f32 %v5498, %v455
        %v5843 = vmul.f32 %v5502, %v456
        %v5844 = vmul.f32 %v5508, %v457
        %v5845 = vmul.f32 %v5512, %v458
        %v5846 = vmul.f32 %v5518, %v459
        %v5847 = vmul.f32 %v5522, %v460
        %v5848 = vmul.f32 %v5528, %v461
        %v5849 = vmul.f32 %v5532, %v462
        %v5850 = vmul.f32 %v5538, %v463
        %v5851 = vmul.f32 %v5542, %v464
        %v5852 = vmul.f32 %v5548, %v465
        %v5853 = vmul.f32 %v5552, %v466
        %v5854 = vmul.f32 %v5558, %v467
        %v5855 = vmul.f32 %v5562, %v468
        %v5856 = vadd.f32 %v5824, %v5840
        %v5857 = vadd.f32 %v5825, %v5841
        %v5858 = vadd.f32 %v5826, %v5842
        %v5859 = vadd.f32 %v5827, %v5843
        %v5860 = vadd.f32 %v5828, %v5844
        %v5861 = vadd.f32 %v5829, %v5845
        %v5862 = vadd.f32 %v5830, %v5846
        %v5863 = vadd.f32 %v5831, %v5847
        %v5864 = vadd.f32 %v5832, %v5848
        %v5865 = vadd.f32 %v5833, %v5849
        %v5866 = vadd.f32 %v5834, %v5850
        %v5867 = vadd.f32 %v5835, %v5851
        %v5868 = vadd.f32 %v5836, %v5852
        %v5869 = vadd.f32 %v5837, %v5853
        %v5870 = vadd.f32 %v5838, %v5854
        %v5871 = vadd.f32 %v5839, %v5855
        %v5872 = vpack.c.bf16 %v5809, %v5808
        %v5873 = vpack.c.bf16 %v5811, %v5810
        %v5874 = vpack.c.bf16 %v5813, %v5812
        %v5875 = vpack.c.bf16 %v5815, %v5814
        %v5876 = vpack.c.bf16 %v5817, %v5816
        %v5877 = vpack.c.bf16 %v5819, %v5818
        %v5878 = vpack.c.bf16 %v5821, %v5820
        %v5879 = vpack.c.bf16 %v5823, %v5822
        %v5880 = vpack.c.bf16 %v5857, %v5856
        %v5881 = vpack.c.bf16 %v5859, %v5858
        %v5882 = vpack.c.bf16 %v5861, %v5860
        %v5883 = vpack.c.bf16 %v5863, %v5862
        %v5884 = vpack.c.bf16 %v5865, %v5864
        %v5885 = vpack.c.bf16 %v5867, %v5866
        %v5886 = vpack.c.bf16 %v5869, %v5868
        %v5887 = vpack.c.bf16 %v5871, %v5870
        %v5888 = vpack.c.bf16 %v5379, %v5375
        %v5889 = vpack.c.bf16 %v5389, %v5385
        %v5890 = vpack.c.bf16 %v5399, %v5395
        %v5891 = vpack.c.bf16 %v5409, %v5405
        %v5892 = vpack.c.bf16 %v5419, %v5415
        %v5893 = vpack.c.bf16 %v5429, %v5425
        %v5894 = vpack.c.bf16 %v5439, %v5435
        %v5895 = vpack.c.bf16 %v5449, %v5445
        %v5897 = vsel %vm1861, %v5872, 0
        %v5900 = vsel %vm1861, %v5873, 0
        %v5903 = vsel %vm1861, %v5874, 0
        %v5906 = vsel %vm1861, %v5875, 0
        %v5909 = vsel %vm1861, %v5876, 0
        %v5912 = vsel %vm1861, %v5877, 0
        %v5915 = vsel %vm1861, %v5878, 0
        %v5918 = vsel %vm1861, %v5879, 0
        %v5921 = vsel %vm1861, %v5880, 0
        %v5924 = vsel %vm1861, %v5881, 0
        %v5927 = vsel %vm1861, %v5882, 0
        %v5930 = vsel %vm1861, %v5883, 0
        %v5933 = vsel %vm1861, %v5884, 0
        %v5936 = vsel %vm1861, %v5885, 0
        %v5939 = vsel %vm1861, %v5886, 0
        %v5942 = vsel %vm1861, %v5887, 0
        %5944 = vmatprep.subr.bf16.mxu0 0
        %5945 = vmatpush1.bf16.xpose.msra.mxu0 %v5921
        %5946 = vmatprep.subr.bf16.mxu0 0
        %5947 = vmatpush1.bf16.xpose.msra.mxu0 %v5924
        %5948 = vmatprep.subr.bf16.mxu0 0
        %5949 = vmatpush1.bf16.xpose.msra.mxu0 %v5927
        %5950 = vmatprep.subr.bf16.mxu0 0
        %5951 = vmatpush1.bf16.xpose.msra.mxu0 %v5930
        %5952 = vmatprep.subr.bf16.mxu0 0
        %5953 = vmatpush1.bf16.xpose.msra.mxu0 %v5933
        %5954 = vmatprep.subr.bf16.mxu0 0
        %5955 = vmatpush1.bf16.xpose.msra.mxu0 %v5936
        %5956 = vmatprep.subr.bf16.mxu0 0
        %5957 = vmatpush1.bf16.xpose.msra.mxu0 %v5939
        %5958 = vmatprep.subr.bf16.mxu0 0
        %5959 = vmatpush1.bf16.xpose.msra.mxu0 %v5942
        %5960 = vmatprep.subr.bf16.mxu0 0
        %5961 = vmatpush1.bf16.xpose.msra.mxu0 0
        %5962 = vmatprep.subr.bf16.mxu0 0
        %5963 = vmatpush1.bf16.xpose.msra.mxu0 0
        %5964 = vmatprep.subr.bf16.mxu0 0
        %5965 = vmatpush1.bf16.xpose.msra.mxu0 0
        %5966 = vmatprep.subr.bf16.mxu0 0
        %5967 = vmatpush1.bf16.xpose.msra.mxu0 0
        %5968 = vmatprep.subr.bf16.mxu0 0
        %5969 = vmatpush1.bf16.xpose.msra.mxu0 0
        %5970 = vmatprep.subr.bf16.mxu0 0
        %5971 = vmatpush1.bf16.xpose.msra.mxu0 0
        %5972 = vmatprep.subr.bf16.mxu0 0
        %5973 = vmatpush1.bf16.xpose.msra.mxu0 0
        %5974 = vmatprep.subr.bf16.mxu0 0
        %5975 = vmatpush1.bf16.xpose.msra.mxu0 0
        %5976 = vmatprep.mubr.bf16.mxu0 0
        %5977 = vmatmul.mubr.bf16.gmra.mrb[0].mxu0 %v5897
        %v5978 = vpop.f32.mrb[0].mxu0
        %v5979 = vadd.f32 %v504, %v5978
        %v5980 = vpop.f32.mrb[0].mxu0
        %v5981 = vpop.f32.mrb[0].mxu0
        %v5982 = vadd.f32 %v505, %v5981
        %v5983 = vpop.f32.mrb[0].mxu0
        %5984 = vmatprep.mubr.bf16.mxu0 0
        %5985 = vmatmul.mubr.bf16.gmra.mrb[0].mxu0 %v5900
        %v5986 = vpop.f32.mrb[0].mxu0
        %v5987 = vadd.f32 %v506, %v5986
        %v5988 = vpop.f32.mrb[0].mxu0
        %v5989 = vpop.f32.mrb[0].mxu0
        %v5990 = vadd.f32 %v507, %v5989
        %v5991 = vpop.f32.mrb[0].mxu0
        %5992 = vmatprep.mubr.bf16.mxu0 0
        %5993 = vmatmul.mubr.bf16.gmra.mrb[0].mxu0 %v5903
        %v5994 = vpop.f32.mrb[0].mxu0
        %v5995 = vadd.f32 %v508, %v5994
        %v5996 = vpop.f32.mrb[0].mxu0
        %v5997 = vpop.f32.mrb[0].mxu0
        %v5998 = vadd.f32 %v509, %v5997
        %v5999 = vpop.f32.mrb[0].mxu0
        %6000 = vmatprep.mubr.bf16.mxu0 0
        %6001 = vmatmul.mubr.bf16.gmra.mrb[0].mxu0 %v5906
        %v6002 = vpop.f32.mrb[0].mxu0
        %v6003 = vadd.f32 %v510, %v6002
        %v6004 = vpop.f32.mrb[0].mxu0
        %v6005 = vpop.f32.mrb[0].mxu0
        %v6006 = vadd.f32 %v511, %v6005
        %v6007 = vpop.f32.mrb[0].mxu0
        %6008 = vmatprep.mubr.bf16.mxu0 0
        %6009 = vmatmul.mubr.bf16.gmra.mrb[0].mxu0 %v5909
        %v6010 = vpop.f32.mrb[0].mxu0
        %v6011 = vadd.f32 %v512, %v6010
        %v6012 = vpop.f32.mrb[0].mxu0
        %v6013 = vpop.f32.mrb[0].mxu0
        %v6014 = vadd.f32 %v513, %v6013
        %v6015 = vpop.f32.mrb[0].mxu0
        %6016 = vmatprep.mubr.bf16.mxu0 0
        %6017 = vmatmul.mubr.bf16.gmra.mrb[0].mxu0 %v5912
        %v6018 = vpop.f32.mrb[0].mxu0
        %v6019 = vadd.f32 %v514, %v6018
        %v6020 = vpop.f32.mrb[0].mxu0
        %v6021 = vpop.f32.mrb[0].mxu0
        %v6022 = vadd.f32 %v515, %v6021
        %v6023 = vpop.f32.mrb[0].mxu0
        %6024 = vmatprep.mubr.bf16.mxu0 0
        %6025 = vmatmul.mubr.bf16.gmra.mrb[0].mxu0 %v5915
        %v6026 = vpop.f32.mrb[0].mxu0
        %v6027 = vadd.f32 %v516, %v6026
        %v6028 = vpop.f32.mrb[0].mxu0
        %v6029 = vpop.f32.mrb[0].mxu0
        %v6030 = vadd.f32 %v517, %v6029
        %v6031 = vpop.f32.mrb[0].mxu0
        %6032 = vmatprep.mubr.bf16.mxu0 0
        %6033 = vmatmul.mubr.bf16.gmra.mrb[0].mxu0 %v5918
        %v6034 = vpop.f32.mrb[0].mxu0
        %v6035 = vadd.f32 %v518, %v6034
        %v6036 = vpop.f32.mrb[0].mxu0
        %v6037 = vpop.f32.mrb[0].mxu0
        %v6038 = vadd.f32 %v519, %v6037
        %v6039 = vpop.f32.mrb[0].mxu0
        %6040 = vdwg.mxu0
        %6041 = vmax.xlane.f32.xlu0 %v5979
        %v6042 = vpop.xlane.xlu0 %6041
        %6043 = vmax.xlane.f32.xlu0 %v5982
        %v6044 = vpop.xlane.xlu0 %6043
        %6045 = vmax.xlane.f32.xlu0 %v5987
        %v6046 = vpop.xlane.xlu0 %6045
        %6047 = vmax.xlane.f32.xlu0 %v5990
        %v6048 = vpop.xlane.xlu0 %6047
        %6049 = vmax.xlane.f32.xlu0 %v5995
        %v6050 = vpop.xlane.xlu0 %6049
        %6051 = vmax.xlane.f32.xlu0 %v5998
        %v6052 = vpop.xlane.xlu0 %6051
        %6053 = vmax.xlane.f32.xlu0 %v6003
        %v6054 = vpop.xlane.xlu0 %6053
        %6055 = vmax.xlane.f32.xlu0 %v6006
        %v6056 = vpop.xlane.xlu0 %6055
        %6057 = vmax.xlane.f32.xlu0 %v6011
        %v6058 = vpop.xlane.xlu0 %6057
        %6059 = vmax.xlane.f32.xlu0 %v6014
        %v6060 = vpop.xlane.xlu0 %6059
        %6061 = vmax.xlane.f32.xlu0 %v6019
        %v6062 = vpop.xlane.xlu0 %6061
        %6063 = vmax.xlane.f32.xlu0 %v6022
        %v6064 = vpop.xlane.xlu0 %6063
        %6065 = vmax.xlane.f32.xlu0 %v6027
        %v6066 = vpop.xlane.xlu0 %6065
        %6067 = vmax.xlane.f32.xlu0 %v6030
        %v6068 = vpop.xlane.xlu0 %6067
        %6069 = vmax.xlane.f32.xlu0 %v6035
        %v6070 = vpop.xlane.xlu0 %6069
        %6071 = vmax.xlane.f32.xlu0 %v6038
        %v6072 = vpop.xlane.xlu0 %6071
        %v6073 = vsub.f32 %v5979, %v6042
        %v6074 = vsub.f32 %v5982, %v6044
        %v6075 = vsub.f32 %v5987, %v6046
        %v6076 = vsub.f32 %v5990, %v6048
        %v6077 = vsub.f32 %v5995, %v6050
        %v6078 = vsub.f32 %v5998, %v6052
        %v6079 = vsub.f32 %v6003, %v6054
        %v6080 = vsub.f32 %v6006, %v6056
        %v6081 = vsub.f32 %v6011, %v6058
        %v6082 = vsub.f32 %v6014, %v6060
        %v6083 = vsub.f32 %v6019, %v6062
        %v6084 = vsub.f32 %v6022, %v6064
        %v6085 = vsub.f32 %v6027, %v6066
        %v6086 = vsub.f32 %v6030, %v6068
        %v6087 = vsub.f32 %v6035, %v6070
        %v6088 = vsub.f32 %v6038, %v6072
        %v6089 = vmul.f32 %v6073, 1.442695
        %v6090 = vpow.pop %v6089
        %v6091 = vmul.f32 %v6074, 1.442695
        %v6092 = vpow.pop %v6091
        %v6093 = vmul.f32 %v6075, 1.442695
        %v6094 = vpow.pop %v6093
        %v6095 = vmul.f32 %v6076, 1.442695
        %v6096 = vpow.pop %v6095
        %v6097 = vmul.f32 %v6077, 1.442695
        %v6098 = vpow.pop %v6097
        %v6099 = vmul.f32 %v6078, 1.442695
        %v6100 = vpow.pop %v6099
        %v6101 = vmul.f32 %v6079, 1.442695
        %v6102 = vpow.pop %v6101
        %v6103 = vmul.f32 %v6080, 1.442695
        %v6104 = vpow.pop %v6103
        %v6105 = vmul.f32 %v6081, 1.442695
        %v6106 = vpow.pop %v6105
        %v6107 = vmul.f32 %v6082, 1.442695
        %v6108 = vpow.pop %v6107
        %v6109 = vmul.f32 %v6083, 1.442695
        %v6110 = vpow.pop %v6109
        %v6111 = vmul.f32 %v6084, 1.442695
        %v6112 = vpow.pop %v6111
        %v6113 = vmul.f32 %v6085, 1.442695
        %v6114 = vpow.pop %v6113
        %v6115 = vmul.f32 %v6086, 1.442695
        %v6116 = vpow.pop %v6115
        %v6117 = vmul.f32 %v6087, 1.442695
        %v6118 = vpow.pop %v6117
        %v6119 = vmul.f32 %v6088, 1.442695
        %v6120 = vpow.pop %v6119
        %6121 = vadd.xlane.f32.xlu0 %v6090
        %v6122 = vpop.xlane.xlu0 %6121
        %6123 = vadd.xlane.f32.xlu0 %v6092
        %v6124 = vpop.xlane.xlu0 %6123
        %6125 = vadd.xlane.f32.xlu0 %v6094
        %v6126 = vpop.xlane.xlu0 %6125
        %6127 = vadd.xlane.f32.xlu0 %v6096
        %v6128 = vpop.xlane.xlu0 %6127
        %6129 = vadd.xlane.f32.xlu0 %v6098
        %v6130 = vpop.xlane.xlu0 %6129
        %6131 = vadd.xlane.f32.xlu0 %v6100
        %v6132 = vpop.xlane.xlu0 %6131
        %6133 = vadd.xlane.f32.xlu0 %v6102
        %v6134 = vpop.xlane.xlu0 %6133
        %6135 = vadd.xlane.f32.xlu0 %v6104
        %v6136 = vpop.xlane.xlu0 %6135
        %6137 = vadd.xlane.f32.xlu0 %v6106
        %v6138 = vpop.xlane.xlu0 %6137
        %6139 = vadd.xlane.f32.xlu0 %v6108
        %v6140 = vpop.xlane.xlu0 %6139
        %6141 = vadd.xlane.f32.xlu0 %v6110
        %v6142 = vpop.xlane.xlu0 %6141
        %6143 = vadd.xlane.f32.xlu0 %v6112
        %v6144 = vpop.xlane.xlu0 %6143
        %6145 = vadd.xlane.f32.xlu0 %v6114
        %v6146 = vpop.xlane.xlu0 %6145
        %6147 = vadd.xlane.f32.xlu0 %v6116
        %v6148 = vpop.xlane.xlu0 %6147
        %6149 = vadd.xlane.f32.xlu0 %v6118
        %v6150 = vpop.xlane.xlu0 %6149
        %6151 = vadd.xlane.f32.xlu0 %v6120
        %v6152 = vpop.xlane.xlu0 %6151
        %v6153 = vpack.c.bf16 %v6092, %v6090
        %v6154 = vpack.c.bf16 %v6096, %v6094
        %v6155 = vpack.c.bf16 %v6100, %v6098
        %v6156 = vpack.c.bf16 %v6104, %v6102
        %v6157 = vpack.c.bf16 %v6108, %v6106
        %v6158 = vpack.c.bf16 %v6112, %v6110
        %v6159 = vpack.c.bf16 %v6116, %v6114
        %v6160 = vpack.c.bf16 %v6120, %v6118
        %6161 = vmatprep.subr.bf16.mxu0 0
        %6162 = vmatpush1.bf16.msra.mxu0 %v5888
        %6163 = vmatprep.subr.bf16.mxu0 0
        %6164 = vmatpush1.bf16.msra.mxu0 %v5889
        %6165 = vmatprep.subr.bf16.mxu0 0
        %6166 = vmatpush1.bf16.msra.mxu0 %v5890
        %6167 = vmatprep.subr.bf16.mxu0 0
        %6168 = vmatpush1.bf16.msra.mxu0 %v5891
        %6169 = vmatprep.subr.bf16.mxu0 0
        %6170 = vmatpush1.bf16.msra.mxu0 %v5892
        %6171 = vmatprep.subr.bf16.mxu0 0
        %6172 = vmatpush1.bf16.msra.mxu0 %v5893
        %6173 = vmatprep.subr.bf16.mxu0 0
        %6174 = vmatpush1.bf16.msra.mxu0 %v5894
        %6175 = vmatprep.subr.bf16.mxu0 0
        %6176 = vmatpush1.bf16.msra.mxu0 %v5895
        %6177 = vmatprep.subr.bf16.mxu0 0
        %6178 = vmatpush1.bf16.msra.mxu0 0
        %6179 = vmatprep.subr.bf16.mxu0 0
        %6180 = vmatpush1.bf16.msra.mxu0 0
        %6181 = vmatprep.subr.bf16.mxu0 0
        %6182 = vmatpush1.bf16.msra.mxu0 0
        %6183 = vmatprep.subr.bf16.mxu0 0
        %6184 = vmatpush1.bf16.msra.mxu0 0
        %6185 = vmatprep.subr.bf16.mxu0 0
        %6186 = vmatpush1.bf16.msra.mxu0 0
        %6187 = vmatprep.subr.bf16.mxu0 0
        %6188 = vmatpush1.bf16.msra.mxu0 0
        %6189 = vmatprep.subr.bf16.mxu0 0
        %6190 = vmatpush1.bf16.msra.mxu0 0
        %6191 = vmatprep.subr.bf16.mxu0 0
        %6192 = vmatpush1.bf16.msra.mxu0 0
        %6193 = vmatprep.mubr.bf16.mxu0 0
        %6194 = vmatmul.mubr.bf16.gmra.mrb[0].mxu0 %v6153
        %v6195 = vpop.f32.mrb[0].mxu0
        %v6196 = vadd.f32 0.0, %v6195
        %v6197 = vpop.f32.mrb[0].mxu0
        %v6198 = vpop.f32.mrb[0].mxu0
        %v6199 = vadd.f32 0.0, %v6198
        %v6200 = vpop.f32.mrb[0].mxu0
        %6201 = vmatprep.mubr.bf16.mxu0 0
        %6202 = vmatmul.mubr.bf16.gmra.mrb[0].mxu0 %v6154
        %v6203 = vpop.f32.mrb[0].mxu0
        %v6204 = vadd.f32 0.0, %v6203
        %v6205 = vpop.f32.mrb[0].mxu0
        %v6206 = vpop.f32.mrb[0].mxu0
        %v6207 = vadd.f32 0.0, %v6206
        %v6208 = vpop.f32.mrb[0].mxu0
        %6209 = vmatprep.mubr.bf16.mxu0 0
        %6210 = vmatmul.mubr.bf16.gmra.mrb[0].mxu0 %v6155
        %v6211 = vpop.f32.mrb[0].mxu0
        %v6212 = vadd.f32 0.0, %v6211
        %v6213 = vpop.f32.mrb[0].mxu0
        %v6214 = vpop.f32.mrb[0].mxu0
        %v6215 = vadd.f32 0.0, %v6214
        %v6216 = vpop.f32.mrb[0].mxu0
        %6217 = vmatprep.mubr.bf16.mxu0 0
        %6218 = vmatmul.mubr.bf16.gmra.mrb[0].mxu0 %v6156
        %v6219 = vpop.f32.mrb[0].mxu0
        %v6220 = vadd.f32 0.0, %v6219
        %v6221 = vpop.f32.mrb[0].mxu0
        %v6222 = vpop.f32.mrb[0].mxu0
        %v6223 = vadd.f32 0.0, %v6222
        %v6224 = vpop.f32.mrb[0].mxu0
        %6225 = vmatprep.mubr.bf16.mxu0 0
        %6226 = vmatmul.mubr.bf16.gmra.mrb[0].mxu0 %v6157
        %v6227 = vpop.f32.mrb[0].mxu0
        %v6228 = vadd.f32 0.0, %v6227
        %v6229 = vpop.f32.mrb[0].mxu0
        %v6230 = vpop.f32.mrb[0].mxu0
        %v6231 = vadd.f32 0.0, %v6230
        %v6232 = vpop.f32.mrb[0].mxu0
        %6233 = vmatprep.mubr.bf16.mxu0 0
        %6234 = vmatmul.mubr.bf16.gmra.mrb[0].mxu0 %v6158
        %v6235 = vpop.f32.mrb[0].mxu0
        %v6236 = vadd.f32 0.0, %v6235
        %v6237 = vpop.f32.mrb[0].mxu0
        %v6238 = vpop.f32.mrb[0].mxu0
        %v6239 = vadd.f32 0.0, %v6238
        %v6240 = vpop.f32.mrb[0].mxu0
        %6241 = vmatprep.mubr.bf16.mxu0 0
        %6242 = vmatmul.mubr.bf16.gmra.mrb[0].mxu0 %v6159
        %v6243 = vpop.f32.mrb[0].mxu0
        %v6244 = vadd.f32 0.0, %v6243
        %v6245 = vpop.f32.mrb[0].mxu0
        %v6246 = vpop.f32.mrb[0].mxu0
        %v6247 = vadd.f32 0.0, %v6246
        %v6248 = vpop.f32.mrb[0].mxu0
        %6249 = vmatprep.mubr.bf16.mxu0 0
        %6250 = vmatmul.mubr.bf16.gmra.mrb[0].mxu0 %v6160
        %v6251 = vpop.f32.mrb[0].mxu0
        %v6252 = vadd.f32 0.0, %v6251
        %v6253 = vpop.f32.mrb[0].mxu0
        %v6254 = vpop.f32.mrb[0].mxu0
        %v6255 = vadd.f32 0.0, %v6254
        %v6256 = vpop.f32.mrb[0].mxu0
        %6257 = vdwg.mxu0
        %v6258 = vrcp.pop %v6122
        %v6259 = vrcp.pop %v6124
        %v6260 = vrcp.pop %v6126
        %v6261 = vrcp.pop %v6128
        %v6262 = vrcp.pop %v6130
        %v6263 = vrcp.pop %v6132
        %v6264 = vrcp.pop %v6134
        %v6265 = vrcp.pop %v6136
        %v6266 = vrcp.pop %v6138
        %v6267 = vrcp.pop %v6140
        %v6268 = vrcp.pop %v6142
        %v6269 = vrcp.pop %v6144
        %v6270 = vrcp.pop %v6146
        %v6271 = vrcp.pop %v6148
        %v6272 = vrcp.pop %v6150
        %v6273 = vrcp.pop %v6152
        %v6274 = vmul.f32 %v6196, %v6258
        %v6275 = vmul.f32 %v6199, %v6259
        %v6276 = vmul.f32 %v6204, %v6260
        %v6277 = vmul.f32 %v6207, %v6261
        %v6278 = vmul.f32 %v6212, %v6262
        %v6279 = vmul.f32 %v6215, %v6263
        %v6280 = vmul.f32 %v6220, %v6264
        %v6281 = vmul.f32 %v6223, %v6265
        %v6282 = vmul.f32 %v6228, %v6266
        %v6283 = vmul.f32 %v6231, %v6267
        %v6284 = vmul.f32 %v6236, %v6268
        %v6285 = vmul.f32 %v6239, %v6269
        %v6286 = vmul.f32 %v6244, %v6270
        %v6287 = vmul.f32 %v6247, %v6271
        %v6288 = vmul.f32 %v6252, %v6272
        %v6289 = vmul.f32 %v6255, %v6273
        %6298 = vrot.lane.b32.xlu0 %v5872, 96
        %v6299 = vpop.permute.xlu0 %6298
        %6300 = vrot.lane.b32.xlu0 %v5873, 96
        %v6301 = vpop.permute.xlu0 %6300
        %6302 = vrot.lane.b32.xlu0 %v5874, 96
        %v6303 = vpop.permute.xlu0 %6302
        %6304 = vrot.lane.b32.xlu0 %v5875, 96
        %v6305 = vpop.permute.xlu0 %6304
        %6306 = vrot.lane.b32.xlu0 %v5876, 96
        %v6307 = vpop.permute.xlu0 %6306
        %6308 = vrot.lane.b32.xlu0 %v5877, 96
        %v6309 = vpop.permute.xlu0 %6308
        %6310 = vrot.lane.b32.xlu0 %v5878, 96
        %v6311 = vpop.permute.xlu0 %6310
        %6312 = vrot.lane.b32.xlu0 %v5879, 96
        %v6313 = vpop.permute.xlu0 %6312
        %6322 = vrot.lane.b32.xlu0 %v5880, 96
        %v6323 = vpop.permute.xlu0 %6322
        %6324 = vrot.lane.b32.xlu0 %v5881, 96
        %v6325 = vpop.permute.xlu0 %6324
        %6326 = vrot.lane.b32.xlu0 %v5882, 96
        %v6327 = vpop.permute.xlu0 %6326
        %6328 = vrot.lane.b32.xlu0 %v5883, 96
        %v6329 = vpop.permute.xlu0 %6328
        %6330 = vrot.lane.b32.xlu0 %v5884, 96
        %v6331 = vpop.permute.xlu0 %6330
        %6332 = vrot.lane.b32.xlu0 %v5885, 96
        %v6333 = vpop.permute.xlu0 %6332
        %6334 = vrot.lane.b32.xlu0 %v5886, 96
        %v6335 = vpop.permute.xlu0 %6334
        %6336 = vrot.lane.b32.xlu0 %v5887, 96
        %v6337 = vpop.permute.xlu0 %6336
        %v6339 = vsel %vm1861, %v6299, 0
        %v6342 = vsel %vm1861, %v6301, 0
        %v6345 = vsel %vm1861, %v6303, 0
        %v6348 = vsel %vm1861, %v6305, 0
        %v6351 = vsel %vm1861, %v6307, 0
        %v6354 = vsel %vm1861, %v6309, 0
        %v6357 = vsel %vm1861, %v6311, 0
        %v6360 = vsel %vm1861, %v6313, 0
        %v6363 = vsel %vm1861, %v6323, 0
        %v6366 = vsel %vm1861, %v6325, 0
        %v6369 = vsel %vm1861, %v6327, 0
        %v6372 = vsel %vm1861, %v6329, 0
        %v6375 = vsel %vm1861, %v6331, 0
        %v6378 = vsel %vm1861, %v6333, 0
        %v6381 = vsel %vm1861, %v6335, 0
        %v6384 = vsel %vm1861, %v6337, 0
        %6386 = vmatprep.subr.bf16.mxu0 0
        %6387 = vmatpush1.bf16.xpose.msra.mxu0 %v6363
        %6388 = vmatprep.subr.bf16.mxu0 0
        %6389 = vmatpush1.bf16.xpose.msra.mxu0 %v6366
        %6390 = vmatprep.subr.bf16.mxu0 0
        %6391 = vmatpush1.bf16.xpose.msra.mxu0 %v6369
        %6392 = vmatprep.subr.bf16.mxu0 0
        %6393 = vmatpush1.bf16.xpose.msra.mxu0 %v6372
        %6394 = vmatprep.subr.bf16.mxu0 0
        %6395 = vmatpush1.bf16.xpose.msra.mxu0 %v6375
        %6396 = vmatprep.subr.bf16.mxu0 0
        %6397 = vmatpush1.bf16.xpose.msra.mxu0 %v6378
        %6398 = vmatprep.subr.bf16.mxu0 0
        %6399 = vmatpush1.bf16.xpose.msra.mxu0 %v6381
        %6400 = vmatprep.subr.bf16.mxu0 0
        %6401 = vmatpush1.bf16.xpose.msra.mxu0 %v6384
        %6402 = vmatprep.subr.bf16.mxu0 0
        %6403 = vmatpush1.bf16.xpose.msra.mxu0 0
        %6404 = vmatprep.subr.bf16.mxu0 0
        %6405 = vmatpush1.bf16.xpose.msra.mxu0 0
        %6406 = vmatprep.subr.bf16.mxu0 0
        %6407 = vmatpush1.bf16.xpose.msra.mxu0 0
        %6408 = vmatprep.subr.bf16.mxu0 0
        %6409 = vmatpush1.bf16.xpose.msra.mxu0 0
        %6410 = vmatprep.subr.bf16.mxu0 0
        %6411 = vmatpush1.bf16.xpose.msra.mxu0 0
        %6412 = vmatprep.subr.bf16.mxu0 0
        %6413 = vmatpush1.bf16.xpose.msra.mxu0 0
        %6414 = vmatprep.subr.bf16.mxu0 0
        %6415 = vmatpush1.bf16.xpose.msra.mxu0 0
        %6416 = vmatprep.subr.bf16.mxu0 0
        %6417 = vmatpush1.bf16.xpose.msra.mxu0 0
        %6418 = vmatprep.mubr.bf16.mxu0 0
        %6419 = vmatmul.mubr.bf16.gmra.mrb[0].mxu0 %v6339
        %v6420 = vpop.f32.mrb[0].mxu0
        %v6421 = vadd.f32 %v504, %v6420
        %v6422 = vpop.f32.mrb[0].mxu0
        %v6423 = vpop.f32.mrb[0].mxu0
        %v6424 = vadd.f32 %v505, %v6423
        %v6425 = vpop.f32.mrb[0].mxu0
        %6426 = vmatprep.mubr.bf16.mxu0 0
        %6427 = vmatmul.mubr.bf16.gmra.mrb[0].mxu0 %v6342
        %v6428 = vpop.f32.mrb[0].mxu0
        %v6429 = vadd.f32 %v506, %v6428
        %v6430 = vpop.f32.mrb[0].mxu0
        %v6431 = vpop.f32.mrb[0].mxu0
        %v6432 = vadd.f32 %v507, %v6431
        %v6433 = vpop.f32.mrb[0].mxu0
        %6434 = vmatprep.mubr.bf16.mxu0 0
        %6435 = vmatmul.mubr.bf16.gmra.mrb[0].mxu0 %v6345
        %v6436 = vpop.f32.mrb[0].mxu0
        %v6437 = vadd.f32 %v508, %v6436
        %v6438 = vpop.f32.mrb[0].mxu0
        %v6439 = vpop.f32.mrb[0].mxu0
        %v6440 = vadd.f32 %v509, %v6439
        %v6441 = vpop.f32.mrb[0].mxu0
        %6442 = vmatprep.mubr.bf16.mxu0 0
        %6443 = vmatmul.mubr.bf16.gmra.mrb[0].mxu0 %v6348
        %v6444 = vpop.f32.mrb[0].mxu0
        %v6445 = vadd.f32 %v510, %v6444
        %v6446 = vpop.f32.mrb[0].mxu0
        %v6447 = vpop.f32.mrb[0].mxu0
        %v6448 = vadd.f32 %v511, %v6447
        %v6449 = vpop.f32.mrb[0].mxu0
        %6450 = vmatprep.mubr.bf16.mxu0 0
        %6451 = vmatmul.mubr.bf16.gmra.mrb[0].mxu0 %v6351
        %v6452 = vpop.f32.mrb[0].mxu0
        %v6453 = vadd.f32 %v512, %v6452
        %v6454 = vpop.f32.mrb[0].mxu0
        %v6455 = vpop.f32.mrb[0].mxu0
        %v6456 = vadd.f32 %v513, %v6455
        %v6457 = vpop.f32.mrb[0].mxu0
        %6458 = vmatprep.mubr.bf16.mxu0 0
        %6459 = vmatmul.mubr.bf16.gmra.mrb[0].mxu0 %v6354
        %v6460 = vpop.f32.mrb[0].mxu0
        %v6461 = vadd.f32 %v514, %v6460
        %v6462 = vpop.f32.mrb[0].mxu0
        %v6463 = vpop.f32.mrb[0].mxu0
        %v6464 = vadd.f32 %v515, %v6463
        %v6465 = vpop.f32.mrb[0].mxu0
        %6466 = vmatprep.mubr.bf16.mxu0 0
        %6467 = vmatmul.mubr.bf16.gmra.mrb[0].mxu0 %v6357
        %v6468 = vpop.f32.mrb[0].mxu0
        %v6469 = vadd.f32 %v516, %v6468
        %v6470 = vpop.f32.mrb[0].mxu0
        %v6471 = vpop.f32.mrb[0].mxu0
        %v6472 = vadd.f32 %v517, %v6471
        %v6473 = vpop.f32.mrb[0].mxu0
        %6474 = vmatprep.mubr.bf16.mxu0 0
        %6475 = vmatmul.mubr.bf16.gmra.mrb[0].mxu0 %v6360
        %v6476 = vpop.f32.mrb[0].mxu0
        %v6477 = vadd.f32 %v518, %v6476
        %v6478 = vpop.f32.mrb[0].mxu0
        %v6479 = vpop.f32.mrb[0].mxu0
        %v6480 = vadd.f32 %v519, %v6479
        %v6481 = vpop.f32.mrb[0].mxu0
        %6482 = vdwg.mxu0
        %6483 = vmax.xlane.f32.xlu0 %v6421
        %v6484 = vpop.xlane.xlu0 %6483
        %6485 = vmax.xlane.f32.xlu0 %v6424
        %v6486 = vpop.xlane.xlu0 %6485
        %6487 = vmax.xlane.f32.xlu0 %v6429
        %v6488 = vpop.xlane.xlu0 %6487
        %6489 = vmax.xlane.f32.xlu0 %v6432
        %v6490 = vpop.xlane.xlu0 %6489
        %6491 = vmax.xlane.f32.xlu0 %v6437
        %v6492 = vpop.xlane.xlu0 %6491
        %6493 = vmax.xlane.f32.xlu0 %v6440
        %v6494 = vpop.xlane.xlu0 %6493
        %6495 = vmax.xlane.f32.xlu0 %v6445
        %v6496 = vpop.xlane.xlu0 %6495
        %6497 = vmax.xlane.f32.xlu0 %v6448
        %v6498 = vpop.xlane.xlu0 %6497
        %6499 = vmax.xlane.f32.xlu0 %v6453
        %v6500 = vpop.xlane.xlu0 %6499
        %6501 = vmax.xlane.f32.xlu0 %v6456
        %v6502 = vpop.xlane.xlu0 %6501
        %6503 = vmax.xlane.f32.xlu0 %v6461
        %v6504 = vpop.xlane.xlu0 %6503
        %6505 = vmax.xlane.f32.xlu0 %v6464
        %v6506 = vpop.xlane.xlu0 %6505
        %6507 = vmax.xlane.f32.xlu0 %v6469
        %v6508 = vpop.xlane.xlu0 %6507
        %6509 = vmax.xlane.f32.xlu0 %v6472
        %v6510 = vpop.xlane.xlu0 %6509
        %6511 = vmax.xlane.f32.xlu0 %v6477
        %v6512 = vpop.xlane.xlu0 %6511
        %6513 = vmax.xlane.f32.xlu0 %v6480
        %v6514 = vpop.xlane.xlu0 %6513
        %v6515 = vsub.f32 %v6421, %v6484
        %v6516 = vsub.f32 %v6424, %v6486
        %v6517 = vsub.f32 %v6429, %v6488
        %v6518 = vsub.f32 %v6432, %v6490
        %v6519 = vsub.f32 %v6437, %v6492
        %v6520 = vsub.f32 %v6440, %v6494
        %v6521 = vsub.f32 %v6445, %v6496
        %v6522 = vsub.f32 %v6448, %v6498
        %v6523 = vsub.f32 %v6453, %v6500
        %v6524 = vsub.f32 %v6456, %v6502
        %v6525 = vsub.f32 %v6461, %v6504
        %v6526 = vsub.f32 %v6464, %v6506
        %v6527 = vsub.f32 %v6469, %v6508
        %v6528 = vsub.f32 %v6472, %v6510
        %v6529 = vsub.f32 %v6477, %v6512
        %v6530 = vsub.f32 %v6480, %v6514
        %v6531 = vmul.f32 %v6515, 1.442695
        %v6532 = vpow.pop %v6531
        %v6533 = vmul.f32 %v6516, 1.442695
        %v6534 = vpow.pop %v6533
        %v6535 = vmul.f32 %v6517, 1.442695
        %v6536 = vpow.pop %v6535
        %v6537 = vmul.f32 %v6518, 1.442695
        %v6538 = vpow.pop %v6537
        %v6539 = vmul.f32 %v6519, 1.442695
        %v6540 = vpow.pop %v6539
        %v6541 = vmul.f32 %v6520, 1.442695
        %v6542 = vpow.pop %v6541
        %v6543 = vmul.f32 %v6521, 1.442695
        %v6544 = vpow.pop %v6543
        %v6545 = vmul.f32 %v6522, 1.442695
        %v6546 = vpow.pop %v6545
        %v6547 = vmul.f32 %v6523, 1.442695
        %v6548 = vpow.pop %v6547
        %v6549 = vmul.f32 %v6524, 1.442695
        %v6550 = vpow.pop %v6549
        %v6551 = vmul.f32 %v6525, 1.442695
        %v6552 = vpow.pop %v6551
        %v6553 = vmul.f32 %v6526, 1.442695
        %v6554 = vpow.pop %v6553
        %v6555 = vmul.f32 %v6527, 1.442695
        %v6556 = vpow.pop %v6555
        %v6557 = vmul.f32 %v6528, 1.442695
        %v6558 = vpow.pop %v6557
        %v6559 = vmul.f32 %v6529, 1.442695
        %v6560 = vpow.pop %v6559
        %v6561 = vmul.f32 %v6530, 1.442695
        %v6562 = vpow.pop %v6561
        %6563 = vadd.xlane.f32.xlu0 %v6532
        %v6564 = vpop.xlane.xlu0 %6563
        %6565 = vadd.xlane.f32.xlu0 %v6534
        %v6566 = vpop.xlane.xlu0 %6565
        %6567 = vadd.xlane.f32.xlu0 %v6536
        %v6568 = vpop.xlane.xlu0 %6567
        %6569 = vadd.xlane.f32.xlu0 %v6538
        %v6570 = vpop.xlane.xlu0 %6569
        %6571 = vadd.xlane.f32.xlu0 %v6540
        %v6572 = vpop.xlane.xlu0 %6571
        %6573 = vadd.xlane.f32.xlu0 %v6542
        %v6574 = vpop.xlane.xlu0 %6573
        %6575 = vadd.xlane.f32.xlu0 %v6544
        %v6576 = vpop.xlane.xlu0 %6575
        %6577 = vadd.xlane.f32.xlu0 %v6546
        %v6578 = vpop.xlane.xlu0 %6577
        %6579 = vadd.xlane.f32.xlu0 %v6548
        %v6580 = vpop.xlane.xlu0 %6579
        %6581 = vadd.xlane.f32.xlu0 %v6550
        %v6582 = vpop.xlane.xlu0 %6581
        %6583 = vadd.xlane.f32.xlu0 %v6552
        %v6584 = vpop.xlane.xlu0 %6583
        %6585 = vadd.xlane.f32.xlu0 %v6554
        %v6586 = vpop.xlane.xlu0 %6585
        %6587 = vadd.xlane.f32.xlu0 %v6556
        %v6588 = vpop.xlane.xlu0 %6587
        %6589 = vadd.xlane.f32.xlu0 %v6558
        %v6590 = vpop.xlane.xlu0 %6589
        %6591 = vadd.xlane.f32.xlu0 %v6560
        %v6592 = vpop.xlane.xlu0 %6591
        %6593 = vadd.xlane.f32.xlu0 %v6562
        %v6594 = vpop.xlane.xlu0 %6593
        %v6595 = vpack.c.bf16 %v6534, %v6532
        %v6596 = vpack.c.bf16 %v6538, %v6536
        %v6597 = vpack.c.bf16 %v6542, %v6540
        %v6598 = vpack.c.bf16 %v6546, %v6544
        %v6599 = vpack.c.bf16 %v6550, %v6548
        %v6600 = vpack.c.bf16 %v6554, %v6552
        %v6601 = vpack.c.bf16 %v6558, %v6556
        %v6602 = vpack.c.bf16 %v6562, %v6560
        %6611 = vrot.lane.b32.xlu0 %v5888, 96
        %v6612 = vpop.permute.xlu0 %6611
        %6613 = vrot.lane.b32.xlu0 %v5889, 96
        %v6614 = vpop.permute.xlu0 %6613
        %6615 = vrot.lane.b32.xlu0 %v5890, 96
        %v6616 = vpop.permute.xlu0 %6615
        %6617 = vrot.lane.b32.xlu0 %v5891, 96
        %v6618 = vpop.permute.xlu0 %6617
        %6619 = vrot.lane.b32.xlu0 %v5892, 96
        %v6620 = vpop.permute.xlu0 %6619
        %6621 = vrot.lane.b32.xlu0 %v5893, 96
        %v6622 = vpop.permute.xlu0 %6621
        %6623 = vrot.lane.b32.xlu0 %v5894, 96
        %v6624 = vpop.permute.xlu0 %6623
        %6625 = vrot.lane.b32.xlu0 %v5895, 96
        %v6626 = vpop.permute.xlu0 %6625
        %6635 = vmatprep.subr.bf16.mxu0 0
        %6636 = vmatpush1.bf16.msra.mxu0 %v6612
        %6637 = vmatprep.subr.bf16.mxu0 0
        %6638 = vmatpush1.bf16.msra.mxu0 %v6614
        %6639 = vmatprep.subr.bf16.mxu0 0
        %6640 = vmatpush1.bf16.msra.mxu0 %v6616
        %6641 = vmatprep.subr.bf16.mxu0 0
        %6642 = vmatpush1.bf16.msra.mxu0 %v6618
        %6643 = vmatprep.subr.bf16.mxu0 0
        %6644 = vmatpush1.bf16.msra.mxu0 %v6620
        %6645 = vmatprep.subr.bf16.mxu0 0
        %6646 = vmatpush1.bf16.msra.mxu0 %v6622
        %6647 = vmatprep.subr.bf16.mxu0 0
        %6648 = vmatpush1.bf16.msra.mxu0 %v6624
        %6649 = vmatprep.subr.bf16.mxu0 0
        %6650 = vmatpush1.bf16.msra.mxu0 %v6626
        %6651 = vmatprep.subr.bf16.mxu0 0
        %6652 = vmatpush1.bf16.msra.mxu0 0
        %6653 = vmatprep.subr.bf16.mxu0 0
        %6654 = vmatpush1.bf16.msra.mxu0 0
        %6655 = vmatprep.subr.bf16.mxu0 0
        %6656 = vmatpush1.bf16.msra.mxu0 0
        %6657 = vmatprep.subr.bf16.mxu0 0
        %6658 = vmatpush1.bf16.msra.mxu0 0
        %6659 = vmatprep.subr.bf16.mxu0 0
        %6660 = vmatpush1.bf16.msra.mxu0 0
        %6661 = vmatprep.subr.bf16.mxu0 0
        %6662 = vmatpush1.bf16.msra.mxu0 0
        %6663 = vmatprep.subr.bf16.mxu0 0
        %6664 = vmatpush1.bf16.msra.mxu0 0
        %6665 = vmatprep.subr.bf16.mxu0 0
        %6666 = vmatpush1.bf16.msra.mxu0 0
        %6667 = vmatprep.mubr.bf16.mxu0 0
        %6668 = vmatmul.mubr.bf16.gmra.mrb[0].mxu0 %v6595
        %v6669 = vpop.f32.mrb[0].mxu0
        %v6670 = vadd.f32 0.0, %v6669
        %v6671 = vpop.f32.mrb[0].mxu0
        %v6672 = vpop.f32.mrb[0].mxu0
        %v6673 = vadd.f32 0.0, %v6672
        %v6674 = vpop.f32.mrb[0].mxu0
        %6675 = vmatprep.mubr.bf16.mxu0 0
        %6676 = vmatmul.mubr.bf16.gmra.mrb[0].mxu0 %v6596
        %v6677 = vpop.f32.mrb[0].mxu0
        %v6678 = vadd.f32 0.0, %v6677
        %v6679 = vpop.f32.mrb[0].mxu0
        %v6680 = vpop.f32.mrb[0].mxu0
        %v6681 = vadd.f32 0.0, %v6680
        %v6682 = vpop.f32.mrb[0].mxu0
        %6683 = vmatprep.mubr.bf16.mxu0 0
        %6684 = vmatmul.mubr.bf16.gmra.mrb[0].mxu0 %v6597
        %v6685 = vpop.f32.mrb[0].mxu0
        %v6686 = vadd.f32 0.0, %v6685
        %v6687 = vpop.f32.mrb[0].mxu0
        %v6688 = vpop.f32.mrb[0].mxu0
        %v6689 = vadd.f32 0.0, %v6688
        %v6690 = vpop.f32.mrb[0].mxu0
        %6691 = vmatprep.mubr.bf16.mxu0 0
        %6692 = vmatmul.mubr.bf16.gmra.mrb[0].mxu0 %v6598
        %v6693 = vpop.f32.mrb[0].mxu0
        %v6694 = vadd.f32 0.0, %v6693
        %v6695 = vpop.f32.mrb[0].mxu0
        %v6696 = vpop.f32.mrb[0].mxu0
        %v6697 = vadd.f32 0.0, %v6696
        %v6698 = vpop.f32.mrb[0].mxu0
        %6699 = vmatprep.mubr.bf16.mxu0 0
        %6700 = vmatmul.mubr.bf16.gmra.mrb[0].mxu0 %v6599
        %v6701 = vpop.f32.mrb[0].mxu0
        %v6702 = vadd.f32 0.0, %v6701
        %v6703 = vpop.f32.mrb[0].mxu0
        %v6704 = vpop.f32.mrb[0].mxu0
        %v6705 = vadd.f32 0.0, %v6704
        %v6706 = vpop.f32.mrb[0].mxu0
        %6707 = vmatprep.mubr.bf16.mxu0 0
        %6708 = vmatmul.mubr.bf16.gmra.mrb[0].mxu0 %v6600
        %v6709 = vpop.f32.mrb[0].mxu0
        %v6710 = vadd.f32 0.0, %v6709
        %v6711 = vpop.f32.mrb[0].mxu0
        %v6712 = vpop.f32.mrb[0].mxu0
        %v6713 = vadd.f32 0.0, %v6712
        %v6714 = vpop.f32.mrb[0].mxu0
        %6715 = vmatprep.mubr.bf16.mxu0 0
        %6716 = vmatmul.mubr.bf16.gmra.mrb[0].mxu0 %v6601
        %v6717 = vpop.f32.mrb[0].mxu0
        %v6718 = vadd.f32 0.0, %v6717
        %v6719 = vpop.f32.mrb[0].mxu0
        %v6720 = vpop.f32.mrb[0].mxu0
        %v6721 = vadd.f32 0.0, %v6720
        %v6722 = vpop.f32.mrb[0].mxu0
        %6723 = vmatprep.mubr.bf16.mxu0 0
        %6724 = vmatmul.mubr.bf16.gmra.mrb[0].mxu0 %v6602
        %v6725 = vpop.f32.mrb[0].mxu0
        %v6726 = vadd.f32 0.0, %v6725
        %v6727 = vpop.f32.mrb[0].mxu0
        %v6728 = vpop.f32.mrb[0].mxu0
        %v6729 = vadd.f32 0.0, %v6728
        %v6730 = vpop.f32.mrb[0].mxu0
        %6731 = vdwg.mxu0
        %v6732 = vrcp.pop %v6564
        %v6733 = vrcp.pop %v6566
        %v6734 = vrcp.pop %v6568
        %v6735 = vrcp.pop %v6570
        %v6736 = vrcp.pop %v6572
        %v6737 = vrcp.pop %v6574
        %v6738 = vrcp.pop %v6576
        %v6739 = vrcp.pop %v6578
        %v6740 = vrcp.pop %v6580
        %v6741 = vrcp.pop %v6582
        %v6742 = vrcp.pop %v6584
        %v6743 = vrcp.pop %v6586
        %v6744 = vrcp.pop %v6588
        %v6745 = vrcp.pop %v6590
        %v6746 = vrcp.pop %v6592
        %v6747 = vrcp.pop %v6594
        %v6748 = vmul.f32 %v6670, %v6732
        %v6749 = vmul.f32 %v6673, %v6733
        %v6750 = vmul.f32 %v6678, %v6734
        %v6751 = vmul.f32 %v6681, %v6735
        %v6752 = vmul.f32 %v6686, %v6736
        %v6753 = vmul.f32 %v6689, %v6737
        %v6754 = vmul.f32 %v6694, %v6738
        %v6755 = vmul.f32 %v6697, %v6739
        %v6756 = vmul.f32 %v6702, %v6740
        %v6757 = vmul.f32 %v6705, %v6741
        %v6758 = vmul.f32 %v6710, %v6742
        %v6759 = vmul.f32 %v6713, %v6743
        %v6760 = vmul.f32 %v6718, %v6744
        %v6761 = vmul.f32 %v6721, %v6745
        %v6762 = vmul.f32 %v6726, %v6746
        %v6763 = vmul.f32 %v6729, %v6747
        %6764 = vrot.lane.b32.xlu0 %v5872, 64
        %v6765 = vpop.permute.xlu0 %6764
        %6766 = vrot.lane.b32.xlu0 %v5873, 64
        %v6767 = vpop.permute.xlu0 %6766
        %6768 = vrot.lane.b32.xlu0 %v5874, 64
        %v6769 = vpop.permute.xlu0 %6768
        %6770 = vrot.lane.b32.xlu0 %v5875, 64
        %v6771 = vpop.permute.xlu0 %6770
        %6772 = vrot.lane.b32.xlu0 %v5876, 64
        %v6773 = vpop.permute.xlu0 %6772
        %6774 = vrot.lane.b32.xlu0 %v5877, 64
        %v6775 = vpop.permute.xlu0 %6774
        %6776 = vrot.lane.b32.xlu0 %v5878, 64
        %v6777 = vpop.permute.xlu0 %6776
        %6778 = vrot.lane.b32.xlu0 %v5879, 64
        %v6779 = vpop.permute.xlu0 %6778
        %6780 = vrot.lane.b32.xlu0 %v5880, 64
        %v6781 = vpop.permute.xlu0 %6780
        %6782 = vrot.lane.b32.xlu0 %v5881, 64
        %v6783 = vpop.permute.xlu0 %6782
        %6784 = vrot.lane.b32.xlu0 %v5882, 64
        %v6785 = vpop.permute.xlu0 %6784
        %6786 = vrot.lane.b32.xlu0 %v5883, 64
        %v6787 = vpop.permute.xlu0 %6786
        %6788 = vrot.lane.b32.xlu0 %v5884, 64
        %v6789 = vpop.permute.xlu0 %6788
        %6790 = vrot.lane.b32.xlu0 %v5885, 64
        %v6791 = vpop.permute.xlu0 %6790
        %6792 = vrot.lane.b32.xlu0 %v5886, 64
        %v6793 = vpop.permute.xlu0 %6792
        %6794 = vrot.lane.b32.xlu0 %v5887, 64
        %v6795 = vpop.permute.xlu0 %6794
        %v6797 = vsel %vm1861, %v6765, 0
        %v6800 = vsel %vm1861, %v6767, 0
        %v6803 = vsel %vm1861, %v6769, 0
        %v6806 = vsel %vm1861, %v6771, 0
        %v6809 = vsel %vm1861, %v6773, 0
        %v6812 = vsel %vm1861, %v6775, 0
        %v6815 = vsel %vm1861, %v6777, 0
        %v6818 = vsel %vm1861, %v6779, 0
        %v6821 = vsel %vm1861, %v6781, 0
        %v6824 = vsel %vm1861, %v6783, 0
        %v6827 = vsel %vm1861, %v6785, 0
        %v6830 = vsel %vm1861, %v6787, 0
        %v6833 = vsel %vm1861, %v6789, 0
        %v6836 = vsel %vm1861, %v6791, 0
        %v6839 = vsel %vm1861, %v6793, 0
        %v6842 = vsel %vm1861, %v6795, 0
        %6844 = vmatprep.subr.bf16.mxu0 0
        %6845 = vmatpush1.bf16.xpose.msra.mxu0 %v6821
        %6846 = vmatprep.subr.bf16.mxu0 0
        %6847 = vmatpush1.bf16.xpose.msra.mxu0 %v6824
        %6848 = vmatprep.subr.bf16.mxu0 0
        %6849 = vmatpush1.bf16.xpose.msra.mxu0 %v6827
        %6850 = vmatprep.subr.bf16.mxu0 0
        %6851 = vmatpush1.bf16.xpose.msra.mxu0 %v6830
        %6852 = vmatprep.subr.bf16.mxu0 0
        %6853 = vmatpush1.bf16.xpose.msra.mxu0 %v6833
        %6854 = vmatprep.subr.bf16.mxu0 0
        %6855 = vmatpush1.bf16.xpose.msra.mxu0 %v6836
        %6856 = vmatprep.subr.bf16.mxu0 0
        %6857 = vmatpush1.bf16.xpose.msra.mxu0 %v6839
        %6858 = vmatprep.subr.bf16.mxu0 0
        %6859 = vmatpush1.bf16.xpose.msra.mxu0 %v6842
        %6860 = vmatprep.subr.bf16.mxu0 0
        %6861 = vmatpush1.bf16.xpose.msra.mxu0 0
        %6862 = vmatprep.subr.bf16.mxu0 0
        %6863 = vmatpush1.bf16.xpose.msra.mxu0 0
        %6864 = vmatprep.subr.bf16.mxu0 0
        %6865 = vmatpush1.bf16.xpose.msra.mxu0 0
        %6866 = vmatprep.subr.bf16.mxu0 0
        %6867 = vmatpush1.bf16.xpose.msra.mxu0 0
        %6868 = vmatprep.subr.bf16.mxu0 0
        %6869 = vmatpush1.bf16.xpose.msra.mxu0 0
        %6870 = vmatprep.subr.bf16.mxu0 0
        %6871 = vmatpush1.bf16.xpose.msra.mxu0 0
        %6872 = vmatprep.subr.bf16.mxu0 0
        %6873 = vmatpush1.bf16.xpose.msra.mxu0 0
        %6874 = vmatprep.subr.bf16.mxu0 0
        %6875 = vmatpush1.bf16.xpose.msra.mxu0 0
        %6876 = vmatprep.mubr.bf16.mxu0 0
        %6877 = vmatmul.mubr.bf16.gmra.mrb[0].mxu0 %v6797
        %v6878 = vpop.f32.mrb[0].mxu0
        %v6879 = vadd.f32 %v504, %v6878
        %v6880 = vpop.f32.mrb[0].mxu0
        %v6881 = vpop.f32.mrb[0].mxu0
        %v6882 = vadd.f32 %v505, %v6881
        %v6883 = vpop.f32.mrb[0].mxu0
        %6884 = vmatprep.mubr.bf16.mxu0 0
        %6885 = vmatmul.mubr.bf16.gmra.mrb[0].mxu0 %v6800
        %v6886 = vpop.f32.mrb[0].mxu0
        %v6887 = vadd.f32 %v506, %v6886
        %v6888 = vpop.f32.mrb[0].mxu0
        %v6889 = vpop.f32.mrb[0].mxu0
        %v6890 = vadd.f32 %v507, %v6889
        %v6891 = vpop.f32.mrb[0].mxu0
        %6892 = vmatprep.mubr.bf16.mxu0 0
        %6893 = vmatmul.mubr.bf16.gmra.mrb[0].mxu0 %v6803
        %v6894 = vpop.f32.mrb[0].mxu0
        %v6895 = vadd.f32 %v508, %v6894
        %v6896 = vpop.f32.mrb[0].mxu0
        %v6897 = vpop.f32.mrb[0].mxu0
        %v6898 = vadd.f32 %v509, %v6897
        %v6899 = vpop.f32.mrb[0].mxu0
        %6900 = vmatprep.mubr.bf16.mxu0 0
        %6901 = vmatmul.mubr.bf16.gmra.mrb[0].mxu0 %v6806
        %v6902 = vpop.f32.mrb[0].mxu0
        %v6903 = vadd.f32 %v510, %v6902
        %v6904 = vpop.f32.mrb[0].mxu0
        %v6905 = vpop.f32.mrb[0].mxu0
        %v6906 = vadd.f32 %v511, %v6905
        %v6907 = vpop.f32.mrb[0].mxu0
        %6908 = vmatprep.mubr.bf16.mxu0 0
        %6909 = vmatmul.mubr.bf16.gmra.mrb[0].mxu0 %v6809
        %v6910 = vpop.f32.mrb[0].mxu0
        %v6911 = vadd.f32 %v512, %v6910
        %v6912 = vpop.f32.mrb[0].mxu0
        %v6913 = vpop.f32.mrb[0].mxu0
        %v6914 = vadd.f32 %v513, %v6913
        %v6915 = vpop.f32.mrb[0].mxu0
        %6916 = vmatprep.mubr.bf16.mxu0 0
        %6917 = vmatmul.mubr.bf16.gmra.mrb[0].mxu0 %v6812
        %v6918 = vpop.f32.mrb[0].mxu0
        %v6919 = vadd.f32 %v514, %v6918
        %v6920 = vpop.f32.mrb[0].mxu0
        %v6921 = vpop.f32.mrb[0].mxu0
        %v6922 = vadd.f32 %v515, %v6921
        %v6923 = vpop.f32.mrb[0].mxu0
        %6924 = vmatprep.mubr.bf16.mxu0 0
        %6925 = vmatmul.mubr.bf16.gmra.mrb[0].mxu0 %v6815
        %v6926 = vpop.f32.mrb[0].mxu0
        %v6927 = vadd.f32 %v516, %v6926
        %v6928 = vpop.f32.mrb[0].mxu0
        %v6929 = vpop.f32.mrb[0].mxu0
        %v6930 = vadd.f32 %v517, %v6929
        %v6931 = vpop.f32.mrb[0].mxu0
        %6932 = vmatprep.mubr.bf16.mxu0 0
        %6933 = vmatmul.mubr.bf16.gmra.mrb[0].mxu0 %v6818
        %v6934 = vpop.f32.mrb[0].mxu0
        %v6935 = vadd.f32 %v518, %v6934
        %v6936 = vpop.f32.mrb[0].mxu0
        %v6937 = vpop.f32.mrb[0].mxu0
        %v6938 = vadd.f32 %v519, %v6937
        %v6939 = vpop.f32.mrb[0].mxu0
        %6940 = vdwg.mxu0
        %6941 = vmax.xlane.f32.xlu0 %v6879
        %v6942 = vpop.xlane.xlu0 %6941
        %6943 = vmax.xlane.f32.xlu0 %v6882
        %v6944 = vpop.xlane.xlu0 %6943
        %6945 = vmax.xlane.f32.xlu0 %v6887
        %v6946 = vpop.xlane.xlu0 %6945
        %6947 = vmax.xlane.f32.xlu0 %v6890
        %v6948 = vpop.xlane.xlu0 %6947
        %6949 = vmax.xlane.f32.xlu0 %v6895
        %v6950 = vpop.xlane.xlu0 %6949
        %6951 = vmax.xlane.f32.xlu0 %v6898
        %v6952 = vpop.xlane.xlu0 %6951
        %6953 = vmax.xlane.f32.xlu0 %v6903
        %v6954 = vpop.xlane.xlu0 %6953
        %6955 = vmax.xlane.f32.xlu0 %v6906
        %v6956 = vpop.xlane.xlu0 %6955
        %6957 = vmax.xlane.f32.xlu0 %v6911
        %v6958 = vpop.xlane.xlu0 %6957
        %6959 = vmax.xlane.f32.xlu0 %v6914
        %v6960 = vpop.xlane.xlu0 %6959
        %6961 = vmax.xlane.f32.xlu0 %v6919
        %v6962 = vpop.xlane.xlu0 %6961
        %6963 = vmax.xlane.f32.xlu0 %v6922
        %v6964 = vpop.xlane.xlu0 %6963
        %6965 = vmax.xlane.f32.xlu0 %v6927
        %v6966 = vpop.xlane.xlu0 %6965
        %6967 = vmax.xlane.f32.xlu0 %v6930
        %v6968 = vpop.xlane.xlu0 %6967
        %6969 = vmax.xlane.f32.xlu0 %v6935
        %v6970 = vpop.xlane.xlu0 %6969
        %6971 = vmax.xlane.f32.xlu0 %v6938
        %v6972 = vpop.xlane.xlu0 %6971
        %v6973 = vsub.f32 %v6879, %v6942
        %v6974 = vsub.f32 %v6882, %v6944
        %v6975 = vsub.f32 %v6887, %v6946
        %v6976 = vsub.f32 %v6890, %v6948
        %v6977 = vsub.f32 %v6895, %v6950
        %v6978 = vsub.f32 %v6898, %v6952
        %v6979 = vsub.f32 %v6903, %v6954
        %v6980 = vsub.f32 %v6906, %v6956
        %v6981 = vsub.f32 %v6911, %v6958
        %v6982 = vsub.f32 %v6914, %v6960
        %v6983 = vsub.f32 %v6919, %v6962
        %v6984 = vsub.f32 %v6922, %v6964
        %v6985 = vsub.f32 %v6927, %v6966
        %v6986 = vsub.f32 %v6930, %v6968
        %v6987 = vsub.f32 %v6935, %v6970
        %v6988 = vsub.f32 %v6938, %v6972
        %v6989 = vmul.f32 %v6973, 1.442695
        %v6990 = vpow.pop %v6989
        %v6991 = vmul.f32 %v6974, 1.442695
        %v6992 = vpow.pop %v6991
        %v6993 = vmul.f32 %v6975, 1.442695
        %v6994 = vpow.pop %v6993
        %v6995 = vmul.f32 %v6976, 1.442695
        %v6996 = vpow.pop %v6995
        %v6997 = vmul.f32 %v6977, 1.442695
        %v6998 = vpow.pop %v6997
        %v6999 = vmul.f32 %v6978, 1.442695
        %v7000 = vpow.pop %v6999
        %v7001 = vmul.f32 %v6979, 1.442695
        %v7002 = vpow.pop %v7001
        %v7003 = vmul.f32 %v6980, 1.442695
        %v7004 = vpow.pop %v7003
        %v7005 = vmul.f32 %v6981, 1.442695
        %v7006 = vpow.pop %v7005
        %v7007 = vmul.f32 %v6982, 1.442695
        %v7008 = vpow.pop %v7007
        %v7009 = vmul.f32 %v6983, 1.442695
        %v7010 = vpow.pop %v7009
        %v7011 = vmul.f32 %v6984, 1.442695
        %v7012 = vpow.pop %v7011
        %v7013 = vmul.f32 %v6985, 1.442695
        %v7014 = vpow.pop %v7013
        %v7015 = vmul.f32 %v6986, 1.442695
        %v7016 = vpow.pop %v7015
        %v7017 = vmul.f32 %v6987, 1.442695
        %v7018 = vpow.pop %v7017
        %v7019 = vmul.f32 %v6988, 1.442695
        %v7020 = vpow.pop %v7019
        %7021 = vadd.xlane.f32.xlu0 %v6990
        %v7022 = vpop.xlane.xlu0 %7021
        %7023 = vadd.xlane.f32.xlu0 %v6992
        %v7024 = vpop.xlane.xlu0 %7023
        %7025 = vadd.xlane.f32.xlu0 %v6994
        %v7026 = vpop.xlane.xlu0 %7025
        %7027 = vadd.xlane.f32.xlu0 %v6996
        %v7028 = vpop.xlane.xlu0 %7027
        %7029 = vadd.xlane.f32.xlu0 %v6998
        %v7030 = vpop.xlane.xlu0 %7029
        %7031 = vadd.xlane.f32.xlu0 %v7000
        %v7032 = vpop.xlane.xlu0 %7031
        %7033 = vadd.xlane.f32.xlu0 %v7002
        %v7034 = vpop.xlane.xlu0 %7033
        %7035 = vadd.xlane.f32.xlu0 %v7004
        %v7036 = vpop.xlane.xlu0 %7035
        %7037 = vadd.xlane.f32.xlu0 %v7006
        %v7038 = vpop.xlane.xlu0 %7037
        %7039 = vadd.xlane.f32.xlu0 %v7008
        %v7040 = vpop.xlane.xlu0 %7039
        %7041 = vadd.xlane.f32.xlu0 %v7010
        %v7042 = vpop.xlane.xlu0 %7041
        %7043 = vadd.xlane.f32.xlu0 %v7012
        %v7044 = vpop.xlane.xlu0 %7043
        %7045 = vadd.xlane.f32.xlu0 %v7014
        %v7046 = vpop.xlane.xlu0 %7045
        %7047 = vadd.xlane.f32.xlu0 %v7016
        %v7048 = vpop.xlane.xlu0 %7047
        %7049 = vadd.xlane.f32.xlu0 %v7018
        %v7050 = vpop.xlane.xlu0 %7049
        %7051 = vadd.xlane.f32.xlu0 %v7020
        %v7052 = vpop.xlane.xlu0 %7051
        %v7053 = vpack.c.bf16 %v6992, %v6990
        %v7054 = vpack.c.bf16 %v6996, %v6994
        %v7055 = vpack.c.bf16 %v7000, %v6998
        %v7056 = vpack.c.bf16 %v7004, %v7002
        %v7057 = vpack.c.bf16 %v7008, %v7006
        %v7058 = vpack.c.bf16 %v7012, %v7010
        %v7059 = vpack.c.bf16 %v7016, %v7014
        %v7060 = vpack.c.bf16 %v7020, %v7018
        %7061 = vrot.lane.b32.xlu0 %v5888, 64
        %v7062 = vpop.permute.xlu0 %7061
        %7063 = vrot.lane.b32.xlu0 %v5889, 64
        %v7064 = vpop.permute.xlu0 %7063
        %7065 = vrot.lane.b32.xlu0 %v5890, 64
        %v7066 = vpop.permute.xlu0 %7065
        %7067 = vrot.lane.b32.xlu0 %v5891, 64
        %v7068 = vpop.permute.xlu0 %7067
        %7069 = vrot.lane.b32.xlu0 %v5892, 64
        %v7070 = vpop.permute.xlu0 %7069
        %7071 = vrot.lane.b32.xlu0 %v5893, 64
        %v7072 = vpop.permute.xlu0 %7071
        %7073 = vrot.lane.b32.xlu0 %v5894, 64
        %v7074 = vpop.permute.xlu0 %7073
        %7075 = vrot.lane.b32.xlu0 %v5895, 64
        %v7076 = vpop.permute.xlu0 %7075
        %7085 = vmatprep.subr.bf16.mxu0 0
        %7086 = vmatpush1.bf16.msra.mxu0 %v7062
        %7087 = vmatprep.subr.bf16.mxu0 0
        %7088 = vmatpush1.bf16.msra.mxu0 %v7064
        %7089 = vmatprep.subr.bf16.mxu0 0
        %7090 = vmatpush1.bf16.msra.mxu0 %v7066
        %7091 = vmatprep.subr.bf16.mxu0 0
        %7092 = vmatpush1.bf16.msra.mxu0 %v7068
        %7093 = vmatprep.subr.bf16.mxu0 0
        %7094 = vmatpush1.bf16.msra.mxu0 %v7070
        %7095 = vmatprep.subr.bf16.mxu0 0
        %7096 = vmatpush1.bf16.msra.mxu0 %v7072
        %7097 = vmatprep.subr.bf16.mxu0 0
        %7098 = vmatpush1.bf16.msra.mxu0 %v7074
        %7099 = vmatprep.subr.bf16.mxu0 0
        %7100 = vmatpush1.bf16.msra.mxu0 %v7076
        %7101 = vmatprep.subr.bf16.mxu0 0
        %7102 = vmatpush1.bf16.msra.mxu0 0
        %7103 = vmatprep.subr.bf16.mxu0 0
        %7104 = vmatpush1.bf16.msra.mxu0 0
        %7105 = vmatprep.subr.bf16.mxu0 0
        %7106 = vmatpush1.bf16.msra.mxu0 0
        %7107 = vmatprep.subr.bf16.mxu0 0
        %7108 = vmatpush1.bf16.msra.mxu0 0
        %7109 = vmatprep.subr.bf16.mxu0 0
        %7110 = vmatpush1.bf16.msra.mxu0 0
        %7111 = vmatprep.subr.bf16.mxu0 0
        %7112 = vmatpush1.bf16.msra.mxu0 0
        %7113 = vmatprep.subr.bf16.mxu0 0
        %7114 = vmatpush1.bf16.msra.mxu0 0
        %7115 = vmatprep.subr.bf16.mxu0 0
        %7116 = vmatpush1.bf16.msra.mxu0 0
        %7117 = vmatprep.mubr.bf16.mxu0 0
        %7118 = vmatmul.mubr.bf16.gmra.mrb[0].mxu0 %v7053
        %v7119 = vpop.f32.mrb[0].mxu0
        %v7120 = vadd.f32 0.0, %v7119
        %v7121 = vpop.f32.mrb[0].mxu0
        %v7122 = vpop.f32.mrb[0].mxu0
        %v7123 = vadd.f32 0.0, %v7122
        %v7124 = vpop.f32.mrb[0].mxu0
        %7125 = vmatprep.mubr.bf16.mxu0 0
        %7126 = vmatmul.mubr.bf16.gmra.mrb[0].mxu0 %v7054
        %v7127 = vpop.f32.mrb[0].mxu0
        %v7128 = vadd.f32 0.0, %v7127
        %v7129 = vpop.f32.mrb[0].mxu0
        %v7130 = vpop.f32.mrb[0].mxu0
        %v7131 = vadd.f32 0.0, %v7130
        %v7132 = vpop.f32.mrb[0].mxu0
        %7133 = vmatprep.mubr.bf16.mxu0 0
        %7134 = vmatmul.mubr.bf16.gmra.mrb[0].mxu0 %v7055
        %v7135 = vpop.f32.mrb[0].mxu0
        %v7136 = vadd.f32 0.0, %v7135
        %v7137 = vpop.f32.mrb[0].mxu0
        %v7138 = vpop.f32.mrb[0].mxu0
        %v7139 = vadd.f32 0.0, %v7138
        %v7140 = vpop.f32.mrb[0].mxu0
        %7141 = vmatprep.mubr.bf16.mxu0 0
        %7142 = vmatmul.mubr.bf16.gmra.mrb[0].mxu0 %v7056
        %v7143 = vpop.f32.mrb[0].mxu0
        %v7144 = vadd.f32 0.0, %v7143
        %v7145 = vpop.f32.mrb[0].mxu0
        %v7146 = vpop.f32.mrb[0].mxu0
        %v7147 = vadd.f32 0.0, %v7146
        %v7148 = vpop.f32.mrb[0].mxu0
        %7149 = vmatprep.mubr.bf16.mxu0 0
        %7150 = vmatmul.mubr.bf16.gmra.mrb[0].mxu0 %v7057
        %v7151 = vpop.f32.mrb[0].mxu0
        %v7152 = vadd.f32 0.0, %v7151
        %v7153 = vpop.f32.mrb[0].mxu0
        %v7154 = vpop.f32.mrb[0].mxu0
        %v7155 = vadd.f32 0.0, %v7154
        %v7156 = vpop.f32.mrb[0].mxu0
        %7157 = vmatprep.mubr.bf16.mxu0 0
        %7158 = vmatmul.mubr.bf16.gmra.mrb[0].mxu0 %v7058
        %v7159 = vpop.f32.mrb[0].mxu0
        %v7160 = vadd.f32 0.0, %v7159
        %v7161 = vpop.f32.mrb[0].mxu0
        %v7162 = vpop.f32.mrb[0].mxu0
        %v7163 = vadd.f32 0.0, %v7162
        %v7164 = vpop.f32.mrb[0].mxu0
        %7165 = vmatprep.mubr.bf16.mxu0 0
        %7166 = vmatmul.mubr.bf16.gmra.mrb[0].mxu0 %v7059
        %v7167 = vpop.f32.mrb[0].mxu0
        %v7168 = vadd.f32 0.0, %v7167
        %v7169 = vpop.f32.mrb[0].mxu0
        %v7170 = vpop.f32.mrb[0].mxu0
        %v7171 = vadd.f32 0.0, %v7170
        %v7172 = vpop.f32.mrb[0].mxu0
        %7173 = vmatprep.mubr.bf16.mxu0 0
        %7174 = vmatmul.mubr.bf16.gmra.mrb[0].mxu0 %v7060
        %v7175 = vpop.f32.mrb[0].mxu0
        %v7176 = vadd.f32 0.0, %v7175
        %v7177 = vpop.f32.mrb[0].mxu0
        %v7178 = vpop.f32.mrb[0].mxu0
        %v7179 = vadd.f32 0.0, %v7178
        %v7180 = vpop.f32.mrb[0].mxu0
        %7181 = vdwg.mxu0
        %v7182 = vrcp.pop %v7022
        %v7183 = vrcp.pop %v7024
        %v7184 = vrcp.pop %v7026
        %v7185 = vrcp.pop %v7028
        %v7186 = vrcp.pop %v7030
        %v7187 = vrcp.pop %v7032
        %v7188 = vrcp.pop %v7034
        %v7189 = vrcp.pop %v7036
        %v7190 = vrcp.pop %v7038
        %v7191 = vrcp.pop %v7040
        %v7192 = vrcp.pop %v7042
        %v7193 = vrcp.pop %v7044
        %v7194 = vrcp.pop %v7046
        %v7195 = vrcp.pop %v7048
        %v7196 = vrcp.pop %v7050
        %v7197 = vrcp.pop %v7052
        %v7198 = vmul.f32 %v7120, %v7182
        %v7199 = vmul.f32 %v7123, %v7183
        %v7200 = vmul.f32 %v7128, %v7184
        %v7201 = vmul.f32 %v7131, %v7185
        %v7202 = vmul.f32 %v7136, %v7186
        %v7203 = vmul.f32 %v7139, %v7187
        %v7204 = vmul.f32 %v7144, %v7188
        %v7205 = vmul.f32 %v7147, %v7189
        %v7206 = vmul.f32 %v7152, %v7190
        %v7207 = vmul.f32 %v7155, %v7191
        %v7208 = vmul.f32 %v7160, %v7192
        %v7209 = vmul.f32 %v7163, %v7193
        %v7210 = vmul.f32 %v7168, %v7194
        %v7211 = vmul.f32 %v7171, %v7195
        %v7212 = vmul.f32 %v7176, %v7196
        %v7213 = vmul.f32 %v7179, %v7197
        %7214 = vrot.lane.b32.xlu0 %v5872, 32
        %v7215 = vpop.permute.xlu0 %7214
        %7216 = vrot.lane.b32.xlu0 %v5873, 32
        %v7217 = vpop.permute.xlu0 %7216
        %7218 = vrot.lane.b32.xlu0 %v5874, 32
        %v7219 = vpop.permute.xlu0 %7218
        %7220 = vrot.lane.b32.xlu0 %v5875, 32
        %v7221 = vpop.permute.xlu0 %7220
        %7222 = vrot.lane.b32.xlu0 %v5876, 32
        %v7223 = vpop.permute.xlu0 %7222
        %7224 = vrot.lane.b32.xlu0 %v5877, 32
        %v7225 = vpop.permute.xlu0 %7224
        %7226 = vrot.lane.b32.xlu0 %v5878, 32
        %v7227 = vpop.permute.xlu0 %7226
        %7228 = vrot.lane.b32.xlu0 %v5879, 32
        %v7229 = vpop.permute.xlu0 %7228
        %7230 = vrot.lane.b32.xlu0 %v5880, 32
        %v7231 = vpop.permute.xlu0 %7230
        %7232 = vrot.lane.b32.xlu0 %v5881, 32
        %v7233 = vpop.permute.xlu0 %7232
        %7234 = vrot.lane.b32.xlu0 %v5882, 32
        %v7235 = vpop.permute.xlu0 %7234
        %7236 = vrot.lane.b32.xlu0 %v5883, 32
        %v7237 = vpop.permute.xlu0 %7236
        %7238 = vrot.lane.b32.xlu0 %v5884, 32
        %v7239 = vpop.permute.xlu0 %7238
        %7240 = vrot.lane.b32.xlu0 %v5885, 32
        %v7241 = vpop.permute.xlu0 %7240
        %7242 = vrot.lane.b32.xlu0 %v5886, 32
        %v7243 = vpop.permute.xlu0 %7242
        %7244 = vrot.lane.b32.xlu0 %v5887, 32
        %v7245 = vpop.permute.xlu0 %7244
        %v7247 = vsel %vm1861, %v7215, 0
        %v7250 = vsel %vm1861, %v7217, 0
        %v7253 = vsel %vm1861, %v7219, 0
        %v7256 = vsel %vm1861, %v7221, 0
        %v7259 = vsel %vm1861, %v7223, 0
        %v7262 = vsel %vm1861, %v7225, 0
        %v7265 = vsel %vm1861, %v7227, 0
        %v7268 = vsel %vm1861, %v7229, 0
        %v7271 = vsel %vm1861, %v7231, 0
        %v7274 = vsel %vm1861, %v7233, 0
        %v7277 = vsel %vm1861, %v7235, 0
        %v7280 = vsel %vm1861, %v7237, 0
        %v7283 = vsel %vm1861, %v7239, 0
        %v7286 = vsel %vm1861, %v7241, 0
        %v7289 = vsel %vm1861, %v7243, 0
        %v7292 = vsel %vm1861, %v7245, 0
        %7294 = vmatprep.subr.bf16.mxu0 0
        %7295 = vmatpush1.bf16.xpose.msra.mxu0 %v7271
        %7296 = vmatprep.subr.bf16.mxu0 0
        %7297 = vmatpush1.bf16.xpose.msra.mxu0 %v7274
        %7298 = vmatprep.subr.bf16.mxu0 0
        %7299 = vmatpush1.bf16.xpose.msra.mxu0 %v7277
        %7300 = vmatprep.subr.bf16.mxu0 0
        %7301 = vmatpush1.bf16.xpose.msra.mxu0 %v7280
        %7302 = vmatprep.subr.bf16.mxu0 0
        %7303 = vmatpush1.bf16.xpose.msra.mxu0 %v7283
        %7304 = vmatprep.subr.bf16.mxu0 0
        %7305 = vmatpush1.bf16.xpose.msra.mxu0 %v7286
        %7306 = vmatprep.subr.bf16.mxu0 0
        %7307 = vmatpush1.bf16.xpose.msra.mxu0 %v7289
        %7308 = vmatprep.subr.bf16.mxu0 0
        %7309 = vmatpush1.bf16.xpose.msra.mxu0 %v7292
        %7310 = vmatprep.subr.bf16.mxu0 0
        %7311 = vmatpush1.bf16.xpose.msra.mxu0 0
        %7312 = vmatprep.subr.bf16.mxu0 0
        %7313 = vmatpush1.bf16.xpose.msra.mxu0 0
        %7314 = vmatprep.subr.bf16.mxu0 0
        %7315 = vmatpush1.bf16.xpose.msra.mxu0 0
        %7316 = vmatprep.subr.bf16.mxu0 0
        %7317 = vmatpush1.bf16.xpose.msra.mxu0 0
        %7318 = vmatprep.subr.bf16.mxu0 0
        %7319 = vmatpush1.bf16.xpose.msra.mxu0 0
        %7320 = vmatprep.subr.bf16.mxu0 0
        %7321 = vmatpush1.bf16.xpose.msra.mxu0 0
        %7322 = vmatprep.subr.bf16.mxu0 0
        %7323 = vmatpush1.bf16.xpose.msra.mxu0 0
        %7324 = vmatprep.subr.bf16.mxu0 0
        %7325 = vmatpush1.bf16.xpose.msra.mxu0 0
        %7326 = vmatprep.mubr.bf16.mxu0 0
        %7327 = vmatmul.mubr.bf16.gmra.mrb[0].mxu0 %v7247
        %v7328 = vpop.f32.mrb[0].mxu0
        %v7329 = vadd.f32 %v504, %v7328
        %v7330 = vpop.f32.mrb[0].mxu0
        %v7331 = vpop.f32.mrb[0].mxu0
        %v7332 = vadd.f32 %v505, %v7331
        %v7333 = vpop.f32.mrb[0].mxu0
        %7334 = vmatprep.mubr.bf16.mxu0 0
        %7335 = vmatmul.mubr.bf16.gmra.mrb[0].mxu0 %v7250
        %v7336 = vpop.f32.mrb[0].mxu0
        %v7337 = vadd.f32 %v506, %v7336
        %v7338 = vpop.f32.mrb[0].mxu0
        %v7339 = vpop.f32.mrb[0].mxu0
        %v7340 = vadd.f32 %v507, %v7339
        %v7341 = vpop.f32.mrb[0].mxu0
        %7342 = vmatprep.mubr.bf16.mxu0 0
        %7343 = vmatmul.mubr.bf16.gmra.mrb[0].mxu0 %v7253
        %v7344 = vpop.f32.mrb[0].mxu0
        %v7345 = vadd.f32 %v508, %v7344
        %v7346 = vpop.f32.mrb[0].mxu0
        %v7347 = vpop.f32.mrb[0].mxu0
        %v7348 = vadd.f32 %v509, %v7347
        %v7349 = vpop.f32.mrb[0].mxu0
        %7350 = vmatprep.mubr.bf16.mxu0 0
        %7351 = vmatmul.mubr.bf16.gmra.mrb[0].mxu0 %v7256
        %v7352 = vpop.f32.mrb[0].mxu0
        %v7353 = vadd.f32 %v510, %v7352
        %v7354 = vpop.f32.mrb[0].mxu0
        %v7355 = vpop.f32.mrb[0].mxu0
        %v7356 = vadd.f32 %v511, %v7355
        %v7357 = vpop.f32.mrb[0].mxu0
        %7358 = vmatprep.mubr.bf16.mxu0 0
        %7359 = vmatmul.mubr.bf16.gmra.mrb[0].mxu0 %v7259
        %v7360 = vpop.f32.mrb[0].mxu0
        %v7361 = vadd.f32 %v512, %v7360
        %v7362 = vpop.f32.mrb[0].mxu0
        %v7363 = vpop.f32.mrb[0].mxu0
        %v7364 = vadd.f32 %v513, %v7363
        %v7365 = vpop.f32.mrb[0].mxu0
        %7366 = vmatprep.mubr.bf16.mxu0 0
        %7367 = vmatmul.mubr.bf16.gmra.mrb[0].mxu0 %v7262
        %v7368 = vpop.f32.mrb[0].mxu0
        %v7369 = vadd.f32 %v514, %v7368
        %v7370 = vpop.f32.mrb[0].mxu0
        %v7371 = vpop.f32.mrb[0].mxu0
        %v7372 = vadd.f32 %v515, %v7371
        %v7373 = vpop.f32.mrb[0].mxu0
        %7374 = vmatprep.mubr.bf16.mxu0 0
        %7375 = vmatmul.mubr.bf16.gmra.mrb[0].mxu0 %v7265
        %v7376 = vpop.f32.mrb[0].mxu0
        %v7377 = vadd.f32 %v516, %v7376
        %v7378 = vpop.f32.mrb[0].mxu0
        %v7379 = vpop.f32.mrb[0].mxu0
        %v7380 = vadd.f32 %v517, %v7379
        %v7381 = vpop.f32.mrb[0].mxu0
        %7382 = vmatprep.mubr.bf16.mxu0 0
        %7383 = vmatmul.mubr.bf16.gmra.mrb[0].mxu0 %v7268
        %v7384 = vpop.f32.mrb[0].mxu0
        %v7385 = vadd.f32 %v518, %v7384
        %v7386 = vpop.f32.mrb[0].mxu0
        %v7387 = vpop.f32.mrb[0].mxu0
        %v7388 = vadd.f32 %v519, %v7387
        %v7389 = vpop.f32.mrb[0].mxu0
        %7390 = vdwg.mxu0
        %7391 = vmax.xlane.f32.xlu0 %v7329
        %v7392 = vpop.xlane.xlu0 %7391
        %7393 = vmax.xlane.f32.xlu0 %v7332
        %v7394 = vpop.xlane.xlu0 %7393
        %7395 = vmax.xlane.f32.xlu0 %v7337
        %v7396 = vpop.xlane.xlu0 %7395
        %7397 = vmax.xlane.f32.xlu0 %v7340
        %v7398 = vpop.xlane.xlu0 %7397
        %7399 = vmax.xlane.f32.xlu0 %v7345
        %v7400 = vpop.xlane.xlu0 %7399
        %7401 = vmax.xlane.f32.xlu0 %v7348
        %v7402 = vpop.xlane.xlu0 %7401
        %7403 = vmax.xlane.f32.xlu0 %v7353
        %v7404 = vpop.xlane.xlu0 %7403
        %7405 = vmax.xlane.f32.xlu0 %v7356
        %v7406 = vpop.xlane.xlu0 %7405
        %7407 = vmax.xlane.f32.xlu0 %v7361
        %v7408 = vpop.xlane.xlu0 %7407
        %7409 = vmax.xlane.f32.xlu0 %v7364
        %v7410 = vpop.xlane.xlu0 %7409
        %7411 = vmax.xlane.f32.xlu0 %v7369
        %v7412 = vpop.xlane.xlu0 %7411
        %7413 = vmax.xlane.f32.xlu0 %v7372
        %v7414 = vpop.xlane.xlu0 %7413
        %7415 = vmax.xlane.f32.xlu0 %v7377
        %v7416 = vpop.xlane.xlu0 %7415
        %7417 = vmax.xlane.f32.xlu0 %v7380
        %v7418 = vpop.xlane.xlu0 %7417
        %7419 = vmax.xlane.f32.xlu0 %v7385
        %v7420 = vpop.xlane.xlu0 %7419
        %7421 = vmax.xlane.f32.xlu0 %v7388
        %v7422 = vpop.xlane.xlu0 %7421
        %v7423 = vsub.f32 %v7329, %v7392
        %v7424 = vsub.f32 %v7332, %v7394
        %v7425 = vsub.f32 %v7337, %v7396
        %v7426 = vsub.f32 %v7340, %v7398
        %v7427 = vsub.f32 %v7345, %v7400
        %v7428 = vsub.f32 %v7348, %v7402
        %v7429 = vsub.f32 %v7353, %v7404
        %v7430 = vsub.f32 %v7356, %v7406
        %v7431 = vsub.f32 %v7361, %v7408
        %v7432 = vsub.f32 %v7364, %v7410
        %v7433 = vsub.f32 %v7369, %v7412
        %v7434 = vsub.f32 %v7372, %v7414
        %v7435 = vsub.f32 %v7377, %v7416
        %v7436 = vsub.f32 %v7380, %v7418
        %v7437 = vsub.f32 %v7385, %v7420
        %v7438 = vsub.f32 %v7388, %v7422
        %v7439 = vmul.f32 %v7423, 1.442695
        %v7440 = vpow.pop %v7439
        %v7441 = vmul.f32 %v7424, 1.442695
        %v7442 = vpow.pop %v7441
        %v7443 = vmul.f32 %v7425, 1.442695
        %v7444 = vpow.pop %v7443
        %v7445 = vmul.f32 %v7426, 1.442695
        %v7446 = vpow.pop %v7445
        %v7447 = vmul.f32 %v7427, 1.442695
        %v7448 = vpow.pop %v7447
        %v7449 = vmul.f32 %v7428, 1.442695
        %v7450 = vpow.pop %v7449
        %v7451 = vmul.f32 %v7429, 1.442695
        %v7452 = vpow.pop %v7451
        %v7453 = vmul.f32 %v7430, 1.442695
        %v7454 = vpow.pop %v7453
        %v7455 = vmul.f32 %v7431, 1.442695
        %v7456 = vpow.pop %v7455
        %v7457 = vmul.f32 %v7432, 1.442695
        %v7458 = vpow.pop %v7457
        %v7459 = vmul.f32 %v7433, 1.442695
        %v7460 = vpow.pop %v7459
        %v7461 = vmul.f32 %v7434, 1.442695
        %v7462 = vpow.pop %v7461
        %v7463 = vmul.f32 %v7435, 1.442695
        %v7464 = vpow.pop %v7463
        %v7465 = vmul.f32 %v7436, 1.442695
        %v7466 = vpow.pop %v7465
        %v7467 = vmul.f32 %v7437, 1.442695
        %v7468 = vpow.pop %v7467
        %v7469 = vmul.f32 %v7438, 1.442695
        %v7470 = vpow.pop %v7469
        %7471 = vadd.xlane.f32.xlu0 %v7440
        %v7472 = vpop.xlane.xlu0 %7471
        %7473 = vadd.xlane.f32.xlu0 %v7442
        %v7474 = vpop.xlane.xlu0 %7473
        %7475 = vadd.xlane.f32.xlu0 %v7444
        %v7476 = vpop.xlane.xlu0 %7475
        %7477 = vadd.xlane.f32.xlu0 %v7446
        %v7478 = vpop.xlane.xlu0 %7477
        %7479 = vadd.xlane.f32.xlu0 %v7448
        %v7480 = vpop.xlane.xlu0 %7479
        %7481 = vadd.xlane.f32.xlu0 %v7450
        %v7482 = vpop.xlane.xlu0 %7481
        %7483 = vadd.xlane.f32.xlu0 %v7452
        %v7484 = vpop.xlane.xlu0 %7483
        %7485 = vadd.xlane.f32.xlu0 %v7454
        %v7486 = vpop.xlane.xlu0 %7485
        %7487 = vadd.xlane.f32.xlu0 %v7456
        %v7488 = vpop.xlane.xlu0 %7487
        %7489 = vadd.xlane.f32.xlu0 %v7458
        %v7490 = vpop.xlane.xlu0 %7489
        %7491 = vadd.xlane.f32.xlu0 %v7460
        %v7492 = vpop.xlane.xlu0 %7491
        %7493 = vadd.xlane.f32.xlu0 %v7462
        %v7494 = vpop.xlane.xlu0 %7493
        %7495 = vadd.xlane.f32.xlu0 %v7464
        %v7496 = vpop.xlane.xlu0 %7495
        %7497 = vadd.xlane.f32.xlu0 %v7466
        %v7498 = vpop.xlane.xlu0 %7497
        %7499 = vadd.xlane.f32.xlu0 %v7468
        %v7500 = vpop.xlane.xlu0 %7499
        %7501 = vadd.xlane.f32.xlu0 %v7470
        %v7502 = vpop.xlane.xlu0 %7501
        %v7503 = vpack.c.bf16 %v7442, %v7440
        %v7504 = vpack.c.bf16 %v7446, %v7444
        %v7505 = vpack.c.bf16 %v7450, %v7448
        %v7506 = vpack.c.bf16 %v7454, %v7452
        %v7507 = vpack.c.bf16 %v7458, %v7456
        %v7508 = vpack.c.bf16 %v7462, %v7460
        %v7509 = vpack.c.bf16 %v7466, %v7464
        %v7510 = vpack.c.bf16 %v7470, %v7468
        %7511 = vrot.lane.b32.xlu0 %v5888, 32
        %v7512 = vpop.permute.xlu0 %7511
        %7513 = vrot.lane.b32.xlu0 %v5889, 32
        %v7514 = vpop.permute.xlu0 %7513
        %7515 = vrot.lane.b32.xlu0 %v5890, 32
        %v7516 = vpop.permute.xlu0 %7515
        %7517 = vrot.lane.b32.xlu0 %v5891, 32
        %v7518 = vpop.permute.xlu0 %7517
        %7519 = vrot.lane.b32.xlu0 %v5892, 32
        %v7520 = vpop.permute.xlu0 %7519
        %7521 = vrot.lane.b32.xlu0 %v5893, 32
        %v7522 = vpop.permute.xlu0 %7521
        %7523 = vrot.lane.b32.xlu0 %v5894, 32
        %v7524 = vpop.permute.xlu0 %7523
        %7525 = vrot.lane.b32.xlu0 %v5895, 32
        %v7526 = vpop.permute.xlu0 %7525
        %7535 = vmatprep.subr.bf16.mxu0 0
        %7536 = vmatpush1.bf16.msra.mxu0 %v7512
        %7537 = vmatprep.subr.bf16.mxu0 0
        %7538 = vmatpush1.bf16.msra.mxu0 %v7514
        %7539 = vmatprep.subr.bf16.mxu0 0
        %7540 = vmatpush1.bf16.msra.mxu0 %v7516
        %7541 = vmatprep.subr.bf16.mxu0 0
        %7542 = vmatpush1.bf16.msra.mxu0 %v7518
        %7543 = vmatprep.subr.bf16.mxu0 0
        %7544 = vmatpush1.bf16.msra.mxu0 %v7520
        %7545 = vmatprep.subr.bf16.mxu0 0
        %7546 = vmatpush1.bf16.msra.mxu0 %v7522
        %7547 = vmatprep.subr.bf16.mxu0 0
        %7548 = vmatpush1.bf16.msra.mxu0 %v7524
        %7549 = vmatprep.subr.bf16.mxu0 0
        %7550 = vmatpush1.bf16.msra.mxu0 %v7526
        %7551 = vmatprep.subr.bf16.mxu0 0
        %7552 = vmatpush1.bf16.msra.mxu0 0
        %7553 = vmatprep.subr.bf16.mxu0 0
        %7554 = vmatpush1.bf16.msra.mxu0 0
        %7555 = vmatprep.subr.bf16.mxu0 0
        %7556 = vmatpush1.bf16.msra.mxu0 0
        %7557 = vmatprep.subr.bf16.mxu0 0
        %7558 = vmatpush1.bf16.msra.mxu0 0
        %7559 = vmatprep.subr.bf16.mxu0 0
        %7560 = vmatpush1.bf16.msra.mxu0 0
        %7561 = vmatprep.subr.bf16.mxu0 0
        %7562 = vmatpush1.bf16.msra.mxu0 0
        %7563 = vmatprep.subr.bf16.mxu0 0
        %7564 = vmatpush1.bf16.msra.mxu0 0
        %7565 = vmatprep.subr.bf16.mxu0 0
        %7566 = vmatpush1.bf16.msra.mxu0 0
        %7567 = vmatprep.mubr.bf16.mxu0 0
        %7568 = vmatmul.mubr.bf16.gmra.mrb[0].mxu0 %v7503
        %v7569 = vpop.f32.mrb[0].mxu0
        %v7570 = vadd.f32 0.0, %v7569
        %v7571 = vpop.f32.mrb[0].mxu0
        %v7572 = vpop.f32.mrb[0].mxu0
        %v7573 = vadd.f32 0.0, %v7572
        %v7574 = vpop.f32.mrb[0].mxu0
        %7575 = vmatprep.mubr.bf16.mxu0 0
        %7576 = vmatmul.mubr.bf16.gmra.mrb[0].mxu0 %v7504
        %v7577 = vpop.f32.mrb[0].mxu0
        %v7578 = vadd.f32 0.0, %v7577
        %v7579 = vpop.f32.mrb[0].mxu0
        %v7580 = vpop.f32.mrb[0].mxu0
        %v7581 = vadd.f32 0.0, %v7580
        %v7582 = vpop.f32.mrb[0].mxu0
        %7583 = vmatprep.mubr.bf16.mxu0 0
        %7584 = vmatmul.mubr.bf16.gmra.mrb[0].mxu0 %v7505
        %v7585 = vpop.f32.mrb[0].mxu0
        %v7586 = vadd.f32 0.0, %v7585
        %v7587 = vpop.f32.mrb[0].mxu0
        %v7588 = vpop.f32.mrb[0].mxu0
        %v7589 = vadd.f32 0.0, %v7588
        %v7590 = vpop.f32.mrb[0].mxu0
        %7591 = vmatprep.mubr.bf16.mxu0 0
        %7592 = vmatmul.mubr.bf16.gmra.mrb[0].mxu0 %v7506
        %v7593 = vpop.f32.mrb[0].mxu0
        %v7594 = vadd.f32 0.0, %v7593
        %v7595 = vpop.f32.mrb[0].mxu0
        %v7596 = vpop.f32.mrb[0].mxu0
        %v7597 = vadd.f32 0.0, %v7596
        %v7598 = vpop.f32.mrb[0].mxu0
        %7599 = vmatprep.mubr.bf16.mxu0 0
        %7600 = vmatmul.mubr.bf16.gmra.mrb[0].mxu0 %v7507
        %v7601 = vpop.f32.mrb[0].mxu0
        %v7602 = vadd.f32 0.0, %v7601
        %v7603 = vpop.f32.mrb[0].mxu0
        %v7604 = vpop.f32.mrb[0].mxu0
        %v7605 = vadd.f32 0.0, %v7604
        %v7606 = vpop.f32.mrb[0].mxu0
        %7607 = vmatprep.mubr.bf16.mxu0 0
        %7608 = vmatmul.mubr.bf16.gmra.mrb[0].mxu0 %v7508
        %v7609 = vpop.f32.mrb[0].mxu0
        %v7610 = vadd.f32 0.0, %v7609
        %v7611 = vpop.f32.mrb[0].mxu0
        %v7612 = vpop.f32.mrb[0].mxu0
        %v7613 = vadd.f32 0.0, %v7612
        %v7614 = vpop.f32.mrb[0].mxu0
        %7615 = vmatprep.mubr.bf16.mxu0 0
        %7616 = vmatmul.mubr.bf16.gmra.mrb[0].mxu0 %v7509
        %v7617 = vpop.f32.mrb[0].mxu0
        %v7618 = vadd.f32 0.0, %v7617
        %v7619 = vpop.f32.mrb[0].mxu0
        %v7620 = vpop.f32.mrb[0].mxu0
        %v7621 = vadd.f32 0.0, %v7620
        %v7622 = vpop.f32.mrb[0].mxu0
        %7623 = vmatprep.mubr.bf16.mxu0 0
        %7624 = vmatmul.mubr.bf16.gmra.mrb[0].mxu0 %v7510
        %v7625 = vpop.f32.mrb[0].mxu0
        %v7626 = vadd.f32 0.0, %v7625
        %v7627 = vpop.f32.mrb[0].mxu0
        %v7628 = vpop.f32.mrb[0].mxu0
        %v7629 = vadd.f32 0.0, %v7628
        %v7630 = vpop.f32.mrb[0].mxu0
        %7631 = vdwg.mxu0
        %v7632 = vrcp.pop %v7472
        %v7633 = vrcp.pop %v7474
        %v7634 = vrcp.pop %v7476
        %v7635 = vrcp.pop %v7478
        %v7636 = vrcp.pop %v7480
        %v7637 = vrcp.pop %v7482
        %v7638 = vrcp.pop %v7484
        %v7639 = vrcp.pop %v7486
        %v7640 = vrcp.pop %v7488
        %v7641 = vrcp.pop %v7490
        %v7642 = vrcp.pop %v7492
        %v7643 = vrcp.pop %v7494
        %v7644 = vrcp.pop %v7496
        %v7645 = vrcp.pop %v7498
        %v7646 = vrcp.pop %v7500
        %v7647 = vrcp.pop %v7502
        %v7648 = vmul.f32 %v7570, %v7632
        %v7649 = vmul.f32 %v7573, %v7633
        %v7650 = vmul.f32 %v7578, %v7634
        %v7651 = vmul.f32 %v7581, %v7635
        %v7652 = vmul.f32 %v7586, %v7636
        %v7653 = vmul.f32 %v7589, %v7637
        %v7654 = vmul.f32 %v7594, %v7638
        %v7655 = vmul.f32 %v7597, %v7639
        %v7656 = vmul.f32 %v7602, %v7640
        %v7657 = vmul.f32 %v7605, %v7641
        %v7658 = vmul.f32 %v7610, %v7642
        %v7659 = vmul.f32 %v7613, %v7643
        %v7660 = vmul.f32 %v7618, %v7644
        %v7661 = vmul.f32 %v7621, %v7645
        %v7662 = vmul.f32 %v7626, %v7646
        %v7663 = vmul.f32 %v7629, %v7647
        %7680 = vrot.lane.b32.xlu0 %v6748, 32
        %v7681 = vpop.permute.xlu0 %7680
        %7682 = vrot.lane.b32.xlu0 %v6749, 32
        %v7683 = vpop.permute.xlu0 %7682
        %7684 = vrot.lane.b32.xlu0 %v6750, 32
        %v7685 = vpop.permute.xlu0 %7684
        %7686 = vrot.lane.b32.xlu0 %v6751, 32
        %v7687 = vpop.permute.xlu0 %7686
        %7688 = vrot.lane.b32.xlu0 %v6752, 32
        %v7689 = vpop.permute.xlu0 %7688
        %7690 = vrot.lane.b32.xlu0 %v6753, 32
        %v7691 = vpop.permute.xlu0 %7690
        %7692 = vrot.lane.b32.xlu0 %v6754, 32
        %v7693 = vpop.permute.xlu0 %7692
        %7694 = vrot.lane.b32.xlu0 %v6755, 32
        %v7695 = vpop.permute.xlu0 %7694
        %7696 = vrot.lane.b32.xlu0 %v6756, 32
        %v7697 = vpop.permute.xlu0 %7696
        %7698 = vrot.lane.b32.xlu0 %v6757, 32
        %v7699 = vpop.permute.xlu0 %7698
        %7700 = vrot.lane.b32.xlu0 %v6758, 32
        %v7701 = vpop.permute.xlu0 %7700
        %7702 = vrot.lane.b32.xlu0 %v6759, 32
        %v7703 = vpop.permute.xlu0 %7702
        %7704 = vrot.lane.b32.xlu0 %v6760, 32
        %v7705 = vpop.permute.xlu0 %7704
        %7706 = vrot.lane.b32.xlu0 %v6761, 32
        %v7707 = vpop.permute.xlu0 %7706
        %7708 = vrot.lane.b32.xlu0 %v6762, 32
        %v7709 = vpop.permute.xlu0 %7708
        %7710 = vrot.lane.b32.xlu0 %v6763, 32
        %v7711 = vpop.permute.xlu0 %7710
        %7744 = vrot.lane.b32.xlu0 %v7198, 64
        %v7745 = vpop.permute.xlu0 %7744
        %7746 = vrot.lane.b32.xlu0 %v7199, 64
        %v7747 = vpop.permute.xlu0 %7746
        %7748 = vrot.lane.b32.xlu0 %v7200, 64
        %v7749 = vpop.permute.xlu0 %7748
        %7750 = vrot.lane.b32.xlu0 %v7201, 64
        %v7751 = vpop.permute.xlu0 %7750
        %7752 = vrot.lane.b32.xlu0 %v7202, 64
        %v7753 = vpop.permute.xlu0 %7752
        %7754 = vrot.lane.b32.xlu0 %v7203, 64
        %v7755 = vpop.permute.xlu0 %7754
        %7756 = vrot.lane.b32.xlu0 %v7204, 64
        %v7757 = vpop.permute.xlu0 %7756
        %7758 = vrot.lane.b32.xlu0 %v7205, 64
        %v7759 = vpop.permute.xlu0 %7758
        %7760 = vrot.lane.b32.xlu0 %v7206, 64
        %v7761 = vpop.permute.xlu0 %7760
        %7762 = vrot.lane.b32.xlu0 %v7207, 64
        %v7763 = vpop.permute.xlu0 %7762
        %7764 = vrot.lane.b32.xlu0 %v7208, 64
        %v7765 = vpop.permute.xlu0 %7764
        %7766 = vrot.lane.b32.xlu0 %v7209, 64
        %v7767 = vpop.permute.xlu0 %7766
        %7768 = vrot.lane.b32.xlu0 %v7210, 64
        %v7769 = vpop.permute.xlu0 %7768
        %7770 = vrot.lane.b32.xlu0 %v7211, 64
        %v7771 = vpop.permute.xlu0 %7770
        %7772 = vrot.lane.b32.xlu0 %v7212, 64
        %v7773 = vpop.permute.xlu0 %7772
        %7774 = vrot.lane.b32.xlu0 %v7213, 64
        %v7775 = vpop.permute.xlu0 %7774
        %7808 = vrot.lane.b32.xlu0 %v7648, 96
        %v7809 = vpop.permute.xlu0 %7808
        %7810 = vrot.lane.b32.xlu0 %v7649, 96
        %v7811 = vpop.permute.xlu0 %7810
        %7812 = vrot.lane.b32.xlu0 %v7650, 96
        %v7813 = vpop.permute.xlu0 %7812
        %7814 = vrot.lane.b32.xlu0 %v7651, 96
        %v7815 = vpop.permute.xlu0 %7814
        %7816 = vrot.lane.b32.xlu0 %v7652, 96
        %v7817 = vpop.permute.xlu0 %7816
        %7818 = vrot.lane.b32.xlu0 %v7653, 96
        %v7819 = vpop.permute.xlu0 %7818
        %7820 = vrot.lane.b32.xlu0 %v7654, 96
        %v7821 = vpop.permute.xlu0 %7820
        %7822 = vrot.lane.b32.xlu0 %v7655, 96
        %v7823 = vpop.permute.xlu0 %7822
        %7824 = vrot.lane.b32.xlu0 %v7656, 96
        %v7825 = vpop.permute.xlu0 %7824
        %7826 = vrot.lane.b32.xlu0 %v7657, 96
        %v7827 = vpop.permute.xlu0 %7826
        %7828 = vrot.lane.b32.xlu0 %v7658, 96
        %v7829 = vpop.permute.xlu0 %7828
        %7830 = vrot.lane.b32.xlu0 %v7659, 96
        %v7831 = vpop.permute.xlu0 %7830
        %7832 = vrot.lane.b32.xlu0 %v7660, 96
        %v7833 = vpop.permute.xlu0 %7832
        %7834 = vrot.lane.b32.xlu0 %v7661, 96
        %v7835 = vpop.permute.xlu0 %7834
        %7836 = vrot.lane.b32.xlu0 %v7662, 96
        %v7837 = vpop.permute.xlu0 %7836
        %7838 = vrot.lane.b32.xlu0 %v7663, 96
        %v7839 = vpop.permute.xlu0 %7838
        %v7856 = vsel %vm1861, %v6274, %v7681
        %v7857 = vsel %vm1861, %v6275, %v7683
        %v7858 = vsel %vm1861, %v6276, %v7685
        %v7859 = vsel %vm1861, %v6277, %v7687
        %v7860 = vsel %vm1861, %v6278, %v7689
        %v7861 = vsel %vm1861, %v6279, %v7691
        %v7862 = vsel %vm1861, %v6280, %v7693
        %v7863 = vsel %vm1861, %v6281, %v7695
        %v7864 = vsel %vm1861, %v6282, %v7697
        %v7865 = vsel %vm1861, %v6283, %v7699
        %v7866 = vsel %vm1861, %v6284, %v7701
        %v7867 = vsel %vm1861, %v6285, %v7703
        %v7868 = vsel %vm1861, %v6286, %v7705
        %v7869 = vsel %vm1861, %v6287, %v7707
        %v7870 = vsel %vm1861, %v6288, %v7709
        %v7871 = vsel %vm1861, %v6289, %v7711
        %v7872 = vsel %vm3838, %v7856, %v7745
        %v7873 = vsel %vm3838, %v7857, %v7747
        %v7874 = vsel %vm3838, %v7858, %v7749
        %v7875 = vsel %vm3838, %v7859, %v7751
        %v7876 = vsel %vm3838, %v7860, %v7753
        %v7877 = vsel %vm3838, %v7861, %v7755
        %v7878 = vsel %vm3838, %v7862, %v7757
        %v7879 = vsel %vm3838, %v7863, %v7759
        %v7880 = vsel %vm3838, %v7864, %v7761
        %v7881 = vsel %vm3838, %v7865, %v7763
        %v7882 = vsel %vm3838, %v7866, %v7765
        %v7883 = vsel %vm3838, %v7867, %v7767
        %v7884 = vsel %vm3838, %v7868, %v7769
        %v7885 = vsel %vm3838, %v7869, %v7771
        %v7886 = vsel %vm3838, %v7870, %v7773
        %v7887 = vsel %vm3838, %v7871, %v7775
        %v7888 = vsel %vm3855, %v7872, %v7809
        %v7889 = vsel %vm3855, %v7873, %v7811
        %v7890 = vsel %vm3855, %v7874, %v7813
        %v7891 = vsel %vm3855, %v7875, %v7815
        %v7892 = vsel %vm3855, %v7876, %v7817
        %v7893 = vsel %vm3855, %v7877, %v7819
        %v7894 = vsel %vm3855, %v7878, %v7821
        %v7895 = vsel %vm3855, %v7879, %v7823
        %v7896 = vsel %vm3855, %v7880, %v7825
        %v7897 = vsel %vm3855, %v7881, %v7827
        %v7898 = vsel %vm3855, %v7882, %v7829
        %v7899 = vsel %vm3855, %v7883, %v7831
        %v7900 = vsel %vm3855, %v7884, %v7833
        %v7901 = vsel %vm3855, %v7885, %v7835
        %v7902 = vsel %vm3855, %v7886, %v7837
        %v7903 = vsel %vm3855, %v7887, %v7839
        %v7904 = vpack.c.bf16 %v7889, %v7888
        %v7905 = vpack.c.bf16 %v7891, %v7890
        %v7906 = vpack.c.bf16 %v7893, %v7892
        %v7907 = vpack.c.bf16 %v7895, %v7894
        %v7908 = vpack.c.bf16 %v7897, %v7896
        %v7909 = vpack.c.bf16 %v7899, %v7898
        %v7910 = vpack.c.bf16 %v7901, %v7900
        %v7911 = vpack.c.bf16 %v7903, %v7902
        %s7912 = scalar_lea.vmem %s334, 64 [#allocation3]
        %v7913 = vld [vmem:[%s7912] sm:$0xf]
        %v7914 = vld [vmem:[%s7912 + $0x4] sm:$0xf]
        %v7915 = vld [vmem:[%s7912 + $0x8] sm:$0xf]
        %v7916 = vld [vmem:[%s7912 + $0xc] sm:$0xf]
        %v7917 = vld [vmem:[%s7912 + $0x10] sm:$0xf]
        %v7918 = vld [vmem:[%s7912 + $0x14] sm:$0xf]
        %v7919 = vld [vmem:[%s7912 + $0x18] sm:$0xf]
        %v7920 = vld [vmem:[%s7912 + $0x1c] sm:$0xf]
        %v7921 = vld [vmem:[%s7912 + $0x20] sm:$0xf]
        %v7922 = vld [vmem:[%s7912 + $0x24] sm:$0xf]
        %v7923 = vld [vmem:[%s7912 + $0x28] sm:$0xf]
        %v7924 = vld [vmem:[%s7912 + $0x2c] sm:$0xf]
        %v7925 = vld [vmem:[%s7912 + $0x30] sm:$0xf]
        %v7926 = vld [vmem:[%s7912 + $0x34] sm:$0xf]
        %v7927 = vld [vmem:[%s7912 + $0x38] sm:$0xf]
        %v7928 = vld [vmem:[%s7912 + $0x3c] sm:$0xf]
        %v7945 = vunpack.c.l.b16 %v7913
        %v7946 = vunpack.c.l.b16 %v7914
        %v7947 = vunpack.c.l.b16 %v7915
        %v7948 = vunpack.c.l.b16 %v7916
        %v7949 = vunpack.c.l.b16 %v7917
        %v7950 = vunpack.c.l.b16 %v7918
        %v7951 = vunpack.c.l.b16 %v7919
        %v7952 = vunpack.c.l.b16 %v7920
        %v7953 = vunpack.c.l.b16 %v7921
        %v7954 = vunpack.c.l.b16 %v7922
        %v7955 = vunpack.c.l.b16 %v7923
        %v7956 = vunpack.c.l.b16 %v7924
        %v7957 = vunpack.c.l.b16 %v7925
        %v7958 = vunpack.c.l.b16 %v7926
        %v7959 = vunpack.c.l.b16 %v7927
        %v7960 = vunpack.c.l.b16 %v7928
        %v7961 = vpack.c.b16 %v7946, %v7945
        %v7962 = vpack.c.b16 %v7948, %v7947
        %v7963 = vpack.c.b16 %v7950, %v7949
        %v7964 = vpack.c.b16 %v7952, %v7951
        %v7965 = vpack.c.b16 %v7954, %v7953
        %v7966 = vpack.c.b16 %v7956, %v7955
        %v7967 = vpack.c.b16 %v7958, %v7957
        %v7968 = vpack.c.b16 %v7960, %v7959
        %7977 = vmatprep.subr.bf16.mxu0 0
        %7978 = vmatpush1.bf16.msra.mxu0 %v7961
        %7979 = vmatprep.subr.bf16.mxu0 0
        %7980 = vmatpush1.bf16.msra.mxu0 %v7962
        %7981 = vmatprep.subr.bf16.mxu0 0
        %7982 = vmatpush1.bf16.msra.mxu0 %v7963
        %7983 = vmatprep.subr.bf16.mxu0 0
        %7984 = vmatpush1.bf16.msra.mxu0 %v7964
        %7985 = vmatprep.subr.bf16.mxu0 0
        %7986 = vmatpush1.bf16.msra.mxu0 %v7965
        %7987 = vmatprep.subr.bf16.mxu0 0
        %7988 = vmatpush1.bf16.msra.mxu0 %v7966
        %7989 = vmatprep.subr.bf16.mxu0 0
        %7990 = vmatpush1.bf16.msra.mxu0 %v7967
        %7991 = vmatprep.subr.bf16.mxu0 0
        %7992 = vmatpush1.bf16.msra.mxu0 %v7968
        %7993 = vmatprep.subr.bf16.mxu0 0
        %7994 = vmatpush1.bf16.msra.mxu0 0
        %7995 = vmatprep.subr.bf16.mxu0 0
        %7996 = vmatpush1.bf16.msra.mxu0 0
        %7997 = vmatprep.subr.bf16.mxu0 0
        %7998 = vmatpush1.bf16.msra.mxu0 0
        %7999 = vmatprep.subr.bf16.mxu0 0
        %8000 = vmatpush1.bf16.msra.mxu0 0
        %8001 = vmatprep.subr.bf16.mxu0 0
        %8002 = vmatpush1.bf16.msra.mxu0 0
        %8003 = vmatprep.subr.bf16.mxu0 0
        %8004 = vmatpush1.bf16.msra.mxu0 0
        %8005 = vmatprep.subr.bf16.mxu0 0
        %8006 = vmatpush1.bf16.msra.mxu0 0
        %8007 = vmatprep.subr.bf16.mxu0 0
        %8008 = vmatpush1.bf16.msra.mxu0 0
        %8009 = vmatprep.mubr.bf16.mxu0 0
        %8010 = vmatmul.mubr.bf16.gmra.mrb[0].mxu0 %v7904
        %v8011 = vpop.f32.mrb[0].mxu0
        %v8012 = vadd.f32 0.0, %v8011
        %v8013 = vpop.f32.mrb[0].mxu0
        %v8014 = vpop.f32.mrb[0].mxu0
        %v8015 = vadd.f32 0.0, %v8014
        %v8016 = vpop.f32.mrb[0].mxu0
        %8017 = vmatprep.mubr.bf16.mxu0 0
        %8018 = vmatmul.mubr.bf16.gmra.mrb[0].mxu0 %v7905
        %v8019 = vpop.f32.mrb[0].mxu0
        %v8020 = vadd.f32 0.0, %v8019
        %v8021 = vpop.f32.mrb[0].mxu0
        %v8022 = vpop.f32.mrb[0].mxu0
        %v8023 = vadd.f32 0.0, %v8022
        %v8024 = vpop.f32.mrb[0].mxu0
        %8025 = vmatprep.mubr.bf16.mxu0 0
        %8026 = vmatmul.mubr.bf16.gmra.mrb[0].mxu0 %v7906
        %v8027 = vpop.f32.mrb[0].mxu0
        %v8028 = vadd.f32 0.0, %v8027
        %v8029 = vpop.f32.mrb[0].mxu0
        %v8030 = vpop.f32.mrb[0].mxu0
        %v8031 = vadd.f32 0.0, %v8030
        %v8032 = vpop.f32.mrb[0].mxu0
        %8033 = vmatprep.mubr.bf16.mxu0 0
        %8034 = vmatmul.mubr.bf16.gmra.mrb[0].mxu0 %v7907
        %v8035 = vpop.f32.mrb[0].mxu0
        %v8036 = vadd.f32 0.0, %v8035
        %v8037 = vpop.f32.mrb[0].mxu0
        %v8038 = vpop.f32.mrb[0].mxu0
        %v8039 = vadd.f32 0.0, %v8038
        %v8040 = vpop.f32.mrb[0].mxu0
        %8041 = vmatprep.mubr.bf16.mxu0 0
        %8042 = vmatmul.mubr.bf16.gmra.mrb[0].mxu0 %v7908
        %v8043 = vpop.f32.mrb[0].mxu0
        %v8044 = vadd.f32 0.0, %v8043
        %v8045 = vpop.f32.mrb[0].mxu0
        %v8046 = vpop.f32.mrb[0].mxu0
        %v8047 = vadd.f32 0.0, %v8046
        %v8048 = vpop.f32.mrb[0].mxu0
        %8049 = vmatprep.mubr.bf16.mxu0 0
        %8050 = vmatmul.mubr.bf16.gmra.mrb[0].mxu0 %v7909
        %v8051 = vpop.f32.mrb[0].mxu0
        %v8052 = vadd.f32 0.0, %v8051
        %v8053 = vpop.f32.mrb[0].mxu0
        %v8054 = vpop.f32.mrb[0].mxu0
        %v8055 = vadd.f32 0.0, %v8054
        %v8056 = vpop.f32.mrb[0].mxu0
        %8057 = vmatprep.mubr.bf16.mxu0 0
        %8058 = vmatmul.mubr.bf16.gmra.mrb[0].mxu0 %v7910
        %v8059 = vpop.f32.mrb[0].mxu0
        %v8060 = vadd.f32 0.0, %v8059
        %v8061 = vpop.f32.mrb[0].mxu0
        %v8062 = vpop.f32.mrb[0].mxu0
        %v8063 = vadd.f32 0.0, %v8062
        %v8064 = vpop.f32.mrb[0].mxu0
        %8065 = vmatprep.mubr.bf16.mxu0 0
        %8066 = vmatmul.mubr.bf16.gmra.mrb[0].mxu0 %v7911
        %v8067 = vpop.f32.mrb[0].mxu0
        %v8068 = vadd.f32 0.0, %v8067
        %v8069 = vpop.f32.mrb[0].mxu0
        %v8070 = vpop.f32.mrb[0].mxu0
        %v8071 = vadd.f32 0.0, %v8070
        %v8072 = vpop.f32.mrb[0].mxu0
        %8073 = vdwg.mxu0
        %v8074 = vxor.u32 %v5490, 2147483648
        %v8075 = vxor.u32 %v5601, 2147483648
        %v8076 = vxor.u32 %v5494, 2147483648
        %v8077 = vxor.u32 %v5605, 2147483648
        %v8078 = vxor.u32 %v5500, 2147483648
        %v8079 = vxor.u32 %v5611, 2147483648
        %v8080 = vxor.u32 %v5504, 2147483648
        %v8081 = vxor.u32 %v5615, 2147483648
        %v8082 = vxor.u32 %v5510, 2147483648
        %v8083 = vxor.u32 %v5621, 2147483648
        %v8084 = vxor.u32 %v5514, 2147483648
        %v8085 = vxor.u32 %v5625, 2147483648
        %v8086 = vxor.u32 %v5520, 2147483648
        %v8087 = vxor.u32 %v5631, 2147483648
        %v8088 = vxor.u32 %v5524, 2147483648
        %v8089 = vxor.u32 %v5635, 2147483648
        %v8090 = vxor.u32 %v5530, 2147483648
        %v8091 = vxor.u32 %v5641, 2147483648
        %v8092 = vxor.u32 %v5534, 2147483648
        %v8093 = vxor.u32 %v5645, 2147483648
        %v8094 = vxor.u32 %v5540, 2147483648
        %v8095 = vxor.u32 %v5651, 2147483648
        %v8096 = vxor.u32 %v5544, 2147483648
        %v8097 = vxor.u32 %v5655, 2147483648
        %v8098 = vxor.u32 %v5550, 2147483648
        %v8099 = vxor.u32 %v5661, 2147483648
        %v8100 = vxor.u32 %v5554, 2147483648
        %v8101 = vxor.u32 %v5665, 2147483648
        %v8102 = vxor.u32 %v5560, 2147483648
        %v8103 = vxor.u32 %v5671, 2147483648
        %v8104 = vxor.u32 %v5564, 2147483648
        %v8105 = vxor.u32 %v5675, 2147483648
        %v8106 = vmul.f32 %v8074, 1.442695
        %v8107 = vpow.pop %v8106
        %v8108 = vmul.f32 %v8075, 1.442695
        %v8109 = vpow.pop %v8108
        %v8110 = vmul.f32 %v8076, 1.442695
        %v8111 = vpow.pop %v8110
        %v8112 = vmul.f32 %v8077, 1.442695
        %v8113 = vpow.pop %v8112
        %v8114 = vmul.f32 %v8078, 1.442695
        %v8115 = vpow.pop %v8114
        %v8116 = vmul.f32 %v8079, 1.442695
        %v8117 = vpow.pop %v8116
        %v8118 = vmul.f32 %v8080, 1.442695
        %v8119 = vpow.pop %v8118
        %v8120 = vmul.f32 %v8081, 1.442695
        %v8121 = vpow.pop %v8120
        %v8122 = vmul.f32 %v8082, 1.442695
        %v8123 = vpow.pop %v8122
        %v8124 = vmul.f32 %v8083, 1.442695
        %v8125 = vpow.pop %v8124
        %v8126 = vmul.f32 %v8084, 1.442695
        %v8127 = vpow.pop %v8126
        %v8128 = vmul.f32 %v8085, 1.442695
        %v8129 = vpow.pop %v8128
        %v8130 = vmul.f32 %v8086, 1.442695
        %v8131 = vpow.pop %v8130
        %v8132 = vmul.f32 %v8087, 1.442695
        %v8133 = vpow.pop %v8132
        %v8134 = vmul.f32 %v8088, 1.442695
        %v8135 = vpow.pop %v8134
        %v8136 = vmul.f32 %v8089, 1.442695
        %v8137 = vpow.pop %v8136
        %v8138 = vmul.f32 %v8090, 1.442695
        %v8139 = vpow.pop %v8138
        %v8140 = vmul.f32 %v8091, 1.442695
        %v8141 = vpow.pop %v8140
        %v8142 = vmul.f32 %v8092, 1.442695
        %v8143 = vpow.pop %v8142
        %v8144 = vmul.f32 %v8093, 1.442695
        %v8145 = vpow.pop %v8144
        %v8146 = vmul.f32 %v8094, 1.442695
        %v8147 = vpow.pop %v8146
        %v8148 = vmul.f32 %v8095, 1.442695
        %v8149 = vpow.pop %v8148
        %v8150 = vmul.f32 %v8096, 1.442695
        %v8151 = vpow.pop %v8150
        %v8152 = vmul.f32 %v8097, 1.442695
        %v8153 = vpow.pop %v8152
        %v8154 = vmul.f32 %v8098, 1.442695
        %v8155 = vpow.pop %v8154
        %v8156 = vmul.f32 %v8099, 1.442695
        %v8157 = vpow.pop %v8156
        %v8158 = vmul.f32 %v8100, 1.442695
        %v8159 = vpow.pop %v8158
        %v8160 = vmul.f32 %v8101, 1.442695
        %v8161 = vpow.pop %v8160
        %v8162 = vmul.f32 %v8102, 1.442695
        %v8163 = vpow.pop %v8162
        %v8164 = vmul.f32 %v8103, 1.442695
        %v8165 = vpow.pop %v8164
        %v8166 = vmul.f32 %v8104, 1.442695
        %v8167 = vpow.pop %v8166
        %v8168 = vmul.f32 %v8105, 1.442695
        %v8169 = vpow.pop %v8168
        %v8170 = vadd.f32 %v8107, 1.0
        %v8171 = vadd.f32 %v8109, 1.0
        %v8172 = vadd.f32 %v8111, 1.0
        %v8173 = vadd.f32 %v8113, 1.0
        %v8174 = vadd.f32 %v8115, 1.0
        %v8175 = vadd.f32 %v8117, 1.0
        %v8176 = vadd.f32 %v8119, 1.0
        %v8177 = vadd.f32 %v8121, 1.0
        %v8178 = vadd.f32 %v8123, 1.0
        %v8179 = vadd.f32 %v8125, 1.0
        %v8180 = vadd.f32 %v8127, 1.0
        %v8181 = vadd.f32 %v8129, 1.0
        %v8182 = vadd.f32 %v8131, 1.0
        %v8183 = vadd.f32 %v8133, 1.0
        %v8184 = vadd.f32 %v8135, 1.0
        %v8185 = vadd.f32 %v8137, 1.0
        %v8186 = vadd.f32 %v8139, 1.0
        %v8187 = vadd.f32 %v8141, 1.0
        %v8188 = vadd.f32 %v8143, 1.0
        %v8189 = vadd.f32 %v8145, 1.0
        %v8190 = vadd.f32 %v8147, 1.0
        %v8191 = vadd.f32 %v8149, 1.0
        %v8192 = vadd.f32 %v8151, 1.0
        %v8193 = vadd.f32 %v8153, 1.0
        %v8194 = vadd.f32 %v8155, 1.0
        %v8195 = vadd.f32 %v8157, 1.0
        %v8196 = vadd.f32 %v8159, 1.0
        %v8197 = vadd.f32 %v8161, 1.0
        %v8198 = vadd.f32 %v8163, 1.0
        %v8199 = vadd.f32 %v8165, 1.0
        %v8200 = vadd.f32 %v8167, 1.0
        %v8201 = vadd.f32 %v8169, 1.0
        %v8202 = vrcp.pop %v8170
        %v8203 = vmul.f32 1.0, %v8202
        %v8204 = vrcp.pop %v8171
        %v8205 = vmul.f32 1.0, %v8204
        %v8206 = vrcp.pop %v8172
        %v8207 = vmul.f32 1.0, %v8206
        %v8208 = vrcp.pop %v8173
        %v8209 = vmul.f32 1.0, %v8208
        %v8210 = vrcp.pop %v8174
        %v8211 = vmul.f32 1.0, %v8210
        %v8212 = vrcp.pop %v8175
        %v8213 = vmul.f32 1.0, %v8212
        %v8214 = vrcp.pop %v8176
        %v8215 = vmul.f32 1.0, %v8214
        %v8216 = vrcp.pop %v8177
        %v8217 = vmul.f32 1.0, %v8216
        %v8218 = vrcp.pop %v8178
        %v8219 = vmul.f32 1.0, %v8218
        %v8220 = vrcp.pop %v8179
        %v8221 = vmul.f32 1.0, %v8220
        %v8222 = vrcp.pop %v8180
        %v8223 = vmul.f32 1.0, %v8222
        %v8224 = vrcp.pop %v8181
        %v8225 = vmul.f32 1.0, %v8224
        %v8226 = vrcp.pop %v8182
        %v8227 = vmul.f32 1.0, %v8226
        %v8228 = vrcp.pop %v8183
        %v8229 = vmul.f32 1.0, %v8228
        %v8230 = vrcp.pop %v8184
        %v8231 = vmul.f32 1.0, %v8230
        %v8232 = vrcp.pop %v8185
        %v8233 = vmul.f32 1.0, %v8232
        %v8234 = vrcp.pop %v8186
        %v8235 = vmul.f32 1.0, %v8234
        %v8236 = vrcp.pop %v8187
        %v8237 = vmul.f32 1.0, %v8236
        %v8238 = vrcp.pop %v8188
        %v8239 = vmul.f32 1.0, %v8238
        %v8240 = vrcp.pop %v8189
        %v8241 = vmul.f32 1.0, %v8240
        %v8242 = vrcp.pop %v8190
        %v8243 = vmul.f32 1.0, %v8242
        %v8244 = vrcp.pop %v8191
        %v8245 = vmul.f32 1.0, %v8244
        %v8246 = vrcp.pop %v8192
        %v8247 = vmul.f32 1.0, %v8246
        %v8248 = vrcp.pop %v8193
        %v8249 = vmul.f32 1.0, %v8248
        %v8250 = vrcp.pop %v8194
        %v8251 = vmul.f32 1.0, %v8250
        %v8252 = vrcp.pop %v8195
        %v8253 = vmul.f32 1.0, %v8252
        %v8254 = vrcp.pop %v8196
        %v8255 = vmul.f32 1.0, %v8254
        %v8256 = vrcp.pop %v8197
        %v8257 = vmul.f32 1.0, %v8256
        %v8258 = vrcp.pop %v8198
        %v8259 = vmul.f32 1.0, %v8258
        %v8260 = vrcp.pop %v8199
        %v8261 = vmul.f32 1.0, %v8260
        %v8262 = vrcp.pop %v8200
        %v8263 = vmul.f32 1.0, %v8262
        %v8264 = vrcp.pop %v8201
        %v8265 = vmul.f32 1.0, %v8264
        %v8266 = vmul.f32 %v5490, %v8203
        %v8267 = vmul.f32 %v5601, %v8205
        %v8268 = vmul.f32 %v5494, %v8207
        %v8269 = vmul.f32 %v5605, %v8209
        %v8270 = vmul.f32 %v5500, %v8211
        %v8271 = vmul.f32 %v5611, %v8213
        %v8272 = vmul.f32 %v5504, %v8215
        %v8273 = vmul.f32 %v5615, %v8217
        %v8274 = vmul.f32 %v5510, %v8219
        %v8275 = vmul.f32 %v5621, %v8221
        %v8276 = vmul.f32 %v5514, %v8223
        %v8277 = vmul.f32 %v5625, %v8225
        %v8278 = vmul.f32 %v5520, %v8227
        %v8279 = vmul.f32 %v5631, %v8229
        %v8280 = vmul.f32 %v5524, %v8231
        %v8281 = vmul.f32 %v5635, %v8233
        %v8282 = vmul.f32 %v5530, %v8235
        %v8283 = vmul.f32 %v5641, %v8237
        %v8284 = vmul.f32 %v5534, %v8239
        %v8285 = vmul.f32 %v5645, %v8241
        %v8286 = vmul.f32 %v5540, %v8243
        %v8287 = vmul.f32 %v5651, %v8245
        %v8288 = vmul.f32 %v5544, %v8247
        %v8289 = vmul.f32 %v5655, %v8249
        %v8290 = vmul.f32 %v5550, %v8251
        %v8291 = vmul.f32 %v5661, %v8253
        %v8292 = vmul.f32 %v5554, %v8255
        %v8293 = vmul.f32 %v5665, %v8257
        %v8294 = vmul.f32 %v5560, %v8259
        %v8295 = vmul.f32 %v5671, %v8261
        %v8296 = vmul.f32 %v5564, %v8263
        %v8297 = vmul.f32 %v5675, %v8265
        %v8298 = vmul.f32 %v8266, %v5603
        %v8299 = vmul.f32 %v8267, %v5714
        %v8300 = vmul.f32 %v8268, %v5607
        %v8301 = vmul.f32 %v8269, %v5717
        %v8302 = vmul.f32 %v8270, %v5613
        %v8303 = vmul.f32 %v8271, %v5722
        %v8304 = vmul.f32 %v8272, %v5617
        %v8305 = vmul.f32 %v8273, %v5725
        %v8306 = vmul.f32 %v8274, %v5623
        %v8307 = vmul.f32 %v8275, %v5730
        %v8308 = vmul.f32 %v8276, %v5627
        %v8309 = vmul.f32 %v8277, %v5733
        %v8310 = vmul.f32 %v8278, %v5633
        %v8311 = vmul.f32 %v8279, %v5738
        %v8312 = vmul.f32 %v8280, %v5637
        %v8313 = vmul.f32 %v8281, %v5741
        %v8314 = vmul.f32 %v8282, %v5643
        %v8315 = vmul.f32 %v8283, %v5746
        %v8316 = vmul.f32 %v8284, %v5647
        %v8317 = vmul.f32 %v8285, %v5749
        %v8318 = vmul.f32 %v8286, %v5653
        %v8319 = vmul.f32 %v8287, %v5754
        %v8320 = vmul.f32 %v8288, %v5657
        %v8321 = vmul.f32 %v8289, %v5757
        %v8322 = vmul.f32 %v8290, %v5663
        %v8323 = vmul.f32 %v8291, %v5762
        %v8324 = vmul.f32 %v8292, %v5667
        %v8325 = vmul.f32 %v8293, %v5765
        %v8326 = vmul.f32 %v8294, %v5673
        %v8327 = vmul.f32 %v8295, %v5770
        %v8328 = vmul.f32 %v8296, %v5677
        %v8329 = vmul.f32 %v8297, %v5773
        %v8330 = vpack.c.bf16 %v8300, %v8298
        %v8331 = vpack.c.bf16 %v8301, %v8299
        %v8332 = vpack.c.bf16 %v8304, %v8302
        %v8333 = vpack.c.bf16 %v8305, %v8303
        %v8334 = vpack.c.bf16 %v8308, %v8306
        %v8335 = vpack.c.bf16 %v8309, %v8307
        %v8336 = vpack.c.bf16 %v8312, %v8310
        %v8337 = vpack.c.bf16 %v8313, %v8311
        %v8338 = vpack.c.bf16 %v8316, %v8314
        %v8339 = vpack.c.bf16 %v8317, %v8315
        %v8340 = vpack.c.bf16 %v8320, %v8318
        %v8341 = vpack.c.bf16 %v8321, %v8319
        %v8342 = vpack.c.bf16 %v8324, %v8322
        %v8343 = vpack.c.bf16 %v8325, %v8323
        %v8344 = vpack.c.bf16 %v8328, %v8326
        %v8345 = vpack.c.bf16 %v8329, %v8327
        %s8346 = scalar_lea.vmem %s343, 128 [#allocation6]
        %v8347 = vld [vmem:[%s8346] sm:$0xf]
        %v8348 = vld [vmem:[%s8346 + $0x4] sm:$0xf]
        %v8349 = vld [vmem:[%s8346 + $0x8] sm:$0xf]
        %v8350 = vld [vmem:[%s8346 + $0xc] sm:$0xf]
        %v8351 = vld [vmem:[%s8346 + $0x10] sm:$0xf]
        %v8352 = vld [vmem:[%s8346 + $0x14] sm:$0xf]
        %v8353 = vld [vmem:[%s8346 + $0x18] sm:$0xf]
        %v8354 = vld [vmem:[%s8346 + $0x1c] sm:$0xf]
        %v8355 = vld [vmem:[%s8346 + $0x20] sm:$0xf]
        %v8356 = vld [vmem:[%s8346 + $0x24] sm:$0xf]
        %v8357 = vld [vmem:[%s8346 + $0x28] sm:$0xf]
        %v8358 = vld [vmem:[%s8346 + $0x2c] sm:$0xf]
        %v8359 = vld [vmem:[%s8346 + $0x30] sm:$0xf]
        %v8360 = vld [vmem:[%s8346 + $0x34] sm:$0xf]
        %v8361 = vld [vmem:[%s8346 + $0x38] sm:$0xf]
        %v8362 = vld [vmem:[%s8346 + $0x3c] sm:$0xf]
        %v8363 = vld [vmem:[%s8346 + $0x40] sm:$0xf]
        %v8364 = vld [vmem:[%s8346 + $0x44] sm:$0xf]
        %v8365 = vld [vmem:[%s8346 + $0x48] sm:$0xf]
        %v8366 = vld [vmem:[%s8346 + $0x4c] sm:$0xf]
        %v8367 = vld [vmem:[%s8346 + $0x50] sm:$0xf]
        %v8368 = vld [vmem:[%s8346 + $0x54] sm:$0xf]
        %v8369 = vld [vmem:[%s8346 + $0x58] sm:$0xf]
        %v8370 = vld [vmem:[%s8346 + $0x5c] sm:$0xf]
        %v8371 = vld [vmem:[%s8346 + $0x60] sm:$0xf]
        %v8372 = vld [vmem:[%s8346 + $0x64] sm:$0xf]
        %v8373 = vld [vmem:[%s8346 + $0x68] sm:$0xf]
        %v8374 = vld [vmem:[%s8346 + $0x6c] sm:$0xf]
        %v8375 = vld [vmem:[%s8346 + $0x70] sm:$0xf]
        %v8376 = vld [vmem:[%s8346 + $0x74] sm:$0xf]
        %v8377 = vld [vmem:[%s8346 + $0x78] sm:$0xf]
        %v8378 = vld [vmem:[%s8346 + $0x7c] sm:$0xf]
        %v8411 = vunpack.c.l.b16 %v8347
        %v8412 = vunpack.c.l.b16 %v8348
        %v8413 = vunpack.c.l.b16 %v8349
        %v8414 = vunpack.c.l.b16 %v8350
        %v8415 = vunpack.c.l.b16 %v8351
        %v8416 = vunpack.c.l.b16 %v8352
        %v8417 = vunpack.c.l.b16 %v8353
        %v8418 = vunpack.c.l.b16 %v8354
        %v8419 = vunpack.c.l.b16 %v8355
        %v8420 = vunpack.c.l.b16 %v8356
        %v8421 = vunpack.c.l.b16 %v8357
        %v8422 = vunpack.c.l.b16 %v8358
        %v8423 = vunpack.c.l.b16 %v8359
        %v8424 = vunpack.c.l.b16 %v8360
        %v8425 = vunpack.c.l.b16 %v8361
        %v8426 = vunpack.c.l.b16 %v8362
        %v8427 = vunpack.c.l.b16 %v8363
        %v8428 = vunpack.c.l.b16 %v8364
        %v8429 = vunpack.c.l.b16 %v8365
        %v8430 = vunpack.c.l.b16 %v8366
        %v8431 = vunpack.c.l.b16 %v8367
        %v8432 = vunpack.c.l.b16 %v8368
        %v8433 = vunpack.c.l.b16 %v8369
        %v8434 = vunpack.c.l.b16 %v8370
        %v8435 = vunpack.c.l.b16 %v8371
        %v8436 = vunpack.c.l.b16 %v8372
        %v8437 = vunpack.c.l.b16 %v8373
        %v8438 = vunpack.c.l.b16 %v8374
        %v8439 = vunpack.c.l.b16 %v8375
        %v8440 = vunpack.c.l.b16 %v8376
        %v8441 = vunpack.c.l.b16 %v8377
        %v8442 = vunpack.c.l.b16 %v8378
        %v8443 = vpack.c.b16 %v8412, %v8411
        %v8444 = vpack.c.b16 %v8414, %v8413
        %v8445 = vpack.c.b16 %v8416, %v8415
        %v8446 = vpack.c.b16 %v8418, %v8417
        %v8447 = vpack.c.b16 %v8420, %v8419
        %v8448 = vpack.c.b16 %v8422, %v8421
        %v8449 = vpack.c.b16 %v8424, %v8423
        %v8450 = vpack.c.b16 %v8426, %v8425
        %v8451 = vpack.c.b16 %v8428, %v8427
        %v8452 = vpack.c.b16 %v8430, %v8429
        %v8453 = vpack.c.b16 %v8432, %v8431
        %v8454 = vpack.c.b16 %v8434, %v8433
        %v8455 = vpack.c.b16 %v8436, %v8435
        %v8456 = vpack.c.b16 %v8438, %v8437
        %v8457 = vpack.c.b16 %v8440, %v8439
        %v8458 = vpack.c.b16 %v8442, %v8441
        %8475 = vmatprep.subr.bf16.mxu0 0
        %8476 = vmatpush1.bf16.msra.mxu0 %v8443
        %8477 = vmatprep.subr.bf16.mxu0 0
        %8478 = vmatpush1.bf16.msra.mxu0 %v8444
        %8479 = vmatprep.subr.bf16.mxu0 0
        %8480 = vmatpush1.bf16.msra.mxu0 %v8445
        %8481 = vmatprep.subr.bf16.mxu0 0
        %8482 = vmatpush1.bf16.msra.mxu0 %v8446
        %8483 = vmatprep.subr.bf16.mxu0 0
        %8484 = vmatpush1.bf16.msra.mxu0 %v8447
        %8485 = vmatprep.subr.bf16.mxu0 0
        %8486 = vmatpush1.bf16.msra.mxu0 %v8448
        %8487 = vmatprep.subr.bf16.mxu0 0
        %8488 = vmatpush1.bf16.msra.mxu0 %v8449
        %8489 = vmatprep.subr.bf16.mxu0 0
        %8490 = vmatpush1.bf16.msra.mxu0 %v8450
        %8491 = vmatprep.subr.bf16.mxu0 0
        %8492 = vmatpush1.bf16.msra.mxu0 %v8451
        %8493 = vmatprep.subr.bf16.mxu0 0
        %8494 = vmatpush1.bf16.msra.mxu0 %v8452
        %8495 = vmatprep.subr.bf16.mxu0 0
        %8496 = vmatpush1.bf16.msra.mxu0 %v8453
        %8497 = vmatprep.subr.bf16.mxu0 0
        %8498 = vmatpush1.bf16.msra.mxu0 %v8454
        %8499 = vmatprep.subr.bf16.mxu0 0
        %8500 = vmatpush1.bf16.msra.mxu0 %v8455
        %8501 = vmatprep.subr.bf16.mxu0 0
        %8502 = vmatpush1.bf16.msra.mxu0 %v8456
        %8503 = vmatprep.subr.bf16.mxu0 0
        %8504 = vmatpush1.bf16.msra.mxu0 %v8457
        %8505 = vmatprep.subr.bf16.mxu0 0
        %8506 = vmatpush1.bf16.msra.mxu0 %v8458
        %8507 = vmatprep.mubr.bf16.mxu0 %v8331
        %8508 = vmatmul.mubr.bf16.gmra.mrb[0].mxu0 %v8330
        %v8509 = vpop.f32.mrb[0].mxu0
        %v8510 = vadd.f32 0.0, %v8509
        %v8511 = vpop.f32.mrb[0].mxu0
        %v8512 = vpop.f32.mrb[0].mxu0
        %v8513 = vadd.f32 0.0, %v8512
        %v8514 = vpop.f32.mrb[0].mxu0
        %8515 = vmatprep.mubr.bf16.mxu0 %v8333
        %8516 = vmatmul.mubr.bf16.gmra.mrb[0].mxu0 %v8332
        %v8517 = vpop.f32.mrb[0].mxu0
        %v8518 = vadd.f32 0.0, %v8517
        %v8519 = vpop.f32.mrb[0].mxu0
        %v8520 = vpop.f32.mrb[0].mxu0
        %v8521 = vadd.f32 0.0, %v8520
        %v8522 = vpop.f32.mrb[0].mxu0
        %8523 = vmatprep.mubr.bf16.mxu0 %v8335
        %8524 = vmatmul.mubr.bf16.gmra.mrb[0].mxu0 %v8334
        %v8525 = vpop.f32.mrb[0].mxu0
        %v8526 = vadd.f32 0.0, %v8525
        %v8527 = vpop.f32.mrb[0].mxu0
        %v8528 = vpop.f32.mrb[0].mxu0
        %v8529 = vadd.f32 0.0, %v8528
        %v8530 = vpop.f32.mrb[0].mxu0
        %8531 = vmatprep.mubr.bf16.mxu0 %v8337
        %8532 = vmatmul.mubr.bf16.gmra.mrb[0].mxu0 %v8336
        %v8533 = vpop.f32.mrb[0].mxu0
        %v8534 = vadd.f32 0.0, %v8533
        %v8535 = vpop.f32.mrb[0].mxu0
        %v8536 = vpop.f32.mrb[0].mxu0
        %v8537 = vadd.f32 0.0, %v8536
        %v8538 = vpop.f32.mrb[0].mxu0
        %8539 = vmatprep.mubr.bf16.mxu0 %v8339
        %8540 = vmatmul.mubr.bf16.gmra.mrb[0].mxu0 %v8338
        %v8541 = vpop.f32.mrb[0].mxu0
        %v8542 = vadd.f32 0.0, %v8541
        %v8543 = vpop.f32.mrb[0].mxu0
        %v8544 = vpop.f32.mrb[0].mxu0
        %v8545 = vadd.f32 0.0, %v8544
        %v8546 = vpop.f32.mrb[0].mxu0
        %8547 = vmatprep.mubr.bf16.mxu0 %v8341
        %8548 = vmatmul.mubr.bf16.gmra.mrb[0].mxu0 %v8340
        %v8549 = vpop.f32.mrb[0].mxu0
        %v8550 = vadd.f32 0.0, %v8549
        %v8551 = vpop.f32.mrb[0].mxu0
        %v8552 = vpop.f32.mrb[0].mxu0
        %v8553 = vadd.f32 0.0, %v8552
        %v8554 = vpop.f32.mrb[0].mxu0
        %8555 = vmatprep.mubr.bf16.mxu0 %v8343
        %8556 = vmatmul.mubr.bf16.gmra.mrb[0].mxu0 %v8342
        %v8557 = vpop.f32.mrb[0].mxu0
        %v8558 = vadd.f32 0.0, %v8557
        %v8559 = vpop.f32.mrb[0].mxu0
        %v8560 = vpop.f32.mrb[0].mxu0
        %v8561 = vadd.f32 0.0, %v8560
        %v8562 = vpop.f32.mrb[0].mxu0
        %8563 = vmatprep.mubr.bf16.mxu0 %v8345
        %8564 = vmatmul.mubr.bf16.gmra.mrb[0].mxu0 %v8344
        %v8565 = vpop.f32.mrb[0].mxu0
        %v8566 = vadd.f32 0.0, %v8565
        %v8567 = vpop.f32.mrb[0].mxu0
        %v8568 = vpop.f32.mrb[0].mxu0
        %v8569 = vadd.f32 0.0, %v8568
        %v8570 = vpop.f32.mrb[0].mxu0
        %8571 = vdwg.mxu0
        %v8572 = vadd.f32 %v4554, %v8012
        %v8573 = vadd.f32 %v4555, %v8015
        %v8574 = vadd.f32 %v4556, %v8020
        %v8575 = vadd.f32 %v4557, %v8023
        %v8576 = vadd.f32 %v4558, %v8028
        %v8577 = vadd.f32 %v4559, %v8031
        %v8578 = vadd.f32 %v4560, %v8036
        %v8579 = vadd.f32 %v4561, %v8039
        %v8580 = vadd.f32 %v4562, %v8044
        %v8581 = vadd.f32 %v4563, %v8047
        %v8582 = vadd.f32 %v4564, %v8052
        %v8583 = vadd.f32 %v4565, %v8055
        %v8584 = vadd.f32 %v4566, %v8060
        %v8585 = vadd.f32 %v4567, %v8063
        %v8586 = vadd.f32 %v4568, %v8068
        %v8587 = vadd.f32 %v4569, %v8071
        %v8588 = vadd.f32 %v8572, %v8510
        %v8589 = vadd.f32 %v8573, %v8513
        %v8590 = vadd.f32 %v8574, %v8518
        %v8591 = vadd.f32 %v8575, %v8521
        %v8592 = vadd.f32 %v8576, %v8526
        %v8593 = vadd.f32 %v8577, %v8529
        %v8594 = vadd.f32 %v8578, %v8534
        %v8595 = vadd.f32 %v8579, %v8537
        %v8596 = vadd.f32 %v8580, %v8542
        %v8597 = vadd.f32 %v8581, %v8545
        %v8598 = vadd.f32 %v8582, %v8550
        %v8599 = vadd.f32 %v8583, %v8553
        %v8600 = vadd.f32 %v8584, %v8558
        %v8601 = vadd.f32 %v8585, %v8561
        %v8602 = vadd.f32 %v8586, %v8566
        %v8603 = vadd.f32 %v8587, %v8569
        %8604 = vst [vmem:[#allocation2] sm:$0xff] %v8588
        %8605 = vst [vmem:[#allocation2 + $0x8] sm:$0xff] %v8589
        %8606 = vst [vmem:[#allocation2 + $0x10] sm:$0xff] %v8590
        %8607 = vst [vmem:[#allocation2 + $0x18] sm:$0xff] %v8591
        %8608 = vst [vmem:[#allocation2 + $0x20] sm:$0xff] %v8592
        %8609 = vst [vmem:[#allocation2 + $0x28] sm:$0xff] %v8593
        %8610 = vst [vmem:[#allocation2 + $0x30] sm:$0xff] %v8594
        %8611 = vst [vmem:[#allocation2 + $0x38] sm:$0xff] %v8595
        %8612 = vst [vmem:[#allocation2 + $0x40] sm:$0xff] %v8596
        %8613 = vst [vmem:[#allocation2 + $0x48] sm:$0xff] %v8597
        %8614 = vst [vmem:[#allocation2 + $0x50] sm:$0xff] %v8598
        %8615 = vst [vmem:[#allocation2 + $0x58] sm:$0xff] %v8599
        %8616 = vst [vmem:[#allocation2 + $0x60] sm:$0xff] %v8600
        %8617 = vst [vmem:[#allocation2 + $0x68] sm:$0xff] %v8601
        %8618 = vst [vmem:[#allocation2 + $0x70] sm:$0xff] %v8602
        %8619 = vst [vmem:[#allocation2 + $0x78] sm:$0xff] %v8603
        %p8620 = scmp.eq.s32.totalorder %s26, 1
        // Predicated region
        $region65: #{cohere_model.1} parent=51 // pred_check
          %p8621 = pneg %p8620
        $region66: #{cohere_model.1} parent=51 // pred_check_branch
          %8623 = sbr.rel (%p8621) target = $region68
        $region67: #{cohere_model.1} parent=51 // pred_region
          %8624 = vadd.xlane.f32.xlu0 %v8588
          %v8625 = vpop.xlane.xlu0 %8624
          %8626 = vadd.xlane.f32.xlu0 %v8589
          %v8627 = vpop.xlane.xlu0 %8626
          %8628 = vadd.xlane.f32.xlu0 %v8590
          %v8629 = vpop.xlane.xlu0 %8628
          %8630 = vadd.xlane.f32.xlu0 %v8591
          %v8631 = vpop.xlane.xlu0 %8630
          %8632 = vadd.xlane.f32.xlu0 %v8592
          %v8633 = vpop.xlane.xlu0 %8632
          %8634 = vadd.xlane.f32.xlu0 %v8593
          %v8635 = vpop.xlane.xlu0 %8634
          %8636 = vadd.xlane.f32.xlu0 %v8594
          %v8637 = vpop.xlane.xlu0 %8636
          %8638 = vadd.xlane.f32.xlu0 %v8595
          %v8639 = vpop.xlane.xlu0 %8638
          %8640 = vadd.xlane.f32.xlu0 %v8596
          %v8641 = vpop.xlane.xlu0 %8640
          %8642 = vadd.xlane.f32.xlu0 %v8597
          %v8643 = vpop.xlane.xlu0 %8642
          %8644 = vadd.xlane.f32.xlu0 %v8598
          %v8645 = vpop.xlane.xlu0 %8644
          %8646 = vadd.xlane.f32.xlu0 %v8599
          %v8647 = vpop.xlane.xlu0 %8646
          %8648 = vadd.xlane.f32.xlu0 %v8600
          %v8649 = vpop.xlane.xlu0 %8648
          %8650 = vadd.xlane.f32.xlu0 %v8601
          %v8651 = vpop.xlane.xlu0 %8650
          %8652 = vadd.xlane.f32.xlu0 %v8602
          %v8653 = vpop.xlane.xlu0 %8652
          %8654 = vadd.xlane.f32.xlu0 %v8603
          %v8655 = vpop.xlane.xlu0 %8654
          %v8656 = vmul.f32 %v8625, %v568
          %v8657 = vmul.f32 %v8627, %v568
          %v8658 = vmul.f32 %v8629, %v568
          %v8659 = vmul.f32 %v8631, %v568
          %v8660 = vmul.f32 %v8633, %v568
          %v8661 = vmul.f32 %v8635, %v568
          %v8662 = vmul.f32 %v8637, %v568
          %v8663 = vmul.f32 %v8639, %v568
          %v8664 = vmul.f32 %v8641, %v568
          %v8665 = vmul.f32 %v8643, %v568
          %v8666 = vmul.f32 %v8645, %v568
          %v8667 = vmul.f32 %v8647, %v568
          %v8668 = vmul.f32 %v8649, %v568
          %v8669 = vmul.f32 %v8651, %v568
          %v8670 = vmul.f32 %v8653, %v568
          %v8671 = vmul.f32 %v8655, %v568
          %v8672 = vsub.f32 %v8588, %v8656
          %v8673 = vsub.f32 %v8589, %v8657
          %v8674 = vsub.f32 %v8590, %v8658
          %v8675 = vsub.f32 %v8591, %v8659
          %v8676 = vsub.f32 %v8592, %v8660
          %v8677 = vsub.f32 %v8593, %v8661
          %v8678 = vsub.f32 %v8594, %v8662
          %v8679 = vsub.f32 %v8595, %v8663
          %v8680 = vsub.f32 %v8596, %v8664
          %v8681 = vsub.f32 %v8597, %v8665
          %v8682 = vsub.f32 %v8598, %v8666
          %v8683 = vsub.f32 %v8599, %v8667
          %v8684 = vsub.f32 %v8600, %v8668
          %v8685 = vsub.f32 %v8601, %v8669
          %v8686 = vsub.f32 %v8602, %v8670
          %v8687 = vsub.f32 %v8603, %v8671
          %v8688 = vmul.f32 %v8672, %v8672
          %v8689 = vmul.f32 %v8673, %v8673
          %v8690 = vmul.f32 %v8674, %v8674
          %v8691 = vmul.f32 %v8675, %v8675
          %v8692 = vmul.f32 %v8676, %v8676
          %v8693 = vmul.f32 %v8677, %v8677
          %v8694 = vmul.f32 %v8678, %v8678
          %v8695 = vmul.f32 %v8679, %v8679
          %v8696 = vmul.f32 %v8680, %v8680
          %v8697 = vmul.f32 %v8681, %v8681
          %v8698 = vmul.f32 %v8682, %v8682
          %v8699 = vmul.f32 %v8683, %v8683
          %v8700 = vmul.f32 %v8684, %v8684
          %v8701 = vmul.f32 %v8685, %v8685
          %v8702 = vmul.f32 %v8686, %v8686
          %v8703 = vmul.f32 %v8687, %v8687
          %8704 = vadd.xlane.f32.xlu0 %v8688
          %v8705 = vpop.xlane.xlu0 %8704
          %8706 = vadd.xlane.f32.xlu0 %v8689
          %v8707 = vpop.xlane.xlu0 %8706
          %8708 = vadd.xlane.f32.xlu0 %v8690
          %v8709 = vpop.xlane.xlu0 %8708
          %8710 = vadd.xlane.f32.xlu0 %v8691
          %v8711 = vpop.xlane.xlu0 %8710
          %8712 = vadd.xlane.f32.xlu0 %v8692
          %v8713 = vpop.xlane.xlu0 %8712
          %8714 = vadd.xlane.f32.xlu0 %v8693
          %v8715 = vpop.xlane.xlu0 %8714
          %8716 = vadd.xlane.f32.xlu0 %v8694
          %v8717 = vpop.xlane.xlu0 %8716
          %8718 = vadd.xlane.f32.xlu0 %v8695
          %v8719 = vpop.xlane.xlu0 %8718
          %8720 = vadd.xlane.f32.xlu0 %v8696
          %v8721 = vpop.xlane.xlu0 %8720
          %8722 = vadd.xlane.f32.xlu0 %v8697
          %v8723 = vpop.xlane.xlu0 %8722
          %8724 = vadd.xlane.f32.xlu0 %v8698
          %v8725 = vpop.xlane.xlu0 %8724
          %8726 = vadd.xlane.f32.xlu0 %v8699
          %v8727 = vpop.xlane.xlu0 %8726
          %8728 = vadd.xlane.f32.xlu0 %v8700
          %v8729 = vpop.xlane.xlu0 %8728
          %8730 = vadd.xlane.f32.xlu0 %v8701
          %v8731 = vpop.xlane.xlu0 %8730
          %8732 = vadd.xlane.f32.xlu0 %v8702
          %v8733 = vpop.xlane.xlu0 %8732
          %8734 = vadd.xlane.f32.xlu0 %v8703
          %v8735 = vpop.xlane.xlu0 %8734
          %v8736 = vmul.f32 %v8705, %v568
          %v8737 = vmul.f32 %v8707, %v568
          %v8738 = vmul.f32 %v8709, %v568
          %v8739 = vmul.f32 %v8711, %v568
          %v8740 = vmul.f32 %v8713, %v568
          %v8741 = vmul.f32 %v8715, %v568
          %v8742 = vmul.f32 %v8717, %v568
          %v8743 = vmul.f32 %v8719, %v568
          %v8744 = vmul.f32 %v8721, %v568
          %v8745 = vmul.f32 %v8723, %v568
          %v8746 = vmul.f32 %v8725, %v568
          %v8747 = vmul.f32 %v8727, %v568
          %v8748 = vmul.f32 %v8729, %v568
          %v8749 = vmul.f32 %v8731, %v568
          %v8750 = vmul.f32 %v8733, %v568
          %v8751 = vmul.f32 %v8735, %v568
          %v8752 = vadd.f32 %v8736, 1e-05
          %v8753 = vadd.f32 %v8737, 1e-05
          %v8754 = vadd.f32 %v8738, 1e-05
          %v8755 = vadd.f32 %v8739, 1e-05
          %v8756 = vadd.f32 %v8740, 1e-05
          %v8757 = vadd.f32 %v8741, 1e-05
          %v8758 = vadd.f32 %v8742, 1e-05
          %v8759 = vadd.f32 %v8743, 1e-05
          %v8760 = vadd.f32 %v8744, 1e-05
          %v8761 = vadd.f32 %v8745, 1e-05
          %v8762 = vadd.f32 %v8746, 1e-05
          %v8763 = vadd.f32 %v8747, 1e-05
          %v8764 = vadd.f32 %v8748, 1e-05
          %v8765 = vadd.f32 %v8749, 1e-05
          %v8766 = vadd.f32 %v8750, 1e-05
          %v8767 = vadd.f32 %v8751, 1e-05
          %v8768 = vrsqrt.pop %v8752
          %v8769 = vrsqrt.pop %v8753
          %v8770 = vrsqrt.pop %v8754
          %v8771 = vrsqrt.pop %v8755
          %v8772 = vrsqrt.pop %v8756
          %v8773 = vrsqrt.pop %v8757
          %v8774 = vrsqrt.pop %v8758
          %v8775 = vrsqrt.pop %v8759
          %v8776 = vrsqrt.pop %v8760
          %v8777 = vrsqrt.pop %v8761
          %v8778 = vrsqrt.pop %v8762
          %v8779 = vrsqrt.pop %v8763
          %v8780 = vrsqrt.pop %v8764
          %v8781 = vrsqrt.pop %v8765
          %v8782 = vrsqrt.pop %v8766
          %v8783 = vrsqrt.pop %v8767
          %v8784 = vmul.f32 %v8672, %v8768
          %v8785 = vmul.f32 %v8673, %v8769
          %v8786 = vmul.f32 %v8674, %v8770
          %v8787 = vmul.f32 %v8675, %v8771
          %v8788 = vmul.f32 %v8676, %v8772
          %v8789 = vmul.f32 %v8677, %v8773
          %v8790 = vmul.f32 %v8678, %v8774
          %v8791 = vmul.f32 %v8679, %v8775
          %v8792 = vmul.f32 %v8680, %v8776
          %v8793 = vmul.f32 %v8681, %v8777
          %v8794 = vmul.f32 %v8682, %v8778
          %v8795 = vmul.f32 %v8683, %v8779
          %v8796 = vmul.f32 %v8684, %v8780
          %v8797 = vmul.f32 %v8685, %v8781
          %v8798 = vmul.f32 %v8686, %v8782
          %v8799 = vmul.f32 %v8687, %v8783
          %v8800 = vld [vmem:[%s3] sm:$0x1]
          %v8802 = vlaneseq
          %v8803 = vshrl.u32 %v8802, 7
          %v8804 = vsub.s32 0, %v8803
          %v8805 = vrot.slane %v8800, %v8804
          %v8807 = vmul.f32 %v8784, %v8805
          %v8808 = vmul.f32 %v8785, %v8805
          %v8809 = vmul.f32 %v8786, %v8805
          %v8810 = vmul.f32 %v8787, %v8805
          %v8811 = vmul.f32 %v8788, %v8805
          %v8812 = vmul.f32 %v8789, %v8805
          %v8813 = vmul.f32 %v8790, %v8805
          %v8814 = vmul.f32 %v8791, %v8805
          %v8815 = vmul.f32 %v8792, %v8805
          %v8816 = vmul.f32 %v8793, %v8805
          %v8817 = vmul.f32 %v8794, %v8805
          %v8818 = vmul.f32 %v8795, %v8805
          %v8819 = vmul.f32 %v8796, %v8805
          %v8820 = vmul.f32 %v8797, %v8805
          %v8821 = vmul.f32 %v8798, %v8805
          %v8822 = vmul.f32 %v8799, %v8805
          %8823 = vst [vmem:[#allocation8] sm:$0xff] %v8807
          %8824 = vst [vmem:[#allocation8 + $0x8] sm:$0xff] %v8808
          %8825 = vst [vmem:[#allocation8 + $0x10] sm:$0xff] %v8809
          %8826 = vst [vmem:[#allocation8 + $0x18] sm:$0xff] %v8810
          %8827 = vst [vmem:[#allocation8 + $0x20] sm:$0xff] %v8811
          %8828 = vst [vmem:[#allocation8 + $0x28] sm:$0xff] %v8812
          %8829 = vst [vmem:[#allocation8 + $0x30] sm:$0xff] %v8813
          %8830 = vst [vmem:[#allocation8 + $0x38] sm:$0xff] %v8814
          %8831 = vst [vmem:[#allocation8 + $0x40] sm:$0xff] %v8815
          %8832 = vst [vmem:[#allocation8 + $0x48] sm:$0xff] %v8816
          %8833 = vst [vmem:[#allocation8 + $0x50] sm:$0xff] %v8817
          %8834 = vst [vmem:[#allocation8 + $0x58] sm:$0xff] %v8818
          %8835 = vst [vmem:[#allocation8 + $0x60] sm:$0xff] %v8819
          %8836 = vst [vmem:[#allocation8 + $0x68] sm:$0xff] %v8820
          %8837 = vst [vmem:[#allocation8 + $0x70] sm:$0xff] %v8821
          %8838 = vst [vmem:[#allocation8 + $0x78] sm:$0xff] %v8822
        $region68: #{cohere_model.1} parent=51 // pred_fallthru
          _
        // Predicated region
        $region69: #{cohere_model.1} parent=51 // pred_check
          %p8839 = pneg %p227
        $region70: #{cohere_model.1} parent=51 // pred_check_branch
          %8841 = sbr.rel (%p8839) target = $region72
        $region71: #{cohere_model.1} parent=51 // pred_region
          %s8843 = ssub.s32 2048, 2048
          %8844 = vsyncadd [#allocation5], %s8843
          %s8845 = sshll.u32 [#allocation8], 4
          %s8846 = int_to_ptr.vmem [resolvable:$true] %s8845
          %8851 = dma.vmem_to_hbm [thread:$0]  %s8846, 2048, %s8, [#allocation5], 128, 128, 8
        $region72: #{cohere_model.1} parent=51 // pred_fallthru
          _
        // Predicated region
        $region73: #{cohere_model.1} parent=51 // pred_check
          %p8852 = pneg %p227
        $region74: #{cohere_model.1} parent=51 // pred_check_branch
          %8854 = sbr.rel (%p8852) target = $region76
        $region75: #{cohere_model.1} parent=51 // pred_region
          %8855 = dma.done [#allocation5], 2048
        $region76: #{cohere_model.1} parent=51 // pred_fallthru
          _
      $region52: #{cohere_model.1} parent=5 // pred_fallthru
        _
      %p8856 = scmp.le.s32.totalorder 2, %s21
      // Predicated region
      $region77: #{cohere_model.1} parent=5 // pred_check
        %p8857 = pneg %p8856
      $region78: #{cohere_model.1} parent=5 // pred_check_branch
        %8859 = sbr.rel (%p8857) target = $region80
      $region79: #{cohere_model.1} parent=5 // pred_region
        %s8860 = ssub.s32 %s21, 2
      $region80: #{cohere_model.1} parent=5 // pred_fallthru
        _
    $region6: #{cohere_model.1} parent=1 // loop_footer
      %s25 = sadd.s32 1, %s21
    $region7: #{cohere_model.1} parent=1 // loop_footer_branch
      %20 = sbr.rel target = $region3
    $region8: #{cohere_model.1} parent=1 // loop_exit
      _
    %8861 = vsyncpa [#allocation4], 1
    %s8862 = scalar_lea.sflag [#allocation4], 1
    %8863 = vsyncpa %s8862, 1
    %8864 = vsyncpa [#allocation7], 1
    %s8865 = scalar_lea.sflag [#allocation7], 1
    %8866 = vsyncpa %s8865, 1
    %8867 = vsyncpa [#allocation5], 1
    %s8868 = scalar_lea.sflag [#allocation5], 1
    %8869 = vsyncpa %s8868, 1

</llo_original>
